<compile_context>
chip_gen: v5e
topology: v5e:2x2
jax: 0.10.0
libtpu: 0.0.40
codegen_flags: <defaults>
</compile_context>

<pallas_src>
import functools

import numpy as np
import jax
import jax.numpy as jnp
from jax.experimental import pallas as pl
from jax.experimental.pallas import tpu as pltpu

LIM_DOWN, LIM_UP = -10.0, 10.0
_VMEM_LIMIT = 32 * 1024 * 1024  # explicit scoped-VMEM cap; actual footprint is a few MB


def _round_up(x, m):
    return ((x + m - 1) // m) * m


# ----------------------------------------------------------------------------
# Pallas kernels
# ----------------------------------------------------------------------------
def _matmul_bias_relu_kernel(x_ref, w_ref, b_ref, o_ref):
    """o = relu(x @ w + b); x:[TM,K] bf16, w:[K,N] bf16, b:[1,N] f32, o:[TM,N] bf16."""
    acc = jnp.dot(x_ref[...], w_ref[...], preferred_element_type=jnp.float32)
    acc = jnp.maximum(acc + b_ref[...], 0.0)
    o_ref[...] = acc.astype(o_ref.dtype)


def matmul_bias_relu(x, w, b, *, max_tile_m=512):
    """Fused relu(x @ w + b), M-gridded, weights resident (constant index map)."""
    M, K = x.shape
    K2, N = w.shape
    assert K == K2, (K, K2)
    tile_m = M if M <= max_tile_m else max_tile_m
    grid = (pl.cdiv(M, tile_m),)
    cost = pl.CostEstimate(
        flops=2 * M * K * N,
        transcendentals=0,
        bytes_accessed=(M * K + K * N + M * N) * 2 + N * 4,
    )
    return pl.pallas_call(
        _matmul_bias_relu_kernel,
        out_shape=jax.ShapeDtypeStruct((M, N), jnp.bfloat16),
        grid=grid,
        in_specs=[
            pl.BlockSpec((tile_m, K), lambda i: (i, 0)),
            pl.BlockSpec((K, N), lambda i: (0, 0)),
            pl.BlockSpec((1, N), lambda i: (0, 0)),
        ],
        out_specs=pl.BlockSpec((tile_m, N), lambda i: (i, 0)),
        compiler_params=pltpu.CompilerParams(
            dimension_semantics=("parallel",),
            vmem_limit_bytes=_VMEM_LIMIT,
        ),
        cost_estimate=cost,
    )(x, w, b.reshape(1, N))


def _head_kernel(x_ref, w0_ref, b0_ref, w1_ref, b1_ref, w2_ref, b2_ref, o_ref,
                 *, lim_down, lim_up):
    """o = clamp(relu(relu(x@w0+b0)@w1+b1) . w2 + b2, lim_down, lim_up)."""
    h = jnp.dot(x_ref[...], w0_ref[...], preferred_element_type=jnp.float32)
    h = jnp.maximum(h + b0_ref[...], 0.0)                       # [TM, 512] f32
    h = jnp.dot(h.astype(jnp.bfloat16), w1_ref[...],
                preferred_element_type=jnp.float32)
    h = jnp.maximum(h + b1_ref[...], 0.0)                       # [TM, 128] f32
    # predictor (128 -> 1): VPU multiply + lane reduction instead of an N=1 MXU dot
    y = jnp.sum(h * w2_ref[...], axis=-1, keepdims=True) + b2_ref[...]
    o_ref[...] = jnp.clip(y, lim_down, lim_up).astype(o_ref.dtype)


def mlp_head(feat, w0, b0, w1, b1, w2_row, b2, *, tile_m,
             lim_down=LIM_DOWN, lim_up=LIM_UP):
    """Fused fc_cnn -> ReLU -> fc1 -> ReLU -> predictor -> clamp in one pallas_call."""
    M, K = feat.shape
    K0, H0 = w0.shape
    H0b, H1 = w1.shape
    assert K == K0 and H0 == H0b and M % tile_m == 0
    grid = (M // tile_m,)
    kernel = functools.partial(_head_kernel, lim_down=lim_down, lim_up=lim_up)
    cost = pl.CostEstimate(
        flops=2 * M * (K * H0 + H0 * H1 + H1),
        transcendentals=0,
        bytes_accessed=(M * K + K * H0 + H0 * H1) * 2 + (H0 + 2 * H1 + 1 + M) * 4,
    )
    return pl.pallas_call(
        kernel,
        out_shape=jax.ShapeDtypeStruct((M, 1), jnp.float32),
        grid=grid,
        in_specs=[
            pl.BlockSpec((tile_m, K), lambda i: (i, 0)),
            pl.BlockSpec((K, H0), lambda i: (0, 0)),
            pl.BlockSpec((1, H0), lambda i: (0, 0)),
            pl.BlockSpec((H0, H1), lambda i: (0, 0)),
            pl.BlockSpec((1, H1), lambda i: (0, 0)),
            pl.BlockSpec((1, H1), lambda i: (0, 0)),
            pl.BlockSpec((1, 1), lambda i: (0, 0)),
        ],
        out_specs=pl.BlockSpec((tile_m, 1), lambda i: (i, 0)),
        compiler_params=pltpu.CompilerParams(
            dimension_semantics=("parallel",),
            vmem_limit_bytes=_VMEM_LIMIT,
        ),
        cost_estimate=cost,
    )(feat, w0, b0.reshape(1, H0), w1, b1.reshape(1, H1),
      w2_row.reshape(1, H1), b2.reshape(1, 1))


# ----------------------------------------------------------------------------
# Glue: im2col patch extraction (strided slicing / reshapes only)
# ----------------------------------------------------------------------------
def im2col(x_nhwc, kh, kw, stride):
    """x: [B, H, W, C] -> patches [B*Ho*Wo, kh*kw*C] in (kh, kw, C) order."""
    B, H, W, C = x_nhwc.shape
    Ho = (H - kh) // stride + 1
    Wo = (W - kw) // stride + 1
    cols = []
    for i in range(kh):
        for j in range(kw):
            cols.append(x_nhwc[:, i:i + stride * Ho:stride, j:j + stride * Wo:stride, :])
    p = jnp.stack(cols, axis=3)                       # [B, Ho, Wo, kh*kw, C]
    return p.reshape(B * Ho * Wo, kh * kw * C), Ho, Wo


# ----------------------------------------------------------------------------
# Deterministic parameter init (mirrors layer_init / nn.Linear shapes)
# ----------------------------------------------------------------------------
def orthogonal_init(key, shape, gain):
    rows = shape[0]
    cols = int(np.prod(shape[1:]))
    flat = (rows, cols) if rows >= cols else (cols, rows)
    a = jax.random.normal(key, flat, dtype=jnp.float32)
    q, r = jnp.linalg.qr(a)
    q = q * jnp.sign(jnp.diag(r))
    if rows < cols:
        q = q.T
    return (gain * q).reshape(shape).astype(jnp.float32)


def conv_w_to_mat(w_oihw):
    """PyTorch conv weight [O, C, kh, kw] -> im2col matmul weight [kh*kw*C, O]."""
    O, C, kh, kw = w_oihw.shape
    return jnp.transpose(w_oihw, (2, 3, 1, 0)).reshape(kh * kw * C, O)


def init_params(key):
    """Canonical parameters, f32, PyTorch layout / PyTorch flatten order."""
    ks = jax.random.split(key, 8)
    sqrt2 = float(np.sqrt(2.0))
    p = {}
    # cnn: Conv2d(1,32,8,s=4), Conv2d(32,64,4,s=2), Conv2d(64,64,3,s=1), Linear(3136,512)
    p["w_conv1"] = conv_w_to_mat(orthogonal_init(ks[0], (32, 1, 8, 8), sqrt2))
    p["b_conv1"] = jnp.zeros((32,), jnp.float32)
    p["w_conv2"] = conv_w_to_mat(orthogonal_init(ks[1], (64, 32, 4, 4), sqrt2))
    p["b_conv2"] = jnp.zeros((64,), jnp.float32)
    p["w_conv3"] = conv_w_to_mat(orthogonal_init(ks[2], (64, 64, 3, 3), sqrt2))
    p["b_conv3"] = jnp.zeros((64,), jnp.float32)
    p["w_fc_cnn"] = orthogonal_init(ks[3], (512, 64 * 7 * 7), sqrt2).T   # [3136 (C,H,W), 512]
    p["b_fc_cnn"] = jnp.zeros((512,), jnp.float32)
    # fc1: nn.Linear(512, 128) (default init in torch; deterministic uniform here)
    lim = 1.0 / np.sqrt(512.0)
    p["w_fc1"] = jax.random.uniform(ks[4], (512, 128), jnp.float32, -lim, lim)
    p["b_fc1"] = jax.random.uniform(ks[5], (128,), jnp.float32, -lim, lim)
    # predictor: layer_init(nn.Linear(128, 1), std=0.01)
    p["w_pred"] = orthogonal_init(ks[6], (1, 128), 0.01).T               # [128, 1]
    p["b_pred"] = jnp.zeros((1,), jnp.float32)
    return p


def prepare_kernel_params(p):
    """One-time (init) repacking for the Pallas kernels:
       - conv / big fc weights cast to bf16 (MXU full rate, half the DMA bytes)
       - w_fc_cnn rows permuted from PyTorch (C,H,W) flatten order to (H,W,C) NHWC
         order (kills the activation transpose) and zero-padded K 3136 -> 3200.
    """
    kp = {}
    for name in ("w_conv1", "w_conv2", "w_conv3"):
        kp[name] = p[name].astype(jnp.bfloat16)
    for name in ("b_conv1", "b_conv2", "b_conv3", "b_fc_cnn", "b_fc1", "b_pred"):
        kp[name] = p[name]
    w = p["w_fc_cnn"].reshape(64, 7, 7, 512)                      # (c, h, w, n)
    w = jnp.transpose(w, (1, 2, 0, 3)).reshape(64 * 7 * 7, 512)   # rows in (h, w, c) order
    w = jnp.pad(w, ((0, 64), (0, 0)))                             # K: 3136 -> 3200 (25*128)
    kp["w_fc_cnn"] = w.astype(jnp.bfloat16)
    kp["w_fc1"] = p["w_fc1"].astype(jnp.bfloat16)
    kp["w_pred_row"] = p["w_pred"].reshape(1, 128)                # keep f32 (tiny)
    return kp


# ----------------------------------------------------------------------------
# Forward pass
# ----------------------------------------------------------------------------
def classifier_atari_forward(x_nchw, kp):
    B = x_nchw.shape[0]
    x = jnp.transpose(x_nchw, (0, 2, 3, 1)).astype(jnp.bfloat16)       # NHWC, bf16

    patches, Ho, Wo = im2col(x, 8, 8, 4)                                # 84 -> 20
    x = matmul_bias_relu(patches, kp["w_conv1"], kp["b_conv1"]).reshape(B, Ho, Wo, 32)

    patches, Ho, Wo = im2col(x, 4, 4, 2)                                # 20 -> 9
    x = matmul_bias_relu(patches, kp["w_conv2"], kp["b_conv2"]).reshape(B, Ho, Wo, 64)

    patches, Ho, Wo = im2col(x, 3, 3, 1)                                # 9 -> 7
    x = matmul_bias_relu(patches, kp["w_conv3"], kp["b_conv3"]).reshape(B, Ho, Wo, 64)

    # NHWC flatten feeds the (H,W,C)-permuted w_fc_cnn directly -> no transpose
    feat = x.reshape(B, 64 * 7 * 7)                                     # [B, 3136] bf16

    tile_m = 128 if B >= 128 else _round_up(B, 8)
    m_pad = _round_up(B, tile_m)
    feat = jnp.pad(feat, ((0, m_pad - B), (0, 64)))                     # M->m_pad, K->3200

    # fc_cnn -> ReLU -> fc1 -> ReLU -> predictor -> clamp fused in ONE Pallas kernel
    out = mlp_head(feat, kp["w_fc_cnn"], kp["b_fc_cnn"],
                   kp["w_fc1"], kp["b_fc1"],
                   kp["w_pred_row"], kp["b_pred"], tile_m=tile_m)
    return out[:B]                                                      # [B, 1] f32


# Pure-JAX reference (PyTorch weight layout, CHW flatten + transpose), mirroring the
# kernel's bf16 rounding points so the assertion checks layout/fusion correctness.
def reference_forward(x_nchw, p):
    bf = jnp.bfloat16

    def conv(x, w_mat, b, kh, kw, s, cout):
        B = x.shape[0]
        pt, Ho, Wo = im2col(x.astype(bf), kh, kw, s)
        y = jnp.dot(pt, w_mat.astype(bf), preferred_element_type=jnp.float32)
        y = jnp.maximum(y + b, 0.0)
        return y.astype(bf).reshape(B, Ho, Wo, cout)

    x = jnp.transpose(x_nchw, (0, 2, 3, 1)).astype(jnp.float32)
    x = conv(x, p["w_conv1"], p["b_conv1"], 8, 8, 4, 32)
    x = conv(x, p["w_conv2"], p["b_conv2"], 4, 4, 2, 64)
    x = conv(x, p["w_conv3"], p["b_conv3"], 3, 3, 1, 64)
    feat = jnp.transpose(x, (0, 3, 1, 2)).reshape(x.shape[0], -1)       # (C,H,W) flatten
    h = jnp.dot(feat.astype(bf), p["w_fc_cnn"].astype(bf),
                preferred_element_type=jnp.float32)
    h = jnp.maximum(h + p["b_fc_cnn"], 0.0)
    h = jnp.dot(h.astype(bf), p["w_fc1"].astype(bf),
                preferred_element_type=jnp.float32)
    h = jnp.maximum(h + p["b_fc1"], 0.0)
    y = h @ p["w_pred"] + p["b_pred"]
    return jnp.clip(y, LIM_DOWN, LIM_UP)


if __name__ == "__main__":
    key = jax.random.PRNGKey(0)
    k_x, k_p = jax.random.split(key)

    # Atari observation: batch=2, 1 channel, 84x84 (84 is required by the fixed
    # Linear(64*7*7, 512) inside the module).
    x = jax.random.normal(k_x, (2, 1, 84, 84), dtype=jnp.float32)

    params = init_params(k_p)                  # canonical f32, PyTorch layout
    kparams = prepare_kernel_params(params)    # one-time repack for the kernels

    fwd = jax.jit(classifier_atari_forward)
    out = jax.block_until_ready(fwd(x, kparams))

    ref = jax.block_until_ready(reference_forward(x, params))
    assert out.shape == (2, 1), out.shape
    np.testing.assert_allclose(np.asarray(out), np.asarray(ref), rtol=1e-2, atol=1e-2)

    print("KERNEL_OK")
</pallas_src>

<mosaic_0001>
module attributes {stable_mosaic.version = 11 : i64} {
  func.func @_matmul_bias_relu_kernel(%arg0: i32, %arg1: memref<512x64xbf16, #tpu.memory_space<vmem>>, %arg2: memref<64x32xbf16, #tpu.memory_space<vmem>>, %arg3: memref<1x32xf32, #tpu.memory_space<vmem>>, %arg4: memref<512x32xbf16, #tpu.memory_space<vmem>>) attributes {dimension_semantics = [#tpu.dimension_semantics<parallel>], iteration_bounds = array<i64: 2>, scalar_prefetch = 0 : i64, scratch_operands = 0 : i64, tpu.core_type = #tpu.core_type<tc>, window_params = [{transform_indices = @transform_0, window_bounds = array<i64: 512, 64>}, {pipeline_mode = #tpu.pipeline_mode<synchronous>, transform_indices = @transform_1, window_bounds = array<i64: 64, 32>}, {pipeline_mode = #tpu.pipeline_mode<synchronous>, transform_indices = @transform_2, window_bounds = array<i64: 1, 32>}, {transform_indices = @transform_3, window_bounds = array<i64: 512, 32>}]} {
    %c0 = arith.constant 0 : index
    %c0_0 = arith.constant 0 : index
    %0 = vector.load %arg1[%c0, %c0_0] : memref<512x64xbf16, #tpu.memory_space<vmem>>, vector<512x64xbf16>
    %c0_1 = arith.constant 0 : index
    %c0_2 = arith.constant 0 : index
    %1 = vector.load %arg2[%c0_1, %c0_2] : memref<64x32xbf16, #tpu.memory_space<vmem>>, vector<64x32xbf16>
    %cst = arith.constant dense<0.000000e+00> : vector<512x32xf32>
    %2 = tpu.matmul %0, %1, %cst {dimension_numbers = #tpu.dot_dimension_numbers<[1], [0], [0], [1], [0, 0, 1, 1], [], []>} : vector<512x64xbf16>, vector<64x32xbf16>, vector<512x32xf32> -> vector<512x32xf32>
    %c0_3 = arith.constant 0 : index
    %c0_4 = arith.constant 0 : index
    %3 = vector.load %arg3[%c0_3, %c0_4] : memref<1x32xf32, #tpu.memory_space<vmem>>, vector<1x32xf32>
    %4 = vector.broadcast %3 : vector<1x32xf32> to vector<512x32xf32>
    %5 = arith.addf %2, %4 : vector<512x32xf32>
    %cst_5 = arith.constant 0.000000e+00 : f32
    %6 = vector.broadcast %cst_5 : f32 to vector<512x32xf32>
    %7 = arith.maximumf %5, %6 : vector<512x32xf32>
    %8 = arith.truncf %7 : vector<512x32xf32> to vector<512x32xbf16>
    %c0_6 = arith.constant 0 : index
    %c0_7 = arith.constant 0 : index
    %9 = vector.load %arg4[%c0_6, %c0_7] : memref<512x32xbf16, #tpu.memory_space<vmem>>, vector<512x32xbf16>
    tpu.vector_store %arg4[%c0_6, %c0_7], %8 {strides = array<i32>} : memref<512x32xbf16, #tpu.memory_space<vmem>>, vector<512x32xbf16>,
    return
  }
  func.func @transform_0(%arg0: i32) -> (i32, i32) {
    %c0_i32 = arith.constant 0 : i32
    %c0_i32_0 = arith.constant 0 : i32
    return %arg0, %c0_i32 : i32, i32
  }
  func.func @transform_1(%arg0: i32) -> (i32, i32) {
    %c0_i32 = arith.constant 0 : i32
    %c0_i32_0 = arith.constant 0 : i32
    %c0_i32_1 = arith.constant 0 : i32
    return %c0_i32, %c0_i32_0 : i32, i32
  }
  func.func @transform_2(%arg0: i32) -> (i32, i32) {
    %c0_i32 = arith.constant 0 : i32
    %c0_i32_0 = arith.constant 0 : i32
    %c0_i32_1 = arith.constant 0 : i32
    return %c0_i32, %c0_i32_0 : i32, i32
  }
  func.func @transform_3(%arg0: i32) -> (i32, i32) {
    %c0_i32 = arith.constant 0 : i32
    %c0_i32_0 = arith.constant 0 : i32
    return %arg0, %c0_i32 : i32, i32
  }
}

module attributes {stable_mosaic.version = 11 : i64} {
  func.func @_matmul_bias_relu_kernel(%arg0: i32, %arg1: memref<162x512xbf16, #tpu.memory_space<vmem>>, %arg2: memref<512x64xbf16, #tpu.memory_space<vmem>>, %arg3: memref<1x64xf32, #tpu.memory_space<vmem>>, %arg4: memref<162x64xbf16, #tpu.memory_space<vmem>>) attributes {dimension_semantics = [#tpu.dimension_semantics<parallel>], iteration_bounds = array<i64: 1>, scalar_prefetch = 0 : i64, scratch_operands = 0 : i64, tpu.core_type = #tpu.core_type<tc>, window_params = [{transform_indices = @transform_0, window_bounds = array<i64: 162, 512>}, {pipeline_mode = #tpu.pipeline_mode<synchronous>, transform_indices = @transform_1, window_bounds = array<i64: 512, 64>}, {pipeline_mode = #tpu.pipeline_mode<synchronous>, transform_indices = @transform_2, window_bounds = array<i64: 1, 64>}, {transform_indices = @transform_3, window_bounds = array<i64: 162, 64>}]} {
    %c0 = arith.constant 0 : index
    %c0_0 = arith.constant 0 : index
    %0 = vector.load %arg1[%c0, %c0_0] : memref<162x512xbf16, #tpu.memory_space<vmem>>, vector<162x512xbf16>
    %c0_1 = arith.constant 0 : index
    %c0_2 = arith.constant 0 : index
    %1 = vector.load %arg2[%c0_1, %c0_2] : memref<512x64xbf16, #tpu.memory_space<vmem>>, vector<512x64xbf16>
    %cst = arith.constant dense<0.000000e+00> : vector<162x64xf32>
    %2 = tpu.matmul %0, %1, %cst {dimension_numbers = #tpu.dot_dimension_numbers<[1], [0], [0], [1], [0, 0, 1, 1], [], []>} : vector<162x512xbf16>, vector<512x64xbf16>, vector<162x64xf32> -> vector<162x64xf32>
    %c0_3 = arith.constant 0 : index
    %c0_4 = arith.constant 0 : index
    %3 = vector.load %arg3[%c0_3, %c0_4] : memref<1x64xf32, #tpu.memory_space<vmem>>, vector<1x64xf32>
    %4 = vector.broadcast %3 : vector<1x64xf32> to vector<162x64xf32>
    %5 = arith.addf %2, %4 : vector<162x64xf32>
    %cst_5 = arith.constant 0.000000e+00 : f32
    %6 = vector.broadcast %cst_5 : f32 to vector<162x64xf32>
    %7 = arith.maximumf %5, %6 : vector<162x64xf32>
    %8 = arith.truncf %7 : vector<162x64xf32> to vector<162x64xbf16>
    %c0_6 = arith.constant 0 : index
    %c0_7 = arith.constant 0 : index
    %9 = vector.load %arg4[%c0_6, %c0_7] : memref<162x64xbf16, #tpu.memory_space<vmem>>, vector<162x64xbf16>
    tpu.vector_store %arg4[%c0_6, %c0_7], %8 {strides = array<i32>} : memref<162x64xbf16, #tpu.memory_space<vmem>>, vector<162x64xbf16>,
    return
  }
  func.func @transform_0(%arg0: i32) -> (i32, i32) {
    %c0_i32 = arith.constant 0 : i32
    %c0_i32_0 = arith.constant 0 : i32
    return %arg0, %c0_i32 : i32, i32
  }
  func.func @transform_1(%arg0: i32) -> (i32, i32) {
    %c0_i32 = arith.constant 0 : i32
    %c0_i32_0 = arith.constant 0 : i32
    %c0_i32_1 = arith.constant 0 : i32
    return %c0_i32, %c0_i32_0 : i32, i32
  }
  func.func @transform_2(%arg0: i32) -> (i32, i32) {
    %c0_i32 = arith.constant 0 : i32
    %c0_i32_0 = arith.constant 0 : i32
    %c0_i32_1 = arith.constant 0 : i32
    return %c0_i32, %c0_i32_0 : i32, i32
  }
  func.func @transform_3(%arg0: i32) -> (i32, i32) {
    %c0_i32 = arith.constant 0 : i32
    %c0_i32_0 = arith.constant 0 : i32
    return %arg0, %c0_i32 : i32, i32
  }
}

module attributes {stable_mosaic.version = 11 : i64} {
  func.func @_matmul_bias_relu_kernel(%arg0: i32, %arg1: memref<98x576xbf16, #tpu.memory_space<vmem>>, %arg2: memref<576x64xbf16, #tpu.memory_space<vmem>>, %arg3: memref<1x64xf32, #tpu.memory_space<vmem>>, %arg4: memref<98x64xbf16, #tpu.memory_space<vmem>>) attributes {dimension_semantics = [#tpu.dimension_semantics<parallel>], iteration_bounds = array<i64: 1>, scalar_prefetch = 0 : i64, scratch_operands = 0 : i64, tpu.core_type = #tpu.core_type<tc>, window_params = [{transform_indices = @transform_0, window_bounds = array<i64: 98, 576>}, {pipeline_mode = #tpu.pipeline_mode<synchronous>, transform_indices = @transform_1, window_bounds = array<i64: 576, 64>}, {pipeline_mode = #tpu.pipeline_mode<synchronous>, transform_indices = @transform_2, window_bounds = array<i64: 1, 64>}, {transform_indices = @transform_3, window_bounds = array<i64: 98, 64>}]} {
    %c0 = arith.constant 0 : index
    %c0_0 = arith.constant 0 : index
    %0 = vector.load %arg1[%c0, %c0_0] : memref<98x576xbf16, #tpu.memory_space<vmem>>, vector<98x576xbf16>
    %c0_1 = arith.constant 0 : index
    %c0_2 = arith.constant 0 : index
    %1 = vector.load %arg2[%c0_1, %c0_2] : memref<576x64xbf16, #tpu.memory_space<vmem>>, vector<576x64xbf16>
    %cst = arith.constant dense<0.000000e+00> : vector<98x64xf32>
    %2 = tpu.matmul %0, %1, %cst {dimension_numbers = #tpu.dot_dimension_numbers<[1], [0], [0], [1], [0, 0, 1, 1], [], []>} : vector<98x576xbf16>, vector<576x64xbf16>, vector<98x64xf32> -> vector<98x64xf32>
    %c0_3 = arith.constant 0 : index
    %c0_4 = arith.constant 0 : index
    %3 = vector.load %arg3[%c0_3, %c0_4] : memref<1x64xf32, #tpu.memory_space<vmem>>, vector<1x64xf32>
    %4 = vector.broadcast %3 : vector<1x64xf32> to vector<98x64xf32>
    %5 = arith.addf %2, %4 : vector<98x64xf32>
    %cst_5 = arith.constant 0.000000e+00 : f32
    %6 = vector.broadcast %cst_5 : f32 to vector<98x64xf32>
    %7 = arith.maximumf %5, %6 : vector<98x64xf32>
    %8 = arith.truncf %7 : vector<98x64xf32> to vector<98x64xbf16>
    %c0_6 = arith.constant 0 : index
    %c0_7 = arith.constant 0 : index
    %9 = vector.load %arg4[%c0_6, %c0_7] : memref<98x64xbf16, #tpu.memory_space<vmem>>, vector<98x64xbf16>
    tpu.vector_store %arg4[%c0_6, %c0_7], %8 {strides = array<i32>} : memref<98x64xbf16, #tpu.memory_space<vmem>>, vector<98x64xbf16>,
    return
  }
  func.func @transform_0(%arg0: i32) -> (i32, i32) {
    %c0_i32 = arith.constant 0 : i32
    %c0_i32_0 = arith.constant 0 : i32
    return %arg0, %c0_i32 : i32, i32
  }
  func.func @transform_1(%arg0: i32) -> (i32, i32) {
    %c0_i32 = arith.constant 0 : i32
    %c0_i32_0 = arith.constant 0 : i32
    %c0_i32_1 = arith.constant 0 : i32
    return %c0_i32, %c0_i32_0 : i32, i32
  }
  func.func @transform_2(%arg0: i32) -> (i32, i32) {
    %c0_i32 = arith.constant 0 : i32
    %c0_i32_0 = arith.constant 0 : i32
    %c0_i32_1 = arith.constant 0 : i32
    return %c0_i32, %c0_i32_0 : i32, i32
  }
  func.func @transform_3(%arg0: i32) -> (i32, i32) {
    %c0_i32 = arith.constant 0 : i32
    %c0_i32_0 = arith.constant 0 : i32
    return %arg0, %c0_i32 : i32, i32
  }
}

module attributes {stable_mosaic.version = 11 : i64} {
  func.func @_head_kernel(%arg0: i32, %arg1: memref<8x3200xbf16, #tpu.memory_space<vmem>>, %arg2: memref<3200x512xbf16, #tpu.memory_space<vmem>>, %arg3: memref<1x512xf32, #tpu.memory_space<vmem>>, %arg4: memref<512x128xbf16, #tpu.memory_space<vmem>>, %arg5: memref<1x128xf32, #tpu.memory_space<vmem>>, %arg6: memref<1x128xf32, #tpu.memory_space<vmem>>, %arg7: memref<1x1xf32, #tpu.memory_space<vmem>>, %arg8: memref<8x1xf32, #tpu.memory_space<vmem>>) attributes {dimension_semantics = [#tpu.dimension_semantics<parallel>], iteration_bounds = array<i64: 1>, scalar_prefetch = 0 : i64, scratch_operands = 0 : i64, tpu.core_type = #tpu.core_type<tc>, window_params = [{transform_indices = @transform_0, window_bounds = array<i64: 8, 3200>}, {pipeline_mode = #tpu.pipeline_mode<synchronous>, transform_indices = @transform_1, window_bounds = array<i64: 3200, 512>}, {pipeline_mode = #tpu.pipeline_mode<synchronous>, transform_indices = @transform_2, window_bounds = array<i64: 1, 512>}, {pipeline_mode = #tpu.pipeline_mode<synchronous>, transform_indices = @transform_3, window_bounds = array<i64: 512, 128>}, {pipeline_mode = #tpu.pipeline_mode<synchronous>, transform_indices = @transform_4, window_bounds = array<i64: 1, 128>}, {pipeline_mode = #tpu.pipeline_mode<synchronous>, transform_indices = @transform_5, window_bounds = array<i64: 1, 128>}, {pipeline_mode = #tpu.pipeline_mode<synchronous>, transform_indices = @transform_6, window_bounds = array<i64: 1, 1>}, {transform_indices = @transform_7, window_bounds = array<i64: 8, 1>}]} {
    %c0 = arith.constant 0 : index
    %c0_0 = arith.constant 0 : index
    %0 = vector.load %arg1[%c0, %c0_0] : memref<8x3200xbf16, #tpu.memory_space<vmem>>, vector<8x3200xbf16>
    %c0_1 = arith.constant 0 : index
    %c0_2 = arith.constant 0 : index
    %1 = vector.load %arg2[%c0_1, %c0_2] : memref<3200x512xbf16, #tpu.memory_space<vmem>>, vector<3200x512xbf16>
    %cst = arith.constant dense<0.000000e+00> : vector<8x512xf32>
    %2 = tpu.matmul %0, %1, %cst {dimension_numbers = #tpu.dot_dimension_numbers<[1], [0], [0], [1], [0, 0, 1, 1], [], []>} : vector<8x3200xbf16>, vector<3200x512xbf16>, vector<8x512xf32> -> vector<8x512xf32>
    %c0_3 = arith.constant 0 : index
    %c0_4 = arith.constant 0 : index
    %3 = vector.load %arg3[%c0_3, %c0_4] : memref<1x512xf32, #tpu.memory_space<vmem>>, vector<1x512xf32>
    %4 = vector.broadcast %3 : vector<1x512xf32> to vector<8x512xf32>
    %5 = arith.addf %2, %4 : vector<8x512xf32>
    %cst_5 = arith.constant 0.000000e+00 : f32
    %6 = vector.broadcast %cst_5 : f32 to vector<8x512xf32>
    %7 = arith.maximumf %5, %6 : vector<8x512xf32>
    %8 = arith.truncf %7 : vector<8x512xf32> to vector<8x512xbf16>
    %c0_6 = arith.constant 0 : index
    %c0_7 = arith.constant 0 : index
    %9 = vector.load %arg4[%c0_6, %c0_7] : memref<512x128xbf16, #tpu.memory_space<vmem>>, vector<512x128xbf16>
    %cst_8 = arith.constant dense<0.000000e+00> : vector<8x128xf32>
    %10 = tpu.matmul %8, %9, %cst_8 {dimension_numbers = #tpu.dot_dimension_numbers<[1], [0], [0], [1], [0, 0, 1, 1], [], []>} : vector<8x512xbf16>, vector<512x128xbf16>, vector<8x128xf32> -> vector<8x128xf32>
    %c0_9 = arith.constant 0 : index
    %c0_10 = arith.constant 0 : index
    %11 = vector.load %arg5[%c0_9, %c0_10] : memref<1x128xf32, #tpu.memory_space<vmem>>, vector<1x128xf32>
    %12 = vector.broadcast %11 : vector<1x128xf32> to vector<8x128xf32>
    %13 = arith.addf %10, %12 : vector<8x128xf32>
    %cst_11 = arith.constant 0.000000e+00 : f32
    %14 = vector.broadcast %cst_11 : f32 to vector<8x128xf32>
    %15 = arith.maximumf %13, %14 : vector<8x128xf32>
    %c0_12 = arith.constant 0 : index
    %c0_13 = arith.constant 0 : index
    %16 = vector.load %arg6[%c0_12, %c0_13] : memref<1x128xf32, #tpu.memory_space<vmem>>, vector<1x128xf32>
    %17 = vector.broadcast %16 : vector<1x128xf32> to vector<8x128xf32>
    %18 = arith.mulf %15, %17 : vector<8x128xf32>
    %cst_14 = arith.constant dense<0.000000e+00> : vector<8xf32>
    %19 = vector.multi_reduction <add>, %18, %cst_14 [1] : vector<8x128xf32> to vector<8xf32>
    %20 = vector.shape_cast %19 : vector<8xf32> to vector<8x1xf32>
    %c0_15 = arith.constant 0 : index
    %c0_16 = arith.constant 0 : index
    %21 = vector.load %arg7[%c0_15, %c0_16] : memref<1x1xf32, #tpu.memory_space<vmem>>, vector<1x1xf32>
    %22 = vector.broadcast %21 : vector<1x1xf32> to vector<8x1xf32>
    %23 = arith.addf %20, %22 : vector<8x1xf32>
    %cst_17 = arith.constant -1.000000e+01 : f32
    %cst_18 = arith.constant 1.000000e+01 : f32
    %24 = vector.broadcast %cst_17 : f32 to vector<8x1xf32>
    %25 = arith.maximumf %24, %23 : vector<8x1xf32>
    %26 = vector.broadcast %cst_18 : f32 to vector<8x1xf32>
    %27 = arith.minimumf %26, %25 : vector<8x1xf32>
    %c0_19 = arith.constant 0 : index
    %c0_20 = arith.constant 0 : index
    %28 = vector.load %arg8[%c0_19, %c0_20] : memref<8x1xf32, #tpu.memory_space<vmem>>, vector<8x1xf32>
    tpu.vector_store %arg8[%c0_19, %c0_20], %27 {strides = array<i32>} : memref<8x1xf32, #tpu.memory_space<vmem>>, vector<8x1xf32>,
    return
  }
  func.func @transform_0(%arg0: i32) -> (i32, i32) {
    %c0_i32 = arith.constant 0 : i32
    %c0_i32_0 = arith.constant 0 : i32
    return %arg0, %c0_i32 : i32, i32
  }
  func.func @transform_1(%arg0: i32) -> (i32, i32) {
    %c0_i32 = arith.constant 0 : i32
    %c0_i32_0 = arith.constant 0 : i32
    %c0_i32_1 = arith.constant 0 : i32
    return %c0_i32, %c0_i32_0 : i32, i32
  }
  func.func @transform_2(%arg0: i32) -> (i32, i32) {
    %c0_i32 = arith.constant 0 : i32
    %c0_i32_0 = arith.constant 0 : i32
    %c0_i32_1 = arith.constant 0 : i32
    return %c0_i32, %c0_i32_0 : i32, i32
  }
  func.func @transform_3(%arg0: i32) -> (i32, i32) {
    %c0_i32 = arith.constant 0 : i32
    %c0_i32_0 = arith.constant 0 : i32
    %c0_i32_1 = arith.constant 0 : i32
    return %c0_i32, %c0_i32_0 : i32, i32
  }
  func.func @transform_4(%arg0: i32) -> (i32, i32) {
    %c0_i32 = arith.constant 0 : i32
    %c0_i32_0 = arith.constant 0 : i32
    %c0_i32_1 = arith.constant 0 : i32
    return %c0_i32, %c0_i32_0 : i32, i32
  }
  func.func @transform_5(%arg0: i32) -> (i32, i32) {
    %c0_i32 = arith.constant 0 : i32
    %c0_i32_0 = arith.constant 0 : i32
    %c0_i32_1 = arith.constant 0 : i32
    return %c0_i32, %c0_i32_0 : i32, i32
  }
  func.func @transform_6(%arg0: i32) -> (i32, i32) {
    %c0_i32 = arith.constant 0 : i32
    %c0_i32_0 = arith.constant 0 : i32
    %c0_i32_1 = arith.constant 0 : i32
    return %c0_i32, %c0_i32_0 : i32, i32
  }
  func.func @transform_7(%arg0: i32) -> (i32, i32) {
    %c0_i32 = arith.constant 0 : i32
    %c0_i32_0 = arith.constant 0 : i32
    return %arg0, %c0_i32 : i32, i32
  }
}

</mosaic_0001>

<llo_original>
// kernel: classifier_atari_forward.4
$region0: #{classifier_atari_forward.4}
  #allocation0 [shape = 'u32[]', space=smem, size = 0x4, offset = 0x4, fixed_abs, tag = 'smem constant byte address 0x4 - core index']
  #allocation1 [shape = 'u32[72,128]{1,0:T(1,128)}', space=vmem, size = 0x9000, scoped, tag = 'internal scratch']
  %s0 = inlined_call_operand.vmem [shape: bf16[800,64], index: 0, kind: input, shape index: {}]
  %s1 = inlined_call_operand.vmem [shape: bf16[64,32], index: 1, kind: input, shape index: {}]
  %s2 = inlined_call_operand.vmem [shape: f32[1,32], index: 2, kind: input, shape index: {}]
  %s3 = inlined_call_operand.vmem [shape: bf16[800,32], index: 3, kind: output, shape index: {}]
  %s4 = sld [smem:[#allocation0]]
  $region89: #{classifier_atari_forward.4} parent=0
    _
  %s6 = ssub.s32 1, %s4
  %s7 = scalar_select 0, %s6, %s4
  $region1: #{classifier_atari_forward.4} parent=0
    #allocation2 [shape = 'u8[262144]{0}', space=vmem, size = 0x40000, scoped, tag = 'output window, operand 0']
    loop: start=0, step=1, limit=4
    $region2: #{classifier_atari_forward.4} parent=1 // loop_pre_header
      _
    $region3: #{classifier_atari_forward.4} parent=1 // loop_header
      %s9 = sphi 0, %s13
      %p10 = scmp.ge.s32.totalorder %s9, 4
      %s19 = sphi 0, %s21
      %s22 = sphi 0, %s19
      %s23 = sphi 0, %s22
      %s39 = sphi 0, %s23
      %s43 = sphi 0, %s43
      %s45 = sphi 0, %s43
      %s46 = sphi 0, %s45
      %s60 = sphi 0, %s46
      %s64 = sphi 0, %s64
      %s66 = sphi 0, %s64
      %s67 = sphi 0, %s66
      %s81 = sphi 0, %s67
      %s87 = sphi 0, %s89
      %s90 = sphi 0, %s87
      %s91 = sphi 0, %s90
      %s107 = sphi 0, %s91
    $region4: #{classifier_atari_forward.4} parent=1 // loop_header_branch
      %12 = sbr.rel (%p10) target = $region8
    $region5: #{classifier_atari_forward.4} parent=1 // loop_body
      %s14 = ssub.s32 %s9, 1
      %s15 = ssub.s32 %s9, 2
      %s16 = sadd.s32 %s9, 1
      %s17 = ssub.s32 %s9, %s16
      %p18 = scmp.eq.s32.totalorder %s17, 0
      %s20 = sadd.s32 %s19, 1
      %s21 = scalar_select %p18, %s19, %s20
      %p24 = pneg %p18
      %p25 = scmp.eq.s32.totalorder %s9, 1
      %p26 = por %p24, %p25
      %p27 = scmp.ne.s32.totalorder %s19, %s22
      %p28 = scmp.eq.s32.totalorder %s9, 0
      %p29 = por %p27, %p28
      %p30 = scmp.ne.s32.totalorder %s19, %s22
      %p31 = scmp.eq.s32.totalorder %s14, 1
      %p32 = por %p30, %p31
      %p33 = scmp.ne.s32.totalorder %s22, %s23
      %p34 = scmp.eq.s32.totalorder %s14, 0
      %p35 = por %p33, %p34
      %p36 = scmp.ne.s32.totalorder %s22, %s23
      %p37 = scmp.eq.s32.totalorder %s15, 1
      %p38 = por %p36, %p37
      %p40 = scmp.ne.s32.totalorder %s23, %s39
      %p41 = scmp.eq.s32.totalorder %s15, 0
      %p42 = por %p40, %p41
      %s44 = sadd.s32 %s43, 1
      %p47 = scmp.eq.s32.totalorder %s9, 1
      %p48 = scmp.ne.s32.totalorder %s43, %s45
      %p49 = scmp.eq.s32.totalorder %s9, 0
      %p50 = por %p48, %p49
      %p51 = scmp.ne.s32.totalorder %s43, %s45
      %p52 = scmp.eq.s32.totalorder %s14, 1
      %p53 = por %p51, %p52
      %p54 = scmp.ne.s32.totalorder %s45, %s46
      %p55 = scmp.eq.s32.totalorder %s14, 0
      %p56 = por %p54, %p55
      %p57 = scmp.ne.s32.totalorder %s45, %s46
      %p58 = scmp.eq.s32.totalorder %s15, 1
      %p59 = por %p57, %p58
      %p61 = scmp.ne.s32.totalorder %s46, %s60
      %p62 = scmp.eq.s32.totalorder %s15, 0
      %p63 = por %p61, %p62
      %s65 = sadd.s32 %s64, 1
      %p68 = scmp.eq.s32.totalorder %s9, 1
      %p69 = scmp.ne.s32.totalorder %s64, %s66
      %p70 = scmp.eq.s32.totalorder %s9, 0
      %p71 = por %p69, %p70
      %p72 = scmp.ne.s32.totalorder %s64, %s66
      %p73 = scmp.eq.s32.totalorder %s14, 1
      %p74 = por %p72, %p73
      %p75 = scmp.ne.s32.totalorder %s66, %s67
      %p76 = scmp.eq.s32.totalorder %s14, 0
      %p77 = por %p75, %p76
      %p78 = scmp.ne.s32.totalorder %s66, %s67
      %p79 = scmp.eq.s32.totalorder %s15, 1
      %p80 = por %p78, %p79
      %p82 = scmp.ne.s32.totalorder %s67, %s81
      %p83 = scmp.eq.s32.totalorder %s15, 0
      %p84 = por %p82, %p83
      %s85 = ssub.s32 %s9, %s16
      %p86 = scmp.eq.s32.totalorder %s85, 0
      %s88 = sadd.s32 %s87, 1
      %s89 = scalar_select %p86, %s87, %s88
      %p92 = pneg %p86
      %p93 = scmp.eq.s32.totalorder %s9, 1
      %p94 = por %p92, %p93
      %p95 = scmp.ne.s32.totalorder %s87, %s90
      %p96 = scmp.eq.s32.totalorder %s9, 0
      %p97 = por %p95, %p96
      %p98 = scmp.ne.s32.totalorder %s87, %s90
      %p99 = scmp.eq.s32.totalorder %s14, 1
      %p100 = por %p98, %p99
      %p101 = scmp.ne.s32.totalorder %s90, %s91
      %p102 = scmp.eq.s32.totalorder %s14, 0
      %p103 = por %p101, %p102
      %p104 = scmp.ne.s32.totalorder %s90, %s91
      %p105 = scmp.eq.s32.totalorder %s15, 1
      %p106 = por %p104, %p105
      %p108 = scmp.ne.s32.totalorder %s91, %s107
      %p109 = scmp.eq.s32.totalorder %s15, 0
      %p110 = por %p108, %p109
      %p111 = scmp.le.s32.totalorder 1, %s9
      %p112 = scmp.lt.s32.totalorder %s9, 3
      %p113 = pnand %p111, %p112
      %p114 = pneg %p113
      // Predicated region
      $region9: #{classifier_atari_forward.4} parent=5 // pred_check
        _
      $region10: #{classifier_atari_forward.4} parent=5 // pred_check_branch
        %116 = sbr.rel (%p113) target = $region12
      $region11: #{classifier_atari_forward.4} parent=5 // pred_region
        %s117 = ssub.s32 %s9, 1
        // Predicated region
        $region13: #{classifier_atari_forward.4} parent=11 // pred_check
          %p118 = pneg %p56
        $region14: #{classifier_atari_forward.4} parent=11 // pred_check_branch
          %120 = sbr.rel (%p118) target = $region16
        $region15: #{classifier_atari_forward.4} parent=11 // pred_region
          _
        $region16: #{classifier_atari_forward.4} parent=11 // pred_fallthru
          _
        // Predicated region
        $region17: #{classifier_atari_forward.4} parent=11 // pred_check
          %p121 = pneg %p77
        $region18: #{classifier_atari_forward.4} parent=11 // pred_check_branch
          %123 = sbr.rel (%p121) target = $region20
        $region19: #{classifier_atari_forward.4} parent=11 // pred_region
          _
        $region20: #{classifier_atari_forward.4} parent=11 // pred_fallthru
          _
      $region12: #{classifier_atari_forward.4} parent=5 // pred_fallthru
        _
      %p124 = scmp.lt.s32.totalorder %s9, 2
      // Predicated region
      $region21: #{classifier_atari_forward.4} parent=5 // pred_check
        %p125 = pneg %p124
      $region22: #{classifier_atari_forward.4} parent=5 // pred_check_branch
        %127 = sbr.rel (%p125) target = $region24
      $region23: #{classifier_atari_forward.4} parent=5 // pred_region
        // Predicated region
        $region25: #{classifier_atari_forward.4} parent=23 // pred_check
          %p128 = pneg %p29
        $region26: #{classifier_atari_forward.4} parent=23 // pred_check_branch
          %130 = sbr.rel (%p128) target = $region28
        $region27: #{classifier_atari_forward.4} parent=23 // pred_region
          %s131 = smul.u32 64, %s9
          %s132 = ssub.s32 100, %s131
          %p133 = scmp.lt.s32.totalorder %s132, 64
          %s134 = scalar_select %p133, %s132, 64
          %s135 = smul.u32 4, %s134
          %p136 = scmp.lt.s32.totalorder %s131, 99
          %s137 = scalar_select %p136, %s131, 99
          %s138 = smul.addr %s137, 4
          %s139 = scalar_lea.vmem %s0, %s138
          %s140 = smul.u32 64, %s9
          %s141 = ssub.s32 100, %s140
          %p142 = scmp.lt.s32.totalorder %s141, 64
          %s143 = scalar_select %p142, %s141, 64
          %s144 = smul.u32 4, %s143
        $region28: #{classifier_atari_forward.4} parent=23 // pred_fallthru
          _
      $region24: #{classifier_atari_forward.4} parent=5 // pred_fallthru
        _
      %p145 = scmp.le.s32.totalorder 1, %s9
      %p146 = scmp.lt.s32.totalorder %s9, 3
      %p147 = pnand %p145, %p146
      %p148 = pneg %p147
      // Predicated region
      $region29: #{classifier_atari_forward.4} parent=5 // pred_check
        _
      $region30: #{classifier_atari_forward.4} parent=5 // pred_check_branch
        %150 = sbr.rel (%p147) target = $region32
      $region31: #{classifier_atari_forward.4} parent=5 // pred_region
        %s151 = ssub.s32 %s9, 1
        %s152 = smul.u32 64, %s14
        %s153 = ssub.s32 100, %s152
        %p154 = scmp.lt.s32.totalorder %s153, 64
        %s155 = scalar_select %p154, %s153, 64
        %s156 = smul.u32 4, %s155
        %p157 = scmp.lt.s32.totalorder %s152, 99
        %s158 = scalar_select %p157, %s152, 99
        %s159 = smul.addr %s158, 4
        %s160 = scalar_lea.vmem %s0, %s159
        %p161 = pneg %p35
        %p162 = pneg %p32
        %p163 = pneg %p56
        %p164 = pneg %p53
        %p165 = pneg %p77
        %p166 = pneg %p74
        %p167 = pneg %p103
        %p168 = pneg %p100
        %s169 = sand.u32 %s90, 1
        %s170 = sand.u32 %s90, 1
        %s171 = smul.addr %s170, 256
        %s172 = scalar_lea.vmem [#allocation2], %s171
        %s173 = smul.u32 64, %s14
        %s174 = ssub.s32 100, %s173
        %p175 = scmp.lt.s32.totalorder %s174, 64
        %s176 = scalar_select %p175, %s174, 64
        %s177 = smul.u32 4, %s176
        %p178 = scmp.lt.s32.totalorder %s173, 99
        %s179 = scalar_select %p178, %s173, 99
        %s180 = smul.addr %s179, 4
        %s181 = scalar_lea.vmem %s0, %s180
        %s182 = smul.u32 64, %s14
        %s183 = ssub.s32 100, %s182
        %p184 = scmp.lt.s32.totalorder %s183, 64
        %s185 = scalar_select %p184, %s183, 64
        %s186 = smul.u32 4, %s185
        %s187 = smul.u32 64, %s14
        %s188 = ssub.s32 100, %s187
        %p189 = scmp.lt.s32.totalorder %s188, 64
        %s190 = scalar_select %p189, %s188, 64
        %s191 = smul.u32 4, %s190
        %v193 = vld [vmem:[%s181] sm:$0xf]
        %v194 = vld [vmem:[%s181 + $0x4] sm:$0xf]
        %v195 = vld [vmem:[%s181 + $0x8] sm:$0xf]
        %v196 = vld [vmem:[%s181 + $0xc] sm:$0xf]
        %v197 = vld [vmem:[%s181 + $0x10] sm:$0xf]
        %v198 = vld [vmem:[%s181 + $0x14] sm:$0xf]
        %v199 = vld [vmem:[%s181 + $0x18] sm:$0xf]
        %v200 = vld [vmem:[%s181 + $0x1c] sm:$0xf]
        %v201 = vld [vmem:[%s181 + $0x20] sm:$0xf]
        %v202 = vld [vmem:[%s181 + $0x24] sm:$0xf]
        %v203 = vld [vmem:[%s181 + $0x28] sm:$0xf]
        %v204 = vld [vmem:[%s181 + $0x2c] sm:$0xf]
        %v205 = vld [vmem:[%s181 + $0x30] sm:$0xf]
        %v206 = vld [vmem:[%s181 + $0x34] sm:$0xf]
        %v207 = vld [vmem:[%s181 + $0x38] sm:$0xf]
        %v208 = vld [vmem:[%s181 + $0x3c] sm:$0xf]
        %v209 = vld [vmem:[%s181 + $0x40] sm:$0xf]
        %v210 = vld [vmem:[%s181 + $0x44] sm:$0xf]
        %v211 = vld [vmem:[%s181 + $0x48] sm:$0xf]
        %v212 = vld [vmem:[%s181 + $0x4c] sm:$0xf]
        %v213 = vld [vmem:[%s181 + $0x50] sm:$0xf]
        %v214 = vld [vmem:[%s181 + $0x54] sm:$0xf]
        %v215 = vld [vmem:[%s181 + $0x58] sm:$0xf]
        %v216 = vld [vmem:[%s181 + $0x5c] sm:$0xf]
        %v217 = vld [vmem:[%s181 + $0x60] sm:$0xf]
        %v218 = vld [vmem:[%s181 + $0x64] sm:$0xf]
        %v219 = vld [vmem:[%s181 + $0x68] sm:$0xf]
        %v220 = vld [vmem:[%s181 + $0x6c] sm:$0xf]
        %v221 = vld [vmem:[%s181 + $0x70] sm:$0xf]
        %v222 = vld [vmem:[%s181 + $0x74] sm:$0xf]
        %v223 = vld [vmem:[%s181 + $0x78] sm:$0xf]
        %v224 = vld [vmem:[%s181 + $0x7c] sm:$0xf]
        %v225 = vld [vmem:[%s181 + $0x80] sm:$0xf]
        %v226 = vld [vmem:[%s181 + $0x84] sm:$0xf]
        %v227 = vld [vmem:[%s181 + $0x88] sm:$0xf]
        %v228 = vld [vmem:[%s181 + $0x8c] sm:$0xf]
        %v229 = vld [vmem:[%s181 + $0x90] sm:$0xf]
        %v230 = vld [vmem:[%s181 + $0x94] sm:$0xf]
        %v231 = vld [vmem:[%s181 + $0x98] sm:$0xf]
        %v232 = vld [vmem:[%s181 + $0x9c] sm:$0xf]
        %v233 = vld [vmem:[%s181 + $0xa0] sm:$0xf]
        %v234 = vld [vmem:[%s181 + $0xa4] sm:$0xf]
        %v235 = vld [vmem:[%s181 + $0xa8] sm:$0xf]
        %v236 = vld [vmem:[%s181 + $0xac] sm:$0xf]
        %v237 = vld [vmem:[%s181 + $0xb0] sm:$0xf]
        %v238 = vld [vmem:[%s181 + $0xb4] sm:$0xf]
        %v239 = vld [vmem:[%s181 + $0xb8] sm:$0xf]
        %v240 = vld [vmem:[%s181 + $0xbc] sm:$0xf]
        %v241 = vld [vmem:[%s181 + $0xc0] sm:$0xf]
        %v242 = vld [vmem:[%s181 + $0xc4] sm:$0xf]
        %v243 = vld [vmem:[%s181 + $0xc8] sm:$0xf]
        %v244 = vld [vmem:[%s181 + $0xcc] sm:$0xf]
        %v245 = vld [vmem:[%s181 + $0xd0] sm:$0xf]
        %v246 = vld [vmem:[%s181 + $0xd4] sm:$0xf]
        %v247 = vld [vmem:[%s181 + $0xd8] sm:$0xf]
        %v248 = vld [vmem:[%s181 + $0xdc] sm:$0xf]
        %v249 = vld [vmem:[%s181 + $0xe0] sm:$0xf]
        %v250 = vld [vmem:[%s181 + $0xe4] sm:$0xf]
        %v251 = vld [vmem:[%s181 + $0xe8] sm:$0xf]
        %v252 = vld [vmem:[%s181 + $0xec] sm:$0xf]
        %v253 = vld [vmem:[%s181 + $0xf0] sm:$0xf]
        %v254 = vld [vmem:[%s181 + $0xf4] sm:$0xf]
        %v255 = vld [vmem:[%s181 + $0xf8] sm:$0xf]
        %v256 = vld [vmem:[%s181 + $0xfc] sm:$0xf]
        %v257 = vld [vmem:[%s1] sm:$0xf]
        %v258 = vld [vmem:[%s1 + $0x4] sm:$0xf]
        %v259 = vld [vmem:[%s1 + $0x8] sm:$0xf]
        %v260 = vld [vmem:[%s1 + $0xc] sm:$0xf]
        %v261 = vld [vmem:[%s1 + $0x10] sm:$0xf]
        %v262 = vld [vmem:[%s1 + $0x14] sm:$0xf]
        %v263 = vld [vmem:[%s1 + $0x18] sm:$0xf]
        %v264 = vld [vmem:[%s1 + $0x1c] sm:$0xf]
        %v265 = vld [vmem:[%s2] sm:$0x1]
        %v267 = vperm.slane %v265, 0
        %v333 = vunpack.c.l.b16 %v193
        %v334 = vunpack.c.l.b16 %v194
        %v335 = vunpack.c.l.b16 %v195
        %v336 = vunpack.c.l.b16 %v196
        %v337 = vunpack.c.l.b16 %v197
        %v338 = vunpack.c.l.b16 %v198
        %v339 = vunpack.c.l.b16 %v199
        %v340 = vunpack.c.l.b16 %v200
        %v341 = vunpack.c.l.b16 %v201
        %v342 = vunpack.c.l.b16 %v202
        %v343 = vunpack.c.l.b16 %v203
        %v344 = vunpack.c.l.b16 %v204
        %v345 = vunpack.c.l.b16 %v205
        %v346 = vunpack.c.l.b16 %v206
        %v347 = vunpack.c.l.b16 %v207
        %v348 = vunpack.c.l.b16 %v208
        %v349 = vunpack.c.l.b16 %v209
        %v350 = vunpack.c.l.b16 %v210
        %v351 = vunpack.c.l.b16 %v211
        %v352 = vunpack.c.l.b16 %v212
        %v353 = vunpack.c.l.b16 %v213
        %v354 = vunpack.c.l.b16 %v214
        %v355 = vunpack.c.l.b16 %v215
        %v356 = vunpack.c.l.b16 %v216
        %v357 = vunpack.c.l.b16 %v217
        %v358 = vunpack.c.l.b16 %v218
        %v359 = vunpack.c.l.b16 %v219
        %v360 = vunpack.c.l.b16 %v220
        %v361 = vunpack.c.l.b16 %v221
        %v362 = vunpack.c.l.b16 %v222
        %v363 = vunpack.c.l.b16 %v223
        %v364 = vunpack.c.l.b16 %v224
        %v365 = vunpack.c.l.b16 %v225
        %v366 = vunpack.c.l.b16 %v226
        %v367 = vunpack.c.l.b16 %v227
        %v368 = vunpack.c.l.b16 %v228
        %v369 = vunpack.c.l.b16 %v229
        %v370 = vunpack.c.l.b16 %v230
        %v371 = vunpack.c.l.b16 %v231
        %v372 = vunpack.c.l.b16 %v232
        %v373 = vunpack.c.l.b16 %v233
        %v374 = vunpack.c.l.b16 %v234
        %v375 = vunpack.c.l.b16 %v235
        %v376 = vunpack.c.l.b16 %v236
        %v377 = vunpack.c.l.b16 %v237
        %v378 = vunpack.c.l.b16 %v238
        %v379 = vunpack.c.l.b16 %v239
        %v380 = vunpack.c.l.b16 %v240
        %v381 = vunpack.c.l.b16 %v241
        %v382 = vunpack.c.l.b16 %v242
        %v383 = vunpack.c.l.b16 %v243
        %v384 = vunpack.c.l.b16 %v244
        %v385 = vunpack.c.l.b16 %v245
        %v386 = vunpack.c.l.b16 %v246
        %v387 = vunpack.c.l.b16 %v247
        %v388 = vunpack.c.l.b16 %v248
        %v389 = vunpack.c.l.b16 %v249
        %v390 = vunpack.c.l.b16 %v250
        %v391 = vunpack.c.l.b16 %v251
        %v392 = vunpack.c.l.b16 %v252
        %v393 = vunpack.c.l.b16 %v253
        %v394 = vunpack.c.l.b16 %v254
        %v395 = vunpack.c.l.b16 %v255
        %v396 = vunpack.c.l.b16 %v256
        %v397 = vpack.c.b16 %v334, %v333
        %v398 = vpack.c.b16 %v336, %v335
        %v399 = vpack.c.b16 %v338, %v337
        %v400 = vpack.c.b16 %v340, %v339
        %v401 = vpack.c.b16 %v342, %v341
        %v402 = vpack.c.b16 %v344, %v343
        %v403 = vpack.c.b16 %v346, %v345
        %v404 = vpack.c.b16 %v348, %v347
        %v405 = vpack.c.b16 %v350, %v349
        %v406 = vpack.c.b16 %v352, %v351
        %v407 = vpack.c.b16 %v354, %v353
        %v408 = vpack.c.b16 %v356, %v355
        %v409 = vpack.c.b16 %v358, %v357
        %v410 = vpack.c.b16 %v360, %v359
        %v411 = vpack.c.b16 %v362, %v361
        %v412 = vpack.c.b16 %v364, %v363
        %v413 = vpack.c.b16 %v366, %v365
        %v414 = vpack.c.b16 %v368, %v367
        %v415 = vpack.c.b16 %v370, %v369
        %v416 = vpack.c.b16 %v372, %v371
        %v417 = vpack.c.b16 %v374, %v373
        %v418 = vpack.c.b16 %v376, %v375
        %v419 = vpack.c.b16 %v378, %v377
        %v420 = vpack.c.b16 %v380, %v379
        %v421 = vpack.c.b16 %v382, %v381
        %v422 = vpack.c.b16 %v384, %v383
        %v423 = vpack.c.b16 %v386, %v385
        %v424 = vpack.c.b16 %v388, %v387
        %v425 = vpack.c.b16 %v390, %v389
        %v426 = vpack.c.b16 %v392, %v391
        %v427 = vpack.c.b16 %v394, %v393
        %v428 = vpack.c.b16 %v396, %v395
        %v437 = vunpack.c.l.b16 %v257
        %v438 = vunpack.c.l.b16 %v258
        %v439 = vunpack.c.l.b16 %v259
        %v440 = vunpack.c.l.b16 %v260
        %v441 = vunpack.c.l.b16 %v261
        %v442 = vunpack.c.l.b16 %v262
        %v443 = vunpack.c.l.b16 %v263
        %v444 = vunpack.c.l.b16 %v264
        %v445 = vpack.c.b16 %v438, %v437
        %v446 = vpack.c.b16 %v440, %v439
        %v447 = vpack.c.b16 %v442, %v441
        %v448 = vpack.c.b16 %v444, %v443
        %vm453 = vcmask 523264
        %v455 = vsel %vm453, %v397, 0
        %v458 = vsel %vm453, %v398, 0
        %v461 = vsel %vm453, %v399, 0
        %v464 = vsel %vm453, %v400, 0
        %v467 = vsel %vm453, %v401, 0
        %v470 = vsel %vm453, %v402, 0
        %v473 = vsel %vm453, %v403, 0
        %v476 = vsel %vm453, %v404, 0
        %v479 = vsel %vm453, %v405, 0
        %v482 = vsel %vm453, %v406, 0
        %v485 = vsel %vm453, %v407, 0
        %v488 = vsel %vm453, %v408, 0
        %v491 = vsel %vm453, %v409, 0
        %v494 = vsel %vm453, %v410, 0
        %v497 = vsel %vm453, %v411, 0
        %v500 = vsel %vm453, %v412, 0
        %v503 = vsel %vm453, %v413, 0
        %v506 = vsel %vm453, %v414, 0
        %v509 = vsel %vm453, %v415, 0
        %v512 = vsel %vm453, %v416, 0
        %v515 = vsel %vm453, %v417, 0
        %v518 = vsel %vm453, %v418, 0
        %v521 = vsel %vm453, %v419, 0
        %v524 = vsel %vm453, %v420, 0
        %v527 = vsel %vm453, %v421, 0
        %v530 = vsel %vm453, %v422, 0
        %v533 = vsel %vm453, %v423, 0
        %v536 = vsel %vm453, %v424, 0
        %v539 = vsel %vm453, %v425, 0
        %v542 = vsel %vm453, %v426, 0
        %v545 = vsel %vm453, %v427, 0
        %v548 = vsel %vm453, %v428, 0
        %550 = vmatpush.bf16.msra.mxu0 0
        %551 = vmatpush.bf16.msra.mxu0 0
        %552 = vmatpush.bf16.msra.mxu0 0
        %553 = vmatpush.bf16.msra.mxu0 0
        %554 = vmatpush.bf16.msra.mxu0 %v448
        %555 = vmatpush.bf16.msra.mxu0 %v447
        %556 = vmatpush.bf16.msra.mxu0 %v446
        %557 = vmatpush.bf16.msra.mxu0 %v445
        %558 = vmatmul.bf16.gmra.mxu0 %v455
        %v559 = vpop.f32.mrf.mxu0
        %v560 = vadd.f32 %v267, %v559
        %v561 = vpop.f32.mrf.mxu0
        %v562 = vadd.f32 %v267, %v561
        %563 = vmatmul.bf16.gmra.mxu0 %v458
        %v564 = vpop.f32.mrf.mxu0
        %v565 = vadd.f32 %v267, %v564
        %v566 = vpop.f32.mrf.mxu0
        %v567 = vadd.f32 %v267, %v566
        %568 = vmatmul.bf16.gmra.mxu0 %v461
        %v569 = vpop.f32.mrf.mxu0
        %v570 = vadd.f32 %v267, %v569
        %v571 = vpop.f32.mrf.mxu0
        %v572 = vadd.f32 %v267, %v571
        %573 = vmatmul.bf16.gmra.mxu0 %v464
        %v574 = vpop.f32.mrf.mxu0
        %v575 = vadd.f32 %v267, %v574
        %v576 = vpop.f32.mrf.mxu0
        %v577 = vadd.f32 %v267, %v576
        %578 = vmatmul.bf16.gmra.mxu0 %v467
        %v579 = vpop.f32.mrf.mxu0
        %v580 = vadd.f32 %v267, %v579
        %v581 = vpop.f32.mrf.mxu0
        %v582 = vadd.f32 %v267, %v581
        %583 = vmatmul.bf16.gmra.mxu0 %v470
        %v584 = vpop.f32.mrf.mxu0
        %v585 = vadd.f32 %v267, %v584
        %v586 = vpop.f32.mrf.mxu0
        %v587 = vadd.f32 %v267, %v586
        %588 = vmatmul.bf16.gmra.mxu0 %v473
        %v589 = vpop.f32.mrf.mxu0
        %v590 = vadd.f32 %v267, %v589
        %v591 = vpop.f32.mrf.mxu0
        %v592 = vadd.f32 %v267, %v591
        %593 = vmatmul.bf16.gmra.mxu0 %v476
        %v594 = vpop.f32.mrf.mxu0
        %v595 = vadd.f32 %v267, %v594
        %v596 = vpop.f32.mrf.mxu0
        %v597 = vadd.f32 %v267, %v596
        %598 = vmatmul.bf16.gmra.mxu0 %v479
        %v599 = vpop.f32.mrf.mxu0
        %v600 = vadd.f32 %v267, %v599
        %v601 = vpop.f32.mrf.mxu0
        %v602 = vadd.f32 %v267, %v601
        %603 = vmatmul.bf16.gmra.mxu0 %v482
        %v604 = vpop.f32.mrf.mxu0
        %v605 = vadd.f32 %v267, %v604
        %v606 = vpop.f32.mrf.mxu0
        %v607 = vadd.f32 %v267, %v606
        %608 = vmatmul.bf16.gmra.mxu0 %v485
        %v609 = vpop.f32.mrf.mxu0
        %v610 = vadd.f32 %v267, %v609
        %v611 = vpop.f32.mrf.mxu0
        %v612 = vadd.f32 %v267, %v611
        %613 = vmatmul.bf16.gmra.mxu0 %v488
        %v614 = vpop.f32.mrf.mxu0
        %v615 = vadd.f32 %v267, %v614
        %v616 = vpop.f32.mrf.mxu0
        %v617 = vadd.f32 %v267, %v616
        %618 = vmatmul.bf16.gmra.mxu0 %v491
        %v619 = vpop.f32.mrf.mxu0
        %v620 = vadd.f32 %v267, %v619
        %v621 = vpop.f32.mrf.mxu0
        %v622 = vadd.f32 %v267, %v621
        %623 = vmatmul.bf16.gmra.mxu0 %v494
        %v624 = vpop.f32.mrf.mxu0
        %v625 = vadd.f32 %v267, %v624
        %v626 = vpop.f32.mrf.mxu0
        %v627 = vadd.f32 %v267, %v626
        %628 = vmatmul.bf16.gmra.mxu0 %v497
        %v629 = vpop.f32.mrf.mxu0
        %v630 = vadd.f32 %v267, %v629
        %v631 = vpop.f32.mrf.mxu0
        %v632 = vadd.f32 %v267, %v631
        %633 = vmatmul.bf16.gmra.mxu0 %v500
        %v634 = vpop.f32.mrf.mxu0
        %v635 = vadd.f32 %v267, %v634
        %v636 = vpop.f32.mrf.mxu0
        %v637 = vadd.f32 %v267, %v636
        %638 = vmatmul.bf16.gmra.mxu0 %v503
        %v639 = vpop.f32.mrf.mxu0
        %v640 = vadd.f32 %v267, %v639
        %v641 = vpop.f32.mrf.mxu0
        %v642 = vadd.f32 %v267, %v641
        %643 = vmatmul.bf16.gmra.mxu0 %v506
        %v644 = vpop.f32.mrf.mxu0
        %v645 = vadd.f32 %v267, %v644
        %v646 = vpop.f32.mrf.mxu0
        %v647 = vadd.f32 %v267, %v646
        %648 = vmatmul.bf16.gmra.mxu0 %v509
        %v649 = vpop.f32.mrf.mxu0
        %v650 = vadd.f32 %v267, %v649
        %v651 = vpop.f32.mrf.mxu0
        %v652 = vadd.f32 %v267, %v651
        %653 = vmatmul.bf16.gmra.mxu0 %v512
        %v654 = vpop.f32.mrf.mxu0
        %v655 = vadd.f32 %v267, %v654
        %v656 = vpop.f32.mrf.mxu0
        %v657 = vadd.f32 %v267, %v656
        %658 = vmatmul.bf16.gmra.mxu0 %v515
        %v659 = vpop.f32.mrf.mxu0
        %v660 = vadd.f32 %v267, %v659
        %v661 = vpop.f32.mrf.mxu0
        %v662 = vadd.f32 %v267, %v661
        %663 = vmatmul.bf16.gmra.mxu0 %v518
        %v664 = vpop.f32.mrf.mxu0
        %v665 = vadd.f32 %v267, %v664
        %v666 = vpop.f32.mrf.mxu0
        %v667 = vadd.f32 %v267, %v666
        %668 = vmatmul.bf16.gmra.mxu0 %v521
        %v669 = vpop.f32.mrf.mxu0
        %v670 = vadd.f32 %v267, %v669
        %v671 = vpop.f32.mrf.mxu0
        %v672 = vadd.f32 %v267, %v671
        %673 = vmatmul.bf16.gmra.mxu0 %v524
        %v674 = vpop.f32.mrf.mxu0
        %v675 = vadd.f32 %v267, %v674
        %v676 = vpop.f32.mrf.mxu0
        %v677 = vadd.f32 %v267, %v676
        %678 = vmatmul.bf16.gmra.mxu0 %v527
        %v679 = vpop.f32.mrf.mxu0
        %v680 = vadd.f32 %v267, %v679
        %v681 = vpop.f32.mrf.mxu0
        %v682 = vadd.f32 %v267, %v681
        %683 = vmatmul.bf16.gmra.mxu0 %v530
        %v684 = vpop.f32.mrf.mxu0
        %v685 = vadd.f32 %v267, %v684
        %v686 = vpop.f32.mrf.mxu0
        %v687 = vadd.f32 %v267, %v686
        %688 = vmatmul.bf16.gmra.mxu0 %v533
        %v689 = vpop.f32.mrf.mxu0
        %v690 = vadd.f32 %v267, %v689
        %v691 = vpop.f32.mrf.mxu0
        %v692 = vadd.f32 %v267, %v691
        %693 = vmatmul.bf16.gmra.mxu0 %v536
        %v694 = vpop.f32.mrf.mxu0
        %v695 = vadd.f32 %v267, %v694
        %v696 = vpop.f32.mrf.mxu0
        %v697 = vadd.f32 %v267, %v696
        %698 = vmatmul.bf16.gmra.mxu0 %v539
        %v699 = vpop.f32.mrf.mxu0
        %v700 = vadd.f32 %v267, %v699
        %v701 = vpop.f32.mrf.mxu0
        %v702 = vadd.f32 %v267, %v701
        %703 = vmatmul.bf16.gmra.mxu0 %v542
        %v704 = vpop.f32.mrf.mxu0
        %v705 = vadd.f32 %v267, %v704
        %v706 = vpop.f32.mrf.mxu0
        %v707 = vadd.f32 %v267, %v706
        %708 = vmatmul.bf16.gmra.mxu0 %v545
        %v709 = vpop.f32.mrf.mxu0
        %v710 = vadd.f32 %v267, %v709
        %v711 = vpop.f32.mrf.mxu0
        %v712 = vadd.f32 %v267, %v711
        %713 = vmatmul.bf16.gmra.mxu0 %v548
        %v714 = vpop.f32.mrf.mxu0
        %v715 = vadd.f32 %v267, %v714
        %v716 = vpop.f32.mrf.mxu0
        %v717 = vadd.f32 %v267, %v716
        %718 = vdwg.mxu0
        %v719 = vmax.f32 %v560, 0.0
        %v720 = vmax.f32 %v562, 0.0
        %v721 = vmax.f32 %v565, 0.0
        %v722 = vmax.f32 %v567, 0.0
        %v723 = vmax.f32 %v570, 0.0
        %v724 = vmax.f32 %v572, 0.0
        %v725 = vmax.f32 %v575, 0.0
        %v726 = vmax.f32 %v577, 0.0
        %v727 = vmax.f32 %v580, 0.0
        %v728 = vmax.f32 %v582, 0.0
        %v729 = vmax.f32 %v585, 0.0
        %v730 = vmax.f32 %v587, 0.0
        %v731 = vmax.f32 %v590, 0.0
        %v732 = vmax.f32 %v592, 0.0
        %v733 = vmax.f32 %v595, 0.0
        %v734 = vmax.f32 %v597, 0.0
        %v735 = vmax.f32 %v600, 0.0
        %v736 = vmax.f32 %v602, 0.0
        %v737 = vmax.f32 %v605, 0.0
        %v738 = vmax.f32 %v607, 0.0
        %v739 = vmax.f32 %v610, 0.0
        %v740 = vmax.f32 %v612, 0.0
        %v741 = vmax.f32 %v615, 0.0
        %v742 = vmax.f32 %v617, 0.0
        %v743 = vmax.f32 %v620, 0.0
        %v744 = vmax.f32 %v622, 0.0
        %v745 = vmax.f32 %v625, 0.0
        %v746 = vmax.f32 %v627, 0.0
        %v747 = vmax.f32 %v630, 0.0
        %v748 = vmax.f32 %v632, 0.0
        %v749 = vmax.f32 %v635, 0.0
        %v750 = vmax.f32 %v637, 0.0
        %v751 = vmax.f32 %v640, 0.0
        %v752 = vmax.f32 %v642, 0.0
        %v753 = vmax.f32 %v645, 0.0
        %v754 = vmax.f32 %v647, 0.0
        %v755 = vmax.f32 %v650, 0.0
        %v756 = vmax.f32 %v652, 0.0
        %v757 = vmax.f32 %v655, 0.0
        %v758 = vmax.f32 %v657, 0.0
        %v759 = vmax.f32 %v660, 0.0
        %v760 = vmax.f32 %v662, 0.0
        %v761 = vmax.f32 %v665, 0.0
        %v762 = vmax.f32 %v667, 0.0
        %v763 = vmax.f32 %v670, 0.0
        %v764 = vmax.f32 %v672, 0.0
        %v765 = vmax.f32 %v675, 0.0
        %v766 = vmax.f32 %v677, 0.0
        %v767 = vmax.f32 %v680, 0.0
        %v768 = vmax.f32 %v682, 0.0
        %v769 = vmax.f32 %v685, 0.0
        %v770 = vmax.f32 %v687, 0.0
        %v771 = vmax.f32 %v690, 0.0
        %v772 = vmax.f32 %v692, 0.0
        %v773 = vmax.f32 %v695, 0.0
        %v774 = vmax.f32 %v697, 0.0
        %v775 = vmax.f32 %v700, 0.0
        %v776 = vmax.f32 %v702, 0.0
        %v777 = vmax.f32 %v705, 0.0
        %v778 = vmax.f32 %v707, 0.0
        %v779 = vmax.f32 %v710, 0.0
        %v780 = vmax.f32 %v712, 0.0
        %v781 = vmax.f32 %v715, 0.0
        %v782 = vmax.f32 %v717, 0.0
        %v783 = vpack.c.bf16 %v719, %v719
        %v784 = vpack.c.bf16 %v720, %v720
        %v785 = vpack.c.bf16 %v721, %v721
        %v786 = vpack.c.bf16 %v722, %v722
        %v787 = vpack.c.bf16 %v723, %v723
        %v788 = vpack.c.bf16 %v724, %v724
        %v789 = vpack.c.bf16 %v725, %v725
        %v790 = vpack.c.bf16 %v726, %v726
        %v791 = vpack.c.bf16 %v727, %v727
        %v792 = vpack.c.bf16 %v728, %v728
        %v793 = vpack.c.bf16 %v729, %v729
        %v794 = vpack.c.bf16 %v730, %v730
        %v795 = vpack.c.bf16 %v731, %v731
        %v796 = vpack.c.bf16 %v732, %v732
        %v797 = vpack.c.bf16 %v733, %v733
        %v798 = vpack.c.bf16 %v734, %v734
        %v799 = vpack.c.bf16 %v735, %v735
        %v800 = vpack.c.bf16 %v736, %v736
        %v801 = vpack.c.bf16 %v737, %v737
        %v802 = vpack.c.bf16 %v738, %v738
        %v803 = vpack.c.bf16 %v739, %v739
        %v804 = vpack.c.bf16 %v740, %v740
        %v805 = vpack.c.bf16 %v741, %v741
        %v806 = vpack.c.bf16 %v742, %v742
        %v807 = vpack.c.bf16 %v743, %v743
        %v808 = vpack.c.bf16 %v744, %v744
        %v809 = vpack.c.bf16 %v745, %v745
        %v810 = vpack.c.bf16 %v746, %v746
        %v811 = vpack.c.bf16 %v747, %v747
        %v812 = vpack.c.bf16 %v748, %v748
        %v813 = vpack.c.bf16 %v749, %v749
        %v814 = vpack.c.bf16 %v750, %v750
        %v815 = vpack.c.bf16 %v751, %v751
        %v816 = vpack.c.bf16 %v752, %v752
        %v817 = vpack.c.bf16 %v753, %v753
        %v818 = vpack.c.bf16 %v754, %v754
        %v819 = vpack.c.bf16 %v755, %v755
        %v820 = vpack.c.bf16 %v756, %v756
        %v821 = vpack.c.bf16 %v757, %v757
        %v822 = vpack.c.bf16 %v758, %v758
        %v823 = vpack.c.bf16 %v759, %v759
        %v824 = vpack.c.bf16 %v760, %v760
        %v825 = vpack.c.bf16 %v761, %v761
        %v826 = vpack.c.bf16 %v762, %v762
        %v827 = vpack.c.bf16 %v763, %v763
        %v828 = vpack.c.bf16 %v764, %v764
        %v829 = vpack.c.bf16 %v765, %v765
        %v830 = vpack.c.bf16 %v766, %v766
        %v831 = vpack.c.bf16 %v767, %v767
        %v832 = vpack.c.bf16 %v768, %v768
        %v833 = vpack.c.bf16 %v769, %v769
        %v834 = vpack.c.bf16 %v770, %v770
        %v835 = vpack.c.bf16 %v771, %v771
        %v836 = vpack.c.bf16 %v772, %v772
        %v837 = vpack.c.bf16 %v773, %v773
        %v838 = vpack.c.bf16 %v774, %v774
        %v839 = vpack.c.bf16 %v775, %v775
        %v840 = vpack.c.bf16 %v776, %v776
        %v841 = vpack.c.bf16 %v777, %v777
        %v842 = vpack.c.bf16 %v778, %v778
        %v843 = vpack.c.bf16 %v779, %v779
        %v844 = vpack.c.bf16 %v780, %v780
        %v845 = vpack.c.bf16 %v781, %v781
        %v846 = vpack.c.bf16 %v782, %v782
        %vm847 = vcmask 257024
        %848 = vst.msk [vmem:[%s172] sm:$0xf] %vm847, %v783
        %849 = vst.msk [vmem:[%s172 + $0x4] sm:$0xf] %vm847, %v784
        %850 = vst.msk [vmem:[%s172 + $0x8] sm:$0xf] %vm847, %v785
        %851 = vst.msk [vmem:[%s172 + $0xc] sm:$0xf] %vm847, %v786
        %852 = vst.msk [vmem:[%s172 + $0x10] sm:$0xf] %vm847, %v787
        %853 = vst.msk [vmem:[%s172 + $0x14] sm:$0xf] %vm847, %v788
        %854 = vst.msk [vmem:[%s172 + $0x18] sm:$0xf] %vm847, %v789
        %855 = vst.msk [vmem:[%s172 + $0x1c] sm:$0xf] %vm847, %v790
        %856 = vst.msk [vmem:[%s172 + $0x20] sm:$0xf] %vm847, %v791
        %857 = vst.msk [vmem:[%s172 + $0x24] sm:$0xf] %vm847, %v792
        %858 = vst.msk [vmem:[%s172 + $0x28] sm:$0xf] %vm847, %v793
        %859 = vst.msk [vmem:[%s172 + $0x2c] sm:$0xf] %vm847, %v794
        %860 = vst.msk [vmem:[%s172 + $0x30] sm:$0xf] %vm847, %v795
        %861 = vst.msk [vmem:[%s172 + $0x34] sm:$0xf] %vm847, %v796
        %862 = vst.msk [vmem:[%s172 + $0x38] sm:$0xf] %vm847, %v797
        %863 = vst.msk [vmem:[%s172 + $0x3c] sm:$0xf] %vm847, %v798
        %864 = vst.msk [vmem:[%s172 + $0x40] sm:$0xf] %vm847, %v799
        %865 = vst.msk [vmem:[%s172 + $0x44] sm:$0xf] %vm847, %v800
        %866 = vst.msk [vmem:[%s172 + $0x48] sm:$0xf] %vm847, %v801
        %867 = vst.msk [vmem:[%s172 + $0x4c] sm:$0xf] %vm847, %v802
        %868 = vst.msk [vmem:[%s172 + $0x50] sm:$0xf] %vm847, %v803
        %869 = vst.msk [vmem:[%s172 + $0x54] sm:$0xf] %vm847, %v804
        %870 = vst.msk [vmem:[%s172 + $0x58] sm:$0xf] %vm847, %v805
        %871 = vst.msk [vmem:[%s172 + $0x5c] sm:$0xf] %vm847, %v806
        %872 = vst.msk [vmem:[%s172 + $0x60] sm:$0xf] %vm847, %v807
        %873 = vst.msk [vmem:[%s172 + $0x64] sm:$0xf] %vm847, %v808
        %874 = vst.msk [vmem:[%s172 + $0x68] sm:$0xf] %vm847, %v809
        %875 = vst.msk [vmem:[%s172 + $0x6c] sm:$0xf] %vm847, %v810
        %876 = vst.msk [vmem:[%s172 + $0x70] sm:$0xf] %vm847, %v811
        %877 = vst.msk [vmem:[%s172 + $0x74] sm:$0xf] %vm847, %v812
        %878 = vst.msk [vmem:[%s172 + $0x78] sm:$0xf] %vm847, %v813
        %879 = vst.msk [vmem:[%s172 + $0x7c] sm:$0xf] %vm847, %v814
        %880 = vst.msk [vmem:[%s172 + $0x80] sm:$0xf] %vm847, %v815
        %881 = vst.msk [vmem:[%s172 + $0x84] sm:$0xf] %vm847, %v816
        %882 = vst.msk [vmem:[%s172 + $0x88] sm:$0xf] %vm847, %v817
        %883 = vst.msk [vmem:[%s172 + $0x8c] sm:$0xf] %vm847, %v818
        %884 = vst.msk [vmem:[%s172 + $0x90] sm:$0xf] %vm847, %v819
        %885 = vst.msk [vmem:[%s172 + $0x94] sm:$0xf] %vm847, %v820
        %886 = vst.msk [vmem:[%s172 + $0x98] sm:$0xf] %vm847, %v821
        %887 = vst.msk [vmem:[%s172 + $0x9c] sm:$0xf] %vm847, %v822
        %888 = vst.msk [vmem:[%s172 + $0xa0] sm:$0xf] %vm847, %v823
        %889 = vst.msk [vmem:[%s172 + $0xa4] sm:$0xf] %vm847, %v824
        %890 = vst.msk [vmem:[%s172 + $0xa8] sm:$0xf] %vm847, %v825
        %891 = vst.msk [vmem:[%s172 + $0xac] sm:$0xf] %vm847, %v826
        %892 = vst.msk [vmem:[%s172 + $0xb0] sm:$0xf] %vm847, %v827
        %893 = vst.msk [vmem:[%s172 + $0xb4] sm:$0xf] %vm847, %v828
        %894 = vst.msk [vmem:[%s172 + $0xb8] sm:$0xf] %vm847, %v829
        %895 = vst.msk [vmem:[%s172 + $0xbc] sm:$0xf] %vm847, %v830
        %896 = vst.msk [vmem:[%s172 + $0xc0] sm:$0xf] %vm847, %v831
        %897 = vst.msk [vmem:[%s172 + $0xc4] sm:$0xf] %vm847, %v832
        %898 = vst.msk [vmem:[%s172 + $0xc8] sm:$0xf] %vm847, %v833
        %899 = vst.msk [vmem:[%s172 + $0xcc] sm:$0xf] %vm847, %v834
        %900 = vst.msk [vmem:[%s172 + $0xd0] sm:$0xf] %vm847, %v835
        %901 = vst.msk [vmem:[%s172 + $0xd4] sm:$0xf] %vm847, %v836
        %902 = vst.msk [vmem:[%s172 + $0xd8] sm:$0xf] %vm847, %v837
        %903 = vst.msk [vmem:[%s172 + $0xdc] sm:$0xf] %vm847, %v838
        %904 = vst.msk [vmem:[%s172 + $0xe0] sm:$0xf] %vm847, %v839
        %905 = vst.msk [vmem:[%s172 + $0xe4] sm:$0xf] %vm847, %v840
        %906 = vst.msk [vmem:[%s172 + $0xe8] sm:$0xf] %vm847, %v841
        %907 = vst.msk [vmem:[%s172 + $0xec] sm:$0xf] %vm847, %v842
        %908 = vst.msk [vmem:[%s172 + $0xf0] sm:$0xf] %vm847, %v843
        %909 = vst.msk [vmem:[%s172 + $0xf4] sm:$0xf] %vm847, %v844
        %910 = vst.msk [vmem:[%s172 + $0xf8] sm:$0xf] %vm847, %v845
        %911 = vst.msk [vmem:[%s172 + $0xfc] sm:$0xf] %vm847, %v846
        %s912 = sand.u32 %s90, 1
        %s913 = sand.u32 %s90, 1
        %s914 = smul.addr %s913, 256
        %s915 = scalar_lea.vmem [#allocation2], %s914
        // Predicated region
        $region33: #{classifier_atari_forward.4} parent=31 // pred_check
          %p916 = pneg %p100
        $region34: #{classifier_atari_forward.4} parent=31 // pred_check_branch
          %918 = sbr.rel (%p916) target = $region36
        $region35: #{classifier_atari_forward.4} parent=31 // pred_region
          %s919 = smul.u32 64, %s14
          %s920 = ssub.s32 100, %s919
          %p921 = scmp.lt.s32.totalorder %s920, 64
          %s922 = scalar_select %p921, %s920, 64
          %s923 = smul.u32 4, %s922
          %p924 = scmp.ne.s32.totalorder 0, %s923
          %s925 = smul.addr %s919, 4
          %s926 = scalar_lea.vmem %s3, %s925
          // Predicated region
          $region37: #{classifier_atari_forward.4} parent=35 // pred_check
            %p927 = pneg %p924
          $region38: #{classifier_atari_forward.4} parent=35 // pred_check_branch
            %929 = sbr.rel (%p927) target = $region40
          $region39: #{classifier_atari_forward.4} parent=35 // pred_region
            // Predicated region
            $region41: #{classifier_atari_forward.4} parent=39 // pred_check
              _
            $region42: #{classifier_atari_forward.4} parent=39 // pred_check_branch
              %931 = sbr.rel target = $region44
            $region43: #{classifier_atari_forward.4} parent=39 // pred_region
              // Predicated region
              $region63: #{classifier_atari_forward.4} parent=43 // pred_check
                _
              $region64: #{classifier_atari_forward.4} parent=43 // pred_check_branch
                %1043 = sbr.rel (0) target = $region66
              $region65: #{classifier_atari_forward.4} parent=43 // pred_region
                %s1045 = ssub.s32 16, 1
                %s1046 = sshrl.u32 %s922, 5
                // While loop
                $region67: #{classifier_atari_forward.4} parent=65 // loop_pre_header
                  _
                $region68: #{classifier_atari_forward.4} parent=65 // loop_header
                  %s1048 = sphi 0, %s1050
                  %p1049 = scmp.ge.s32.totalorder %s1048, %s1046
                  %s1053 = sphi 0, %s1122
                  %s1054 = sphi %s915, %s1125
                  %s1055 = sphi %s926, %s1126
                $region69: #{classifier_atari_forward.4} parent=65 // loop_header_branch
                  %1052 = sbr.rel (%p1049) target = $region73
                $region70: #{classifier_atari_forward.4} parent=65 // loop_body
                  %v1056 = vld [vmem:[%s1054] sm:%s1045]
                  %1057 = vst [vmem:[%s1055] sm:%s1045] %v1056
                  %v1058 = vld [vmem:[%s1054 + $0x4] sm:%s1045]
                  %1059 = vst [vmem:[%s1055 + $0x4] sm:%s1045] %v1058
                  %v1060 = vld [vmem:[%s1054 + $0x8] sm:%s1045]
                  %1061 = vst [vmem:[%s1055 + $0x8] sm:%s1045] %v1060
                  %v1062 = vld [vmem:[%s1054 + $0xc] sm:%s1045]
                  %1063 = vst [vmem:[%s1055 + $0xc] sm:%s1045] %v1062
                  %v1064 = vld [vmem:[%s1054 + $0x10] sm:%s1045]
                  %1065 = vst [vmem:[%s1055 + $0x10] sm:%s1045] %v1064
                  %v1066 = vld [vmem:[%s1054 + $0x14] sm:%s1045]
                  %1067 = vst [vmem:[%s1055 + $0x14] sm:%s1045] %v1066
                  %v1068 = vld [vmem:[%s1054 + $0x18] sm:%s1045]
                  %1069 = vst [vmem:[%s1055 + $0x18] sm:%s1045] %v1068
                  %v1070 = vld [vmem:[%s1054 + $0x1c] sm:%s1045]
                  %1071 = vst [vmem:[%s1055 + $0x1c] sm:%s1045] %v1070
                  %v1072 = vld [vmem:[%s1054 + $0x20] sm:%s1045]
                  %1073 = vst [vmem:[%s1055 + $0x20] sm:%s1045] %v1072
                  %v1074 = vld [vmem:[%s1054 + $0x24] sm:%s1045]
                  %1075 = vst [vmem:[%s1055 + $0x24] sm:%s1045] %v1074
                  %v1076 = vld [vmem:[%s1054 + $0x28] sm:%s1045]
                  %1077 = vst [vmem:[%s1055 + $0x28] sm:%s1045] %v1076
                  %v1078 = vld [vmem:[%s1054 + $0x2c] sm:%s1045]
                  %1079 = vst [vmem:[%s1055 + $0x2c] sm:%s1045] %v1078
                  %v1080 = vld [vmem:[%s1054 + $0x30] sm:%s1045]
                  %1081 = vst [vmem:[%s1055 + $0x30] sm:%s1045] %v1080
                  %v1082 = vld [vmem:[%s1054 + $0x34] sm:%s1045]
                  %1083 = vst [vmem:[%s1055 + $0x34] sm:%s1045] %v1082
                  %v1084 = vld [vmem:[%s1054 + $0x38] sm:%s1045]
                  %1085 = vst [vmem:[%s1055 + $0x38] sm:%s1045] %v1084
                  %v1086 = vld [vmem:[%s1054 + $0x3c] sm:%s1045]
                  %1087 = vst [vmem:[%s1055 + $0x3c] sm:%s1045] %v1086
                  %v1088 = vld [vmem:[%s1054 + $0x40] sm:%s1045]
                  %1089 = vst [vmem:[%s1055 + $0x40] sm:%s1045] %v1088
                  %v1090 = vld [vmem:[%s1054 + $0x44] sm:%s1045]
                  %1091 = vst [vmem:[%s1055 + $0x44] sm:%s1045] %v1090
                  %v1092 = vld [vmem:[%s1054 + $0x48] sm:%s1045]
                  %1093 = vst [vmem:[%s1055 + $0x48] sm:%s1045] %v1092
                  %v1094 = vld [vmem:[%s1054 + $0x4c] sm:%s1045]
                  %1095 = vst [vmem:[%s1055 + $0x4c] sm:%s1045] %v1094
                  %v1096 = vld [vmem:[%s1054 + $0x50] sm:%s1045]
                  %1097 = vst [vmem:[%s1055 + $0x50] sm:%s1045] %v1096
                  %v1098 = vld [vmem:[%s1054 + $0x54] sm:%s1045]
                  %1099 = vst [vmem:[%s1055 + $0x54] sm:%s1045] %v1098
                  %v1100 = vld [vmem:[%s1054 + $0x58] sm:%s1045]
                  %1101 = vst [vmem:[%s1055 + $0x58] sm:%s1045] %v1100
                  %v1102 = vld [vmem:[%s1054 + $0x5c] sm:%s1045]
                  %1103 = vst [vmem:[%s1055 + $0x5c] sm:%s1045] %v1102
                  %v1104 = vld [vmem:[%s1054 + $0x60] sm:%s1045]
                  %1105 = vst [vmem:[%s1055 + $0x60] sm:%s1045] %v1104
                  %v1106 = vld [vmem:[%s1054 + $0x64] sm:%s1045]
                  %1107 = vst [vmem:[%s1055 + $0x64] sm:%s1045] %v1106
                  %v1108 = vld [vmem:[%s1054 + $0x68] sm:%s1045]
                  %1109 = vst [vmem:[%s1055 + $0x68] sm:%s1045] %v1108
                  %v1110 = vld [vmem:[%s1054 + $0x6c] sm:%s1045]
                  %1111 = vst [vmem:[%s1055 + $0x6c] sm:%s1045] %v1110
                  %v1112 = vld [vmem:[%s1054 + $0x70] sm:%s1045]
                  %1113 = vst [vmem:[%s1055 + $0x70] sm:%s1045] %v1112
                  %v1114 = vld [vmem:[%s1054 + $0x74] sm:%s1045]
                  %1115 = vst [vmem:[%s1055 + $0x74] sm:%s1045] %v1114
                  %v1116 = vld [vmem:[%s1054 + $0x78] sm:%s1045]
                  %1117 = vst [vmem:[%s1055 + $0x78] sm:%s1045] %v1116
                  %v1118 = vld [vmem:[%s1054 + $0x7c] sm:%s1045]
                  %1119 = vst [vmem:[%s1055 + $0x7c] sm:%s1045] %v1118
                  %s1120 = sadd.s32 1, %s1053
                  %p1121 = scmp.ge.s32.totalorder %s1120, %s1046
                  %s1122 = scalar_select %p1121, 0, %s1120
                  %s1123 = smul.u32 %s1122, 128
                  %s1124 = smul.u32 %s1122, 128
                  %s1125 = scalar_lea.vmem %s915, %s1123 [#allocation2]
                  %s1126 = scalar_lea.vmem %s926, %s1124
                $region71: #{classifier_atari_forward.4} parent=65 // loop_footer
                  %s1050 = sadd.s32 %s1048, 1
                $region72: #{classifier_atari_forward.4} parent=65 // loop_footer_branch
                  %1047 = sbr.rel target = $region68
                $region73: #{classifier_atari_forward.4} parent=65 // loop_exit
                  _
                %s1127 = sshrl.u32 %s922, 5
                %s1128 = sand.u32 %s922, 31
                %s1129 = smul.u32 %s1127, 32
                %s1130 = smul.u32 4, %s1129
                %s1131 = scalar_lea.vmem %s915, %s1130 [#allocation2]
                %s1132 = smul.u32 4, %s1129
                %s1133 = scalar_lea.vmem %s926, %s1132
                // While loop
                $region74: #{classifier_atari_forward.4} parent=65 // loop_pre_header
                  _
                $region75: #{classifier_atari_forward.4} parent=65 // loop_header
                  %s1135 = sphi 0, %s1137
                  %p1136 = scmp.ge.s32.totalorder %s1135, %s1128
                  %s1140 = sphi 0, %s1147
                  %s1141 = sphi %s1131, %s1150
                  %s1142 = sphi %s1133, %s1151
                $region76: #{classifier_atari_forward.4} parent=65 // loop_header_branch
                  %1139 = sbr.rel (%p1136) target = $region80
                $region77: #{classifier_atari_forward.4} parent=65 // loop_body
                  %v1143 = vld [vmem:[%s1141] sm:%s1045]
                  %1144 = vst [vmem:[%s1142] sm:%s1045] %v1143
                  %s1145 = sadd.s32 1, %s1140
                  %p1146 = scmp.ge.s32.totalorder %s1145, %s1128
                  %s1147 = scalar_select %p1146, 0, %s1145
                  %s1148 = smul.u32 %s1147, 4
                  %s1149 = smul.u32 %s1147, 4
                  %s1150 = scalar_lea.vmem %s1131, %s1148 [#allocation2]
                  %s1151 = scalar_lea.vmem %s1133, %s1149
                $region78: #{classifier_atari_forward.4} parent=65 // loop_footer
                  %s1137 = sadd.s32 %s1135, 1
                $region79: #{classifier_atari_forward.4} parent=65 // loop_footer_branch
                  %1134 = sbr.rel target = $region75
                $region80: #{classifier_atari_forward.4} parent=65 // loop_exit
                  _
              $region66: #{classifier_atari_forward.4} parent=43 // pred_fallthru
                _
            $region44: #{classifier_atari_forward.4} parent=39 // pred_fallthru
              _
            // Predicated region
            $region45: #{classifier_atari_forward.4} parent=39 // pred_check
              _
            $region46: #{classifier_atari_forward.4} parent=39 // pred_check_branch
              %933 = sbr.rel (0) target = $region48
            $region47: #{classifier_atari_forward.4} parent=39 // pred_region
              %s935 = ssub.s32 16, 1
              %s936 = sshrl.u32 %s922, 5
              // While loop
              $region49: #{classifier_atari_forward.4} parent=47 // loop_pre_header
                _
              $region50: #{classifier_atari_forward.4} parent=47 // loop_header
                %s938 = sphi 0, %s940
                %p939 = scmp.ge.s32.totalorder %s938, %s936
                %s943 = sphi 0, %s1012
                %s944 = sphi %s915, %s1015
                %s945 = sphi %s926, %s1016
              $region51: #{classifier_atari_forward.4} parent=47 // loop_header_branch
                %942 = sbr.rel (%p939) target = $region55
              $region52: #{classifier_atari_forward.4} parent=47 // loop_body
                %v946 = vld [vmem:[%s944] sm:%s935]
                %947 = vst [vmem:[%s945] sm:%s935] %v946
                %v948 = vld [vmem:[%s944 + $0x4] sm:%s935]
                %949 = vst [vmem:[%s945 + $0x4] sm:%s935] %v948
                %v950 = vld [vmem:[%s944 + $0x8] sm:%s935]
                %951 = vst [vmem:[%s945 + $0x8] sm:%s935] %v950
                %v952 = vld [vmem:[%s944 + $0xc] sm:%s935]
                %953 = vst [vmem:[%s945 + $0xc] sm:%s935] %v952
                %v954 = vld [vmem:[%s944 + $0x10] sm:%s935]
                %955 = vst [vmem:[%s945 + $0x10] sm:%s935] %v954
                %v956 = vld [vmem:[%s944 + $0x14] sm:%s935]
                %957 = vst [vmem:[%s945 + $0x14] sm:%s935] %v956
                %v958 = vld [vmem:[%s944 + $0x18] sm:%s935]
                %959 = vst [vmem:[%s945 + $0x18] sm:%s935] %v958
                %v960 = vld [vmem:[%s944 + $0x1c] sm:%s935]
                %961 = vst [vmem:[%s945 + $0x1c] sm:%s935] %v960
                %v962 = vld [vmem:[%s944 + $0x20] sm:%s935]
                %963 = vst [vmem:[%s945 + $0x20] sm:%s935] %v962
                %v964 = vld [vmem:[%s944 + $0x24] sm:%s935]
                %965 = vst [vmem:[%s945 + $0x24] sm:%s935] %v964
                %v966 = vld [vmem:[%s944 + $0x28] sm:%s935]
                %967 = vst [vmem:[%s945 + $0x28] sm:%s935] %v966
                %v968 = vld [vmem:[%s944 + $0x2c] sm:%s935]
                %969 = vst [vmem:[%s945 + $0x2c] sm:%s935] %v968
                %v970 = vld [vmem:[%s944 + $0x30] sm:%s935]
                %971 = vst [vmem:[%s945 + $0x30] sm:%s935] %v970
                %v972 = vld [vmem:[%s944 + $0x34] sm:%s935]
                %973 = vst [vmem:[%s945 + $0x34] sm:%s935] %v972
                %v974 = vld [vmem:[%s944 + $0x38] sm:%s935]
                %975 = vst [vmem:[%s945 + $0x38] sm:%s935] %v974
                %v976 = vld [vmem:[%s944 + $0x3c] sm:%s935]
                %977 = vst [vmem:[%s945 + $0x3c] sm:%s935] %v976
                %v978 = vld [vmem:[%s944 + $0x40] sm:%s935]
                %979 = vst [vmem:[%s945 + $0x40] sm:%s935] %v978
                %v980 = vld [vmem:[%s944 + $0x44] sm:%s935]
                %981 = vst [vmem:[%s945 + $0x44] sm:%s935] %v980
                %v982 = vld [vmem:[%s944 + $0x48] sm:%s935]
                %983 = vst [vmem:[%s945 + $0x48] sm:%s935] %v982
                %v984 = vld [vmem:[%s944 + $0x4c] sm:%s935]
                %985 = vst [vmem:[%s945 + $0x4c] sm:%s935] %v984
                %v986 = vld [vmem:[%s944 + $0x50] sm:%s935]
                %987 = vst [vmem:[%s945 + $0x50] sm:%s935] %v986
                %v988 = vld [vmem:[%s944 + $0x54] sm:%s935]
                %989 = vst [vmem:[%s945 + $0x54] sm:%s935] %v988
                %v990 = vld [vmem:[%s944 + $0x58] sm:%s935]
                %991 = vst [vmem:[%s945 + $0x58] sm:%s935] %v990
                %v992 = vld [vmem:[%s944 + $0x5c] sm:%s935]
                %993 = vst [vmem:[%s945 + $0x5c] sm:%s935] %v992
                %v994 = vld [vmem:[%s944 + $0x60] sm:%s935]
                %995 = vst [vmem:[%s945 + $0x60] sm:%s935] %v994
                %v996 = vld [vmem:[%s944 + $0x64] sm:%s935]
                %997 = vst [vmem:[%s945 + $0x64] sm:%s935] %v996
                %v998 = vld [vmem:[%s944 + $0x68] sm:%s935]
                %999 = vst [vmem:[%s945 + $0x68] sm:%s935] %v998
                %v1000 = vld [vmem:[%s944 + $0x6c] sm:%s935]
                %1001 = vst [vmem:[%s945 + $0x6c] sm:%s935] %v1000
                %v1002 = vld [vmem:[%s944 + $0x70] sm:%s935]
                %1003 = vst [vmem:[%s945 + $0x70] sm:%s935] %v1002
                %v1004 = vld [vmem:[%s944 + $0x74] sm:%s935]
                %1005 = vst [vmem:[%s945 + $0x74] sm:%s935] %v1004
                %v1006 = vld [vmem:[%s944 + $0x78] sm:%s935]
                %1007 = vst [vmem:[%s945 + $0x78] sm:%s935] %v1006
                %v1008 = vld [vmem:[%s944 + $0x7c] sm:%s935]
                %1009 = vst [vmem:[%s945 + $0x7c] sm:%s935] %v1008
                %s1010 = sadd.s32 1, %s943
                %p1011 = scmp.ge.s32.totalorder %s1010, %s936
                %s1012 = scalar_select %p1011, 0, %s1010
                %s1013 = smul.u32 %s1012, 128
                %s1014 = smul.u32 %s1012, 128
                %s1015 = scalar_lea.vmem %s915, %s1013 [#allocation2]
                %s1016 = scalar_lea.vmem %s926, %s1014
              $region53: #{classifier_atari_forward.4} parent=47 // loop_footer
                %s940 = sadd.s32 %s938, 1
              $region54: #{classifier_atari_forward.4} parent=47 // loop_footer_branch
                %937 = sbr.rel target = $region50
              $region55: #{classifier_atari_forward.4} parent=47 // loop_exit
                _
              %s1017 = sshrl.u32 %s922, 5
              %s1018 = sand.u32 %s922, 31
              %s1019 = smul.u32 %s1017, 32
              %s1020 = smul.u32 4, %s1019
              %s1021 = scalar_lea.vmem %s915, %s1020 [#allocation2]
              %s1022 = smul.u32 4, %s1019
              %s1023 = scalar_lea.vmem %s926, %s1022
              // While loop
              $region56: #{classifier_atari_forward.4} parent=47 // loop_pre_header
                _
              $region57: #{classifier_atari_forward.4} parent=47 // loop_header
                %s1025 = sphi 0, %s1027
                %p1026 = scmp.ge.s32.totalorder %s1025, %s1018
                %s1030 = sphi 0, %s1037
                %s1031 = sphi %s1021, %s1040
                %s1032 = sphi %s1023, %s1041
              $region58: #{classifier_atari_forward.4} parent=47 // loop_header_branch
                %1029 = sbr.rel (%p1026) target = $region62
              $region59: #{classifier_atari_forward.4} parent=47 // loop_body
                %v1033 = vld [vmem:[%s1031] sm:%s935]
                %1034 = vst [vmem:[%s1032] sm:%s935] %v1033
                %s1035 = sadd.s32 1, %s1030
                %p1036 = scmp.ge.s32.totalorder %s1035, %s1018
                %s1037 = scalar_select %p1036, 0, %s1035
                %s1038 = smul.u32 %s1037, 4
                %s1039 = smul.u32 %s1037, 4
                %s1040 = scalar_lea.vmem %s1021, %s1038 [#allocation2]
                %s1041 = scalar_lea.vmem %s1023, %s1039
              $region60: #{classifier_atari_forward.4} parent=47 // loop_footer
                %s1027 = sadd.s32 %s1025, 1
              $region61: #{classifier_atari_forward.4} parent=47 // loop_footer_branch
                %1024 = sbr.rel target = $region57
              $region62: #{classifier_atari_forward.4} parent=47 // loop_exit
                _
            $region48: #{classifier_atari_forward.4} parent=39 // pred_fallthru
              _
          $region40: #{classifier_atari_forward.4} parent=35 // pred_fallthru
            _
          %1152 = vnop
        $region36: #{classifier_atari_forward.4} parent=31 // pred_fallthru
          _
      $region32: #{classifier_atari_forward.4} parent=5 // pred_fallthru
        _
      %p1153 = scmp.le.s32.totalorder 2, %s9
      // Predicated region
      $region81: #{classifier_atari_forward.4} parent=5 // pred_check
        %p1154 = pneg %p1153
      $region82: #{classifier_atari_forward.4} parent=5 // pred_check_branch
        %1156 = sbr.rel (%p1154) target = $region84
      $region83: #{classifier_atari_forward.4} parent=5 // pred_region
        %s1157 = ssub.s32 %s9, 2
        // Predicated region
        $region85: #{classifier_atari_forward.4} parent=83 // pred_check
          %p1158 = pneg %p106
        $region86: #{classifier_atari_forward.4} parent=83 // pred_check_branch
          %1160 = sbr.rel (%p1158) target = $region88
        $region87: #{classifier_atari_forward.4} parent=83 // pred_region
          %s1161 = sand.u32 %s91, 1
          %s1162 = sand.u32 %s91, 1
          %s1163 = smul.addr %s1162, 256
          %s1164 = scalar_lea.vmem [#allocation2], %s1163
        $region88: #{classifier_atari_forward.4} parent=83 // pred_fallthru
          _
      $region84: #{classifier_atari_forward.4} parent=5 // pred_fallthru
        _
    $region6: #{classifier_atari_forward.4} parent=1 // loop_footer
      %s13 = sadd.s32 1, %s9
    $region7: #{classifier_atari_forward.4} parent=1 // loop_footer_branch
      %8 = sbr.rel target = $region3
    $region8: #{classifier_atari_forward.4} parent=1 // loop_exit
      _

// kernel: classifier_atari_forward.5
$region0: #{classifier_atari_forward.5}
  #allocation0 [shape = 'u32[]', space=smem, size = 0x4, offset = 0x4, fixed_abs, tag = 'smem constant byte address 0x4 - core index']
  #allocation1 [shape = 'u32[72,128]{1,0:T(1,128)}', space=vmem, size = 0x9000, scoped, tag = 'internal scratch']
  %s0 = inlined_call_operand.vmem [shape: bf16[162,512], index: 0, kind: input, shape index: {}]
  %s1 = inlined_call_operand.vmem [shape: bf16[512,64], index: 1, kind: input, shape index: {}]
  %s2 = inlined_call_operand.vmem [shape: f32[1,64], index: 2, kind: input, shape index: {}]
  %s3 = inlined_call_operand.vmem [shape: bf16[162,64], index: 3, kind: output, shape index: {}]
  %s4 = sld [smem:[#allocation0]]
  $region22: #{classifier_atari_forward.5} parent=0
    _
  %s6 = ssub.s32 1, %s4
  %s7 = scalar_select 0, %s6, %s4
  // Predicated region
  $region2: #{classifier_atari_forward.5} parent=0 // pred_check
    _
  $region3: #{classifier_atari_forward.5} parent=0 // pred_check_branch
    %9 = sbr.rel (0) target = $region5
  $region4: #{classifier_atari_forward.5} parent=0 // pred_region
    _
  $region5: #{classifier_atari_forward.5} parent=0 // pred_fallthru
    _
  // Predicated region
  $region6: #{classifier_atari_forward.5} parent=0 // pred_check
    _
  $region7: #{classifier_atari_forward.5} parent=0 // pred_check_branch
    %11 = sbr.rel (0) target = $region9
  $region8: #{classifier_atari_forward.5} parent=0 // pred_region
    _
  $region9: #{classifier_atari_forward.5} parent=0 // pred_fallthru
    _
  // Predicated region
  $region10: #{classifier_atari_forward.5} parent=0 // pred_check
    _
  $region11: #{classifier_atari_forward.5} parent=0 // pred_check_branch
    %13 = sbr.rel (0) target = $region13
  $region12: #{classifier_atari_forward.5} parent=0 // pred_region
    _
  $region13: #{classifier_atari_forward.5} parent=0 // pred_fallthru
    _
  %v14 = vld [vmem:[%s0] sm:$0xff]
  %v15 = vld [vmem:[%s0 + $0x8] sm:$0xff]
  %v16 = vld [vmem:[%s0 + $0x10] sm:$0xff]
  %v17 = vld [vmem:[%s0 + $0x18] sm:$0xff]
  %v18 = vld [vmem:[%s0 + $0x20] sm:$0xff]
  %v19 = vld [vmem:[%s0 + $0x28] sm:$0xff]
  %v20 = vld [vmem:[%s0 + $0x30] sm:$0xff]
  %v21 = vld [vmem:[%s0 + $0x38] sm:$0xff]
  %v22 = vld [vmem:[%s0 + $0x40] sm:$0xff]
  %v23 = vld [vmem:[%s0 + $0x48] sm:$0xff]
  %v24 = vld [vmem:[%s0 + $0x50] sm:$0xff]
  %v25 = vld [vmem:[%s0 + $0x58] sm:$0xff]
  %v26 = vld [vmem:[%s0 + $0x60] sm:$0xff]
  %v27 = vld [vmem:[%s0 + $0x68] sm:$0xff]
  %v28 = vld [vmem:[%s0 + $0x70] sm:$0xff]
  %v29 = vld [vmem:[%s0 + $0x78] sm:$0xff]
  %v30 = vld [vmem:[%s0 + $0x80] sm:$0xff]
  %v31 = vld [vmem:[%s0 + $0x88] sm:$0xff]
  %v32 = vld [vmem:[%s0 + $0x90] sm:$0xff]
  %v33 = vld [vmem:[%s0 + $0x98] sm:$0xff]
  %v34 = vld [vmem:[%s0 + $0xa0] sm:$0xff]
  %v35 = vld [vmem:[%s0 + $0xa8] sm:$0xff]
  %v36 = vld [vmem:[%s0 + $0xb0] sm:$0xff]
  %v37 = vld [vmem:[%s0 + $0xb8] sm:$0xff]
  %v38 = vld [vmem:[%s0 + $0xc0] sm:$0xff]
  %v39 = vld [vmem:[%s0 + $0xc8] sm:$0xff]
  %v40 = vld [vmem:[%s0 + $0xd0] sm:$0xff]
  %v41 = vld [vmem:[%s0 + $0xd8] sm:$0xff]
  %v42 = vld [vmem:[%s0 + $0xe0] sm:$0xff]
  %v43 = vld [vmem:[%s0 + $0xe8] sm:$0xff]
  %v44 = vld [vmem:[%s0 + $0xf0] sm:$0xff]
  %v45 = vld [vmem:[%s0 + $0xf8] sm:$0xff]
  %v46 = vld [vmem:[%s0 + $0x100] sm:$0xff]
  %v47 = vld [vmem:[%s0 + $0x108] sm:$0xff]
  %v48 = vld [vmem:[%s0 + $0x110] sm:$0xff]
  %v49 = vld [vmem:[%s0 + $0x118] sm:$0xff]
  %v50 = vld [vmem:[%s0 + $0x120] sm:$0xff]
  %v51 = vld [vmem:[%s0 + $0x128] sm:$0xff]
  %v52 = vld [vmem:[%s0 + $0x130] sm:$0xff]
  %v53 = vld [vmem:[%s0 + $0x138] sm:$0xff]
  %v54 = vld [vmem:[%s0 + $0x140] sm:$0x11]
  %v55 = vld [vmem:[%s0 + $0x148] sm:$0x11]
  %v56 = vld [vmem:[%s1] sm:$0xf]
  %v57 = vld [vmem:[%s1 + $0x4] sm:$0xf]
  %v58 = vld [vmem:[%s1 + $0x8] sm:$0xf]
  %v59 = vld [vmem:[%s1 + $0xc] sm:$0xf]
  %v60 = vld [vmem:[%s1 + $0x10] sm:$0xf]
  %v61 = vld [vmem:[%s1 + $0x14] sm:$0xf]
  %v62 = vld [vmem:[%s1 + $0x18] sm:$0xf]
  %v63 = vld [vmem:[%s1 + $0x1c] sm:$0xf]
  %v64 = vld [vmem:[%s1 + $0x20] sm:$0xf]
  %v65 = vld [vmem:[%s1 + $0x24] sm:$0xf]
  %v66 = vld [vmem:[%s1 + $0x28] sm:$0xf]
  %v67 = vld [vmem:[%s1 + $0x2c] sm:$0xf]
  %v68 = vld [vmem:[%s1 + $0x30] sm:$0xf]
  %v69 = vld [vmem:[%s1 + $0x34] sm:$0xf]
  %v70 = vld [vmem:[%s1 + $0x38] sm:$0xf]
  %v71 = vld [vmem:[%s1 + $0x3c] sm:$0xf]
  %v72 = vld [vmem:[%s1 + $0x40] sm:$0xf]
  %v73 = vld [vmem:[%s1 + $0x44] sm:$0xf]
  %v74 = vld [vmem:[%s1 + $0x48] sm:$0xf]
  %v75 = vld [vmem:[%s1 + $0x4c] sm:$0xf]
  %v76 = vld [vmem:[%s1 + $0x50] sm:$0xf]
  %v77 = vld [vmem:[%s1 + $0x54] sm:$0xf]
  %v78 = vld [vmem:[%s1 + $0x58] sm:$0xf]
  %v79 = vld [vmem:[%s1 + $0x5c] sm:$0xf]
  %v80 = vld [vmem:[%s1 + $0x60] sm:$0xf]
  %v81 = vld [vmem:[%s1 + $0x64] sm:$0xf]
  %v82 = vld [vmem:[%s1 + $0x68] sm:$0xf]
  %v83 = vld [vmem:[%s1 + $0x6c] sm:$0xf]
  %v84 = vld [vmem:[%s1 + $0x70] sm:$0xf]
  %v85 = vld [vmem:[%s1 + $0x74] sm:$0xf]
  %v86 = vld [vmem:[%s1 + $0x78] sm:$0xf]
  %v87 = vld [vmem:[%s1 + $0x7c] sm:$0xf]
  %v88 = vld [vmem:[%s1 + $0x80] sm:$0xf]
  %v89 = vld [vmem:[%s1 + $0x84] sm:$0xf]
  %v90 = vld [vmem:[%s1 + $0x88] sm:$0xf]
  %v91 = vld [vmem:[%s1 + $0x8c] sm:$0xf]
  %v92 = vld [vmem:[%s1 + $0x90] sm:$0xf]
  %v93 = vld [vmem:[%s1 + $0x94] sm:$0xf]
  %v94 = vld [vmem:[%s1 + $0x98] sm:$0xf]
  %v95 = vld [vmem:[%s1 + $0x9c] sm:$0xf]
  %v96 = vld [vmem:[%s1 + $0xa0] sm:$0xf]
  %v97 = vld [vmem:[%s1 + $0xa4] sm:$0xf]
  %v98 = vld [vmem:[%s1 + $0xa8] sm:$0xf]
  %v99 = vld [vmem:[%s1 + $0xac] sm:$0xf]
  %v100 = vld [vmem:[%s1 + $0xb0] sm:$0xf]
  %v101 = vld [vmem:[%s1 + $0xb4] sm:$0xf]
  %v102 = vld [vmem:[%s1 + $0xb8] sm:$0xf]
  %v103 = vld [vmem:[%s1 + $0xbc] sm:$0xf]
  %v104 = vld [vmem:[%s1 + $0xc0] sm:$0xf]
  %v105 = vld [vmem:[%s1 + $0xc4] sm:$0xf]
  %v106 = vld [vmem:[%s1 + $0xc8] sm:$0xf]
  %v107 = vld [vmem:[%s1 + $0xcc] sm:$0xf]
  %v108 = vld [vmem:[%s1 + $0xd0] sm:$0xf]
  %v109 = vld [vmem:[%s1 + $0xd4] sm:$0xf]
  %v110 = vld [vmem:[%s1 + $0xd8] sm:$0xf]
  %v111 = vld [vmem:[%s1 + $0xdc] sm:$0xf]
  %v112 = vld [vmem:[%s1 + $0xe0] sm:$0xf]
  %v113 = vld [vmem:[%s1 + $0xe4] sm:$0xf]
  %v114 = vld [vmem:[%s1 + $0xe8] sm:$0xf]
  %v115 = vld [vmem:[%s1 + $0xec] sm:$0xf]
  %v116 = vld [vmem:[%s1 + $0xf0] sm:$0xf]
  %v117 = vld [vmem:[%s1 + $0xf4] sm:$0xf]
  %v118 = vld [vmem:[%s1 + $0xf8] sm:$0xf]
  %v119 = vld [vmem:[%s1 + $0xfc] sm:$0xf]
  %v120 = vld [vmem:[%s2] sm:$0x1]
  %v122 = vperm.slane %v120, 0
  %v166 = vunpack.c.l.b16 %v14
  %v167 = vunpack.c.h.b16 %v14
  %v168 = vunpack.c.l.b16 %v15
  %v169 = vunpack.c.h.b16 %v15
  %v170 = vunpack.c.l.b16 %v16
  %v171 = vunpack.c.h.b16 %v16
  %v172 = vunpack.c.l.b16 %v17
  %v173 = vunpack.c.h.b16 %v17
  %v174 = vunpack.c.l.b16 %v18
  %v175 = vunpack.c.h.b16 %v18
  %v176 = vunpack.c.l.b16 %v19
  %v177 = vunpack.c.h.b16 %v19
  %v178 = vunpack.c.l.b16 %v20
  %v179 = vunpack.c.h.b16 %v20
  %v180 = vunpack.c.l.b16 %v21
  %v181 = vunpack.c.h.b16 %v21
  %v182 = vunpack.c.l.b16 %v22
  %v183 = vunpack.c.h.b16 %v22
  %v184 = vunpack.c.l.b16 %v23
  %v185 = vunpack.c.h.b16 %v23
  %v186 = vunpack.c.l.b16 %v24
  %v187 = vunpack.c.h.b16 %v24
  %v188 = vunpack.c.l.b16 %v25
  %v189 = vunpack.c.h.b16 %v25
  %v190 = vunpack.c.l.b16 %v26
  %v191 = vunpack.c.h.b16 %v26
  %v192 = vunpack.c.l.b16 %v27
  %v193 = vunpack.c.h.b16 %v27
  %v194 = vunpack.c.l.b16 %v28
  %v195 = vunpack.c.h.b16 %v28
  %v196 = vunpack.c.l.b16 %v29
  %v197 = vunpack.c.h.b16 %v29
  %v198 = vunpack.c.l.b16 %v30
  %v199 = vunpack.c.h.b16 %v30
  %v200 = vunpack.c.l.b16 %v31
  %v201 = vunpack.c.h.b16 %v31
  %v202 = vunpack.c.l.b16 %v32
  %v203 = vunpack.c.h.b16 %v32
  %v204 = vunpack.c.l.b16 %v33
  %v205 = vunpack.c.h.b16 %v33
  %v206 = vunpack.c.l.b16 %v34
  %v207 = vunpack.c.h.b16 %v34
  %v208 = vunpack.c.l.b16 %v35
  %v209 = vunpack.c.h.b16 %v35
  %v210 = vunpack.c.l.b16 %v36
  %v211 = vunpack.c.h.b16 %v36
  %v212 = vunpack.c.l.b16 %v37
  %v213 = vunpack.c.h.b16 %v37
  %v214 = vunpack.c.l.b16 %v38
  %v215 = vunpack.c.h.b16 %v38
  %v216 = vunpack.c.l.b16 %v39
  %v217 = vunpack.c.h.b16 %v39
  %v218 = vunpack.c.l.b16 %v40
  %v219 = vunpack.c.h.b16 %v40
  %v220 = vunpack.c.l.b16 %v41
  %v221 = vunpack.c.h.b16 %v41
  %v222 = vunpack.c.l.b16 %v42
  %v223 = vunpack.c.h.b16 %v42
  %v224 = vunpack.c.l.b16 %v43
  %v225 = vunpack.c.h.b16 %v43
  %v226 = vunpack.c.l.b16 %v44
  %v227 = vunpack.c.h.b16 %v44
  %v228 = vunpack.c.l.b16 %v45
  %v229 = vunpack.c.h.b16 %v45
  %v230 = vunpack.c.l.b16 %v46
  %v231 = vunpack.c.h.b16 %v46
  %v232 = vunpack.c.l.b16 %v47
  %v233 = vunpack.c.h.b16 %v47
  %v234 = vunpack.c.l.b16 %v48
  %v235 = vunpack.c.h.b16 %v48
  %v236 = vunpack.c.l.b16 %v49
  %v237 = vunpack.c.h.b16 %v49
  %v238 = vunpack.c.l.b16 %v50
  %v239 = vunpack.c.h.b16 %v50
  %v240 = vunpack.c.l.b16 %v51
  %v241 = vunpack.c.h.b16 %v51
  %v242 = vunpack.c.l.b16 %v52
  %v243 = vunpack.c.h.b16 %v52
  %v244 = vunpack.c.l.b16 %v53
  %v245 = vunpack.c.h.b16 %v53
  %v246 = vunpack.c.l.b16 %v54
  %v247 = vunpack.c.h.b16 %v54
  %v248 = vunpack.c.l.b16 %v55
  %v249 = vunpack.c.h.b16 %v55
  %v250 = vpack.c.b16 %v170, %v166
  %v251 = vpack.c.b16 %v171, %v167
  %v252 = vpack.c.b16 %v172, %v168
  %v253 = vpack.c.b16 %v173, %v169
  %v254 = vpack.c.b16 %v178, %v174
  %v255 = vpack.c.b16 %v179, %v175
  %v256 = vpack.c.b16 %v180, %v176
  %v257 = vpack.c.b16 %v181, %v177
  %v258 = vpack.c.b16 %v186, %v182
  %v259 = vpack.c.b16 %v187, %v183
  %v260 = vpack.c.b16 %v188, %v184
  %v261 = vpack.c.b16 %v189, %v185
  %v262 = vpack.c.b16 %v194, %v190
  %v263 = vpack.c.b16 %v195, %v191
  %v264 = vpack.c.b16 %v196, %v192
  %v265 = vpack.c.b16 %v197, %v193
  %v266 = vpack.c.b16 %v202, %v198
  %v267 = vpack.c.b16 %v203, %v199
  %v268 = vpack.c.b16 %v204, %v200
  %v269 = vpack.c.b16 %v205, %v201
  %v270 = vpack.c.b16 %v210, %v206
  %v271 = vpack.c.b16 %v211, %v207
  %v272 = vpack.c.b16 %v212, %v208
  %v273 = vpack.c.b16 %v213, %v209
  %v274 = vpack.c.b16 %v218, %v214
  %v275 = vpack.c.b16 %v219, %v215
  %v276 = vpack.c.b16 %v220, %v216
  %v277 = vpack.c.b16 %v221, %v217
  %v278 = vpack.c.b16 %v226, %v222
  %v279 = vpack.c.b16 %v227, %v223
  %v280 = vpack.c.b16 %v228, %v224
  %v281 = vpack.c.b16 %v229, %v225
  %v282 = vpack.c.b16 %v234, %v230
  %v283 = vpack.c.b16 %v235, %v231
  %v284 = vpack.c.b16 %v236, %v232
  %v285 = vpack.c.b16 %v237, %v233
  %v286 = vpack.c.b16 %v242, %v238
  %v287 = vpack.c.b16 %v243, %v239
  %v288 = vpack.c.b16 %v244, %v240
  %v289 = vpack.c.b16 %v245, %v241
  %v290 = vpack.c.b16 %v246, %v246
  %v291 = vpack.c.b16 %v247, %v247
  %v292 = vpack.c.b16 %v248, %v248
  %v293 = vpack.c.b16 %v249, %v249
  %v402 = vunpack.c.l.b16 %v56
  %v403 = vunpack.c.l.b16 %v57
  %v404 = vunpack.c.l.b16 %v58
  %v405 = vunpack.c.l.b16 %v59
  %v406 = vunpack.c.l.b16 %v60
  %v407 = vunpack.c.l.b16 %v61
  %v408 = vunpack.c.l.b16 %v62
  %v409 = vunpack.c.l.b16 %v63
  %v410 = vunpack.c.l.b16 %v64
  %v411 = vunpack.c.l.b16 %v65
  %v412 = vunpack.c.l.b16 %v66
  %v413 = vunpack.c.l.b16 %v67
  %v414 = vunpack.c.l.b16 %v68
  %v415 = vunpack.c.l.b16 %v69
  %v416 = vunpack.c.l.b16 %v70
  %v417 = vunpack.c.l.b16 %v71
  %v418 = vunpack.c.l.b16 %v72
  %v419 = vunpack.c.l.b16 %v73
  %v420 = vunpack.c.l.b16 %v74
  %v421 = vunpack.c.l.b16 %v75
  %v422 = vunpack.c.l.b16 %v76
  %v423 = vunpack.c.l.b16 %v77
  %v424 = vunpack.c.l.b16 %v78
  %v425 = vunpack.c.l.b16 %v79
  %v426 = vunpack.c.l.b16 %v80
  %v427 = vunpack.c.l.b16 %v81
  %v428 = vunpack.c.l.b16 %v82
  %v429 = vunpack.c.l.b16 %v83
  %v430 = vunpack.c.l.b16 %v84
  %v431 = vunpack.c.l.b16 %v85
  %v432 = vunpack.c.l.b16 %v86
  %v433 = vunpack.c.l.b16 %v87
  %v434 = vunpack.c.l.b16 %v88
  %v435 = vunpack.c.l.b16 %v89
  %v436 = vunpack.c.l.b16 %v90
  %v437 = vunpack.c.l.b16 %v91
  %v438 = vunpack.c.l.b16 %v92
  %v439 = vunpack.c.l.b16 %v93
  %v440 = vunpack.c.l.b16 %v94
  %v441 = vunpack.c.l.b16 %v95
  %v442 = vunpack.c.l.b16 %v96
  %v443 = vunpack.c.l.b16 %v97
  %v444 = vunpack.c.l.b16 %v98
  %v445 = vunpack.c.l.b16 %v99
  %v446 = vunpack.c.l.b16 %v100
  %v447 = vunpack.c.l.b16 %v101
  %v448 = vunpack.c.l.b16 %v102
  %v449 = vunpack.c.l.b16 %v103
  %v450 = vunpack.c.l.b16 %v104
  %v451 = vunpack.c.l.b16 %v105
  %v452 = vunpack.c.l.b16 %v106
  %v453 = vunpack.c.l.b16 %v107
  %v454 = vunpack.c.l.b16 %v108
  %v455 = vunpack.c.l.b16 %v109
  %v456 = vunpack.c.l.b16 %v110
  %v457 = vunpack.c.l.b16 %v111
  %v458 = vunpack.c.l.b16 %v112
  %v459 = vunpack.c.l.b16 %v113
  %v460 = vunpack.c.l.b16 %v114
  %v461 = vunpack.c.l.b16 %v115
  %v462 = vunpack.c.l.b16 %v116
  %v463 = vunpack.c.l.b16 %v117
  %v464 = vunpack.c.l.b16 %v118
  %v465 = vunpack.c.l.b16 %v119
  %v466 = vpack.c.b16 %v403, %v402
  %v467 = vpack.c.b16 %v405, %v404
  %v468 = vpack.c.b16 %v407, %v406
  %v469 = vpack.c.b16 %v409, %v408
  %v470 = vpack.c.b16 %v411, %v410
  %v471 = vpack.c.b16 %v413, %v412
  %v472 = vpack.c.b16 %v415, %v414
  %v473 = vpack.c.b16 %v417, %v416
  %v474 = vpack.c.b16 %v419, %v418
  %v475 = vpack.c.b16 %v421, %v420
  %v476 = vpack.c.b16 %v423, %v422
  %v477 = vpack.c.b16 %v425, %v424
  %v478 = vpack.c.b16 %v427, %v426
  %v479 = vpack.c.b16 %v429, %v428
  %v480 = vpack.c.b16 %v431, %v430
  %v481 = vpack.c.b16 %v433, %v432
  %v482 = vpack.c.b16 %v435, %v434
  %v483 = vpack.c.b16 %v437, %v436
  %v484 = vpack.c.b16 %v439, %v438
  %v485 = vpack.c.b16 %v441, %v440
  %v486 = vpack.c.b16 %v443, %v442
  %v487 = vpack.c.b16 %v445, %v444
  %v488 = vpack.c.b16 %v447, %v446
  %v489 = vpack.c.b16 %v449, %v448
  %v490 = vpack.c.b16 %v451, %v450
  %v491 = vpack.c.b16 %v453, %v452
  %v492 = vpack.c.b16 %v455, %v454
  %v493 = vpack.c.b16 %v457, %v456
  %v494 = vpack.c.b16 %v459, %v458
  %v495 = vpack.c.b16 %v461, %v460
  %v496 = vpack.c.b16 %v463, %v462
  %v497 = vpack.c.b16 %v465, %v464
  %530 = vmatpush.bf16.msra.mxu0 %v473
  %531 = vmatpush.bf16.msra.mxu0 %v472
  %532 = vmatpush.bf16.msra.mxu0 %v471
  %533 = vmatpush.bf16.msra.mxu0 %v470
  %534 = vmatpush.bf16.msra.mxu0 %v469
  %535 = vmatpush.bf16.msra.mxu0 %v468
  %536 = vmatpush.bf16.msra.mxu0 %v467
  %537 = vmatpush.bf16.msra.mxu0 %v466
  %538 = vmatmul.bf16.gmra.mxu0 %v250
  %v539 = vpop.f32.mrf.mxu0
  %v540 = vadd.f32 %v122, %v539
  %v541 = vpop.f32.mrf.mxu0
  %v542 = vadd.f32 %v122, %v541
  %543 = vmatmul.bf16.gmra.mxu0 %v254
  %v544 = vpop.f32.mrf.mxu0
  %v545 = vadd.f32 %v122, %v544
  %v546 = vpop.f32.mrf.mxu0
  %v547 = vadd.f32 %v122, %v546
  %548 = vmatmul.bf16.gmra.mxu0 %v258
  %v549 = vpop.f32.mrf.mxu0
  %v550 = vadd.f32 %v122, %v549
  %v551 = vpop.f32.mrf.mxu0
  %v552 = vadd.f32 %v122, %v551
  %553 = vmatmul.bf16.gmra.mxu0 %v262
  %v554 = vpop.f32.mrf.mxu0
  %v555 = vadd.f32 %v122, %v554
  %v556 = vpop.f32.mrf.mxu0
  %v557 = vadd.f32 %v122, %v556
  %558 = vmatmul.bf16.gmra.mxu0 %v266
  %v559 = vpop.f32.mrf.mxu0
  %v560 = vadd.f32 %v122, %v559
  %v561 = vpop.f32.mrf.mxu0
  %v562 = vadd.f32 %v122, %v561
  %563 = vmatmul.bf16.gmra.mxu0 %v270
  %v564 = vpop.f32.mrf.mxu0
  %v565 = vadd.f32 %v122, %v564
  %v566 = vpop.f32.mrf.mxu0
  %v567 = vadd.f32 %v122, %v566
  %568 = vmatmul.bf16.gmra.mxu0 %v274
  %v569 = vpop.f32.mrf.mxu0
  %v570 = vadd.f32 %v122, %v569
  %v571 = vpop.f32.mrf.mxu0
  %v572 = vadd.f32 %v122, %v571
  %573 = vmatmul.bf16.gmra.mxu0 %v278
  %v574 = vpop.f32.mrf.mxu0
  %v575 = vadd.f32 %v122, %v574
  %v576 = vpop.f32.mrf.mxu0
  %v577 = vadd.f32 %v122, %v576
  %578 = vmatmul.bf16.gmra.mxu0 %v282
  %v579 = vpop.f32.mrf.mxu0
  %v580 = vadd.f32 %v122, %v579
  %v581 = vpop.f32.mrf.mxu0
  %v582 = vadd.f32 %v122, %v581
  %583 = vmatmul.bf16.gmra.mxu0 %v286
  %v584 = vpop.f32.mrf.mxu0
  %v585 = vadd.f32 %v122, %v584
  %v586 = vpop.f32.mrf.mxu0
  %v587 = vadd.f32 %v122, %v586
  %588 = vmatmul.bf16.gmra.mxu0 %v290
  %v589 = vpop.f32.mrf.mxu0
  %v590 = vadd.f32 %v122, %v589
  %v591 = vpop.f32.mrf.mxu0
  %592 = vdwg.mxu0
  %593 = vmatpush.bf16.msra.mxu0 %v481
  %594 = vmatpush.bf16.msra.mxu0 %v480
  %595 = vmatpush.bf16.msra.mxu0 %v479
  %596 = vmatpush.bf16.msra.mxu0 %v478
  %597 = vmatpush.bf16.msra.mxu0 %v477
  %598 = vmatpush.bf16.msra.mxu0 %v476
  %599 = vmatpush.bf16.msra.mxu0 %v475
  %600 = vmatpush.bf16.msra.mxu0 %v474
  %601 = vmatmul.bf16.gmra.mxu0 %v251
  %v602 = vpop.f32.mrf.mxu0
  %v603 = vadd.f32 %v540, %v602
  %v604 = vpop.f32.mrf.mxu0
  %v605 = vadd.f32 %v542, %v604
  %606 = vmatmul.bf16.gmra.mxu0 %v255
  %v607 = vpop.f32.mrf.mxu0
  %v608 = vadd.f32 %v545, %v607
  %v609 = vpop.f32.mrf.mxu0
  %v610 = vadd.f32 %v547, %v609
  %611 = vmatmul.bf16.gmra.mxu0 %v259
  %v612 = vpop.f32.mrf.mxu0
  %v613 = vadd.f32 %v550, %v612
  %v614 = vpop.f32.mrf.mxu0
  %v615 = vadd.f32 %v552, %v614
  %616 = vmatmul.bf16.gmra.mxu0 %v263
  %v617 = vpop.f32.mrf.mxu0
  %v618 = vadd.f32 %v555, %v617
  %v619 = vpop.f32.mrf.mxu0
  %v620 = vadd.f32 %v557, %v619
  %621 = vmatmul.bf16.gmra.mxu0 %v267
  %v622 = vpop.f32.mrf.mxu0
  %v623 = vadd.f32 %v560, %v622
  %v624 = vpop.f32.mrf.mxu0
  %v625 = vadd.f32 %v562, %v624
  %626 = vmatmul.bf16.gmra.mxu0 %v271
  %v627 = vpop.f32.mrf.mxu0
  %v628 = vadd.f32 %v565, %v627
  %v629 = vpop.f32.mrf.mxu0
  %v630 = vadd.f32 %v567, %v629
  %631 = vmatmul.bf16.gmra.mxu0 %v275
  %v632 = vpop.f32.mrf.mxu0
  %v633 = vadd.f32 %v570, %v632
  %v634 = vpop.f32.mrf.mxu0
  %v635 = vadd.f32 %v572, %v634
  %636 = vmatmul.bf16.gmra.mxu0 %v279
  %v637 = vpop.f32.mrf.mxu0
  %v638 = vadd.f32 %v575, %v637
  %v639 = vpop.f32.mrf.mxu0
  %v640 = vadd.f32 %v577, %v639
  %641 = vmatmul.bf16.gmra.mxu0 %v283
  %v642 = vpop.f32.mrf.mxu0
  %v643 = vadd.f32 %v580, %v642
  %v644 = vpop.f32.mrf.mxu0
  %v645 = vadd.f32 %v582, %v644
  %646 = vmatmul.bf16.gmra.mxu0 %v287
  %v647 = vpop.f32.mrf.mxu0
  %v648 = vadd.f32 %v585, %v647
  %v649 = vpop.f32.mrf.mxu0
  %v650 = vadd.f32 %v587, %v649
  %651 = vmatmul.bf16.gmra.mxu0 %v291
  %v652 = vpop.f32.mrf.mxu0
  %v653 = vadd.f32 %v590, %v652
  %v654 = vpop.f32.mrf.mxu0
  %655 = vdwg.mxu0
  %656 = vmatpush.bf16.msra.mxu0 %v489
  %657 = vmatpush.bf16.msra.mxu0 %v488
  %658 = vmatpush.bf16.msra.mxu0 %v487
  %659 = vmatpush.bf16.msra.mxu0 %v486
  %660 = vmatpush.bf16.msra.mxu0 %v485
  %661 = vmatpush.bf16.msra.mxu0 %v484
  %662 = vmatpush.bf16.msra.mxu0 %v483
  %663 = vmatpush.bf16.msra.mxu0 %v482
  %664 = vmatmul.bf16.gmra.mxu0 %v252
  %v665 = vpop.f32.mrf.mxu0
  %v666 = vadd.f32 %v603, %v665
  %v667 = vpop.f32.mrf.mxu0
  %v668 = vadd.f32 %v605, %v667
  %669 = vmatmul.bf16.gmra.mxu0 %v256
  %v670 = vpop.f32.mrf.mxu0
  %v671 = vadd.f32 %v608, %v670
  %v672 = vpop.f32.mrf.mxu0
  %v673 = vadd.f32 %v610, %v672
  %674 = vmatmul.bf16.gmra.mxu0 %v260
  %v675 = vpop.f32.mrf.mxu0
  %v676 = vadd.f32 %v613, %v675
  %v677 = vpop.f32.mrf.mxu0
  %v678 = vadd.f32 %v615, %v677
  %679 = vmatmul.bf16.gmra.mxu0 %v264
  %v680 = vpop.f32.mrf.mxu0
  %v681 = vadd.f32 %v618, %v680
  %v682 = vpop.f32.mrf.mxu0
  %v683 = vadd.f32 %v620, %v682
  %684 = vmatmul.bf16.gmra.mxu0 %v268
  %v685 = vpop.f32.mrf.mxu0
  %v686 = vadd.f32 %v623, %v685
  %v687 = vpop.f32.mrf.mxu0
  %v688 = vadd.f32 %v625, %v687
  %689 = vmatmul.bf16.gmra.mxu0 %v272
  %v690 = vpop.f32.mrf.mxu0
  %v691 = vadd.f32 %v628, %v690
  %v692 = vpop.f32.mrf.mxu0
  %v693 = vadd.f32 %v630, %v692
  %694 = vmatmul.bf16.gmra.mxu0 %v276
  %v695 = vpop.f32.mrf.mxu0
  %v696 = vadd.f32 %v633, %v695
  %v697 = vpop.f32.mrf.mxu0
  %v698 = vadd.f32 %v635, %v697
  %699 = vmatmul.bf16.gmra.mxu0 %v280
  %v700 = vpop.f32.mrf.mxu0
  %v701 = vadd.f32 %v638, %v700
  %v702 = vpop.f32.mrf.mxu0
  %v703 = vadd.f32 %v640, %v702
  %704 = vmatmul.bf16.gmra.mxu0 %v284
  %v705 = vpop.f32.mrf.mxu0
  %v706 = vadd.f32 %v643, %v705
  %v707 = vpop.f32.mrf.mxu0
  %v708 = vadd.f32 %v645, %v707
  %709 = vmatmul.bf16.gmra.mxu0 %v288
  %v710 = vpop.f32.mrf.mxu0
  %v711 = vadd.f32 %v648, %v710
  %v712 = vpop.f32.mrf.mxu0
  %v713 = vadd.f32 %v650, %v712
  %714 = vmatmul.bf16.gmra.mxu0 %v292
  %v715 = vpop.f32.mrf.mxu0
  %v716 = vadd.f32 %v653, %v715
  %v717 = vpop.f32.mrf.mxu0
  %718 = vdwg.mxu0
  %719 = vmatpush.bf16.msra.mxu0 %v497
  %720 = vmatpush.bf16.msra.mxu0 %v496
  %721 = vmatpush.bf16.msra.mxu0 %v495
  %722 = vmatpush.bf16.msra.mxu0 %v494
  %723 = vmatpush.bf16.msra.mxu0 %v493
  %724 = vmatpush.bf16.msra.mxu0 %v492
  %725 = vmatpush.bf16.msra.mxu0 %v491
  %726 = vmatpush.bf16.msra.mxu0 %v490
  %727 = vmatmul.bf16.gmra.mxu0 %v253
  %v728 = vpop.f32.mrf.mxu0
  %v729 = vadd.f32 %v666, %v728
  %v730 = vpop.f32.mrf.mxu0
  %v731 = vadd.f32 %v668, %v730
  %732 = vmatmul.bf16.gmra.mxu0 %v257
  %v733 = vpop.f32.mrf.mxu0
  %v734 = vadd.f32 %v671, %v733
  %v735 = vpop.f32.mrf.mxu0
  %v736 = vadd.f32 %v673, %v735
  %737 = vmatmul.bf16.gmra.mxu0 %v261
  %v738 = vpop.f32.mrf.mxu0
  %v739 = vadd.f32 %v676, %v738
  %v740 = vpop.f32.mrf.mxu0
  %v741 = vadd.f32 %v678, %v740
  %742 = vmatmul.bf16.gmra.mxu0 %v265
  %v743 = vpop.f32.mrf.mxu0
  %v744 = vadd.f32 %v681, %v743
  %v745 = vpop.f32.mrf.mxu0
  %v746 = vadd.f32 %v683, %v745
  %747 = vmatmul.bf16.gmra.mxu0 %v269
  %v748 = vpop.f32.mrf.mxu0
  %v749 = vadd.f32 %v686, %v748
  %v750 = vpop.f32.mrf.mxu0
  %v751 = vadd.f32 %v688, %v750
  %752 = vmatmul.bf16.gmra.mxu0 %v273
  %v753 = vpop.f32.mrf.mxu0
  %v754 = vadd.f32 %v691, %v753
  %v755 = vpop.f32.mrf.mxu0
  %v756 = vadd.f32 %v693, %v755
  %757 = vmatmul.bf16.gmra.mxu0 %v277
  %v758 = vpop.f32.mrf.mxu0
  %v759 = vadd.f32 %v696, %v758
  %v760 = vpop.f32.mrf.mxu0
  %v761 = vadd.f32 %v698, %v760
  %762 = vmatmul.bf16.gmra.mxu0 %v281
  %v763 = vpop.f32.mrf.mxu0
  %v764 = vadd.f32 %v701, %v763
  %v765 = vpop.f32.mrf.mxu0
  %v766 = vadd.f32 %v703, %v765
  %767 = vmatmul.bf16.gmra.mxu0 %v285
  %v768 = vpop.f32.mrf.mxu0
  %v769 = vadd.f32 %v706, %v768
  %v770 = vpop.f32.mrf.mxu0
  %v771 = vadd.f32 %v708, %v770
  %772 = vmatmul.bf16.gmra.mxu0 %v289
  %v773 = vpop.f32.mrf.mxu0
  %v774 = vadd.f32 %v711, %v773
  %v775 = vpop.f32.mrf.mxu0
  %v776 = vadd.f32 %v713, %v775
  %777 = vmatmul.bf16.gmra.mxu0 %v293
  %v778 = vpop.f32.mrf.mxu0
  %v779 = vadd.f32 %v716, %v778
  %v780 = vpop.f32.mrf.mxu0
  %781 = vdwg.mxu0
  %v782 = vmax.f32 %v729, 0.0
  %v783 = vmax.f32 %v731, 0.0
  %v784 = vmax.f32 %v734, 0.0
  %v785 = vmax.f32 %v736, 0.0
  %v786 = vmax.f32 %v739, 0.0
  %v787 = vmax.f32 %v741, 0.0
  %v788 = vmax.f32 %v744, 0.0
  %v789 = vmax.f32 %v746, 0.0
  %v790 = vmax.f32 %v749, 0.0
  %v791 = vmax.f32 %v751, 0.0
  %v792 = vmax.f32 %v754, 0.0
  %v793 = vmax.f32 %v756, 0.0
  %v794 = vmax.f32 %v759, 0.0
  %v795 = vmax.f32 %v761, 0.0
  %v796 = vmax.f32 %v764, 0.0
  %v797 = vmax.f32 %v766, 0.0
  %v798 = vmax.f32 %v769, 0.0
  %v799 = vmax.f32 %v771, 0.0
  %v800 = vmax.f32 %v774, 0.0
  %v801 = vmax.f32 %v776, 0.0
  %v802 = vmax.f32 %v779, 0.0
  %v803 = vpack.c.bf16 %v782, %v782
  %v804 = vpack.c.bf16 %v783, %v783
  %v805 = vpack.c.bf16 %v784, %v784
  %v806 = vpack.c.bf16 %v785, %v785
  %v807 = vpack.c.bf16 %v786, %v786
  %v808 = vpack.c.bf16 %v787, %v787
  %v809 = vpack.c.bf16 %v788, %v788
  %v810 = vpack.c.bf16 %v789, %v789
  %v811 = vpack.c.bf16 %v790, %v790
  %v812 = vpack.c.bf16 %v791, %v791
  %v813 = vpack.c.bf16 %v792, %v792
  %v814 = vpack.c.bf16 %v793, %v793
  %v815 = vpack.c.bf16 %v794, %v794
  %v816 = vpack.c.bf16 %v795, %v795
  %v817 = vpack.c.bf16 %v796, %v796
  %v818 = vpack.c.bf16 %v797, %v797
  %v819 = vpack.c.bf16 %v798, %v798
  %v820 = vpack.c.bf16 %v799, %v799
  %v821 = vpack.c.bf16 %v800, %v800
  %v822 = vpack.c.bf16 %v801, %v801
  %v823 = vpack.c.bf16 %v802, %v802
  %vm824 = vcmask 519168
  %825 = vst.msk [vmem:[%s3] sm:$0xf] %vm824, %v803
  %826 = vst.msk [vmem:[%s3 + $0x4] sm:$0xf] %vm824, %v804
  %827 = vst.msk [vmem:[%s3 + $0x8] sm:$0xf] %vm824, %v805
  %828 = vst.msk [vmem:[%s3 + $0xc] sm:$0xf] %vm824, %v806
  %829 = vst.msk [vmem:[%s3 + $0x10] sm:$0xf] %vm824, %v807
  %830 = vst.msk [vmem:[%s3 + $0x14] sm:$0xf] %vm824, %v808
  %831 = vst.msk [vmem:[%s3 + $0x18] sm:$0xf] %vm824, %v809
  %832 = vst.msk [vmem:[%s3 + $0x1c] sm:$0xf] %vm824, %v810
  %833 = vst.msk [vmem:[%s3 + $0x20] sm:$0xf] %vm824, %v811
  %834 = vst.msk [vmem:[%s3 + $0x24] sm:$0xf] %vm824, %v812
  %835 = vst.msk [vmem:[%s3 + $0x28] sm:$0xf] %vm824, %v813
  %836 = vst.msk [vmem:[%s3 + $0x2c] sm:$0xf] %vm824, %v814
  %837 = vst.msk [vmem:[%s3 + $0x30] sm:$0xf] %vm824, %v815
  %838 = vst.msk [vmem:[%s3 + $0x34] sm:$0xf] %vm824, %v816
  %839 = vst.msk [vmem:[%s3 + $0x38] sm:$0xf] %vm824, %v817
  %840 = vst.msk [vmem:[%s3 + $0x3c] sm:$0xf] %vm824, %v818
  %841 = vst.msk [vmem:[%s3 + $0x40] sm:$0xf] %vm824, %v819
  %842 = vst.msk [vmem:[%s3 + $0x44] sm:$0xf] %vm824, %v820
  %843 = vst.msk [vmem:[%s3 + $0x48] sm:$0xf] %vm824, %v821
  %844 = vst.msk [vmem:[%s3 + $0x4c] sm:$0xf] %vm824, %v822
  %vm845 = vcmask 516096
  %846 = vst.msk [vmem:[%s3 + $0x50] sm:$0x1] %vm845, %v823
  // Predicated region
  $region14: #{classifier_atari_forward.5} parent=0 // pred_check
    _
  $region15: #{classifier_atari_forward.5} parent=0 // pred_check_branch
    %848 = sbr.rel (0) target = $region17
  $region16: #{classifier_atari_forward.5} parent=0 // pred_region
    _
  $region17: #{classifier_atari_forward.5} parent=0 // pred_fallthru
    _
  // Predicated region
  $region18: #{classifier_atari_forward.5} parent=0 // pred_check
    _
  $region19: #{classifier_atari_forward.5} parent=0 // pred_check_branch
    %850 = sbr.rel (0) target = $region21
  $region20: #{classifier_atari_forward.5} parent=0 // pred_region
    _
  $region21: #{classifier_atari_forward.5} parent=0 // pred_fallthru
    _

// kernel: classifier_atari_forward.6
$region0: #{classifier_atari_forward.6}
  #allocation0 [shape = 'u32[]', space=smem, size = 0x4, offset = 0x4, fixed_abs, tag = 'smem constant byte address 0x4 - core index']
  #allocation1 [shape = 'u32[72,128]{1,0:T(1,128)}', space=vmem, size = 0x9000, scoped, tag = 'internal scratch']
  %s0 = inlined_call_operand.vmem [shape: bf16[98,576], index: 0, kind: input, shape index: {}]
  %s1 = inlined_call_operand.vmem [shape: bf16[576,64], index: 1, kind: input, shape index: {}]
  %s2 = inlined_call_operand.vmem [shape: f32[1,64], index: 2, kind: input, shape index: {}]
  %s3 = inlined_call_operand.vmem [shape: bf16[98,64], index: 3, kind: output, shape index: {}]
  %s4 = sld [smem:[#allocation0]]
  $region22: #{classifier_atari_forward.6} parent=0
    _
  %s6 = ssub.s32 1, %s4
  %s7 = scalar_select 0, %s6, %s4
  // Predicated region
  $region2: #{classifier_atari_forward.6} parent=0 // pred_check
    _
  $region3: #{classifier_atari_forward.6} parent=0 // pred_check_branch
    %9 = sbr.rel (0) target = $region5
  $region4: #{classifier_atari_forward.6} parent=0 // pred_region
    _
  $region5: #{classifier_atari_forward.6} parent=0 // pred_fallthru
    _
  // Predicated region
  $region6: #{classifier_atari_forward.6} parent=0 // pred_check
    _
  $region7: #{classifier_atari_forward.6} parent=0 // pred_check_branch
    %11 = sbr.rel (0) target = $region9
  $region8: #{classifier_atari_forward.6} parent=0 // pred_region
    _
  $region9: #{classifier_atari_forward.6} parent=0 // pred_fallthru
    _
  // Predicated region
  $region10: #{classifier_atari_forward.6} parent=0 // pred_check
    _
  $region11: #{classifier_atari_forward.6} parent=0 // pred_check_branch
    %13 = sbr.rel (0) target = $region13
  $region12: #{classifier_atari_forward.6} parent=0 // pred_region
    _
  $region13: #{classifier_atari_forward.6} parent=0 // pred_fallthru
    _
  %v15 = vld [vmem:[%s0] sm:$0xff]
  %v16 = vld [vmem:[%s0 + $0x8] sm:$0xff]
  %v17 = vld [vmem:[%s0 + $0x10] sm:$0xf]
  %v18 = vld [vmem:[%s0 + $0x14] sm:$0xff]
  %v19 = vld [vmem:[%s0 + $0x1c] sm:$0xff]
  %v20 = vld [vmem:[%s0 + $0x24] sm:$0xf]
  %v21 = vld [vmem:[%s0 + $0x28] sm:$0xff]
  %v22 = vld [vmem:[%s0 + $0x30] sm:$0xff]
  %v23 = vld [vmem:[%s0 + $0x38] sm:$0xf]
  %v24 = vld [vmem:[%s0 + $0x3c] sm:$0xff]
  %v25 = vld [vmem:[%s0 + $0x44] sm:$0xff]
  %v26 = vld [vmem:[%s0 + $0x4c] sm:$0xf]
  %v27 = vld [vmem:[%s0 + $0x50] sm:$0xff]
  %v28 = vld [vmem:[%s0 + $0x58] sm:$0xff]
  %v29 = vld [vmem:[%s0 + $0x60] sm:$0xf]
  %v30 = vld [vmem:[%s0 + $0x64] sm:$0xff]
  %v31 = vld [vmem:[%s0 + $0x6c] sm:$0xff]
  %v32 = vld [vmem:[%s0 + $0x74] sm:$0xf]
  %v33 = vld [vmem:[%s0 + $0x78] sm:$0xff]
  %v34 = vld [vmem:[%s0 + $0x80] sm:$0xff]
  %v35 = vld [vmem:[%s0 + $0x88] sm:$0xf]
  %v36 = vld [vmem:[%s0 + $0x8c] sm:$0xff]
  %v37 = vld [vmem:[%s0 + $0x94] sm:$0xff]
  %v38 = vld [vmem:[%s0 + $0x9c] sm:$0xf]
  %v39 = vld [vmem:[%s0 + $0xa0] sm:$0xff]
  %v40 = vld [vmem:[%s0 + $0xa8] sm:$0xff]
  %v41 = vld [vmem:[%s0 + $0xb0] sm:$0xf]
  %v42 = vld [vmem:[%s0 + $0xb4] sm:$0xff]
  %v43 = vld [vmem:[%s0 + $0xbc] sm:$0xff]
  %v44 = vld [vmem:[%s0 + $0xc4] sm:$0xf]
  %v45 = vld [vmem:[%s0 + $0xc8] sm:$0xff]
  %v46 = vld [vmem:[%s0 + $0xd0] sm:$0xff]
  %v47 = vld [vmem:[%s0 + $0xd8] sm:$0xf]
  %v48 = vld [vmem:[%s0 + $0xdc] sm:$0xff]
  %v49 = vld [vmem:[%s0 + $0xe4] sm:$0xff]
  %v50 = vld [vmem:[%s0 + $0xec] sm:$0xf]
  %v51 = vld [vmem:[%s0 + $0xf0] sm:$0x11]
  %v52 = vld [vmem:[%s0 + $0xf8] sm:$0x11]
  %v53 = vld [vmem:[%s0 + $0x100] sm:$0x1]
  %v54 = vld [vmem:[%s1] sm:$0xf]
  %v55 = vld [vmem:[%s1 + $0x4] sm:$0xf]
  %v56 = vld [vmem:[%s1 + $0x8] sm:$0xf]
  %v57 = vld [vmem:[%s1 + $0xc] sm:$0xf]
  %v58 = vld [vmem:[%s1 + $0x10] sm:$0xf]
  %v59 = vld [vmem:[%s1 + $0x14] sm:$0xf]
  %v60 = vld [vmem:[%s1 + $0x18] sm:$0xf]
  %v61 = vld [vmem:[%s1 + $0x1c] sm:$0xf]
  %v62 = vld [vmem:[%s1 + $0x20] sm:$0xf]
  %v63 = vld [vmem:[%s1 + $0x24] sm:$0xf]
  %v64 = vld [vmem:[%s1 + $0x28] sm:$0xf]
  %v65 = vld [vmem:[%s1 + $0x2c] sm:$0xf]
  %v66 = vld [vmem:[%s1 + $0x30] sm:$0xf]
  %v67 = vld [vmem:[%s1 + $0x34] sm:$0xf]
  %v68 = vld [vmem:[%s1 + $0x38] sm:$0xf]
  %v69 = vld [vmem:[%s1 + $0x3c] sm:$0xf]
  %v70 = vld [vmem:[%s1 + $0x40] sm:$0xf]
  %v71 = vld [vmem:[%s1 + $0x44] sm:$0xf]
  %v72 = vld [vmem:[%s1 + $0x48] sm:$0xf]
  %v73 = vld [vmem:[%s1 + $0x4c] sm:$0xf]
  %v74 = vld [vmem:[%s1 + $0x50] sm:$0xf]
  %v75 = vld [vmem:[%s1 + $0x54] sm:$0xf]
  %v76 = vld [vmem:[%s1 + $0x58] sm:$0xf]
  %v77 = vld [vmem:[%s1 + $0x5c] sm:$0xf]
  %v78 = vld [vmem:[%s1 + $0x60] sm:$0xf]
  %v79 = vld [vmem:[%s1 + $0x64] sm:$0xf]
  %v80 = vld [vmem:[%s1 + $0x68] sm:$0xf]
  %v81 = vld [vmem:[%s1 + $0x6c] sm:$0xf]
  %v82 = vld [vmem:[%s1 + $0x70] sm:$0xf]
  %v83 = vld [vmem:[%s1 + $0x74] sm:$0xf]
  %v84 = vld [vmem:[%s1 + $0x78] sm:$0xf]
  %v85 = vld [vmem:[%s1 + $0x7c] sm:$0xf]
  %v86 = vld [vmem:[%s1 + $0x80] sm:$0xf]
  %v87 = vld [vmem:[%s1 + $0x84] sm:$0xf]
  %v88 = vld [vmem:[%s1 + $0x88] sm:$0xf]
  %v89 = vld [vmem:[%s1 + $0x8c] sm:$0xf]
  %v90 = vld [vmem:[%s1 + $0x90] sm:$0xf]
  %v91 = vld [vmem:[%s1 + $0x94] sm:$0xf]
  %v92 = vld [vmem:[%s1 + $0x98] sm:$0xf]
  %v93 = vld [vmem:[%s1 + $0x9c] sm:$0xf]
  %v94 = vld [vmem:[%s1 + $0xa0] sm:$0xf]
  %v95 = vld [vmem:[%s1 + $0xa4] sm:$0xf]
  %v96 = vld [vmem:[%s1 + $0xa8] sm:$0xf]
  %v97 = vld [vmem:[%s1 + $0xac] sm:$0xf]
  %v98 = vld [vmem:[%s1 + $0xb0] sm:$0xf]
  %v99 = vld [vmem:[%s1 + $0xb4] sm:$0xf]
  %v100 = vld [vmem:[%s1 + $0xb8] sm:$0xf]
  %v101 = vld [vmem:[%s1 + $0xbc] sm:$0xf]
  %v102 = vld [vmem:[%s1 + $0xc0] sm:$0xf]
  %v103 = vld [vmem:[%s1 + $0xc4] sm:$0xf]
  %v104 = vld [vmem:[%s1 + $0xc8] sm:$0xf]
  %v105 = vld [vmem:[%s1 + $0xcc] sm:$0xf]
  %v106 = vld [vmem:[%s1 + $0xd0] sm:$0xf]
  %v107 = vld [vmem:[%s1 + $0xd4] sm:$0xf]
  %v108 = vld [vmem:[%s1 + $0xd8] sm:$0xf]
  %v109 = vld [vmem:[%s1 + $0xdc] sm:$0xf]
  %v110 = vld [vmem:[%s1 + $0xe0] sm:$0xf]
  %v111 = vld [vmem:[%s1 + $0xe4] sm:$0xf]
  %v112 = vld [vmem:[%s1 + $0xe8] sm:$0xf]
  %v113 = vld [vmem:[%s1 + $0xec] sm:$0xf]
  %v114 = vld [vmem:[%s1 + $0xf0] sm:$0xf]
  %v115 = vld [vmem:[%s1 + $0xf4] sm:$0xf]
  %v116 = vld [vmem:[%s1 + $0xf8] sm:$0xf]
  %v117 = vld [vmem:[%s1 + $0xfc] sm:$0xf]
  %v118 = vld [vmem:[%s1 + $0x100] sm:$0xf]
  %v119 = vld [vmem:[%s1 + $0x104] sm:$0xf]
  %v120 = vld [vmem:[%s1 + $0x108] sm:$0xf]
  %v121 = vld [vmem:[%s1 + $0x10c] sm:$0xf]
  %v122 = vld [vmem:[%s1 + $0x110] sm:$0xf]
  %v123 = vld [vmem:[%s1 + $0x114] sm:$0xf]
  %v124 = vld [vmem:[%s1 + $0x118] sm:$0xf]
  %v125 = vld [vmem:[%s1 + $0x11c] sm:$0xf]
  %v126 = vld [vmem:[%s2] sm:$0x1]
  %v128 = vperm.slane %v126, 0
  %v169 = vunpack.c.l.b16 %v15
  %v170 = vunpack.c.h.b16 %v15
  %v171 = vunpack.c.l.b16 %v16
  %v172 = vunpack.c.h.b16 %v16
  %v173 = vunpack.c.l.b16 %v17
  %v174 = vunpack.c.l.b16 %v18
  %v175 = vunpack.c.h.b16 %v18
  %v176 = vunpack.c.l.b16 %v19
  %v177 = vunpack.c.h.b16 %v19
  %v178 = vunpack.c.l.b16 %v20
  %v179 = vunpack.c.l.b16 %v21
  %v180 = vunpack.c.h.b16 %v21
  %v181 = vunpack.c.l.b16 %v22
  %v182 = vunpack.c.h.b16 %v22
  %v183 = vunpack.c.l.b16 %v23
  %v184 = vunpack.c.l.b16 %v24
  %v185 = vunpack.c.h.b16 %v24
  %v186 = vunpack.c.l.b16 %v25
  %v187 = vunpack.c.h.b16 %v25
  %v188 = vunpack.c.l.b16 %v26
  %v189 = vunpack.c.l.b16 %v27
  %v190 = vunpack.c.h.b16 %v27
  %v191 = vunpack.c.l.b16 %v28
  %v192 = vunpack.c.h.b16 %v28
  %v193 = vunpack.c.l.b16 %v29
  %v194 = vunpack.c.l.b16 %v30
  %v195 = vunpack.c.h.b16 %v30
  %v196 = vunpack.c.l.b16 %v31
  %v197 = vunpack.c.h.b16 %v31
  %v198 = vunpack.c.l.b16 %v32
  %v199 = vunpack.c.l.b16 %v33
  %v200 = vunpack.c.h.b16 %v33
  %v201 = vunpack.c.l.b16 %v34
  %v202 = vunpack.c.h.b16 %v34
  %v203 = vunpack.c.l.b16 %v35
  %v204 = vunpack.c.l.b16 %v36
  %v205 = vunpack.c.h.b16 %v36
  %v206 = vunpack.c.l.b16 %v37
  %v207 = vunpack.c.h.b16 %v37
  %v208 = vunpack.c.l.b16 %v38
  %v209 = vunpack.c.l.b16 %v39
  %v210 = vunpack.c.h.b16 %v39
  %v211 = vunpack.c.l.b16 %v40
  %v212 = vunpack.c.h.b16 %v40
  %v213 = vunpack.c.l.b16 %v41
  %v214 = vunpack.c.l.b16 %v42
  %v215 = vunpack.c.h.b16 %v42
  %v216 = vunpack.c.l.b16 %v43
  %v217 = vunpack.c.h.b16 %v43
  %v218 = vunpack.c.l.b16 %v44
  %v219 = vunpack.c.l.b16 %v45
  %v220 = vunpack.c.h.b16 %v45
  %v221 = vunpack.c.l.b16 %v46
  %v222 = vunpack.c.h.b16 %v46
  %v223 = vunpack.c.l.b16 %v47
  %v224 = vunpack.c.l.b16 %v48
  %v225 = vunpack.c.h.b16 %v48
  %v226 = vunpack.c.l.b16 %v49
  %v227 = vunpack.c.h.b16 %v49
  %v228 = vunpack.c.l.b16 %v50
  %v229 = vunpack.c.l.b16 %v51
  %v230 = vunpack.c.h.b16 %v51
  %v231 = vunpack.c.l.b16 %v52
  %v232 = vunpack.c.h.b16 %v52
  %v233 = vunpack.c.l.b16 %v53
  %v234 = vpack.c.b16 %v174, %v169
  %v235 = vpack.c.b16 %v175, %v170
  %v236 = vpack.c.b16 %v176, %v171
  %v237 = vpack.c.b16 %v177, %v172
  %v238 = vpack.c.b16 %v178, %v173
  %v239 = vpack.c.b16 %v184, %v179
  %v240 = vpack.c.b16 %v185, %v180
  %v241 = vpack.c.b16 %v186, %v181
  %v242 = vpack.c.b16 %v187, %v182
  %v243 = vpack.c.b16 %v188, %v183
  %v244 = vpack.c.b16 %v194, %v189
  %v245 = vpack.c.b16 %v195, %v190
  %v246 = vpack.c.b16 %v196, %v191
  %v247 = vpack.c.b16 %v197, %v192
  %v248 = vpack.c.b16 %v198, %v193
  %v249 = vpack.c.b16 %v204, %v199
  %v250 = vpack.c.b16 %v205, %v200
  %v251 = vpack.c.b16 %v206, %v201
  %v252 = vpack.c.b16 %v207, %v202
  %v253 = vpack.c.b16 %v208, %v203
  %v254 = vpack.c.b16 %v214, %v209
  %v255 = vpack.c.b16 %v215, %v210
  %v256 = vpack.c.b16 %v216, %v211
  %v257 = vpack.c.b16 %v217, %v212
  %v258 = vpack.c.b16 %v218, %v213
  %v259 = vpack.c.b16 %v224, %v219
  %v260 = vpack.c.b16 %v225, %v220
  %v261 = vpack.c.b16 %v226, %v221
  %v262 = vpack.c.b16 %v227, %v222
  %v263 = vpack.c.b16 %v228, %v223
  %v264 = vpack.c.b16 %v229, %v229
  %v265 = vpack.c.b16 %v230, %v230
  %v266 = vpack.c.b16 %v231, %v231
  %v267 = vpack.c.b16 %v232, %v232
  %v268 = vpack.c.b16 %v233, %v233
  %v369 = vunpack.c.l.b16 %v54
  %v370 = vunpack.c.l.b16 %v55
  %v371 = vunpack.c.l.b16 %v56
  %v372 = vunpack.c.l.b16 %v57
  %v373 = vunpack.c.l.b16 %v58
  %v374 = vunpack.c.l.b16 %v59
  %v375 = vunpack.c.l.b16 %v60
  %v376 = vunpack.c.l.b16 %v61
  %v377 = vunpack.c.l.b16 %v62
  %v378 = vunpack.c.l.b16 %v63
  %v379 = vunpack.c.l.b16 %v64
  %v380 = vunpack.c.l.b16 %v65
  %v381 = vunpack.c.l.b16 %v66
  %v382 = vunpack.c.l.b16 %v67
  %v383 = vunpack.c.l.b16 %v68
  %v384 = vunpack.c.l.b16 %v69
  %v385 = vunpack.c.l.b16 %v70
  %v386 = vunpack.c.l.b16 %v71
  %v387 = vunpack.c.l.b16 %v72
  %v388 = vunpack.c.l.b16 %v73
  %v389 = vunpack.c.l.b16 %v74
  %v390 = vunpack.c.l.b16 %v75
  %v391 = vunpack.c.l.b16 %v76
  %v392 = vunpack.c.l.b16 %v77
  %v393 = vunpack.c.l.b16 %v78
  %v394 = vunpack.c.l.b16 %v79
  %v395 = vunpack.c.l.b16 %v80
  %v396 = vunpack.c.l.b16 %v81
  %v397 = vunpack.c.l.b16 %v82
  %v398 = vunpack.c.l.b16 %v83
  %v399 = vunpack.c.l.b16 %v84
  %v400 = vunpack.c.l.b16 %v85
  %v401 = vunpack.c.l.b16 %v86
  %v402 = vunpack.c.l.b16 %v87
  %v403 = vunpack.c.l.b16 %v88
  %v404 = vunpack.c.l.b16 %v89
  %v405 = vunpack.c.l.b16 %v90
  %v406 = vunpack.c.l.b16 %v91
  %v407 = vunpack.c.l.b16 %v92
  %v408 = vunpack.c.l.b16 %v93
  %v409 = vunpack.c.l.b16 %v94
  %v410 = vunpack.c.l.b16 %v95
  %v411 = vunpack.c.l.b16 %v96
  %v412 = vunpack.c.l.b16 %v97
  %v413 = vunpack.c.l.b16 %v98
  %v414 = vunpack.c.l.b16 %v99
  %v415 = vunpack.c.l.b16 %v100
  %v416 = vunpack.c.l.b16 %v101
  %v417 = vunpack.c.l.b16 %v102
  %v418 = vunpack.c.l.b16 %v103
  %v419 = vunpack.c.l.b16 %v104
  %v420 = vunpack.c.l.b16 %v105
  %v421 = vunpack.c.l.b16 %v106
  %v422 = vunpack.c.l.b16 %v107
  %v423 = vunpack.c.l.b16 %v108
  %v424 = vunpack.c.l.b16 %v109
  %v425 = vunpack.c.l.b16 %v110
  %v426 = vunpack.c.l.b16 %v111
  %v427 = vunpack.c.l.b16 %v112
  %v428 = vunpack.c.l.b16 %v113
  %v429 = vunpack.c.l.b16 %v114
  %v430 = vunpack.c.l.b16 %v115
  %v431 = vunpack.c.l.b16 %v116
  %v432 = vunpack.c.l.b16 %v117
  %v433 = vunpack.c.l.b16 %v118
  %v434 = vunpack.c.l.b16 %v119
  %v435 = vunpack.c.l.b16 %v120
  %v436 = vunpack.c.l.b16 %v121
  %v437 = vunpack.c.l.b16 %v122
  %v438 = vunpack.c.l.b16 %v123
  %v439 = vunpack.c.l.b16 %v124
  %v440 = vunpack.c.l.b16 %v125
  %v441 = vpack.c.b16 %v370, %v369
  %v442 = vpack.c.b16 %v372, %v371
  %v443 = vpack.c.b16 %v374, %v373
  %v444 = vpack.c.b16 %v376, %v375
  %v445 = vpack.c.b16 %v378, %v377
  %v446 = vpack.c.b16 %v380, %v379
  %v447 = vpack.c.b16 %v382, %v381
  %v448 = vpack.c.b16 %v384, %v383
  %v449 = vpack.c.b16 %v386, %v385
  %v450 = vpack.c.b16 %v388, %v387
  %v451 = vpack.c.b16 %v390, %v389
  %v452 = vpack.c.b16 %v392, %v391
  %v453 = vpack.c.b16 %v394, %v393
  %v454 = vpack.c.b16 %v396, %v395
  %v455 = vpack.c.b16 %v398, %v397
  %v456 = vpack.c.b16 %v400, %v399
  %v457 = vpack.c.b16 %v402, %v401
  %v458 = vpack.c.b16 %v404, %v403
  %v459 = vpack.c.b16 %v406, %v405
  %v460 = vpack.c.b16 %v408, %v407
  %v461 = vpack.c.b16 %v410, %v409
  %v462 = vpack.c.b16 %v412, %v411
  %v463 = vpack.c.b16 %v414, %v413
  %v464 = vpack.c.b16 %v416, %v415
  %v465 = vpack.c.b16 %v418, %v417
  %v466 = vpack.c.b16 %v420, %v419
  %v467 = vpack.c.b16 %v422, %v421
  %v468 = vpack.c.b16 %v424, %v423
  %v469 = vpack.c.b16 %v426, %v425
  %v470 = vpack.c.b16 %v428, %v427
  %v471 = vpack.c.b16 %v430, %v429
  %v472 = vpack.c.b16 %v432, %v431
  %v473 = vpack.c.b16 %v434, %v433
  %v474 = vpack.c.b16 %v436, %v435
  %v475 = vpack.c.b16 %v438, %v437
  %v476 = vpack.c.b16 %v440, %v439
  %vm513 = vcmask 523264
  %v515 = vsel %vm513, %v238, 0
  %v518 = vsel %vm513, %v243, 0
  %v521 = vsel %vm513, %v248, 0
  %v524 = vsel %vm513, %v253, 0
  %v527 = vsel %vm513, %v258, 0
  %v530 = vsel %vm513, %v263, 0
  %v533 = vsel %vm513, %v268, 0
  %535 = vmatpush.bf16.msra.mxu0 %v448
  %536 = vmatpush.bf16.msra.mxu0 %v447
  %537 = vmatpush.bf16.msra.mxu0 %v446
  %538 = vmatpush.bf16.msra.mxu0 %v445
  %539 = vmatpush.bf16.msra.mxu0 %v444
  %540 = vmatpush.bf16.msra.mxu0 %v443
  %541 = vmatpush.bf16.msra.mxu0 %v442
  %542 = vmatpush.bf16.msra.mxu0 %v441
  %543 = vmatmul.bf16.gmra.mxu0 %v234
  %v544 = vpop.f32.mrf.mxu0
  %v545 = vadd.f32 %v128, %v544
  %v546 = vpop.f32.mrf.mxu0
  %v547 = vadd.f32 %v128, %v546
  %548 = vmatmul.bf16.gmra.mxu0 %v239
  %v549 = vpop.f32.mrf.mxu0
  %v550 = vadd.f32 %v128, %v549
  %v551 = vpop.f32.mrf.mxu0
  %v552 = vadd.f32 %v128, %v551
  %553 = vmatmul.bf16.gmra.mxu0 %v244
  %v554 = vpop.f32.mrf.mxu0
  %v555 = vadd.f32 %v128, %v554
  %v556 = vpop.f32.mrf.mxu0
  %v557 = vadd.f32 %v128, %v556
  %558 = vmatmul.bf16.gmra.mxu0 %v249
  %v559 = vpop.f32.mrf.mxu0
  %v560 = vadd.f32 %v128, %v559
  %v561 = vpop.f32.mrf.mxu0
  %v562 = vadd.f32 %v128, %v561
  %563 = vmatmul.bf16.gmra.mxu0 %v254
  %v564 = vpop.f32.mrf.mxu0
  %v565 = vadd.f32 %v128, %v564
  %v566 = vpop.f32.mrf.mxu0
  %v567 = vadd.f32 %v128, %v566
  %568 = vmatmul.bf16.gmra.mxu0 %v259
  %v569 = vpop.f32.mrf.mxu0
  %v570 = vadd.f32 %v128, %v569
  %v571 = vpop.f32.mrf.mxu0
  %v572 = vadd.f32 %v128, %v571
  %573 = vmatmul.bf16.gmra.mxu0 %v264
  %v574 = vpop.f32.mrf.mxu0
  %v575 = vadd.f32 %v128, %v574
  %v576 = vpop.f32.mrf.mxu0
  %577 = vdwg.mxu0
  %578 = vmatpush.bf16.msra.mxu0 %v456
  %579 = vmatpush.bf16.msra.mxu0 %v455
  %580 = vmatpush.bf16.msra.mxu0 %v454
  %581 = vmatpush.bf16.msra.mxu0 %v453
  %582 = vmatpush.bf16.msra.mxu0 %v452
  %583 = vmatpush.bf16.msra.mxu0 %v451
  %584 = vmatpush.bf16.msra.mxu0 %v450
  %585 = vmatpush.bf16.msra.mxu0 %v449
  %586 = vmatmul.bf16.gmra.mxu0 %v235
  %v587 = vpop.f32.mrf.mxu0
  %v588 = vadd.f32 %v545, %v587
  %v589 = vpop.f32.mrf.mxu0
  %v590 = vadd.f32 %v547, %v589
  %591 = vmatmul.bf16.gmra.mxu0 %v240
  %v592 = vpop.f32.mrf.mxu0
  %v593 = vadd.f32 %v550, %v592
  %v594 = vpop.f32.mrf.mxu0
  %v595 = vadd.f32 %v552, %v594
  %596 = vmatmul.bf16.gmra.mxu0 %v245
  %v597 = vpop.f32.mrf.mxu0
  %v598 = vadd.f32 %v555, %v597
  %v599 = vpop.f32.mrf.mxu0
  %v600 = vadd.f32 %v557, %v599
  %601 = vmatmul.bf16.gmra.mxu0 %v250
  %v602 = vpop.f32.mrf.mxu0
  %v603 = vadd.f32 %v560, %v602
  %v604 = vpop.f32.mrf.mxu0
  %v605 = vadd.f32 %v562, %v604
  %606 = vmatmul.bf16.gmra.mxu0 %v255
  %v607 = vpop.f32.mrf.mxu0
  %v608 = vadd.f32 %v565, %v607
  %v609 = vpop.f32.mrf.mxu0
  %v610 = vadd.f32 %v567, %v609
  %611 = vmatmul.bf16.gmra.mxu0 %v260
  %v612 = vpop.f32.mrf.mxu0
  %v613 = vadd.f32 %v570, %v612
  %v614 = vpop.f32.mrf.mxu0
  %v615 = vadd.f32 %v572, %v614
  %616 = vmatmul.bf16.gmra.mxu0 %v265
  %v617 = vpop.f32.mrf.mxu0
  %v618 = vadd.f32 %v575, %v617
  %v619 = vpop.f32.mrf.mxu0
  %620 = vdwg.mxu0
  %621 = vmatpush.bf16.msra.mxu0 %v464
  %622 = vmatpush.bf16.msra.mxu0 %v463
  %623 = vmatpush.bf16.msra.mxu0 %v462
  %624 = vmatpush.bf16.msra.mxu0 %v461
  %625 = vmatpush.bf16.msra.mxu0 %v460
  %626 = vmatpush.bf16.msra.mxu0 %v459
  %627 = vmatpush.bf16.msra.mxu0 %v458
  %628 = vmatpush.bf16.msra.mxu0 %v457
  %629 = vmatmul.bf16.gmra.mxu0 %v236
  %v630 = vpop.f32.mrf.mxu0
  %v631 = vadd.f32 %v588, %v630
  %v632 = vpop.f32.mrf.mxu0
  %v633 = vadd.f32 %v590, %v632
  %634 = vmatmul.bf16.gmra.mxu0 %v241
  %v635 = vpop.f32.mrf.mxu0
  %v636 = vadd.f32 %v593, %v635
  %v637 = vpop.f32.mrf.mxu0
  %v638 = vadd.f32 %v595, %v637
  %639 = vmatmul.bf16.gmra.mxu0 %v246
  %v640 = vpop.f32.mrf.mxu0
  %v641 = vadd.f32 %v598, %v640
  %v642 = vpop.f32.mrf.mxu0
  %v643 = vadd.f32 %v600, %v642
  %644 = vmatmul.bf16.gmra.mxu0 %v251
  %v645 = vpop.f32.mrf.mxu0
  %v646 = vadd.f32 %v603, %v645
  %v647 = vpop.f32.mrf.mxu0
  %v648 = vadd.f32 %v605, %v647
  %649 = vmatmul.bf16.gmra.mxu0 %v256
  %v650 = vpop.f32.mrf.mxu0
  %v651 = vadd.f32 %v608, %v650
  %v652 = vpop.f32.mrf.mxu0
  %v653 = vadd.f32 %v610, %v652
  %654 = vmatmul.bf16.gmra.mxu0 %v261
  %v655 = vpop.f32.mrf.mxu0
  %v656 = vadd.f32 %v613, %v655
  %v657 = vpop.f32.mrf.mxu0
  %v658 = vadd.f32 %v615, %v657
  %659 = vmatmul.bf16.gmra.mxu0 %v266
  %v660 = vpop.f32.mrf.mxu0
  %v661 = vadd.f32 %v618, %v660
  %v662 = vpop.f32.mrf.mxu0
  %663 = vdwg.mxu0
  %664 = vmatpush.bf16.msra.mxu0 %v472
  %665 = vmatpush.bf16.msra.mxu0 %v471
  %666 = vmatpush.bf16.msra.mxu0 %v470
  %667 = vmatpush.bf16.msra.mxu0 %v469
  %668 = vmatpush.bf16.msra.mxu0 %v468
  %669 = vmatpush.bf16.msra.mxu0 %v467
  %670 = vmatpush.bf16.msra.mxu0 %v466
  %671 = vmatpush.bf16.msra.mxu0 %v465
  %672 = vmatmul.bf16.gmra.mxu0 %v237
  %v673 = vpop.f32.mrf.mxu0
  %v674 = vadd.f32 %v631, %v673
  %v675 = vpop.f32.mrf.mxu0
  %v676 = vadd.f32 %v633, %v675
  %677 = vmatmul.bf16.gmra.mxu0 %v242
  %v678 = vpop.f32.mrf.mxu0
  %v679 = vadd.f32 %v636, %v678
  %v680 = vpop.f32.mrf.mxu0
  %v681 = vadd.f32 %v638, %v680
  %682 = vmatmul.bf16.gmra.mxu0 %v247
  %v683 = vpop.f32.mrf.mxu0
  %v684 = vadd.f32 %v641, %v683
  %v685 = vpop.f32.mrf.mxu0
  %v686 = vadd.f32 %v643, %v685
  %687 = vmatmul.bf16.gmra.mxu0 %v252
  %v688 = vpop.f32.mrf.mxu0
  %v689 = vadd.f32 %v646, %v688
  %v690 = vpop.f32.mrf.mxu0
  %v691 = vadd.f32 %v648, %v690
  %692 = vmatmul.bf16.gmra.mxu0 %v257
  %v693 = vpop.f32.mrf.mxu0
  %v694 = vadd.f32 %v651, %v693
  %v695 = vpop.f32.mrf.mxu0
  %v696 = vadd.f32 %v653, %v695
  %697 = vmatmul.bf16.gmra.mxu0 %v262
  %v698 = vpop.f32.mrf.mxu0
  %v699 = vadd.f32 %v656, %v698
  %v700 = vpop.f32.mrf.mxu0
  %v701 = vadd.f32 %v658, %v700
  %702 = vmatmul.bf16.gmra.mxu0 %v267
  %v703 = vpop.f32.mrf.mxu0
  %v704 = vadd.f32 %v661, %v703
  %v705 = vpop.f32.mrf.mxu0
  %706 = vdwg.mxu0
  %707 = vmatpush.bf16.msra.mxu0 0
  %708 = vmatpush.bf16.msra.mxu0 0
  %709 = vmatpush.bf16.msra.mxu0 0
  %710 = vmatpush.bf16.msra.mxu0 0
  %711 = vmatpush.bf16.msra.mxu0 %v476
  %712 = vmatpush.bf16.msra.mxu0 %v475
  %713 = vmatpush.bf16.msra.mxu0 %v474
  %714 = vmatpush.bf16.msra.mxu0 %v473
  %715 = vmatmul.bf16.gmra.mxu0 %v515
  %v716 = vpop.f32.mrf.mxu0
  %v717 = vadd.f32 %v674, %v716
  %v718 = vpop.f32.mrf.mxu0
  %v719 = vadd.f32 %v676, %v718
  %720 = vmatmul.bf16.gmra.mxu0 %v518
  %v721 = vpop.f32.mrf.mxu0
  %v722 = vadd.f32 %v679, %v721
  %v723 = vpop.f32.mrf.mxu0
  %v724 = vadd.f32 %v681, %v723
  %725 = vmatmul.bf16.gmra.mxu0 %v521
  %v726 = vpop.f32.mrf.mxu0
  %v727 = vadd.f32 %v684, %v726
  %v728 = vpop.f32.mrf.mxu0
  %v729 = vadd.f32 %v686, %v728
  %730 = vmatmul.bf16.gmra.mxu0 %v524
  %v731 = vpop.f32.mrf.mxu0
  %v732 = vadd.f32 %v689, %v731
  %v733 = vpop.f32.mrf.mxu0
  %v734 = vadd.f32 %v691, %v733
  %735 = vmatmul.bf16.gmra.mxu0 %v527
  %v736 = vpop.f32.mrf.mxu0
  %v737 = vadd.f32 %v694, %v736
  %v738 = vpop.f32.mrf.mxu0
  %v739 = vadd.f32 %v696, %v738
  %740 = vmatmul.bf16.gmra.mxu0 %v530
  %v741 = vpop.f32.mrf.mxu0
  %v742 = vadd.f32 %v699, %v741
  %v743 = vpop.f32.mrf.mxu0
  %v744 = vadd.f32 %v701, %v743
  %745 = vmatmul.bf16.gmra.mxu0 %v533
  %v746 = vpop.f32.mrf.mxu0
  %v747 = vadd.f32 %v704, %v746
  %v748 = vpop.f32.mrf.mxu0
  %749 = vdwg.mxu0
  %v750 = vmax.f32 %v717, 0.0
  %v751 = vmax.f32 %v719, 0.0
  %v752 = vmax.f32 %v722, 0.0
  %v753 = vmax.f32 %v724, 0.0
  %v754 = vmax.f32 %v727, 0.0
  %v755 = vmax.f32 %v729, 0.0
  %v756 = vmax.f32 %v732, 0.0
  %v757 = vmax.f32 %v734, 0.0
  %v758 = vmax.f32 %v737, 0.0
  %v759 = vmax.f32 %v739, 0.0
  %v760 = vmax.f32 %v742, 0.0
  %v761 = vmax.f32 %v744, 0.0
  %v762 = vmax.f32 %v747, 0.0
  %v763 = vpack.c.bf16 %v750, %v750
  %v764 = vpack.c.bf16 %v751, %v751
  %v765 = vpack.c.bf16 %v752, %v752
  %v766 = vpack.c.bf16 %v753, %v753
  %v767 = vpack.c.bf16 %v754, %v754
  %v768 = vpack.c.bf16 %v755, %v755
  %v769 = vpack.c.bf16 %v756, %v756
  %v770 = vpack.c.bf16 %v757, %v757
  %v771 = vpack.c.bf16 %v758, %v758
  %v772 = vpack.c.bf16 %v759, %v759
  %v773 = vpack.c.bf16 %v760, %v760
  %v774 = vpack.c.bf16 %v761, %v761
  %v775 = vpack.c.bf16 %v762, %v762
  %vm776 = vcmask 519168
  %777 = vst.msk [vmem:[%s3] sm:$0xf] %vm776, %v763
  %778 = vst.msk [vmem:[%s3 + $0x4] sm:$0xf] %vm776, %v764
  %779 = vst.msk [vmem:[%s3 + $0x8] sm:$0xf] %vm776, %v765
  %780 = vst.msk [vmem:[%s3 + $0xc] sm:$0xf] %vm776, %v766
  %781 = vst.msk [vmem:[%s3 + $0x10] sm:$0xf] %vm776, %v767
  %782 = vst.msk [vmem:[%s3 + $0x14] sm:$0xf] %vm776, %v768
  %783 = vst.msk [vmem:[%s3 + $0x18] sm:$0xf] %vm776, %v769
  %784 = vst.msk [vmem:[%s3 + $0x1c] sm:$0xf] %vm776, %v770
  %785 = vst.msk [vmem:[%s3 + $0x20] sm:$0xf] %vm776, %v771
  %786 = vst.msk [vmem:[%s3 + $0x24] sm:$0xf] %vm776, %v772
  %787 = vst.msk [vmem:[%s3 + $0x28] sm:$0xf] %vm776, %v773
  %788 = vst.msk [vmem:[%s3 + $0x2c] sm:$0xf] %vm776, %v774
  %vm789 = vcmask 516096
  %790 = vst.msk [vmem:[%s3 + $0x30] sm:$0x1] %vm789, %v775
  // Predicated region
  $region14: #{classifier_atari_forward.6} parent=0 // pred_check
    _
  $region15: #{classifier_atari_forward.6} parent=0 // pred_check_branch
    %792 = sbr.rel (0) target = $region17
  $region16: #{classifier_atari_forward.6} parent=0 // pred_region
    _
  $region17: #{classifier_atari_forward.6} parent=0 // pred_fallthru
    _
  // Predicated region
  $region18: #{classifier_atari_forward.6} parent=0 // pred_check
    _
  $region19: #{classifier_atari_forward.6} parent=0 // pred_check_branch
    %794 = sbr.rel (0) target = $region21
  $region20: #{classifier_atari_forward.6} parent=0 // pred_region
    _
  $region21: #{classifier_atari_forward.6} parent=0 // pred_fallthru
    _

// kernel: classifier_atari_forward.7
$region0: #{classifier_atari_forward.7}
  #allocation0 [shape = 'u32[]', space=smem, size = 0x4, offset = 0x4, fixed_abs, tag = 'smem constant byte address 0x4 - core index']
  #allocation1 [shape = 'u32[72,128]{1,0:T(1,128)}', space=vmem, size = 0x9000, scoped, tag = 'internal scratch']
  #allocation2 [shape = 'f32[1,1]{1,0:T(1,128)S(1)}', space=vmem, size = 0x200, scoped, tag = 'scoped memory for classifier_atari_forward.7']
  %s0 = inlined_call_operand.vmem [shape: bf16[8,3200], index: 0, kind: input, shape index: {}]
  %s1 = inlined_call_operand.vmem [shape: bf16[3200,512], index: 1, kind: input, shape index: {}]
  %s2 = inlined_call_operand.vmem [shape: f32[1,512], index: 2, kind: input, shape index: {}]
  %s3 = inlined_call_operand.vmem [shape: bf16[512,128], index: 3, kind: input, shape index: {}]
  %s4 = inlined_call_operand.vmem [shape: f32[1,128], index: 4, kind: input, shape index: {}]
  %s5 = inlined_call_operand.vmem [shape: f32[1,128], index: 5, kind: input, shape index: {}]
  %s6 = inlined_call_operand.<no memory space> [shape: f32[1,1], index: 6, kind: input, shape index: {}]
  %s7 = inlined_call_operand.vmem [shape: f32[8,1], index: 7, kind: output, shape index: {}]
  %s8 = sld [smem:[#allocation0]]
  $region38: #{classifier_atari_forward.7} parent=0
    _
  %s10 = ssub.s32 1, %s8
  %s11 = scalar_select 0, %s10, %s8
  %v12 = vstv %s6
  %13 = vst [vmem:[#allocation2] sm:$0x1] %v12
  // Predicated region
  $region2: #{classifier_atari_forward.7} parent=0 // pred_check
    _
  $region3: #{classifier_atari_forward.7} parent=0 // pred_check_branch
    %15 = sbr.rel (0) target = $region5
  $region4: #{classifier_atari_forward.7} parent=0 // pred_region
    _
  $region5: #{classifier_atari_forward.7} parent=0 // pred_fallthru
    _
  // Predicated region
  $region6: #{classifier_atari_forward.7} parent=0 // pred_check
    _
  $region7: #{classifier_atari_forward.7} parent=0 // pred_check_branch
    %17 = sbr.rel (0) target = $region9
  $region8: #{classifier_atari_forward.7} parent=0 // pred_region
    _
  $region9: #{classifier_atari_forward.7} parent=0 // pred_fallthru
    _
  // Predicated region
  $region10: #{classifier_atari_forward.7} parent=0 // pred_check
    _
  $region11: #{classifier_atari_forward.7} parent=0 // pred_check_branch
    %19 = sbr.rel (0) target = $region13
  $region12: #{classifier_atari_forward.7} parent=0 // pred_region
    _
  $region13: #{classifier_atari_forward.7} parent=0 // pred_fallthru
    _
  // Predicated region
  $region14: #{classifier_atari_forward.7} parent=0 // pred_check
    _
  $region15: #{classifier_atari_forward.7} parent=0 // pred_check_branch
    %21 = sbr.rel (0) target = $region17
  $region16: #{classifier_atari_forward.7} parent=0 // pred_region
    _
  $region17: #{classifier_atari_forward.7} parent=0 // pred_fallthru
    _
  // Predicated region
  $region18: #{classifier_atari_forward.7} parent=0 // pred_check
    _
  $region19: #{classifier_atari_forward.7} parent=0 // pred_check_branch
    %23 = sbr.rel (0) target = $region21
  $region20: #{classifier_atari_forward.7} parent=0 // pred_region
    _
  $region21: #{classifier_atari_forward.7} parent=0 // pred_fallthru
    _
  // Predicated region
  $region22: #{classifier_atari_forward.7} parent=0 // pred_check
    _
  $region23: #{classifier_atari_forward.7} parent=0 // pred_check_branch
    %25 = sbr.rel (0) target = $region25
  $region24: #{classifier_atari_forward.7} parent=0 // pred_region
    _
  $region25: #{classifier_atari_forward.7} parent=0 // pred_fallthru
    _
  // Predicated region
  $region26: #{classifier_atari_forward.7} parent=0 // pred_check
    _
  $region27: #{classifier_atari_forward.7} parent=0 // pred_check_branch
    %27 = sbr.rel (0) target = $region29
  $region28: #{classifier_atari_forward.7} parent=0 // pred_region
    _
  $region29: #{classifier_atari_forward.7} parent=0 // pred_fallthru
    _
  %v28 = vld [vmem:[%s0] sm:$0xff]
  %v29 = vld [vmem:[%s0 + $0x8] sm:$0xff]
  %v30 = vld [vmem:[%s0 + $0x10] sm:$0xff]
  %v31 = vld [vmem:[%s0 + $0x18] sm:$0xff]
  %v32 = vld [vmem:[%s0 + $0x20] sm:$0xff]
  %v33 = vld [vmem:[%s0 + $0x28] sm:$0xff]
  %v34 = vld [vmem:[%s0 + $0x30] sm:$0xff]
  %v35 = vld [vmem:[%s0 + $0x38] sm:$0xff]
  %v36 = vld [vmem:[%s0 + $0x40] sm:$0xff]
  %v37 = vld [vmem:[%s0 + $0x48] sm:$0xff]
  %v38 = vld [vmem:[%s0 + $0x50] sm:$0xff]
  %v39 = vld [vmem:[%s0 + $0x58] sm:$0xff]
  %v40 = vld [vmem:[%s0 + $0x60] sm:$0xf]
  %v41 = vld [vmem:[%s1] sm:$0xff]
  %v42 = vld [vmem:[%s1 + $0x8] sm:$0xff]
  %v43 = vld [vmem:[%s1 + $0x10] sm:$0xff]
  %v44 = vld [vmem:[%s1 + $0x18] sm:$0xff]
  %v45 = vld [vmem:[%s1 + $0x20] sm:$0xff]
  %v46 = vld [vmem:[%s1 + $0x28] sm:$0xff]
  %v47 = vld [vmem:[%s1 + $0x30] sm:$0xff]
  %v48 = vld [vmem:[%s1 + $0x38] sm:$0xff]
  %v49 = vld [vmem:[%s1 + $0x40] sm:$0xff]
  %v50 = vld [vmem:[%s1 + $0x48] sm:$0xff]
  %v51 = vld [vmem:[%s1 + $0x50] sm:$0xff]
  %v52 = vld [vmem:[%s1 + $0x58] sm:$0xff]
  %v53 = vld [vmem:[%s1 + $0x60] sm:$0xff]
  %v54 = vld [vmem:[%s1 + $0x68] sm:$0xff]
  %v55 = vld [vmem:[%s1 + $0x70] sm:$0xff]
  %v56 = vld [vmem:[%s1 + $0x78] sm:$0xff]
  %v57 = vld [vmem:[%s1 + $0x80] sm:$0xff]
  %v58 = vld [vmem:[%s1 + $0x88] sm:$0xff]
  %v59 = vld [vmem:[%s1 + $0x90] sm:$0xff]
  %v60 = vld [vmem:[%s1 + $0x98] sm:$0xff]
  %v61 = vld [vmem:[%s1 + $0xa0] sm:$0xff]
  %v62 = vld [vmem:[%s1 + $0xa8] sm:$0xff]
  %v63 = vld [vmem:[%s1 + $0xb0] sm:$0xff]
  %v64 = vld [vmem:[%s1 + $0xb8] sm:$0xff]
  %v65 = vld [vmem:[%s1 + $0xc0] sm:$0xff]
  %v66 = vld [vmem:[%s1 + $0xc8] sm:$0xff]
  %v67 = vld [vmem:[%s1 + $0xd0] sm:$0xff]
  %v68 = vld [vmem:[%s1 + $0xd8] sm:$0xff]
  %v69 = vld [vmem:[%s1 + $0xe0] sm:$0xff]
  %v70 = vld [vmem:[%s1 + $0xe8] sm:$0xff]
  %v71 = vld [vmem:[%s1 + $0xf0] sm:$0xff]
  %v72 = vld [vmem:[%s1 + $0xf8] sm:$0xff]
  %v73 = vld [vmem:[%s1 + $0x100] sm:$0xff]
  %v74 = vld [vmem:[%s1 + $0x108] sm:$0xff]
  %v75 = vld [vmem:[%s1 + $0x110] sm:$0xff]
  %v76 = vld [vmem:[%s1 + $0x118] sm:$0xff]
  %v77 = vld [vmem:[%s1 + $0x120] sm:$0xff]
  %v78 = vld [vmem:[%s1 + $0x128] sm:$0xff]
  %v79 = vld [vmem:[%s1 + $0x130] sm:$0xff]
  %v80 = vld [vmem:[%s1 + $0x138] sm:$0xff]
  %v81 = vld [vmem:[%s1 + $0x140] sm:$0xff]
  %v82 = vld [vmem:[%s1 + $0x148] sm:$0xff]
  %v83 = vld [vmem:[%s1 + $0x150] sm:$0xff]
  %v84 = vld [vmem:[%s1 + $0x158] sm:$0xff]
  %v85 = vld [vmem:[%s1 + $0x160] sm:$0xff]
  %v86 = vld [vmem:[%s1 + $0x168] sm:$0xff]
  %v87 = vld [vmem:[%s1 + $0x170] sm:$0xff]
  %v88 = vld [vmem:[%s1 + $0x178] sm:$0xff]
  %v89 = vld [vmem:[%s1 + $0x180] sm:$0xff]
  %v90 = vld [vmem:[%s1 + $0x188] sm:$0xff]
  %v91 = vld [vmem:[%s1 + $0x190] sm:$0xff]
  %v92 = vld [vmem:[%s1 + $0x198] sm:$0xff]
  %v93 = vld [vmem:[%s1 + $0x1a0] sm:$0xff]
  %v94 = vld [vmem:[%s1 + $0x1a8] sm:$0xff]
  %v95 = vld [vmem:[%s1 + $0x1b0] sm:$0xff]
  %v96 = vld [vmem:[%s1 + $0x1b8] sm:$0xff]
  %v97 = vld [vmem:[%s1 + $0x1c0] sm:$0xff]
  %v98 = vld [vmem:[%s1 + $0x1c8] sm:$0xff]
  %v99 = vld [vmem:[%s1 + $0x1d0] sm:$0xff]
  %v100 = vld [vmem:[%s1 + $0x1d8] sm:$0xff]
  %v101 = vld [vmem:[%s1 + $0x1e0] sm:$0xff]
  %v102 = vld [vmem:[%s1 + $0x1e8] sm:$0xff]
  %v103 = vld [vmem:[%s1 + $0x1f0] sm:$0xff]
  %v104 = vld [vmem:[%s1 + $0x1f8] sm:$0xff]
  %v105 = vld [vmem:[%s1 + $0x200] sm:$0xff]
  %v106 = vld [vmem:[%s1 + $0x208] sm:$0xff]
  %v107 = vld [vmem:[%s1 + $0x210] sm:$0xff]
  %v108 = vld [vmem:[%s1 + $0x218] sm:$0xff]
  %v109 = vld [vmem:[%s1 + $0x220] sm:$0xff]
  %v110 = vld [vmem:[%s1 + $0x228] sm:$0xff]
  %v111 = vld [vmem:[%s1 + $0x230] sm:$0xff]
  %v112 = vld [vmem:[%s1 + $0x238] sm:$0xff]
  %v113 = vld [vmem:[%s1 + $0x240] sm:$0xff]
  %v114 = vld [vmem:[%s1 + $0x248] sm:$0xff]
  %v115 = vld [vmem:[%s1 + $0x250] sm:$0xff]
  %v116 = vld [vmem:[%s1 + $0x258] sm:$0xff]
  %v117 = vld [vmem:[%s1 + $0x260] sm:$0xff]
  %v118 = vld [vmem:[%s1 + $0x268] sm:$0xff]
  %v119 = vld [vmem:[%s1 + $0x270] sm:$0xff]
  %v120 = vld [vmem:[%s1 + $0x278] sm:$0xff]
  %v121 = vld [vmem:[%s1 + $0x280] sm:$0xff]
  %v122 = vld [vmem:[%s1 + $0x288] sm:$0xff]
  %v123 = vld [vmem:[%s1 + $0x290] sm:$0xff]
  %v124 = vld [vmem:[%s1 + $0x298] sm:$0xff]
  %v125 = vld [vmem:[%s1 + $0x2a0] sm:$0xff]
  %v126 = vld [vmem:[%s1 + $0x2a8] sm:$0xff]
  %v127 = vld [vmem:[%s1 + $0x2b0] sm:$0xff]
  %v128 = vld [vmem:[%s1 + $0x2b8] sm:$0xff]
  %v129 = vld [vmem:[%s1 + $0x2c0] sm:$0xff]
  %v130 = vld [vmem:[%s1 + $0x2c8] sm:$0xff]
  %v131 = vld [vmem:[%s1 + $0x2d0] sm:$0xff]
  %v132 = vld [vmem:[%s1 + $0x2d8] sm:$0xff]
  %v133 = vld [vmem:[%s1 + $0x2e0] sm:$0xff]
  %v134 = vld [vmem:[%s1 + $0x2e8] sm:$0xff]
  %v135 = vld [vmem:[%s1 + $0x2f0] sm:$0xff]
  %v136 = vld [vmem:[%s1 + $0x2f8] sm:$0xff]
  %v137 = vld [vmem:[%s1 + $0x300] sm:$0xff]
  %v138 = vld [vmem:[%s1 + $0x308] sm:$0xff]
  %v139 = vld [vmem:[%s1 + $0x310] sm:$0xff]
  %v140 = vld [vmem:[%s1 + $0x318] sm:$0xff]
  %v141 = vld [vmem:[%s1 + $0x320] sm:$0xff]
  %v142 = vld [vmem:[%s1 + $0x328] sm:$0xff]
  %v143 = vld [vmem:[%s1 + $0x330] sm:$0xff]
  %v144 = vld [vmem:[%s1 + $0x338] sm:$0xff]
  %v145 = vld [vmem:[%s1 + $0x340] sm:$0xff]
  %v146 = vld [vmem:[%s1 + $0x348] sm:$0xff]
  %v147 = vld [vmem:[%s1 + $0x350] sm:$0xff]
  %v148 = vld [vmem:[%s1 + $0x358] sm:$0xff]
  %v149 = vld [vmem:[%s1 + $0x360] sm:$0xff]
  %v150 = vld [vmem:[%s1 + $0x368] sm:$0xff]
  %v151 = vld [vmem:[%s1 + $0x370] sm:$0xff]
  %v152 = vld [vmem:[%s1 + $0x378] sm:$0xff]
  %v153 = vld [vmem:[%s1 + $0x380] sm:$0xff]
  %v154 = vld [vmem:[%s1 + $0x388] sm:$0xff]
  %v155 = vld [vmem:[%s1 + $0x390] sm:$0xff]
  %v156 = vld [vmem:[%s1 + $0x398] sm:$0xff]
  %v157 = vld [vmem:[%s1 + $0x3a0] sm:$0xff]
  %v158 = vld [vmem:[%s1 + $0x3a8] sm:$0xff]
  %v159 = vld [vmem:[%s1 + $0x3b0] sm:$0xff]
  %v160 = vld [vmem:[%s1 + $0x3b8] sm:$0xff]
  %v161 = vld [vmem:[%s1 + $0x3c0] sm:$0xff]
  %v162 = vld [vmem:[%s1 + $0x3c8] sm:$0xff]
  %v163 = vld [vmem:[%s1 + $0x3d0] sm:$0xff]
  %v164 = vld [vmem:[%s1 + $0x3d8] sm:$0xff]
  %v165 = vld [vmem:[%s1 + $0x3e0] sm:$0xff]
  %v166 = vld [vmem:[%s1 + $0x3e8] sm:$0xff]
  %v167 = vld [vmem:[%s1 + $0x3f0] sm:$0xff]
  %v168 = vld [vmem:[%s1 + $0x3f8] sm:$0xff]
  %v169 = vld [vmem:[%s1 + $0x400] sm:$0xff]
  %v170 = vld [vmem:[%s1 + $0x408] sm:$0xff]
  %v171 = vld [vmem:[%s1 + $0x410] sm:$0xff]
  %v172 = vld [vmem:[%s1 + $0x418] sm:$0xff]
  %v173 = vld [vmem:[%s1 + $0x420] sm:$0xff]
  %v174 = vld [vmem:[%s1 + $0x428] sm:$0xff]
  %v175 = vld [vmem:[%s1 + $0x430] sm:$0xff]
  %v176 = vld [vmem:[%s1 + $0x438] sm:$0xff]
  %v177 = vld [vmem:[%s1 + $0x440] sm:$0xff]
  %v178 = vld [vmem:[%s1 + $0x448] sm:$0xff]
  %v179 = vld [vmem:[%s1 + $0x450] sm:$0xff]
  %v180 = vld [vmem:[%s1 + $0x458] sm:$0xff]
  %v181 = vld [vmem:[%s1 + $0x460] sm:$0xff]
  %v182 = vld [vmem:[%s1 + $0x468] sm:$0xff]
  %v183 = vld [vmem:[%s1 + $0x470] sm:$0xff]
  %v184 = vld [vmem:[%s1 + $0x478] sm:$0xff]
  %v185 = vld [vmem:[%s1 + $0x480] sm:$0xff]
  %v186 = vld [vmem:[%s1 + $0x488] sm:$0xff]
  %v187 = vld [vmem:[%s1 + $0x490] sm:$0xff]
  %v188 = vld [vmem:[%s1 + $0x498] sm:$0xff]
  %v189 = vld [vmem:[%s1 + $0x4a0] sm:$0xff]
  %v190 = vld [vmem:[%s1 + $0x4a8] sm:$0xff]
  %v191 = vld [vmem:[%s1 + $0x4b0] sm:$0xff]
  %v192 = vld [vmem:[%s1 + $0x4b8] sm:$0xff]
  %v193 = vld [vmem:[%s1 + $0x4c0] sm:$0xff]
  %v194 = vld [vmem:[%s1 + $0x4c8] sm:$0xff]
  %v195 = vld [vmem:[%s1 + $0x4d0] sm:$0xff]
  %v196 = vld [vmem:[%s1 + $0x4d8] sm:$0xff]
  %v197 = vld [vmem:[%s1 + $0x4e0] sm:$0xff]
  %v198 = vld [vmem:[%s1 + $0x4e8] sm:$0xff]
  %v199 = vld [vmem:[%s1 + $0x4f0] sm:$0xff]
  %v200 = vld [vmem:[%s1 + $0x4f8] sm:$0xff]
  %v201 = vld [vmem:[%s1 + $0x500] sm:$0xff]
  %v202 = vld [vmem:[%s1 + $0x508] sm:$0xff]
  %v203 = vld [vmem:[%s1 + $0x510] sm:$0xff]
  %v204 = vld [vmem:[%s1 + $0x518] sm:$0xff]
  %v205 = vld [vmem:[%s1 + $0x520] sm:$0xff]
  %v206 = vld [vmem:[%s1 + $0x528] sm:$0xff]
  %v207 = vld [vmem:[%s1 + $0x530] sm:$0xff]
  %v208 = vld [vmem:[%s1 + $0x538] sm:$0xff]
  %v209 = vld [vmem:[%s1 + $0x540] sm:$0xff]
  %v210 = vld [vmem:[%s1 + $0x548] sm:$0xff]
  %v211 = vld [vmem:[%s1 + $0x550] sm:$0xff]
  %v212 = vld [vmem:[%s1 + $0x558] sm:$0xff]
  %v213 = vld [vmem:[%s1 + $0x560] sm:$0xff]
  %v214 = vld [vmem:[%s1 + $0x568] sm:$0xff]
  %v215 = vld [vmem:[%s1 + $0x570] sm:$0xff]
  %v216 = vld [vmem:[%s1 + $0x578] sm:$0xff]
  %v217 = vld [vmem:[%s1 + $0x580] sm:$0xff]
  %v218 = vld [vmem:[%s1 + $0x588] sm:$0xff]
  %v219 = vld [vmem:[%s1 + $0x590] sm:$0xff]
  %v220 = vld [vmem:[%s1 + $0x598] sm:$0xff]
  %v221 = vld [vmem:[%s1 + $0x5a0] sm:$0xff]
  %v222 = vld [vmem:[%s1 + $0x5a8] sm:$0xff]
  %v223 = vld [vmem:[%s1 + $0x5b0] sm:$0xff]
  %v224 = vld [vmem:[%s1 + $0x5b8] sm:$0xff]
  %v225 = vld [vmem:[%s1 + $0x5c0] sm:$0xff]
  %v226 = vld [vmem:[%s1 + $0x5c8] sm:$0xff]
  %v227 = vld [vmem:[%s1 + $0x5d0] sm:$0xff]
  %v228 = vld [vmem:[%s1 + $0x5d8] sm:$0xff]
  %v229 = vld [vmem:[%s1 + $0x5e0] sm:$0xff]
  %v230 = vld [vmem:[%s1 + $0x5e8] sm:$0xff]
  %v231 = vld [vmem:[%s1 + $0x5f0] sm:$0xff]
  %v232 = vld [vmem:[%s1 + $0x5f8] sm:$0xff]
  %v233 = vld [vmem:[%s1 + $0x600] sm:$0xff]
  %v234 = vld [vmem:[%s1 + $0x608] sm:$0xff]
  %v235 = vld [vmem:[%s1 + $0x610] sm:$0xff]
  %v236 = vld [vmem:[%s1 + $0x618] sm:$0xff]
  %v237 = vld [vmem:[%s1 + $0x620] sm:$0xff]
  %v238 = vld [vmem:[%s1 + $0x628] sm:$0xff]
  %v239 = vld [vmem:[%s1 + $0x630] sm:$0xff]
  %v240 = vld [vmem:[%s1 + $0x638] sm:$0xff]
  %v241 = vld [vmem:[%s1 + $0x640] sm:$0xff]
  %v242 = vld [vmem:[%s1 + $0x648] sm:$0xff]
  %v243 = vld [vmem:[%s1 + $0x650] sm:$0xff]
  %v244 = vld [vmem:[%s1 + $0x658] sm:$0xff]
  %v245 = vld [vmem:[%s1 + $0x660] sm:$0xff]
  %v246 = vld [vmem:[%s1 + $0x668] sm:$0xff]
  %v247 = vld [vmem:[%s1 + $0x670] sm:$0xff]
  %v248 = vld [vmem:[%s1 + $0x678] sm:$0xff]
  %v249 = vld [vmem:[%s1 + $0x680] sm:$0xff]
  %v250 = vld [vmem:[%s1 + $0x688] sm:$0xff]
  %v251 = vld [vmem:[%s1 + $0x690] sm:$0xff]
  %v252 = vld [vmem:[%s1 + $0x698] sm:$0xff]
  %v253 = vld [vmem:[%s1 + $0x6a0] sm:$0xff]
  %v254 = vld [vmem:[%s1 + $0x6a8] sm:$0xff]
  %v255 = vld [vmem:[%s1 + $0x6b0] sm:$0xff]
  %v256 = vld [vmem:[%s1 + $0x6b8] sm:$0xff]
  %v257 = vld [vmem:[%s1 + $0x6c0] sm:$0xff]
  %v258 = vld [vmem:[%s1 + $0x6c8] sm:$0xff]
  %v259 = vld [vmem:[%s1 + $0x6d0] sm:$0xff]
  %v260 = vld [vmem:[%s1 + $0x6d8] sm:$0xff]
  %v261 = vld [vmem:[%s1 + $0x6e0] sm:$0xff]
  %v262 = vld [vmem:[%s1 + $0x6e8] sm:$0xff]
  %v263 = vld [vmem:[%s1 + $0x6f0] sm:$0xff]
  %v264 = vld [vmem:[%s1 + $0x6f8] sm:$0xff]
  %v265 = vld [vmem:[%s1 + $0x700] sm:$0xff]
  %v266 = vld [vmem:[%s1 + $0x708] sm:$0xff]
  %v267 = vld [vmem:[%s1 + $0x710] sm:$0xff]
  %v268 = vld [vmem:[%s1 + $0x718] sm:$0xff]
  %v269 = vld [vmem:[%s1 + $0x720] sm:$0xff]
  %v270 = vld [vmem:[%s1 + $0x728] sm:$0xff]
  %v271 = vld [vmem:[%s1 + $0x730] sm:$0xff]
  %v272 = vld [vmem:[%s1 + $0x738] sm:$0xff]
  %v273 = vld [vmem:[%s1 + $0x740] sm:$0xff]
  %v274 = vld [vmem:[%s1 + $0x748] sm:$0xff]
  %v275 = vld [vmem:[%s1 + $0x750] sm:$0xff]
  %v276 = vld [vmem:[%s1 + $0x758] sm:$0xff]
  %v277 = vld [vmem:[%s1 + $0x760] sm:$0xff]
  %v278 = vld [vmem:[%s1 + $0x768] sm:$0xff]
  %v279 = vld [vmem:[%s1 + $0x770] sm:$0xff]
  %v280 = vld [vmem:[%s1 + $0x778] sm:$0xff]
  %v281 = vld [vmem:[%s1 + $0x780] sm:$0xff]
  %v282 = vld [vmem:[%s1 + $0x788] sm:$0xff]
  %v283 = vld [vmem:[%s1 + $0x790] sm:$0xff]
  %v284 = vld [vmem:[%s1 + $0x798] sm:$0xff]
  %v285 = vld [vmem:[%s1 + $0x7a0] sm:$0xff]
  %v286 = vld [vmem:[%s1 + $0x7a8] sm:$0xff]
  %v287 = vld [vmem:[%s1 + $0x7b0] sm:$0xff]
  %v288 = vld [vmem:[%s1 + $0x7b8] sm:$0xff]
  %v289 = vld [vmem:[%s1 + $0x7c0] sm:$0xff]
  %v290 = vld [vmem:[%s1 + $0x7c8] sm:$0xff]
  %v291 = vld [vmem:[%s1 + $0x7d0] sm:$0xff]
  %v292 = vld [vmem:[%s1 + $0x7d8] sm:$0xff]
  %v293 = vld [vmem:[%s1 + $0x7e0] sm:$0xff]
  %v294 = vld [vmem:[%s1 + $0x7e8] sm:$0xff]
  %v295 = vld [vmem:[%s1 + $0x7f0] sm:$0xff]
  %v296 = vld [vmem:[%s1 + $0x7f8] sm:$0xff]
  %v297 = vld [vmem:[%s1 + $0x800] sm:$0xff]
  %v298 = vld [vmem:[%s1 + $0x808] sm:$0xff]
  %v299 = vld [vmem:[%s1 + $0x810] sm:$0xff]
  %v300 = vld [vmem:[%s1 + $0x818] sm:$0xff]
  %v301 = vld [vmem:[%s1 + $0x820] sm:$0xff]
  %v302 = vld [vmem:[%s1 + $0x828] sm:$0xff]
  %v303 = vld [vmem:[%s1 + $0x830] sm:$0xff]
  %v304 = vld [vmem:[%s1 + $0x838] sm:$0xff]
  %v305 = vld [vmem:[%s1 + $0x840] sm:$0xff]
  %v306 = vld [vmem:[%s1 + $0x848] sm:$0xff]
  %v307 = vld [vmem:[%s1 + $0x850] sm:$0xff]
  %v308 = vld [vmem:[%s1 + $0x858] sm:$0xff]
  %v309 = vld [vmem:[%s1 + $0x860] sm:$0xff]
  %v310 = vld [vmem:[%s1 + $0x868] sm:$0xff]
  %v311 = vld [vmem:[%s1 + $0x870] sm:$0xff]
  %v312 = vld [vmem:[%s1 + $0x878] sm:$0xff]
  %v313 = vld [vmem:[%s1 + $0x880] sm:$0xff]
  %v314 = vld [vmem:[%s1 + $0x888] sm:$0xff]
  %v315 = vld [vmem:[%s1 + $0x890] sm:$0xff]
  %v316 = vld [vmem:[%s1 + $0x898] sm:$0xff]
  %v317 = vld [vmem:[%s1 + $0x8a0] sm:$0xff]
  %v318 = vld [vmem:[%s1 + $0x8a8] sm:$0xff]
  %v319 = vld [vmem:[%s1 + $0x8b0] sm:$0xff]
  %v320 = vld [vmem:[%s1 + $0x8b8] sm:$0xff]
  %v321 = vld [vmem:[%s1 + $0x8c0] sm:$0xff]
  %v322 = vld [vmem:[%s1 + $0x8c8] sm:$0xff]
  %v323 = vld [vmem:[%s1 + $0x8d0] sm:$0xff]
  %v324 = vld [vmem:[%s1 + $0x8d8] sm:$0xff]
  %v325 = vld [vmem:[%s1 + $0x8e0] sm:$0xff]
  %v326 = vld [vmem:[%s1 + $0x8e8] sm:$0xff]
  %v327 = vld [vmem:[%s1 + $0x8f0] sm:$0xff]
  %v328 = vld [vmem:[%s1 + $0x8f8] sm:$0xff]
  %v329 = vld [vmem:[%s1 + $0x900] sm:$0xff]
  %v330 = vld [vmem:[%s1 + $0x908] sm:$0xff]
  %v331 = vld [vmem:[%s1 + $0x910] sm:$0xff]
  %v332 = vld [vmem:[%s1 + $0x918] sm:$0xff]
  %v333 = vld [vmem:[%s1 + $0x920] sm:$0xff]
  %v334 = vld [vmem:[%s1 + $0x928] sm:$0xff]
  %v335 = vld [vmem:[%s1 + $0x930] sm:$0xff]
  %v336 = vld [vmem:[%s1 + $0x938] sm:$0xff]
  %v337 = vld [vmem:[%s1 + $0x940] sm:$0xff]
  %v338 = vld [vmem:[%s1 + $0x948] sm:$0xff]
  %v339 = vld [vmem:[%s1 + $0x950] sm:$0xff]
  %v340 = vld [vmem:[%s1 + $0x958] sm:$0xff]
  %v341 = vld [vmem:[%s1 + $0x960] sm:$0xff]
  %v342 = vld [vmem:[%s1 + $0x968] sm:$0xff]
  %v343 = vld [vmem:[%s1 + $0x970] sm:$0xff]
  %v344 = vld [vmem:[%s1 + $0x978] sm:$0xff]
  %v345 = vld [vmem:[%s1 + $0x980] sm:$0xff]
  %v346 = vld [vmem:[%s1 + $0x988] sm:$0xff]
  %v347 = vld [vmem:[%s1 + $0x990] sm:$0xff]
  %v348 = vld [vmem:[%s1 + $0x998] sm:$0xff]
  %v349 = vld [vmem:[%s1 + $0x9a0] sm:$0xff]
  %v350 = vld [vmem:[%s1 + $0x9a8] sm:$0xff]
  %v351 = vld [vmem:[%s1 + $0x9b0] sm:$0xff]
  %v352 = vld [vmem:[%s1 + $0x9b8] sm:$0xff]
  %v353 = vld [vmem:[%s1 + $0x9c0] sm:$0xff]
  %v354 = vld [vmem:[%s1 + $0x9c8] sm:$0xff]
  %v355 = vld [vmem:[%s1 + $0x9d0] sm:$0xff]
  %v356 = vld [vmem:[%s1 + $0x9d8] sm:$0xff]
  %v357 = vld [vmem:[%s1 + $0x9e0] sm:$0xff]
  %v358 = vld [vmem:[%s1 + $0x9e8] sm:$0xff]
  %v359 = vld [vmem:[%s1 + $0x9f0] sm:$0xff]
  %v360 = vld [vmem:[%s1 + $0x9f8] sm:$0xff]
  %v361 = vld [vmem:[%s1 + $0xa00] sm:$0xff]
  %v362 = vld [vmem:[%s1 + $0xa08] sm:$0xff]
  %v363 = vld [vmem:[%s1 + $0xa10] sm:$0xff]
  %v364 = vld [vmem:[%s1 + $0xa18] sm:$0xff]
  %v365 = vld [vmem:[%s1 + $0xa20] sm:$0xff]
  %v366 = vld [vmem:[%s1 + $0xa28] sm:$0xff]
  %v367 = vld [vmem:[%s1 + $0xa30] sm:$0xff]
  %v368 = vld [vmem:[%s1 + $0xa38] sm:$0xff]
  %v369 = vld [vmem:[%s1 + $0xa40] sm:$0xff]
  %v370 = vld [vmem:[%s1 + $0xa48] sm:$0xff]
  %v371 = vld [vmem:[%s1 + $0xa50] sm:$0xff]
  %v372 = vld [vmem:[%s1 + $0xa58] sm:$0xff]
  %v373 = vld [vmem:[%s1 + $0xa60] sm:$0xff]
  %v374 = vld [vmem:[%s1 + $0xa68] sm:$0xff]
  %v375 = vld [vmem:[%s1 + $0xa70] sm:$0xff]
  %v376 = vld [vmem:[%s1 + $0xa78] sm:$0xff]
  %v377 = vld [vmem:[%s1 + $0xa80] sm:$0xff]
  %v378 = vld [vmem:[%s1 + $0xa88] sm:$0xff]
  %v379 = vld [vmem:[%s1 + $0xa90] sm:$0xff]
  %v380 = vld [vmem:[%s1 + $0xa98] sm:$0xff]
  %v381 = vld [vmem:[%s1 + $0xaa0] sm:$0xff]
  %v382 = vld [vmem:[%s1 + $0xaa8] sm:$0xff]
  %v383 = vld [vmem:[%s1 + $0xab0] sm:$0xff]
  %v384 = vld [vmem:[%s1 + $0xab8] sm:$0xff]
  %v385 = vld [vmem:[%s1 + $0xac0] sm:$0xff]
  %v386 = vld [vmem:[%s1 + $0xac8] sm:$0xff]
  %v387 = vld [vmem:[%s1 + $0xad0] sm:$0xff]
  %v388 = vld [vmem:[%s1 + $0xad8] sm:$0xff]
  %v389 = vld [vmem:[%s1 + $0xae0] sm:$0xff]
  %v390 = vld [vmem:[%s1 + $0xae8] sm:$0xff]
  %v391 = vld [vmem:[%s1 + $0xaf0] sm:$0xff]
  %v392 = vld [vmem:[%s1 + $0xaf8] sm:$0xff]
  %v393 = vld [vmem:[%s1 + $0xb00] sm:$0xff]
  %v394 = vld [vmem:[%s1 + $0xb08] sm:$0xff]
  %v395 = vld [vmem:[%s1 + $0xb10] sm:$0xff]
  %v396 = vld [vmem:[%s1 + $0xb18] sm:$0xff]
  %v397 = vld [vmem:[%s1 + $0xb20] sm:$0xff]
  %v398 = vld [vmem:[%s1 + $0xb28] sm:$0xff]
  %v399 = vld [vmem:[%s1 + $0xb30] sm:$0xff]
  %v400 = vld [vmem:[%s1 + $0xb38] sm:$0xff]
  %v401 = vld [vmem:[%s1 + $0xb40] sm:$0xff]
  %v402 = vld [vmem:[%s1 + $0xb48] sm:$0xff]
  %v403 = vld [vmem:[%s1 + $0xb50] sm:$0xff]
  %v404 = vld [vmem:[%s1 + $0xb58] sm:$0xff]
  %v405 = vld [vmem:[%s1 + $0xb60] sm:$0xff]
  %v406 = vld [vmem:[%s1 + $0xb68] sm:$0xff]
  %v407 = vld [vmem:[%s1 + $0xb70] sm:$0xff]
  %v408 = vld [vmem:[%s1 + $0xb78] sm:$0xff]
  %v409 = vld [vmem:[%s1 + $0xb80] sm:$0xff]
  %v410 = vld [vmem:[%s1 + $0xb88] sm:$0xff]
  %v411 = vld [vmem:[%s1 + $0xb90] sm:$0xff]
  %v412 = vld [vmem:[%s1 + $0xb98] sm:$0xff]
  %v413 = vld [vmem:[%s1 + $0xba0] sm:$0xff]
  %v414 = vld [vmem:[%s1 + $0xba8] sm:$0xff]
  %v415 = vld [vmem:[%s1 + $0xbb0] sm:$0xff]
  %v416 = vld [vmem:[%s1 + $0xbb8] sm:$0xff]
  %v417 = vld [vmem:[%s1 + $0xbc0] sm:$0xff]
  %v418 = vld [vmem:[%s1 + $0xbc8] sm:$0xff]
  %v419 = vld [vmem:[%s1 + $0xbd0] sm:$0xff]
  %v420 = vld [vmem:[%s1 + $0xbd8] sm:$0xff]
  %v421 = vld [vmem:[%s1 + $0xbe0] sm:$0xff]
  %v422 = vld [vmem:[%s1 + $0xbe8] sm:$0xff]
  %v423 = vld [vmem:[%s1 + $0xbf0] sm:$0xff]
  %v424 = vld [vmem:[%s1 + $0xbf8] sm:$0xff]
  %v425 = vld [vmem:[%s1 + $0xc00] sm:$0xff]
  %v426 = vld [vmem:[%s1 + $0xc08] sm:$0xff]
  %v427 = vld [vmem:[%s1 + $0xc10] sm:$0xff]
  %v428 = vld [vmem:[%s1 + $0xc18] sm:$0xff]
  %v429 = vld [vmem:[%s1 + $0xc20] sm:$0xff]
  %v430 = vld [vmem:[%s1 + $0xc28] sm:$0xff]
  %v431 = vld [vmem:[%s1 + $0xc30] sm:$0xff]
  %v432 = vld [vmem:[%s1 + $0xc38] sm:$0xff]
  %v433 = vld [vmem:[%s1 + $0xc40] sm:$0xff]
  %v434 = vld [vmem:[%s1 + $0xc48] sm:$0xff]
  %v435 = vld [vmem:[%s1 + $0xc50] sm:$0xff]
  %v436 = vld [vmem:[%s1 + $0xc58] sm:$0xff]
  %v437 = vld [vmem:[%s1 + $0xc60] sm:$0xff]
  %v438 = vld [vmem:[%s1 + $0xc68] sm:$0xff]
  %v439 = vld [vmem:[%s1 + $0xc70] sm:$0xff]
  %v440 = vld [vmem:[%s1 + $0xc78] sm:$0xff]
  %v441 = vld [vmem:[%s1 + $0xc80] sm:$0xff]
  %v442 = vld [vmem:[%s1 + $0xc88] sm:$0xff]
  %v443 = vld [vmem:[%s1 + $0xc90] sm:$0xff]
  %v444 = vld [vmem:[%s1 + $0xc98] sm:$0xff]
  %v445 = vld [vmem:[%s1 + $0xca0] sm:$0xff]
  %v446 = vld [vmem:[%s1 + $0xca8] sm:$0xff]
  %v447 = vld [vmem:[%s1 + $0xcb0] sm:$0xff]
  %v448 = vld [vmem:[%s1 + $0xcb8] sm:$0xff]
  %v449 = vld [vmem:[%s1 + $0xcc0] sm:$0xff]
  %v450 = vld [vmem:[%s1 + $0xcc8] sm:$0xff]
  %v451 = vld [vmem:[%s1 + $0xcd0] sm:$0xff]
  %v452 = vld [vmem:[%s1 + $0xcd8] sm:$0xff]
  %v453 = vld [vmem:[%s1 + $0xce0] sm:$0xff]
  %v454 = vld [vmem:[%s1 + $0xce8] sm:$0xff]
  %v455 = vld [vmem:[%s1 + $0xcf0] sm:$0xff]
  %v456 = vld [vmem:[%s1 + $0xcf8] sm:$0xff]
  %v457 = vld [vmem:[%s1 + $0xd00] sm:$0xff]
  %v458 = vld [vmem:[%s1 + $0xd08] sm:$0xff]
  %v459 = vld [vmem:[%s1 + $0xd10] sm:$0xff]
  %v460 = vld [vmem:[%s1 + $0xd18] sm:$0xff]
  %v461 = vld [vmem:[%s1 + $0xd20] sm:$0xff]
  %v462 = vld [vmem:[%s1 + $0xd28] sm:$0xff]
  %v463 = vld [vmem:[%s1 + $0xd30] sm:$0xff]
  %v464 = vld [vmem:[%s1 + $0xd38] sm:$0xff]
  %v465 = vld [vmem:[%s1 + $0xd40] sm:$0xff]
  %v466 = vld [vmem:[%s1 + $0xd48] sm:$0xff]
  %v467 = vld [vmem:[%s1 + $0xd50] sm:$0xff]
  %v468 = vld [vmem:[%s1 + $0xd58] sm:$0xff]
  %v469 = vld [vmem:[%s1 + $0xd60] sm:$0xff]
  %v470 = vld [vmem:[%s1 + $0xd68] sm:$0xff]
  %v471 = vld [vmem:[%s1 + $0xd70] sm:$0xff]
  %v472 = vld [vmem:[%s1 + $0xd78] sm:$0xff]
  %v473 = vld [vmem:[%s1 + $0xd80] sm:$0xff]
  %v474 = vld [vmem:[%s1 + $0xd88] sm:$0xff]
  %v475 = vld [vmem:[%s1 + $0xd90] sm:$0xff]
  %v476 = vld [vmem:[%s1 + $0xd98] sm:$0xff]
  %v477 = vld [vmem:[%s1 + $0xda0] sm:$0xff]
  %v478 = vld [vmem:[%s1 + $0xda8] sm:$0xff]
  %v479 = vld [vmem:[%s1 + $0xdb0] sm:$0xff]
  %v480 = vld [vmem:[%s1 + $0xdb8] sm:$0xff]
  %v481 = vld [vmem:[%s1 + $0xdc0] sm:$0xff]
  %v482 = vld [vmem:[%s1 + $0xdc8] sm:$0xff]
  %v483 = vld [vmem:[%s1 + $0xdd0] sm:$0xff]
  %v484 = vld [vmem:[%s1 + $0xdd8] sm:$0xff]
  %v485 = vld [vmem:[%s1 + $0xde0] sm:$0xff]
  %v486 = vld [vmem:[%s1 + $0xde8] sm:$0xff]
  %v487 = vld [vmem:[%s1 + $0xdf0] sm:$0xff]
  %v488 = vld [vmem:[%s1 + $0xdf8] sm:$0xff]
  %v489 = vld [vmem:[%s1 + $0xe00] sm:$0xff]
  %v490 = vld [vmem:[%s1 + $0xe08] sm:$0xff]
  %v491 = vld [vmem:[%s1 + $0xe10] sm:$0xff]
  %v492 = vld [vmem:[%s1 + $0xe18] sm:$0xff]
  %v493 = vld [vmem:[%s1 + $0xe20] sm:$0xff]
  %v494 = vld [vmem:[%s1 + $0xe28] sm:$0xff]
  %v495 = vld [vmem:[%s1 + $0xe30] sm:$0xff]
  %v496 = vld [vmem:[%s1 + $0xe38] sm:$0xff]
  %v497 = vld [vmem:[%s1 + $0xe40] sm:$0xff]
  %v498 = vld [vmem:[%s1 + $0xe48] sm:$0xff]
  %v499 = vld [vmem:[%s1 + $0xe50] sm:$0xff]
  %v500 = vld [vmem:[%s1 + $0xe58] sm:$0xff]
  %v501 = vld [vmem:[%s1 + $0xe60] sm:$0xff]
  %v502 = vld [vmem:[%s1 + $0xe68] sm:$0xff]
  %v503 = vld [vmem:[%s1 + $0xe70] sm:$0xff]
  %v504 = vld [vmem:[%s1 + $0xe78] sm:$0xff]
  %v505 = vld [vmem:[%s1 + $0xe80] sm:$0xff]
  %v506 = vld [vmem:[%s1 + $0xe88] sm:$0xff]
  %v507 = vld [vmem:[%s1 + $0xe90] sm:$0xff]
  %v508 = vld [vmem:[%s1 + $0xe98] sm:$0xff]
  %v509 = vld [vmem:[%s1 + $0xea0] sm:$0xff]
  %v510 = vld [vmem:[%s1 + $0xea8] sm:$0xff]
  %v511 = vld [vmem:[%s1 + $0xeb0] sm:$0xff]
  %v512 = vld [vmem:[%s1 + $0xeb8] sm:$0xff]
  %v513 = vld [vmem:[%s1 + $0xec0] sm:$0xff]
  %v514 = vld [vmem:[%s1 + $0xec8] sm:$0xff]
  %v515 = vld [vmem:[%s1 + $0xed0] sm:$0xff]
  %v516 = vld [vmem:[%s1 + $0xed8] sm:$0xff]
  %v517 = vld [vmem:[%s1 + $0xee0] sm:$0xff]
  %v518 = vld [vmem:[%s1 + $0xee8] sm:$0xff]
  %v519 = vld [vmem:[%s1 + $0xef0] sm:$0xff]
  %v520 = vld [vmem:[%s1 + $0xef8] sm:$0xff]
  %v521 = vld [vmem:[%s1 + $0xf00] sm:$0xff]
  %v522 = vld [vmem:[%s1 + $0xf08] sm:$0xff]
  %v523 = vld [vmem:[%s1 + $0xf10] sm:$0xff]
  %v524 = vld [vmem:[%s1 + $0xf18] sm:$0xff]
  %v525 = vld [vmem:[%s1 + $0xf20] sm:$0xff]
  %v526 = vld [vmem:[%s1 + $0xf28] sm:$0xff]
  %v527 = vld [vmem:[%s1 + $0xf30] sm:$0xff]
  %v528 = vld [vmem:[%s1 + $0xf38] sm:$0xff]
  %v529 = vld [vmem:[%s1 + $0xf40] sm:$0xff]
  %v530 = vld [vmem:[%s1 + $0xf48] sm:$0xff]
  %v531 = vld [vmem:[%s1 + $0xf50] sm:$0xff]
  %v532 = vld [vmem:[%s1 + $0xf58] sm:$0xff]
  %v533 = vld [vmem:[%s1 + $0xf60] sm:$0xff]
  %v534 = vld [vmem:[%s1 + $0xf68] sm:$0xff]
  %v535 = vld [vmem:[%s1 + $0xf70] sm:$0xff]
  %v536 = vld [vmem:[%s1 + $0xf78] sm:$0xff]
  %v537 = vld [vmem:[%s1 + $0xf80] sm:$0xff]
  %v538 = vld [vmem:[%s1 + $0xf88] sm:$0xff]
  %v539 = vld [vmem:[%s1 + $0xf90] sm:$0xff]
  %v540 = vld [vmem:[%s1 + $0xf98] sm:$0xff]
  %v541 = vld [vmem:[%s1 + $0xfa0] sm:$0xff]
  %v542 = vld [vmem:[%s1 + $0xfa8] sm:$0xff]
  %v543 = vld [vmem:[%s1 + $0xfb0] sm:$0xff]
  %v544 = vld [vmem:[%s1 + $0xfb8] sm:$0xff]
  %v545 = vld [vmem:[%s1 + $0xfc0] sm:$0xff]
  %v546 = vld [vmem:[%s1 + $0xfc8] sm:$0xff]
  %v547 = vld [vmem:[%s1 + $0xfd0] sm:$0xff]
  %v548 = vld [vmem:[%s1 + $0xfd8] sm:$0xff]
  %v549 = vld [vmem:[%s1 + $0xfe0] sm:$0xff]
  %v550 = vld [vmem:[%s1 + $0xfe8] sm:$0xff]
  %v551 = vld [vmem:[%s1 + $0xff0] sm:$0xff]
  %v552 = vld [vmem:[%s1 + $0xff8] sm:$0xff]
  %v553 = vld [vmem:[%s1 + $0x1000] sm:$0xff]
  %v554 = vld [vmem:[%s1 + $0x1008] sm:$0xff]
  %v555 = vld [vmem:[%s1 + $0x1010] sm:$0xff]
  %v556 = vld [vmem:[%s1 + $0x1018] sm:$0xff]
  %v557 = vld [vmem:[%s1 + $0x1020] sm:$0xff]
  %v558 = vld [vmem:[%s1 + $0x1028] sm:$0xff]
  %v559 = vld [vmem:[%s1 + $0x1030] sm:$0xff]
  %v560 = vld [vmem:[%s1 + $0x1038] sm:$0xff]
  %v561 = vld [vmem:[%s1 + $0x1040] sm:$0xff]
  %v562 = vld [vmem:[%s1 + $0x1048] sm:$0xff]
  %v563 = vld [vmem:[%s1 + $0x1050] sm:$0xff]
  %v564 = vld [vmem:[%s1 + $0x1058] sm:$0xff]
  %v565 = vld [vmem:[%s1 + $0x1060] sm:$0xff]
  %v566 = vld [vmem:[%s1 + $0x1068] sm:$0xff]
  %v567 = vld [vmem:[%s1 + $0x1070] sm:$0xff]
  %v568 = vld [vmem:[%s1 + $0x1078] sm:$0xff]
  %v569 = vld [vmem:[%s1 + $0x1080] sm:$0xff]
  %v570 = vld [vmem:[%s1 + $0x1088] sm:$0xff]
  %v571 = vld [vmem:[%s1 + $0x1090] sm:$0xff]
  %v572 = vld [vmem:[%s1 + $0x1098] sm:$0xff]
  %v573 = vld [vmem:[%s1 + $0x10a0] sm:$0xff]
  %v574 = vld [vmem:[%s1 + $0x10a8] sm:$0xff]
  %v575 = vld [vmem:[%s1 + $0x10b0] sm:$0xff]
  %v576 = vld [vmem:[%s1 + $0x10b8] sm:$0xff]
  %v577 = vld [vmem:[%s1 + $0x10c0] sm:$0xff]
  %v578 = vld [vmem:[%s1 + $0x10c8] sm:$0xff]
  %v579 = vld [vmem:[%s1 + $0x10d0] sm:$0xff]
  %v580 = vld [vmem:[%s1 + $0x10d8] sm:$0xff]
  %v581 = vld [vmem:[%s1 + $0x10e0] sm:$0xff]
  %v582 = vld [vmem:[%s1 + $0x10e8] sm:$0xff]
  %v583 = vld [vmem:[%s1 + $0x10f0] sm:$0xff]
  %v584 = vld [vmem:[%s1 + $0x10f8] sm:$0xff]
  %v585 = vld [vmem:[%s1 + $0x1100] sm:$0xff]
  %v586 = vld [vmem:[%s1 + $0x1108] sm:$0xff]
  %v587 = vld [vmem:[%s1 + $0x1110] sm:$0xff]
  %v588 = vld [vmem:[%s1 + $0x1118] sm:$0xff]
  %v589 = vld [vmem:[%s1 + $0x1120] sm:$0xff]
  %v590 = vld [vmem:[%s1 + $0x1128] sm:$0xff]
  %v591 = vld [vmem:[%s1 + $0x1130] sm:$0xff]
  %v592 = vld [vmem:[%s1 + $0x1138] sm:$0xff]
  %v593 = vld [vmem:[%s1 + $0x1140] sm:$0xff]
  %v594 = vld [vmem:[%s1 + $0x1148] sm:$0xff]
  %v595 = vld [vmem:[%s1 + $0x1150] sm:$0xff]
  %v596 = vld [vmem:[%s1 + $0x1158] sm:$0xff]
  %v597 = vld [vmem:[%s1 + $0x1160] sm:$0xff]
  %v598 = vld [vmem:[%s1 + $0x1168] sm:$0xff]
  %v599 = vld [vmem:[%s1 + $0x1170] sm:$0xff]
  %v600 = vld [vmem:[%s1 + $0x1178] sm:$0xff]
  %v601 = vld [vmem:[%s1 + $0x1180] sm:$0xff]
  %v602 = vld [vmem:[%s1 + $0x1188] sm:$0xff]
  %v603 = vld [vmem:[%s1 + $0x1190] sm:$0xff]
  %v604 = vld [vmem:[%s1 + $0x1198] sm:$0xff]
  %v605 = vld [vmem:[%s1 + $0x11a0] sm:$0xff]
  %v606 = vld [vmem:[%s1 + $0x11a8] sm:$0xff]
  %v607 = vld [vmem:[%s1 + $0x11b0] sm:$0xff]
  %v608 = vld [vmem:[%s1 + $0x11b8] sm:$0xff]
  %v609 = vld [vmem:[%s1 + $0x11c0] sm:$0xff]
  %v610 = vld [vmem:[%s1 + $0x11c8] sm:$0xff]
  %v611 = vld [vmem:[%s1 + $0x11d0] sm:$0xff]
  %v612 = vld [vmem:[%s1 + $0x11d8] sm:$0xff]
  %v613 = vld [vmem:[%s1 + $0x11e0] sm:$0xff]
  %v614 = vld [vmem:[%s1 + $0x11e8] sm:$0xff]
  %v615 = vld [vmem:[%s1 + $0x11f0] sm:$0xff]
  %v616 = vld [vmem:[%s1 + $0x11f8] sm:$0xff]
  %v617 = vld [vmem:[%s1 + $0x1200] sm:$0xff]
  %v618 = vld [vmem:[%s1 + $0x1208] sm:$0xff]
  %v619 = vld [vmem:[%s1 + $0x1210] sm:$0xff]
  %v620 = vld [vmem:[%s1 + $0x1218] sm:$0xff]
  %v621 = vld [vmem:[%s1 + $0x1220] sm:$0xff]
  %v622 = vld [vmem:[%s1 + $0x1228] sm:$0xff]
  %v623 = vld [vmem:[%s1 + $0x1230] sm:$0xff]
  %v624 = vld [vmem:[%s1 + $0x1238] sm:$0xff]
  %v625 = vld [vmem:[%s1 + $0x1240] sm:$0xff]
  %v626 = vld [vmem:[%s1 + $0x1248] sm:$0xff]
  %v627 = vld [vmem:[%s1 + $0x1250] sm:$0xff]
  %v628 = vld [vmem:[%s1 + $0x1258] sm:$0xff]
  %v629 = vld [vmem:[%s1 + $0x1260] sm:$0xff]
  %v630 = vld [vmem:[%s1 + $0x1268] sm:$0xff]
  %v631 = vld [vmem:[%s1 + $0x1270] sm:$0xff]
  %v632 = vld [vmem:[%s1 + $0x1278] sm:$0xff]
  %v633 = vld [vmem:[%s1 + $0x1280] sm:$0xff]
  %v634 = vld [vmem:[%s1 + $0x1288] sm:$0xff]
  %v635 = vld [vmem:[%s1 + $0x1290] sm:$0xff]
  %v636 = vld [vmem:[%s1 + $0x1298] sm:$0xff]
  %v637 = vld [vmem:[%s1 + $0x12a0] sm:$0xff]
  %v638 = vld [vmem:[%s1 + $0x12a8] sm:$0xff]
  %v639 = vld [vmem:[%s1 + $0x12b0] sm:$0xff]
  %v640 = vld [vmem:[%s1 + $0x12b8] sm:$0xff]
  %v641 = vld [vmem:[%s1 + $0x12c0] sm:$0xff]
  %v642 = vld [vmem:[%s1 + $0x12c8] sm:$0xff]
  %v643 = vld [vmem:[%s1 + $0x12d0] sm:$0xff]
  %v644 = vld [vmem:[%s1 + $0x12d8] sm:$0xff]
  %v645 = vld [vmem:[%s1 + $0x12e0] sm:$0xff]
  %v646 = vld [vmem:[%s1 + $0x12e8] sm:$0xff]
  %v647 = vld [vmem:[%s1 + $0x12f0] sm:$0xff]
  %v648 = vld [vmem:[%s1 + $0x12f8] sm:$0xff]
  %v649 = vld [vmem:[%s1 + $0x1300] sm:$0xff]
  %v650 = vld [vmem:[%s1 + $0x1308] sm:$0xff]
  %v651 = vld [vmem:[%s1 + $0x1310] sm:$0xff]
  %v652 = vld [vmem:[%s1 + $0x1318] sm:$0xff]
  %v653 = vld [vmem:[%s1 + $0x1320] sm:$0xff]
  %v654 = vld [vmem:[%s1 + $0x1328] sm:$0xff]
  %v655 = vld [vmem:[%s1 + $0x1330] sm:$0xff]
  %v656 = vld [vmem:[%s1 + $0x1338] sm:$0xff]
  %v657 = vld [vmem:[%s1 + $0x1340] sm:$0xff]
  %v658 = vld [vmem:[%s1 + $0x1348] sm:$0xff]
  %v659 = vld [vmem:[%s1 + $0x1350] sm:$0xff]
  %v660 = vld [vmem:[%s1 + $0x1358] sm:$0xff]
  %v661 = vld [vmem:[%s1 + $0x1360] sm:$0xff]
  %v662 = vld [vmem:[%s1 + $0x1368] sm:$0xff]
  %v663 = vld [vmem:[%s1 + $0x1370] sm:$0xff]
  %v664 = vld [vmem:[%s1 + $0x1378] sm:$0xff]
  %v665 = vld [vmem:[%s1 + $0x1380] sm:$0xff]
  %v666 = vld [vmem:[%s1 + $0x1388] sm:$0xff]
  %v667 = vld [vmem:[%s1 + $0x1390] sm:$0xff]
  %v668 = vld [vmem:[%s1 + $0x1398] sm:$0xff]
  %v669 = vld [vmem:[%s1 + $0x13a0] sm:$0xff]
  %v670 = vld [vmem:[%s1 + $0x13a8] sm:$0xff]
  %v671 = vld [vmem:[%s1 + $0x13b0] sm:$0xff]
  %v672 = vld [vmem:[%s1 + $0x13b8] sm:$0xff]
  %v673 = vld [vmem:[%s1 + $0x13c0] sm:$0xff]
  %v674 = vld [vmem:[%s1 + $0x13c8] sm:$0xff]
  %v675 = vld [vmem:[%s1 + $0x13d0] sm:$0xff]
  %v676 = vld [vmem:[%s1 + $0x13d8] sm:$0xff]
  %v677 = vld [vmem:[%s1 + $0x13e0] sm:$0xff]
  %v678 = vld [vmem:[%s1 + $0x13e8] sm:$0xff]
  %v679 = vld [vmem:[%s1 + $0x13f0] sm:$0xff]
  %v680 = vld [vmem:[%s1 + $0x13f8] sm:$0xff]
  %v681 = vld [vmem:[%s1 + $0x1400] sm:$0xff]
  %v682 = vld [vmem:[%s1 + $0x1408] sm:$0xff]
  %v683 = vld [vmem:[%s1 + $0x1410] sm:$0xff]
  %v684 = vld [vmem:[%s1 + $0x1418] sm:$0xff]
  %v685 = vld [vmem:[%s1 + $0x1420] sm:$0xff]
  %v686 = vld [vmem:[%s1 + $0x1428] sm:$0xff]
  %v687 = vld [vmem:[%s1 + $0x1430] sm:$0xff]
  %v688 = vld [vmem:[%s1 + $0x1438] sm:$0xff]
  %v689 = vld [vmem:[%s1 + $0x1440] sm:$0xff]
  %v690 = vld [vmem:[%s1 + $0x1448] sm:$0xff]
  %v691 = vld [vmem:[%s1 + $0x1450] sm:$0xff]
  %v692 = vld [vmem:[%s1 + $0x1458] sm:$0xff]
  %v693 = vld [vmem:[%s1 + $0x1460] sm:$0xff]
  %v694 = vld [vmem:[%s1 + $0x1468] sm:$0xff]
  %v695 = vld [vmem:[%s1 + $0x1470] sm:$0xff]
  %v696 = vld [vmem:[%s1 + $0x1478] sm:$0xff]
  %v697 = vld [vmem:[%s1 + $0x1480] sm:$0xff]
  %v698 = vld [vmem:[%s1 + $0x1488] sm:$0xff]
  %v699 = vld [vmem:[%s1 + $0x1490] sm:$0xff]
  %v700 = vld [vmem:[%s1 + $0x1498] sm:$0xff]
  %v701 = vld [vmem:[%s1 + $0x14a0] sm:$0xff]
  %v702 = vld [vmem:[%s1 + $0x14a8] sm:$0xff]
  %v703 = vld [vmem:[%s1 + $0x14b0] sm:$0xff]
  %v704 = vld [vmem:[%s1 + $0x14b8] sm:$0xff]
  %v705 = vld [vmem:[%s1 + $0x14c0] sm:$0xff]
  %v706 = vld [vmem:[%s1 + $0x14c8] sm:$0xff]
  %v707 = vld [vmem:[%s1 + $0x14d0] sm:$0xff]
  %v708 = vld [vmem:[%s1 + $0x14d8] sm:$0xff]
  %v709 = vld [vmem:[%s1 + $0x14e0] sm:$0xff]
  %v710 = vld [vmem:[%s1 + $0x14e8] sm:$0xff]
  %v711 = vld [vmem:[%s1 + $0x14f0] sm:$0xff]
  %v712 = vld [vmem:[%s1 + $0x14f8] sm:$0xff]
  %v713 = vld [vmem:[%s1 + $0x1500] sm:$0xff]
  %v714 = vld [vmem:[%s1 + $0x1508] sm:$0xff]
  %v715 = vld [vmem:[%s1 + $0x1510] sm:$0xff]
  %v716 = vld [vmem:[%s1 + $0x1518] sm:$0xff]
  %v717 = vld [vmem:[%s1 + $0x1520] sm:$0xff]
  %v718 = vld [vmem:[%s1 + $0x1528] sm:$0xff]
  %v719 = vld [vmem:[%s1 + $0x1530] sm:$0xff]
  %v720 = vld [vmem:[%s1 + $0x1538] sm:$0xff]
  %v721 = vld [vmem:[%s1 + $0x1540] sm:$0xff]
  %v722 = vld [vmem:[%s1 + $0x1548] sm:$0xff]
  %v723 = vld [vmem:[%s1 + $0x1550] sm:$0xff]
  %v724 = vld [vmem:[%s1 + $0x1558] sm:$0xff]
  %v725 = vld [vmem:[%s1 + $0x1560] sm:$0xff]
  %v726 = vld [vmem:[%s1 + $0x1568] sm:$0xff]
  %v727 = vld [vmem:[%s1 + $0x1570] sm:$0xff]
  %v728 = vld [vmem:[%s1 + $0x1578] sm:$0xff]
  %v729 = vld [vmem:[%s1 + $0x1580] sm:$0xff]
  %v730 = vld [vmem:[%s1 + $0x1588] sm:$0xff]
  %v731 = vld [vmem:[%s1 + $0x1590] sm:$0xff]
  %v732 = vld [vmem:[%s1 + $0x1598] sm:$0xff]
  %v733 = vld [vmem:[%s1 + $0x15a0] sm:$0xff]
  %v734 = vld [vmem:[%s1 + $0x15a8] sm:$0xff]
  %v735 = vld [vmem:[%s1 + $0x15b0] sm:$0xff]
  %v736 = vld [vmem:[%s1 + $0x15b8] sm:$0xff]
  %v737 = vld [vmem:[%s1 + $0x15c0] sm:$0xff]
  %v738 = vld [vmem:[%s1 + $0x15c8] sm:$0xff]
  %v739 = vld [vmem:[%s1 + $0x15d0] sm:$0xff]
  %v740 = vld [vmem:[%s1 + $0x15d8] sm:$0xff]
  %v741 = vld [vmem:[%s1 + $0x15e0] sm:$0xff]
  %v742 = vld [vmem:[%s1 + $0x15e8] sm:$0xff]
  %v743 = vld [vmem:[%s1 + $0x15f0] sm:$0xff]
  %v744 = vld [vmem:[%s1 + $0x15f8] sm:$0xff]
  %v745 = vld [vmem:[%s1 + $0x1600] sm:$0xff]
  %v746 = vld [vmem:[%s1 + $0x1608] sm:$0xff]
  %v747 = vld [vmem:[%s1 + $0x1610] sm:$0xff]
  %v748 = vld [vmem:[%s1 + $0x1618] sm:$0xff]
  %v749 = vld [vmem:[%s1 + $0x1620] sm:$0xff]
  %v750 = vld [vmem:[%s1 + $0x1628] sm:$0xff]
  %v751 = vld [vmem:[%s1 + $0x1630] sm:$0xff]
  %v752 = vld [vmem:[%s1 + $0x1638] sm:$0xff]
  %v753 = vld [vmem:[%s1 + $0x1640] sm:$0xff]
  %v754 = vld [vmem:[%s1 + $0x1648] sm:$0xff]
  %v755 = vld [vmem:[%s1 + $0x1650] sm:$0xff]
  %v756 = vld [vmem:[%s1 + $0x1658] sm:$0xff]
  %v757 = vld [vmem:[%s1 + $0x1660] sm:$0xff]
  %v758 = vld [vmem:[%s1 + $0x1668] sm:$0xff]
  %v759 = vld [vmem:[%s1 + $0x1670] sm:$0xff]
  %v760 = vld [vmem:[%s1 + $0x1678] sm:$0xff]
  %v761 = vld [vmem:[%s1 + $0x1680] sm:$0xff]
  %v762 = vld [vmem:[%s1 + $0x1688] sm:$0xff]
  %v763 = vld [vmem:[%s1 + $0x1690] sm:$0xff]
  %v764 = vld [vmem:[%s1 + $0x1698] sm:$0xff]
  %v765 = vld [vmem:[%s1 + $0x16a0] sm:$0xff]
  %v766 = vld [vmem:[%s1 + $0x16a8] sm:$0xff]
  %v767 = vld [vmem:[%s1 + $0x16b0] sm:$0xff]
  %v768 = vld [vmem:[%s1 + $0x16b8] sm:$0xff]
  %v769 = vld [vmem:[%s1 + $0x16c0] sm:$0xff]
  %v770 = vld [vmem:[%s1 + $0x16c8] sm:$0xff]
  %v771 = vld [vmem:[%s1 + $0x16d0] sm:$0xff]
  %v772 = vld [vmem:[%s1 + $0x16d8] sm:$0xff]
  %v773 = vld [vmem:[%s1 + $0x16e0] sm:$0xff]
  %v774 = vld [vmem:[%s1 + $0x16e8] sm:$0xff]
  %v775 = vld [vmem:[%s1 + $0x16f0] sm:$0xff]
  %v776 = vld [vmem:[%s1 + $0x16f8] sm:$0xff]
  %v777 = vld [vmem:[%s1 + $0x1700] sm:$0xff]
  %v778 = vld [vmem:[%s1 + $0x1708] sm:$0xff]
  %v779 = vld [vmem:[%s1 + $0x1710] sm:$0xff]
  %v780 = vld [vmem:[%s1 + $0x1718] sm:$0xff]
  %v781 = vld [vmem:[%s1 + $0x1720] sm:$0xff]
  %v782 = vld [vmem:[%s1 + $0x1728] sm:$0xff]
  %v783 = vld [vmem:[%s1 + $0x1730] sm:$0xff]
  %v784 = vld [vmem:[%s1 + $0x1738] sm:$0xff]
  %v785 = vld [vmem:[%s1 + $0x1740] sm:$0xff]
  %v786 = vld [vmem:[%s1 + $0x1748] sm:$0xff]
  %v787 = vld [vmem:[%s1 + $0x1750] sm:$0xff]
  %v788 = vld [vmem:[%s1 + $0x1758] sm:$0xff]
  %v789 = vld [vmem:[%s1 + $0x1760] sm:$0xff]
  %v790 = vld [vmem:[%s1 + $0x1768] sm:$0xff]
  %v791 = vld [vmem:[%s1 + $0x1770] sm:$0xff]
  %v792 = vld [vmem:[%s1 + $0x1778] sm:$0xff]
  %v793 = vld [vmem:[%s1 + $0x1780] sm:$0xff]
  %v794 = vld [vmem:[%s1 + $0x1788] sm:$0xff]
  %v795 = vld [vmem:[%s1 + $0x1790] sm:$0xff]
  %v796 = vld [vmem:[%s1 + $0x1798] sm:$0xff]
  %v797 = vld [vmem:[%s1 + $0x17a0] sm:$0xff]
  %v798 = vld [vmem:[%s1 + $0x17a8] sm:$0xff]
  %v799 = vld [vmem:[%s1 + $0x17b0] sm:$0xff]
  %v800 = vld [vmem:[%s1 + $0x17b8] sm:$0xff]
  %v801 = vld [vmem:[%s1 + $0x17c0] sm:$0xff]
  %v802 = vld [vmem:[%s1 + $0x17c8] sm:$0xff]
  %v803 = vld [vmem:[%s1 + $0x17d0] sm:$0xff]
  %v804 = vld [vmem:[%s1 + $0x17d8] sm:$0xff]
  %v805 = vld [vmem:[%s1 + $0x17e0] sm:$0xff]
  %v806 = vld [vmem:[%s1 + $0x17e8] sm:$0xff]
  %v807 = vld [vmem:[%s1 + $0x17f0] sm:$0xff]
  %v808 = vld [vmem:[%s1 + $0x17f8] sm:$0xff]
  %v809 = vld [vmem:[%s1 + $0x1800] sm:$0xff]
  %v810 = vld [vmem:[%s1 + $0x1808] sm:$0xff]
  %v811 = vld [vmem:[%s1 + $0x1810] sm:$0xff]
  %v812 = vld [vmem:[%s1 + $0x1818] sm:$0xff]
  %v813 = vld [vmem:[%s1 + $0x1820] sm:$0xff]
  %v814 = vld [vmem:[%s1 + $0x1828] sm:$0xff]
  %v815 = vld [vmem:[%s1 + $0x1830] sm:$0xff]
  %v816 = vld [vmem:[%s1 + $0x1838] sm:$0xff]
  %v817 = vld [vmem:[%s1 + $0x1840] sm:$0xff]
  %v818 = vld [vmem:[%s1 + $0x1848] sm:$0xff]
  %v819 = vld [vmem:[%s1 + $0x1850] sm:$0xff]
  %v820 = vld [vmem:[%s1 + $0x1858] sm:$0xff]
  %v821 = vld [vmem:[%s1 + $0x1860] sm:$0xff]
  %v822 = vld [vmem:[%s1 + $0x1868] sm:$0xff]
  %v823 = vld [vmem:[%s1 + $0x1870] sm:$0xff]
  %v824 = vld [vmem:[%s1 + $0x1878] sm:$0xff]
  %v825 = vld [vmem:[%s1 + $0x1880] sm:$0xff]
  %v826 = vld [vmem:[%s1 + $0x1888] sm:$0xff]
  %v827 = vld [vmem:[%s1 + $0x1890] sm:$0xff]
  %v828 = vld [vmem:[%s1 + $0x1898] sm:$0xff]
  %v829 = vld [vmem:[%s1 + $0x18a0] sm:$0xff]
  %v830 = vld [vmem:[%s1 + $0x18a8] sm:$0xff]
  %v831 = vld [vmem:[%s1 + $0x18b0] sm:$0xff]
  %v832 = vld [vmem:[%s1 + $0x18b8] sm:$0xff]
  %v833 = vld [vmem:[%s1 + $0x18c0] sm:$0xff]
  %v834 = vld [vmem:[%s1 + $0x18c8] sm:$0xff]
  %v835 = vld [vmem:[%s1 + $0x18d0] sm:$0xff]
  %v836 = vld [vmem:[%s1 + $0x18d8] sm:$0xff]
  %v837 = vld [vmem:[%s1 + $0x18e0] sm:$0xff]
  %v838 = vld [vmem:[%s1 + $0x18e8] sm:$0xff]
  %v839 = vld [vmem:[%s1 + $0x18f0] sm:$0xff]
  %v840 = vld [vmem:[%s1 + $0x18f8] sm:$0xff]
  %v841 = vld [vmem:[%s2] sm:$0xf]
  %v843 = vperm.slane %v841, 0
  %v844 = vperm.slane %v841, 1
  %v845 = vperm.slane %v841, 2
  %v846 = vperm.slane %v841, 3
  %v864 = vunpack.c.l.b16 %v28
  %v865 = vunpack.c.h.b16 %v28
  %v866 = vunpack.c.l.b16 %v29
  %v867 = vunpack.c.h.b16 %v29
  %v868 = vunpack.c.l.b16 %v30
  %v869 = vunpack.c.h.b16 %v30
  %v870 = vunpack.c.l.b16 %v31
  %v871 = vunpack.c.h.b16 %v31
  %v872 = vunpack.c.l.b16 %v32
  %v873 = vunpack.c.h.b16 %v32
  %v874 = vunpack.c.l.b16 %v33
  %v875 = vunpack.c.h.b16 %v33
  %v876 = vunpack.c.l.b16 %v34
  %v877 = vunpack.c.h.b16 %v34
  %v878 = vunpack.c.l.b16 %v35
  %v879 = vunpack.c.h.b16 %v35
  %v880 = vunpack.c.l.b16 %v36
  %v881 = vunpack.c.h.b16 %v36
  %v882 = vunpack.c.l.b16 %v37
  %v883 = vunpack.c.h.b16 %v37
  %v884 = vunpack.c.l.b16 %v38
  %v885 = vunpack.c.h.b16 %v38
  %v886 = vunpack.c.l.b16 %v39
  %v887 = vunpack.c.h.b16 %v39
  %v888 = vunpack.c.l.b16 %v40
  %v889 = vpack.c.b16 %v864, %v864
  %v890 = vpack.c.b16 %v865, %v865
  %v891 = vpack.c.b16 %v866, %v866
  %v892 = vpack.c.b16 %v867, %v867
  %v893 = vpack.c.b16 %v868, %v868
  %v894 = vpack.c.b16 %v869, %v869
  %v895 = vpack.c.b16 %v870, %v870
  %v896 = vpack.c.b16 %v871, %v871
  %v897 = vpack.c.b16 %v872, %v872
  %v898 = vpack.c.b16 %v873, %v873
  %v899 = vpack.c.b16 %v874, %v874
  %v900 = vpack.c.b16 %v875, %v875
  %v901 = vpack.c.b16 %v876, %v876
  %v902 = vpack.c.b16 %v877, %v877
  %v903 = vpack.c.b16 %v878, %v878
  %v904 = vpack.c.b16 %v879, %v879
  %v905 = vpack.c.b16 %v880, %v880
  %v906 = vpack.c.b16 %v881, %v881
  %v907 = vpack.c.b16 %v882, %v882
  %v908 = vpack.c.b16 %v883, %v883
  %v909 = vpack.c.b16 %v884, %v884
  %v910 = vpack.c.b16 %v885, %v885
  %v911 = vpack.c.b16 %v886, %v886
  %v912 = vpack.c.b16 %v887, %v887
  %v913 = vpack.c.b16 %v888, %v888
  %v1739 = vunpack.c.l.b16 %v41
  %v1740 = vunpack.c.h.b16 %v41
  %v1741 = vunpack.c.l.b16 %v42
  %v1742 = vunpack.c.h.b16 %v42
  %v1743 = vunpack.c.l.b16 %v43
  %v1744 = vunpack.c.h.b16 %v43
  %v1745 = vunpack.c.l.b16 %v44
  %v1746 = vunpack.c.h.b16 %v44
  %v1747 = vunpack.c.l.b16 %v45
  %v1748 = vunpack.c.h.b16 %v45
  %v1749 = vunpack.c.l.b16 %v46
  %v1750 = vunpack.c.h.b16 %v46
  %v1751 = vunpack.c.l.b16 %v47
  %v1752 = vunpack.c.h.b16 %v47
  %v1753 = vunpack.c.l.b16 %v48
  %v1754 = vunpack.c.h.b16 %v48
  %v1755 = vunpack.c.l.b16 %v49
  %v1756 = vunpack.c.h.b16 %v49
  %v1757 = vunpack.c.l.b16 %v50
  %v1758 = vunpack.c.h.b16 %v50
  %v1759 = vunpack.c.l.b16 %v51
  %v1760 = vunpack.c.h.b16 %v51
  %v1761 = vunpack.c.l.b16 %v52
  %v1762 = vunpack.c.h.b16 %v52
  %v1763 = vunpack.c.l.b16 %v53
  %v1764 = vunpack.c.h.b16 %v53
  %v1765 = vunpack.c.l.b16 %v54
  %v1766 = vunpack.c.h.b16 %v54
  %v1767 = vunpack.c.l.b16 %v55
  %v1768 = vunpack.c.h.b16 %v55
  %v1769 = vunpack.c.l.b16 %v56
  %v1770 = vunpack.c.h.b16 %v56
  %v1771 = vunpack.c.l.b16 %v57
  %v1772 = vunpack.c.h.b16 %v57
  %v1773 = vunpack.c.l.b16 %v58
  %v1774 = vunpack.c.h.b16 %v58
  %v1775 = vunpack.c.l.b16 %v59
  %v1776 = vunpack.c.h.b16 %v59
  %v1777 = vunpack.c.l.b16 %v60
  %v1778 = vunpack.c.h.b16 %v60
  %v1779 = vunpack.c.l.b16 %v61
  %v1780 = vunpack.c.h.b16 %v61
  %v1781 = vunpack.c.l.b16 %v62
  %v1782 = vunpack.c.h.b16 %v62
  %v1783 = vunpack.c.l.b16 %v63
  %v1784 = vunpack.c.h.b16 %v63
  %v1785 = vunpack.c.l.b16 %v64
  %v1786 = vunpack.c.h.b16 %v64
  %v1787 = vunpack.c.l.b16 %v65
  %v1788 = vunpack.c.h.b16 %v65
  %v1789 = vunpack.c.l.b16 %v66
  %v1790 = vunpack.c.h.b16 %v66
  %v1791 = vunpack.c.l.b16 %v67
  %v1792 = vunpack.c.h.b16 %v67
  %v1793 = vunpack.c.l.b16 %v68
  %v1794 = vunpack.c.h.b16 %v68
  %v1795 = vunpack.c.l.b16 %v69
  %v1796 = vunpack.c.h.b16 %v69
  %v1797 = vunpack.c.l.b16 %v70
  %v1798 = vunpack.c.h.b16 %v70
  %v1799 = vunpack.c.l.b16 %v71
  %v1800 = vunpack.c.h.b16 %v71
  %v1801 = vunpack.c.l.b16 %v72
  %v1802 = vunpack.c.h.b16 %v72
  %v1803 = vunpack.c.l.b16 %v73
  %v1804 = vunpack.c.h.b16 %v73
  %v1805 = vunpack.c.l.b16 %v74
  %v1806 = vunpack.c.h.b16 %v74
  %v1807 = vunpack.c.l.b16 %v75
  %v1808 = vunpack.c.h.b16 %v75
  %v1809 = vunpack.c.l.b16 %v76
  %v1810 = vunpack.c.h.b16 %v76
  %v1811 = vunpack.c.l.b16 %v77
  %v1812 = vunpack.c.h.b16 %v77
  %v1813 = vunpack.c.l.b16 %v78
  %v1814 = vunpack.c.h.b16 %v78
  %v1815 = vunpack.c.l.b16 %v79
  %v1816 = vunpack.c.h.b16 %v79
  %v1817 = vunpack.c.l.b16 %v80
  %v1818 = vunpack.c.h.b16 %v80
  %v1819 = vunpack.c.l.b16 %v81
  %v1820 = vunpack.c.h.b16 %v81
  %v1821 = vunpack.c.l.b16 %v82
  %v1822 = vunpack.c.h.b16 %v82
  %v1823 = vunpack.c.l.b16 %v83
  %v1824 = vunpack.c.h.b16 %v83
  %v1825 = vunpack.c.l.b16 %v84
  %v1826 = vunpack.c.h.b16 %v84
  %v1827 = vunpack.c.l.b16 %v85
  %v1828 = vunpack.c.h.b16 %v85
  %v1829 = vunpack.c.l.b16 %v86
  %v1830 = vunpack.c.h.b16 %v86
  %v1831 = vunpack.c.l.b16 %v87
  %v1832 = vunpack.c.h.b16 %v87
  %v1833 = vunpack.c.l.b16 %v88
  %v1834 = vunpack.c.h.b16 %v88
  %v1835 = vunpack.c.l.b16 %v89
  %v1836 = vunpack.c.h.b16 %v89
  %v1837 = vunpack.c.l.b16 %v90
  %v1838 = vunpack.c.h.b16 %v90
  %v1839 = vunpack.c.l.b16 %v91
  %v1840 = vunpack.c.h.b16 %v91
  %v1841 = vunpack.c.l.b16 %v92
  %v1842 = vunpack.c.h.b16 %v92
  %v1843 = vunpack.c.l.b16 %v93
  %v1844 = vunpack.c.h.b16 %v93
  %v1845 = vunpack.c.l.b16 %v94
  %v1846 = vunpack.c.h.b16 %v94
  %v1847 = vunpack.c.l.b16 %v95
  %v1848 = vunpack.c.h.b16 %v95
  %v1849 = vunpack.c.l.b16 %v96
  %v1850 = vunpack.c.h.b16 %v96
  %v1851 = vunpack.c.l.b16 %v97
  %v1852 = vunpack.c.h.b16 %v97
  %v1853 = vunpack.c.l.b16 %v98
  %v1854 = vunpack.c.h.b16 %v98
  %v1855 = vunpack.c.l.b16 %v99
  %v1856 = vunpack.c.h.b16 %v99
  %v1857 = vunpack.c.l.b16 %v100
  %v1858 = vunpack.c.h.b16 %v100
  %v1859 = vunpack.c.l.b16 %v101
  %v1860 = vunpack.c.h.b16 %v101
  %v1861 = vunpack.c.l.b16 %v102
  %v1862 = vunpack.c.h.b16 %v102
  %v1863 = vunpack.c.l.b16 %v103
  %v1864 = vunpack.c.h.b16 %v103
  %v1865 = vunpack.c.l.b16 %v104
  %v1866 = vunpack.c.h.b16 %v104
  %v1867 = vunpack.c.l.b16 %v105
  %v1868 = vunpack.c.h.b16 %v105
  %v1869 = vunpack.c.l.b16 %v106
  %v1870 = vunpack.c.h.b16 %v106
  %v1871 = vunpack.c.l.b16 %v107
  %v1872 = vunpack.c.h.b16 %v107
  %v1873 = vunpack.c.l.b16 %v108
  %v1874 = vunpack.c.h.b16 %v108
  %v1875 = vunpack.c.l.b16 %v109
  %v1876 = vunpack.c.h.b16 %v109
  %v1877 = vunpack.c.l.b16 %v110
  %v1878 = vunpack.c.h.b16 %v110
  %v1879 = vunpack.c.l.b16 %v111
  %v1880 = vunpack.c.h.b16 %v111
  %v1881 = vunpack.c.l.b16 %v112
  %v1882 = vunpack.c.h.b16 %v112
  %v1883 = vunpack.c.l.b16 %v113
  %v1884 = vunpack.c.h.b16 %v113
  %v1885 = vunpack.c.l.b16 %v114
  %v1886 = vunpack.c.h.b16 %v114
  %v1887 = vunpack.c.l.b16 %v115
  %v1888 = vunpack.c.h.b16 %v115
  %v1889 = vunpack.c.l.b16 %v116
  %v1890 = vunpack.c.h.b16 %v116
  %v1891 = vunpack.c.l.b16 %v117
  %v1892 = vunpack.c.h.b16 %v117
  %v1893 = vunpack.c.l.b16 %v118
  %v1894 = vunpack.c.h.b16 %v118
  %v1895 = vunpack.c.l.b16 %v119
  %v1896 = vunpack.c.h.b16 %v119
  %v1897 = vunpack.c.l.b16 %v120
  %v1898 = vunpack.c.h.b16 %v120
  %v1899 = vunpack.c.l.b16 %v121
  %v1900 = vunpack.c.h.b16 %v121
  %v1901 = vunpack.c.l.b16 %v122
  %v1902 = vunpack.c.h.b16 %v122
  %v1903 = vunpack.c.l.b16 %v123
  %v1904 = vunpack.c.h.b16 %v123
  %v1905 = vunpack.c.l.b16 %v124
  %v1906 = vunpack.c.h.b16 %v124
  %v1907 = vunpack.c.l.b16 %v125
  %v1908 = vunpack.c.h.b16 %v125
  %v1909 = vunpack.c.l.b16 %v126
  %v1910 = vunpack.c.h.b16 %v126
  %v1911 = vunpack.c.l.b16 %v127
  %v1912 = vunpack.c.h.b16 %v127
  %v1913 = vunpack.c.l.b16 %v128
  %v1914 = vunpack.c.h.b16 %v128
  %v1915 = vunpack.c.l.b16 %v129
  %v1916 = vunpack.c.h.b16 %v129
  %v1917 = vunpack.c.l.b16 %v130
  %v1918 = vunpack.c.h.b16 %v130
  %v1919 = vunpack.c.l.b16 %v131
  %v1920 = vunpack.c.h.b16 %v131
  %v1921 = vunpack.c.l.b16 %v132
  %v1922 = vunpack.c.h.b16 %v132
  %v1923 = vunpack.c.l.b16 %v133
  %v1924 = vunpack.c.h.b16 %v133
  %v1925 = vunpack.c.l.b16 %v134
  %v1926 = vunpack.c.h.b16 %v134
  %v1927 = vunpack.c.l.b16 %v135
  %v1928 = vunpack.c.h.b16 %v135
  %v1929 = vunpack.c.l.b16 %v136
  %v1930 = vunpack.c.h.b16 %v136
  %v1931 = vunpack.c.l.b16 %v137
  %v1932 = vunpack.c.h.b16 %v137
  %v1933 = vunpack.c.l.b16 %v138
  %v1934 = vunpack.c.h.b16 %v138
  %v1935 = vunpack.c.l.b16 %v139
  %v1936 = vunpack.c.h.b16 %v139
  %v1937 = vunpack.c.l.b16 %v140
  %v1938 = vunpack.c.h.b16 %v140
  %v1939 = vunpack.c.l.b16 %v141
  %v1940 = vunpack.c.h.b16 %v141
  %v1941 = vunpack.c.l.b16 %v142
  %v1942 = vunpack.c.h.b16 %v142
  %v1943 = vunpack.c.l.b16 %v143
  %v1944 = vunpack.c.h.b16 %v143
  %v1945 = vunpack.c.l.b16 %v144
  %v1946 = vunpack.c.h.b16 %v144
  %v1947 = vunpack.c.l.b16 %v145
  %v1948 = vunpack.c.h.b16 %v145
  %v1949 = vunpack.c.l.b16 %v146
  %v1950 = vunpack.c.h.b16 %v146
  %v1951 = vunpack.c.l.b16 %v147
  %v1952 = vunpack.c.h.b16 %v147
  %v1953 = vunpack.c.l.b16 %v148
  %v1954 = vunpack.c.h.b16 %v148
  %v1955 = vunpack.c.l.b16 %v149
  %v1956 = vunpack.c.h.b16 %v149
  %v1957 = vunpack.c.l.b16 %v150
  %v1958 = vunpack.c.h.b16 %v150
  %v1959 = vunpack.c.l.b16 %v151
  %v1960 = vunpack.c.h.b16 %v151
  %v1961 = vunpack.c.l.b16 %v152
  %v1962 = vunpack.c.h.b16 %v152
  %v1963 = vunpack.c.l.b16 %v153
  %v1964 = vunpack.c.h.b16 %v153
  %v1965 = vunpack.c.l.b16 %v154
  %v1966 = vunpack.c.h.b16 %v154
  %v1967 = vunpack.c.l.b16 %v155
  %v1968 = vunpack.c.h.b16 %v155
  %v1969 = vunpack.c.l.b16 %v156
  %v1970 = vunpack.c.h.b16 %v156
  %v1971 = vunpack.c.l.b16 %v157
  %v1972 = vunpack.c.h.b16 %v157
  %v1973 = vunpack.c.l.b16 %v158
  %v1974 = vunpack.c.h.b16 %v158
  %v1975 = vunpack.c.l.b16 %v159
  %v1976 = vunpack.c.h.b16 %v159
  %v1977 = vunpack.c.l.b16 %v160
  %v1978 = vunpack.c.h.b16 %v160
  %v1979 = vunpack.c.l.b16 %v161
  %v1980 = vunpack.c.h.b16 %v161
  %v1981 = vunpack.c.l.b16 %v162
  %v1982 = vunpack.c.h.b16 %v162
  %v1983 = vunpack.c.l.b16 %v163
  %v1984 = vunpack.c.h.b16 %v163
  %v1985 = vunpack.c.l.b16 %v164
  %v1986 = vunpack.c.h.b16 %v164
  %v1987 = vunpack.c.l.b16 %v165
  %v1988 = vunpack.c.h.b16 %v165
  %v1989 = vunpack.c.l.b16 %v166
  %v1990 = vunpack.c.h.b16 %v166
  %v1991 = vunpack.c.l.b16 %v167
  %v1992 = vunpack.c.h.b16 %v167
  %v1993 = vunpack.c.l.b16 %v168
  %v1994 = vunpack.c.h.b16 %v168
  %v1995 = vunpack.c.l.b16 %v169
  %v1996 = vunpack.c.h.b16 %v169
  %v1997 = vunpack.c.l.b16 %v170
  %v1998 = vunpack.c.h.b16 %v170
  %v1999 = vunpack.c.l.b16 %v171
  %v2000 = vunpack.c.h.b16 %v171
  %v2001 = vunpack.c.l.b16 %v172
  %v2002 = vunpack.c.h.b16 %v172
  %v2003 = vunpack.c.l.b16 %v173
  %v2004 = vunpack.c.h.b16 %v173
  %v2005 = vunpack.c.l.b16 %v174
  %v2006 = vunpack.c.h.b16 %v174
  %v2007 = vunpack.c.l.b16 %v175
  %v2008 = vunpack.c.h.b16 %v175
  %v2009 = vunpack.c.l.b16 %v176
  %v2010 = vunpack.c.h.b16 %v176
  %v2011 = vunpack.c.l.b16 %v177
  %v2012 = vunpack.c.h.b16 %v177
  %v2013 = vunpack.c.l.b16 %v178
  %v2014 = vunpack.c.h.b16 %v178
  %v2015 = vunpack.c.l.b16 %v179
  %v2016 = vunpack.c.h.b16 %v179
  %v2017 = vunpack.c.l.b16 %v180
  %v2018 = vunpack.c.h.b16 %v180
  %v2019 = vunpack.c.l.b16 %v181
  %v2020 = vunpack.c.h.b16 %v181
  %v2021 = vunpack.c.l.b16 %v182
  %v2022 = vunpack.c.h.b16 %v182
  %v2023 = vunpack.c.l.b16 %v183
  %v2024 = vunpack.c.h.b16 %v183
  %v2025 = vunpack.c.l.b16 %v184
  %v2026 = vunpack.c.h.b16 %v184
  %v2027 = vunpack.c.l.b16 %v185
  %v2028 = vunpack.c.h.b16 %v185
  %v2029 = vunpack.c.l.b16 %v186
  %v2030 = vunpack.c.h.b16 %v186
  %v2031 = vunpack.c.l.b16 %v187
  %v2032 = vunpack.c.h.b16 %v187
  %v2033 = vunpack.c.l.b16 %v188
  %v2034 = vunpack.c.h.b16 %v188
  %v2035 = vunpack.c.l.b16 %v189
  %v2036 = vunpack.c.h.b16 %v189
  %v2037 = vunpack.c.l.b16 %v190
  %v2038 = vunpack.c.h.b16 %v190
  %v2039 = vunpack.c.l.b16 %v191
  %v2040 = vunpack.c.h.b16 %v191
  %v2041 = vunpack.c.l.b16 %v192
  %v2042 = vunpack.c.h.b16 %v192
  %v2043 = vunpack.c.l.b16 %v193
  %v2044 = vunpack.c.h.b16 %v193
  %v2045 = vunpack.c.l.b16 %v194
  %v2046 = vunpack.c.h.b16 %v194
  %v2047 = vunpack.c.l.b16 %v195
  %v2048 = vunpack.c.h.b16 %v195
  %v2049 = vunpack.c.l.b16 %v196
  %v2050 = vunpack.c.h.b16 %v196
  %v2051 = vunpack.c.l.b16 %v197
  %v2052 = vunpack.c.h.b16 %v197
  %v2053 = vunpack.c.l.b16 %v198
  %v2054 = vunpack.c.h.b16 %v198
  %v2055 = vunpack.c.l.b16 %v199
  %v2056 = vunpack.c.h.b16 %v199
  %v2057 = vunpack.c.l.b16 %v200
  %v2058 = vunpack.c.h.b16 %v200
  %v2059 = vunpack.c.l.b16 %v201
  %v2060 = vunpack.c.h.b16 %v201
  %v2061 = vunpack.c.l.b16 %v202
  %v2062 = vunpack.c.h.b16 %v202
  %v2063 = vunpack.c.l.b16 %v203
  %v2064 = vunpack.c.h.b16 %v203
  %v2065 = vunpack.c.l.b16 %v204
  %v2066 = vunpack.c.h.b16 %v204
  %v2067 = vunpack.c.l.b16 %v205
  %v2068 = vunpack.c.h.b16 %v205
  %v2069 = vunpack.c.l.b16 %v206
  %v2070 = vunpack.c.h.b16 %v206
  %v2071 = vunpack.c.l.b16 %v207
  %v2072 = vunpack.c.h.b16 %v207
  %v2073 = vunpack.c.l.b16 %v208
  %v2074 = vunpack.c.h.b16 %v208
  %v2075 = vunpack.c.l.b16 %v209
  %v2076 = vunpack.c.h.b16 %v209
  %v2077 = vunpack.c.l.b16 %v210
  %v2078 = vunpack.c.h.b16 %v210
  %v2079 = vunpack.c.l.b16 %v211
  %v2080 = vunpack.c.h.b16 %v211
  %v2081 = vunpack.c.l.b16 %v212
  %v2082 = vunpack.c.h.b16 %v212
  %v2083 = vunpack.c.l.b16 %v213
  %v2084 = vunpack.c.h.b16 %v213
  %v2085 = vunpack.c.l.b16 %v214
  %v2086 = vunpack.c.h.b16 %v214
  %v2087 = vunpack.c.l.b16 %v215
  %v2088 = vunpack.c.h.b16 %v215
  %v2089 = vunpack.c.l.b16 %v216
  %v2090 = vunpack.c.h.b16 %v216
  %v2091 = vunpack.c.l.b16 %v217
  %v2092 = vunpack.c.h.b16 %v217
  %v2093 = vunpack.c.l.b16 %v218
  %v2094 = vunpack.c.h.b16 %v218
  %v2095 = vunpack.c.l.b16 %v219
  %v2096 = vunpack.c.h.b16 %v219
  %v2097 = vunpack.c.l.b16 %v220
  %v2098 = vunpack.c.h.b16 %v220
  %v2099 = vunpack.c.l.b16 %v221
  %v2100 = vunpack.c.h.b16 %v221
  %v2101 = vunpack.c.l.b16 %v222
  %v2102 = vunpack.c.h.b16 %v222
  %v2103 = vunpack.c.l.b16 %v223
  %v2104 = vunpack.c.h.b16 %v223
  %v2105 = vunpack.c.l.b16 %v224
  %v2106 = vunpack.c.h.b16 %v224
  %v2107 = vunpack.c.l.b16 %v225
  %v2108 = vunpack.c.h.b16 %v225
  %v2109 = vunpack.c.l.b16 %v226
  %v2110 = vunpack.c.h.b16 %v226
  %v2111 = vunpack.c.l.b16 %v227
  %v2112 = vunpack.c.h.b16 %v227
  %v2113 = vunpack.c.l.b16 %v228
  %v2114 = vunpack.c.h.b16 %v228
  %v2115 = vunpack.c.l.b16 %v229
  %v2116 = vunpack.c.h.b16 %v229
  %v2117 = vunpack.c.l.b16 %v230
  %v2118 = vunpack.c.h.b16 %v230
  %v2119 = vunpack.c.l.b16 %v231
  %v2120 = vunpack.c.h.b16 %v231
  %v2121 = vunpack.c.l.b16 %v232
  %v2122 = vunpack.c.h.b16 %v232
  %v2123 = vunpack.c.l.b16 %v233
  %v2124 = vunpack.c.h.b16 %v233
  %v2125 = vunpack.c.l.b16 %v234
  %v2126 = vunpack.c.h.b16 %v234
  %v2127 = vunpack.c.l.b16 %v235
  %v2128 = vunpack.c.h.b16 %v235
  %v2129 = vunpack.c.l.b16 %v236
  %v2130 = vunpack.c.h.b16 %v236
  %v2131 = vunpack.c.l.b16 %v237
  %v2132 = vunpack.c.h.b16 %v237
  %v2133 = vunpack.c.l.b16 %v238
  %v2134 = vunpack.c.h.b16 %v238
  %v2135 = vunpack.c.l.b16 %v239
  %v2136 = vunpack.c.h.b16 %v239
  %v2137 = vunpack.c.l.b16 %v240
  %v2138 = vunpack.c.h.b16 %v240
  %v2139 = vunpack.c.l.b16 %v241
  %v2140 = vunpack.c.h.b16 %v241
  %v2141 = vunpack.c.l.b16 %v242
  %v2142 = vunpack.c.h.b16 %v242
  %v2143 = vunpack.c.l.b16 %v243
  %v2144 = vunpack.c.h.b16 %v243
  %v2145 = vunpack.c.l.b16 %v244
  %v2146 = vunpack.c.h.b16 %v244
  %v2147 = vunpack.c.l.b16 %v245
  %v2148 = vunpack.c.h.b16 %v245
  %v2149 = vunpack.c.l.b16 %v246
  %v2150 = vunpack.c.h.b16 %v246
  %v2151 = vunpack.c.l.b16 %v247
  %v2152 = vunpack.c.h.b16 %v247
  %v2153 = vunpack.c.l.b16 %v248
  %v2154 = vunpack.c.h.b16 %v248
  %v2155 = vunpack.c.l.b16 %v249
  %v2156 = vunpack.c.h.b16 %v249
  %v2157 = vunpack.c.l.b16 %v250
  %v2158 = vunpack.c.h.b16 %v250
  %v2159 = vunpack.c.l.b16 %v251
  %v2160 = vunpack.c.h.b16 %v251
  %v2161 = vunpack.c.l.b16 %v252
  %v2162 = vunpack.c.h.b16 %v252
  %v2163 = vunpack.c.l.b16 %v253
  %v2164 = vunpack.c.h.b16 %v253
  %v2165 = vunpack.c.l.b16 %v254
  %v2166 = vunpack.c.h.b16 %v254
  %v2167 = vunpack.c.l.b16 %v255
  %v2168 = vunpack.c.h.b16 %v255
  %v2169 = vunpack.c.l.b16 %v256
  %v2170 = vunpack.c.h.b16 %v256
  %v2171 = vunpack.c.l.b16 %v257
  %v2172 = vunpack.c.h.b16 %v257
  %v2173 = vunpack.c.l.b16 %v258
  %v2174 = vunpack.c.h.b16 %v258
  %v2175 = vunpack.c.l.b16 %v259
  %v2176 = vunpack.c.h.b16 %v259
  %v2177 = vunpack.c.l.b16 %v260
  %v2178 = vunpack.c.h.b16 %v260
  %v2179 = vunpack.c.l.b16 %v261
  %v2180 = vunpack.c.h.b16 %v261
  %v2181 = vunpack.c.l.b16 %v262
  %v2182 = vunpack.c.h.b16 %v262
  %v2183 = vunpack.c.l.b16 %v263
  %v2184 = vunpack.c.h.b16 %v263
  %v2185 = vunpack.c.l.b16 %v264
  %v2186 = vunpack.c.h.b16 %v264
  %v2187 = vunpack.c.l.b16 %v265
  %v2188 = vunpack.c.h.b16 %v265
  %v2189 = vunpack.c.l.b16 %v266
  %v2190 = vunpack.c.h.b16 %v266
  %v2191 = vunpack.c.l.b16 %v267
  %v2192 = vunpack.c.h.b16 %v267
  %v2193 = vunpack.c.l.b16 %v268
  %v2194 = vunpack.c.h.b16 %v268
  %v2195 = vunpack.c.l.b16 %v269
  %v2196 = vunpack.c.h.b16 %v269
  %v2197 = vunpack.c.l.b16 %v270
  %v2198 = vunpack.c.h.b16 %v270
  %v2199 = vunpack.c.l.b16 %v271
  %v2200 = vunpack.c.h.b16 %v271
  %v2201 = vunpack.c.l.b16 %v272
  %v2202 = vunpack.c.h.b16 %v272
  %v2203 = vunpack.c.l.b16 %v273
  %v2204 = vunpack.c.h.b16 %v273
  %v2205 = vunpack.c.l.b16 %v274
  %v2206 = vunpack.c.h.b16 %v274
  %v2207 = vunpack.c.l.b16 %v275
  %v2208 = vunpack.c.h.b16 %v275
  %v2209 = vunpack.c.l.b16 %v276
  %v2210 = vunpack.c.h.b16 %v276
  %v2211 = vunpack.c.l.b16 %v277
  %v2212 = vunpack.c.h.b16 %v277
  %v2213 = vunpack.c.l.b16 %v278
  %v2214 = vunpack.c.h.b16 %v278
  %v2215 = vunpack.c.l.b16 %v279
  %v2216 = vunpack.c.h.b16 %v279
  %v2217 = vunpack.c.l.b16 %v280
  %v2218 = vunpack.c.h.b16 %v280
  %v2219 = vunpack.c.l.b16 %v281
  %v2220 = vunpack.c.h.b16 %v281
  %v2221 = vunpack.c.l.b16 %v282
  %v2222 = vunpack.c.h.b16 %v282
  %v2223 = vunpack.c.l.b16 %v283
  %v2224 = vunpack.c.h.b16 %v283
  %v2225 = vunpack.c.l.b16 %v284
  %v2226 = vunpack.c.h.b16 %v284
  %v2227 = vunpack.c.l.b16 %v285
  %v2228 = vunpack.c.h.b16 %v285
  %v2229 = vunpack.c.l.b16 %v286
  %v2230 = vunpack.c.h.b16 %v286
  %v2231 = vunpack.c.l.b16 %v287
  %v2232 = vunpack.c.h.b16 %v287
  %v2233 = vunpack.c.l.b16 %v288
  %v2234 = vunpack.c.h.b16 %v288
  %v2235 = vunpack.c.l.b16 %v289
  %v2236 = vunpack.c.h.b16 %v289
  %v2237 = vunpack.c.l.b16 %v290
  %v2238 = vunpack.c.h.b16 %v290
  %v2239 = vunpack.c.l.b16 %v291
  %v2240 = vunpack.c.h.b16 %v291
  %v2241 = vunpack.c.l.b16 %v292
  %v2242 = vunpack.c.h.b16 %v292
  %v2243 = vunpack.c.l.b16 %v293
  %v2244 = vunpack.c.h.b16 %v293
  %v2245 = vunpack.c.l.b16 %v294
  %v2246 = vunpack.c.h.b16 %v294
  %v2247 = vunpack.c.l.b16 %v295
  %v2248 = vunpack.c.h.b16 %v295
  %v2249 = vunpack.c.l.b16 %v296
  %v2250 = vunpack.c.h.b16 %v296
  %v2251 = vunpack.c.l.b16 %v297
  %v2252 = vunpack.c.h.b16 %v297
  %v2253 = vunpack.c.l.b16 %v298
  %v2254 = vunpack.c.h.b16 %v298
  %v2255 = vunpack.c.l.b16 %v299
  %v2256 = vunpack.c.h.b16 %v299
  %v2257 = vunpack.c.l.b16 %v300
  %v2258 = vunpack.c.h.b16 %v300
  %v2259 = vunpack.c.l.b16 %v301
  %v2260 = vunpack.c.h.b16 %v301
  %v2261 = vunpack.c.l.b16 %v302
  %v2262 = vunpack.c.h.b16 %v302
  %v2263 = vunpack.c.l.b16 %v303
  %v2264 = vunpack.c.h.b16 %v303
  %v2265 = vunpack.c.l.b16 %v304
  %v2266 = vunpack.c.h.b16 %v304
  %v2267 = vunpack.c.l.b16 %v305
  %v2268 = vunpack.c.h.b16 %v305
  %v2269 = vunpack.c.l.b16 %v306
  %v2270 = vunpack.c.h.b16 %v306
  %v2271 = vunpack.c.l.b16 %v307
  %v2272 = vunpack.c.h.b16 %v307
  %v2273 = vunpack.c.l.b16 %v308
  %v2274 = vunpack.c.h.b16 %v308
  %v2275 = vunpack.c.l.b16 %v309
  %v2276 = vunpack.c.h.b16 %v309
  %v2277 = vunpack.c.l.b16 %v310
  %v2278 = vunpack.c.h.b16 %v310
  %v2279 = vunpack.c.l.b16 %v311
  %v2280 = vunpack.c.h.b16 %v311
  %v2281 = vunpack.c.l.b16 %v312
  %v2282 = vunpack.c.h.b16 %v312
  %v2283 = vunpack.c.l.b16 %v313
  %v2284 = vunpack.c.h.b16 %v313
  %v2285 = vunpack.c.l.b16 %v314
  %v2286 = vunpack.c.h.b16 %v314
  %v2287 = vunpack.c.l.b16 %v315
  %v2288 = vunpack.c.h.b16 %v315
  %v2289 = vunpack.c.l.b16 %v316
  %v2290 = vunpack.c.h.b16 %v316
  %v2291 = vunpack.c.l.b16 %v317
  %v2292 = vunpack.c.h.b16 %v317
  %v2293 = vunpack.c.l.b16 %v318
  %v2294 = vunpack.c.h.b16 %v318
  %v2295 = vunpack.c.l.b16 %v319
  %v2296 = vunpack.c.h.b16 %v319
  %v2297 = vunpack.c.l.b16 %v320
  %v2298 = vunpack.c.h.b16 %v320
  %v2299 = vunpack.c.l.b16 %v321
  %v2300 = vunpack.c.h.b16 %v321
  %v2301 = vunpack.c.l.b16 %v322
  %v2302 = vunpack.c.h.b16 %v322
  %v2303 = vunpack.c.l.b16 %v323
  %v2304 = vunpack.c.h.b16 %v323
  %v2305 = vunpack.c.l.b16 %v324
  %v2306 = vunpack.c.h.b16 %v324
  %v2307 = vunpack.c.l.b16 %v325
  %v2308 = vunpack.c.h.b16 %v325
  %v2309 = vunpack.c.l.b16 %v326
  %v2310 = vunpack.c.h.b16 %v326
  %v2311 = vunpack.c.l.b16 %v327
  %v2312 = vunpack.c.h.b16 %v327
  %v2313 = vunpack.c.l.b16 %v328
  %v2314 = vunpack.c.h.b16 %v328
  %v2315 = vunpack.c.l.b16 %v329
  %v2316 = vunpack.c.h.b16 %v329
  %v2317 = vunpack.c.l.b16 %v330
  %v2318 = vunpack.c.h.b16 %v330
  %v2319 = vunpack.c.l.b16 %v331
  %v2320 = vunpack.c.h.b16 %v331
  %v2321 = vunpack.c.l.b16 %v332
  %v2322 = vunpack.c.h.b16 %v332
  %v2323 = vunpack.c.l.b16 %v333
  %v2324 = vunpack.c.h.b16 %v333
  %v2325 = vunpack.c.l.b16 %v334
  %v2326 = vunpack.c.h.b16 %v334
  %v2327 = vunpack.c.l.b16 %v335
  %v2328 = vunpack.c.h.b16 %v335
  %v2329 = vunpack.c.l.b16 %v336
  %v2330 = vunpack.c.h.b16 %v336
  %v2331 = vunpack.c.l.b16 %v337
  %v2332 = vunpack.c.h.b16 %v337
  %v2333 = vunpack.c.l.b16 %v338
  %v2334 = vunpack.c.h.b16 %v338
  %v2335 = vunpack.c.l.b16 %v339
  %v2336 = vunpack.c.h.b16 %v339
  %v2337 = vunpack.c.l.b16 %v340
  %v2338 = vunpack.c.h.b16 %v340
  %v2339 = vunpack.c.l.b16 %v341
  %v2340 = vunpack.c.h.b16 %v341
  %v2341 = vunpack.c.l.b16 %v342
  %v2342 = vunpack.c.h.b16 %v342
  %v2343 = vunpack.c.l.b16 %v343
  %v2344 = vunpack.c.h.b16 %v343
  %v2345 = vunpack.c.l.b16 %v344
  %v2346 = vunpack.c.h.b16 %v344
  %v2347 = vunpack.c.l.b16 %v345
  %v2348 = vunpack.c.h.b16 %v345
  %v2349 = vunpack.c.l.b16 %v346
  %v2350 = vunpack.c.h.b16 %v346
  %v2351 = vunpack.c.l.b16 %v347
  %v2352 = vunpack.c.h.b16 %v347
  %v2353 = vunpack.c.l.b16 %v348
  %v2354 = vunpack.c.h.b16 %v348
  %v2355 = vunpack.c.l.b16 %v349
  %v2356 = vunpack.c.h.b16 %v349
  %v2357 = vunpack.c.l.b16 %v350
  %v2358 = vunpack.c.h.b16 %v350
  %v2359 = vunpack.c.l.b16 %v351
  %v2360 = vunpack.c.h.b16 %v351
  %v2361 = vunpack.c.l.b16 %v352
  %v2362 = vunpack.c.h.b16 %v352
  %v2363 = vunpack.c.l.b16 %v353
  %v2364 = vunpack.c.h.b16 %v353
  %v2365 = vunpack.c.l.b16 %v354
  %v2366 = vunpack.c.h.b16 %v354
  %v2367 = vunpack.c.l.b16 %v355
  %v2368 = vunpack.c.h.b16 %v355
  %v2369 = vunpack.c.l.b16 %v356
  %v2370 = vunpack.c.h.b16 %v356
  %v2371 = vunpack.c.l.b16 %v357
  %v2372 = vunpack.c.h.b16 %v357
  %v2373 = vunpack.c.l.b16 %v358
  %v2374 = vunpack.c.h.b16 %v358
  %v2375 = vunpack.c.l.b16 %v359
  %v2376 = vunpack.c.h.b16 %v359
  %v2377 = vunpack.c.l.b16 %v360
  %v2378 = vunpack.c.h.b16 %v360
  %v2379 = vunpack.c.l.b16 %v361
  %v2380 = vunpack.c.h.b16 %v361
  %v2381 = vunpack.c.l.b16 %v362
  %v2382 = vunpack.c.h.b16 %v362
  %v2383 = vunpack.c.l.b16 %v363
  %v2384 = vunpack.c.h.b16 %v363
  %v2385 = vunpack.c.l.b16 %v364
  %v2386 = vunpack.c.h.b16 %v364
  %v2387 = vunpack.c.l.b16 %v365
  %v2388 = vunpack.c.h.b16 %v365
  %v2389 = vunpack.c.l.b16 %v366
  %v2390 = vunpack.c.h.b16 %v366
  %v2391 = vunpack.c.l.b16 %v367
  %v2392 = vunpack.c.h.b16 %v367
  %v2393 = vunpack.c.l.b16 %v368
  %v2394 = vunpack.c.h.b16 %v368
  %v2395 = vunpack.c.l.b16 %v369
  %v2396 = vunpack.c.h.b16 %v369
  %v2397 = vunpack.c.l.b16 %v370
  %v2398 = vunpack.c.h.b16 %v370
  %v2399 = vunpack.c.l.b16 %v371
  %v2400 = vunpack.c.h.b16 %v371
  %v2401 = vunpack.c.l.b16 %v372
  %v2402 = vunpack.c.h.b16 %v372
  %v2403 = vunpack.c.l.b16 %v373
  %v2404 = vunpack.c.h.b16 %v373
  %v2405 = vunpack.c.l.b16 %v374
  %v2406 = vunpack.c.h.b16 %v374
  %v2407 = vunpack.c.l.b16 %v375
  %v2408 = vunpack.c.h.b16 %v375
  %v2409 = vunpack.c.l.b16 %v376
  %v2410 = vunpack.c.h.b16 %v376
  %v2411 = vunpack.c.l.b16 %v377
  %v2412 = vunpack.c.h.b16 %v377
  %v2413 = vunpack.c.l.b16 %v378
  %v2414 = vunpack.c.h.b16 %v378
  %v2415 = vunpack.c.l.b16 %v379
  %v2416 = vunpack.c.h.b16 %v379
  %v2417 = vunpack.c.l.b16 %v380
  %v2418 = vunpack.c.h.b16 %v380
  %v2419 = vunpack.c.l.b16 %v381
  %v2420 = vunpack.c.h.b16 %v381
  %v2421 = vunpack.c.l.b16 %v382
  %v2422 = vunpack.c.h.b16 %v382
  %v2423 = vunpack.c.l.b16 %v383
  %v2424 = vunpack.c.h.b16 %v383
  %v2425 = vunpack.c.l.b16 %v384
  %v2426 = vunpack.c.h.b16 %v384
  %v2427 = vunpack.c.l.b16 %v385
  %v2428 = vunpack.c.h.b16 %v385
  %v2429 = vunpack.c.l.b16 %v386
  %v2430 = vunpack.c.h.b16 %v386
  %v2431 = vunpack.c.l.b16 %v387
  %v2432 = vunpack.c.h.b16 %v387
  %v2433 = vunpack.c.l.b16 %v388
  %v2434 = vunpack.c.h.b16 %v388
  %v2435 = vunpack.c.l.b16 %v389
  %v2436 = vunpack.c.h.b16 %v389
  %v2437 = vunpack.c.l.b16 %v390
  %v2438 = vunpack.c.h.b16 %v390
  %v2439 = vunpack.c.l.b16 %v391
  %v2440 = vunpack.c.h.b16 %v391
  %v2441 = vunpack.c.l.b16 %v392
  %v2442 = vunpack.c.h.b16 %v392
  %v2443 = vunpack.c.l.b16 %v393
  %v2444 = vunpack.c.h.b16 %v393
  %v2445 = vunpack.c.l.b16 %v394
  %v2446 = vunpack.c.h.b16 %v394
  %v2447 = vunpack.c.l.b16 %v395
  %v2448 = vunpack.c.h.b16 %v395
  %v2449 = vunpack.c.l.b16 %v396
  %v2450 = vunpack.c.h.b16 %v396
  %v2451 = vunpack.c.l.b16 %v397
  %v2452 = vunpack.c.h.b16 %v397
  %v2453 = vunpack.c.l.b16 %v398
  %v2454 = vunpack.c.h.b16 %v398
  %v2455 = vunpack.c.l.b16 %v399
  %v2456 = vunpack.c.h.b16 %v399
  %v2457 = vunpack.c.l.b16 %v400
  %v2458 = vunpack.c.h.b16 %v400
  %v2459 = vunpack.c.l.b16 %v401
  %v2460 = vunpack.c.h.b16 %v401
  %v2461 = vunpack.c.l.b16 %v402
  %v2462 = vunpack.c.h.b16 %v402
  %v2463 = vunpack.c.l.b16 %v403
  %v2464 = vunpack.c.h.b16 %v403
  %v2465 = vunpack.c.l.b16 %v404
  %v2466 = vunpack.c.h.b16 %v404
  %v2467 = vunpack.c.l.b16 %v405
  %v2468 = vunpack.c.h.b16 %v405
  %v2469 = vunpack.c.l.b16 %v406
  %v2470 = vunpack.c.h.b16 %v406
  %v2471 = vunpack.c.l.b16 %v407
  %v2472 = vunpack.c.h.b16 %v407
  %v2473 = vunpack.c.l.b16 %v408
  %v2474 = vunpack.c.h.b16 %v408
  %v2475 = vunpack.c.l.b16 %v409
  %v2476 = vunpack.c.h.b16 %v409
  %v2477 = vunpack.c.l.b16 %v410
  %v2478 = vunpack.c.h.b16 %v410
  %v2479 = vunpack.c.l.b16 %v411
  %v2480 = vunpack.c.h.b16 %v411
  %v2481 = vunpack.c.l.b16 %v412
  %v2482 = vunpack.c.h.b16 %v412
  %v2483 = vunpack.c.l.b16 %v413
  %v2484 = vunpack.c.h.b16 %v413
  %v2485 = vunpack.c.l.b16 %v414
  %v2486 = vunpack.c.h.b16 %v414
  %v2487 = vunpack.c.l.b16 %v415
  %v2488 = vunpack.c.h.b16 %v415
  %v2489 = vunpack.c.l.b16 %v416
  %v2490 = vunpack.c.h.b16 %v416
  %v2491 = vunpack.c.l.b16 %v417
  %v2492 = vunpack.c.h.b16 %v417
  %v2493 = vunpack.c.l.b16 %v418
  %v2494 = vunpack.c.h.b16 %v418
  %v2495 = vunpack.c.l.b16 %v419
  %v2496 = vunpack.c.h.b16 %v419
  %v2497 = vunpack.c.l.b16 %v420
  %v2498 = vunpack.c.h.b16 %v420
  %v2499 = vunpack.c.l.b16 %v421
  %v2500 = vunpack.c.h.b16 %v421
  %v2501 = vunpack.c.l.b16 %v422
  %v2502 = vunpack.c.h.b16 %v422
  %v2503 = vunpack.c.l.b16 %v423
  %v2504 = vunpack.c.h.b16 %v423
  %v2505 = vunpack.c.l.b16 %v424
  %v2506 = vunpack.c.h.b16 %v424
  %v2507 = vunpack.c.l.b16 %v425
  %v2508 = vunpack.c.h.b16 %v425
  %v2509 = vunpack.c.l.b16 %v426
  %v2510 = vunpack.c.h.b16 %v426
  %v2511 = vunpack.c.l.b16 %v427
  %v2512 = vunpack.c.h.b16 %v427
  %v2513 = vunpack.c.l.b16 %v428
  %v2514 = vunpack.c.h.b16 %v428
  %v2515 = vunpack.c.l.b16 %v429
  %v2516 = vunpack.c.h.b16 %v429
  %v2517 = vunpack.c.l.b16 %v430
  %v2518 = vunpack.c.h.b16 %v430
  %v2519 = vunpack.c.l.b16 %v431
  %v2520 = vunpack.c.h.b16 %v431
  %v2521 = vunpack.c.l.b16 %v432
  %v2522 = vunpack.c.h.b16 %v432
  %v2523 = vunpack.c.l.b16 %v433
  %v2524 = vunpack.c.h.b16 %v433
  %v2525 = vunpack.c.l.b16 %v434
  %v2526 = vunpack.c.h.b16 %v434
  %v2527 = vunpack.c.l.b16 %v435
  %v2528 = vunpack.c.h.b16 %v435
  %v2529 = vunpack.c.l.b16 %v436
  %v2530 = vunpack.c.h.b16 %v436
  %v2531 = vunpack.c.l.b16 %v437
  %v2532 = vunpack.c.h.b16 %v437
  %v2533 = vunpack.c.l.b16 %v438
  %v2534 = vunpack.c.h.b16 %v438
  %v2535 = vunpack.c.l.b16 %v439
  %v2536 = vunpack.c.h.b16 %v439
  %v2537 = vunpack.c.l.b16 %v440
  %v2538 = vunpack.c.h.b16 %v440
  %v2539 = vunpack.c.l.b16 %v441
  %v2540 = vunpack.c.h.b16 %v441
  %v2541 = vunpack.c.l.b16 %v442
  %v2542 = vunpack.c.h.b16 %v442
  %v2543 = vunpack.c.l.b16 %v443
  %v2544 = vunpack.c.h.b16 %v443
  %v2545 = vunpack.c.l.b16 %v444
  %v2546 = vunpack.c.h.b16 %v444
  %v2547 = vunpack.c.l.b16 %v445
  %v2548 = vunpack.c.h.b16 %v445
  %v2549 = vunpack.c.l.b16 %v446
  %v2550 = vunpack.c.h.b16 %v446
  %v2551 = vunpack.c.l.b16 %v447
  %v2552 = vunpack.c.h.b16 %v447
  %v2553 = vunpack.c.l.b16 %v448
  %v2554 = vunpack.c.h.b16 %v448
  %v2555 = vunpack.c.l.b16 %v449
  %v2556 = vunpack.c.h.b16 %v449
  %v2557 = vunpack.c.l.b16 %v450
  %v2558 = vunpack.c.h.b16 %v450
  %v2559 = vunpack.c.l.b16 %v451
  %v2560 = vunpack.c.h.b16 %v451
  %v2561 = vunpack.c.l.b16 %v452
  %v2562 = vunpack.c.h.b16 %v452
  %v2563 = vunpack.c.l.b16 %v453
  %v2564 = vunpack.c.h.b16 %v453
  %v2565 = vunpack.c.l.b16 %v454
  %v2566 = vunpack.c.h.b16 %v454
  %v2567 = vunpack.c.l.b16 %v455
  %v2568 = vunpack.c.h.b16 %v455
  %v2569 = vunpack.c.l.b16 %v456
  %v2570 = vunpack.c.h.b16 %v456
  %v2571 = vunpack.c.l.b16 %v457
  %v2572 = vunpack.c.h.b16 %v457
  %v2573 = vunpack.c.l.b16 %v458
  %v2574 = vunpack.c.h.b16 %v458
  %v2575 = vunpack.c.l.b16 %v459
  %v2576 = vunpack.c.h.b16 %v459
  %v2577 = vunpack.c.l.b16 %v460
  %v2578 = vunpack.c.h.b16 %v460
  %v2579 = vunpack.c.l.b16 %v461
  %v2580 = vunpack.c.h.b16 %v461
  %v2581 = vunpack.c.l.b16 %v462
  %v2582 = vunpack.c.h.b16 %v462
  %v2583 = vunpack.c.l.b16 %v463
  %v2584 = vunpack.c.h.b16 %v463
  %v2585 = vunpack.c.l.b16 %v464
  %v2586 = vunpack.c.h.b16 %v464
  %v2587 = vunpack.c.l.b16 %v465
  %v2588 = vunpack.c.h.b16 %v465
  %v2589 = vunpack.c.l.b16 %v466
  %v2590 = vunpack.c.h.b16 %v466
  %v2591 = vunpack.c.l.b16 %v467
  %v2592 = vunpack.c.h.b16 %v467
  %v2593 = vunpack.c.l.b16 %v468
  %v2594 = vunpack.c.h.b16 %v468
  %v2595 = vunpack.c.l.b16 %v469
  %v2596 = vunpack.c.h.b16 %v469
  %v2597 = vunpack.c.l.b16 %v470
  %v2598 = vunpack.c.h.b16 %v470
  %v2599 = vunpack.c.l.b16 %v471
  %v2600 = vunpack.c.h.b16 %v471
  %v2601 = vunpack.c.l.b16 %v472
  %v2602 = vunpack.c.h.b16 %v472
  %v2603 = vunpack.c.l.b16 %v473
  %v2604 = vunpack.c.h.b16 %v473
  %v2605 = vunpack.c.l.b16 %v474
  %v2606 = vunpack.c.h.b16 %v474
  %v2607 = vunpack.c.l.b16 %v475
  %v2608 = vunpack.c.h.b16 %v475
  %v2609 = vunpack.c.l.b16 %v476
  %v2610 = vunpack.c.h.b16 %v476
  %v2611 = vunpack.c.l.b16 %v477
  %v2612 = vunpack.c.h.b16 %v477
  %v2613 = vunpack.c.l.b16 %v478
  %v2614 = vunpack.c.h.b16 %v478
  %v2615 = vunpack.c.l.b16 %v479
  %v2616 = vunpack.c.h.b16 %v479
  %v2617 = vunpack.c.l.b16 %v480
  %v2618 = vunpack.c.h.b16 %v480
  %v2619 = vunpack.c.l.b16 %v481
  %v2620 = vunpack.c.h.b16 %v481
  %v2621 = vunpack.c.l.b16 %v482
  %v2622 = vunpack.c.h.b16 %v482
  %v2623 = vunpack.c.l.b16 %v483
  %v2624 = vunpack.c.h.b16 %v483
  %v2625 = vunpack.c.l.b16 %v484
  %v2626 = vunpack.c.h.b16 %v484
  %v2627 = vunpack.c.l.b16 %v485
  %v2628 = vunpack.c.h.b16 %v485
  %v2629 = vunpack.c.l.b16 %v486
  %v2630 = vunpack.c.h.b16 %v486
  %v2631 = vunpack.c.l.b16 %v487
  %v2632 = vunpack.c.h.b16 %v487
  %v2633 = vunpack.c.l.b16 %v488
  %v2634 = vunpack.c.h.b16 %v488
  %v2635 = vunpack.c.l.b16 %v489
  %v2636 = vunpack.c.h.b16 %v489
  %v2637 = vunpack.c.l.b16 %v490
  %v2638 = vunpack.c.h.b16 %v490
  %v2639 = vunpack.c.l.b16 %v491
  %v2640 = vunpack.c.h.b16 %v491
  %v2641 = vunpack.c.l.b16 %v492
  %v2642 = vunpack.c.h.b16 %v492
  %v2643 = vunpack.c.l.b16 %v493
  %v2644 = vunpack.c.h.b16 %v493
  %v2645 = vunpack.c.l.b16 %v494
  %v2646 = vunpack.c.h.b16 %v494
  %v2647 = vunpack.c.l.b16 %v495
  %v2648 = vunpack.c.h.b16 %v495
  %v2649 = vunpack.c.l.b16 %v496
  %v2650 = vunpack.c.h.b16 %v496
  %v2651 = vunpack.c.l.b16 %v497
  %v2652 = vunpack.c.h.b16 %v497
  %v2653 = vunpack.c.l.b16 %v498
  %v2654 = vunpack.c.h.b16 %v498
  %v2655 = vunpack.c.l.b16 %v499
  %v2656 = vunpack.c.h.b16 %v499
  %v2657 = vunpack.c.l.b16 %v500
  %v2658 = vunpack.c.h.b16 %v500
  %v2659 = vunpack.c.l.b16 %v501
  %v2660 = vunpack.c.h.b16 %v501
  %v2661 = vunpack.c.l.b16 %v502
  %v2662 = vunpack.c.h.b16 %v502
  %v2663 = vunpack.c.l.b16 %v503
  %v2664 = vunpack.c.h.b16 %v503
  %v2665 = vunpack.c.l.b16 %v504
  %v2666 = vunpack.c.h.b16 %v504
  %v2667 = vunpack.c.l.b16 %v505
  %v2668 = vunpack.c.h.b16 %v505
  %v2669 = vunpack.c.l.b16 %v506
  %v2670 = vunpack.c.h.b16 %v506
  %v2671 = vunpack.c.l.b16 %v507
  %v2672 = vunpack.c.h.b16 %v507
  %v2673 = vunpack.c.l.b16 %v508
  %v2674 = vunpack.c.h.b16 %v508
  %v2675 = vunpack.c.l.b16 %v509
  %v2676 = vunpack.c.h.b16 %v509
  %v2677 = vunpack.c.l.b16 %v510
  %v2678 = vunpack.c.h.b16 %v510
  %v2679 = vunpack.c.l.b16 %v511
  %v2680 = vunpack.c.h.b16 %v511
  %v2681 = vunpack.c.l.b16 %v512
  %v2682 = vunpack.c.h.b16 %v512
  %v2683 = vunpack.c.l.b16 %v513
  %v2684 = vunpack.c.h.b16 %v513
  %v2685 = vunpack.c.l.b16 %v514
  %v2686 = vunpack.c.h.b16 %v514
  %v2687 = vunpack.c.l.b16 %v515
  %v2688 = vunpack.c.h.b16 %v515
  %v2689 = vunpack.c.l.b16 %v516
  %v2690 = vunpack.c.h.b16 %v516
  %v2691 = vunpack.c.l.b16 %v517
  %v2692 = vunpack.c.h.b16 %v517
  %v2693 = vunpack.c.l.b16 %v518
  %v2694 = vunpack.c.h.b16 %v518
  %v2695 = vunpack.c.l.b16 %v519
  %v2696 = vunpack.c.h.b16 %v519
  %v2697 = vunpack.c.l.b16 %v520
  %v2698 = vunpack.c.h.b16 %v520
  %v2699 = vunpack.c.l.b16 %v521
  %v2700 = vunpack.c.h.b16 %v521
  %v2701 = vunpack.c.l.b16 %v522
  %v2702 = vunpack.c.h.b16 %v522
  %v2703 = vunpack.c.l.b16 %v523
  %v2704 = vunpack.c.h.b16 %v523
  %v2705 = vunpack.c.l.b16 %v524
  %v2706 = vunpack.c.h.b16 %v524
  %v2707 = vunpack.c.l.b16 %v525
  %v2708 = vunpack.c.h.b16 %v525
  %v2709 = vunpack.c.l.b16 %v526
  %v2710 = vunpack.c.h.b16 %v526
  %v2711 = vunpack.c.l.b16 %v527
  %v2712 = vunpack.c.h.b16 %v527
  %v2713 = vunpack.c.l.b16 %v528
  %v2714 = vunpack.c.h.b16 %v528
  %v2715 = vunpack.c.l.b16 %v529
  %v2716 = vunpack.c.h.b16 %v529
  %v2717 = vunpack.c.l.b16 %v530
  %v2718 = vunpack.c.h.b16 %v530
  %v2719 = vunpack.c.l.b16 %v531
  %v2720 = vunpack.c.h.b16 %v531
  %v2721 = vunpack.c.l.b16 %v532
  %v2722 = vunpack.c.h.b16 %v532
  %v2723 = vunpack.c.l.b16 %v533
  %v2724 = vunpack.c.h.b16 %v533
  %v2725 = vunpack.c.l.b16 %v534
  %v2726 = vunpack.c.h.b16 %v534
  %v2727 = vunpack.c.l.b16 %v535
  %v2728 = vunpack.c.h.b16 %v535
  %v2729 = vunpack.c.l.b16 %v536
  %v2730 = vunpack.c.h.b16 %v536
  %v2731 = vunpack.c.l.b16 %v537
  %v2732 = vunpack.c.h.b16 %v537
  %v2733 = vunpack.c.l.b16 %v538
  %v2734 = vunpack.c.h.b16 %v538
  %v2735 = vunpack.c.l.b16 %v539
  %v2736 = vunpack.c.h.b16 %v539
  %v2737 = vunpack.c.l.b16 %v540
  %v2738 = vunpack.c.h.b16 %v540
  %v2739 = vunpack.c.l.b16 %v541
  %v2740 = vunpack.c.h.b16 %v541
  %v2741 = vunpack.c.l.b16 %v542
  %v2742 = vunpack.c.h.b16 %v542
  %v2743 = vunpack.c.l.b16 %v543
  %v2744 = vunpack.c.h.b16 %v543
  %v2745 = vunpack.c.l.b16 %v544
  %v2746 = vunpack.c.h.b16 %v544
  %v2747 = vunpack.c.l.b16 %v545
  %v2748 = vunpack.c.h.b16 %v545
  %v2749 = vunpack.c.l.b16 %v546
  %v2750 = vunpack.c.h.b16 %v546
  %v2751 = vunpack.c.l.b16 %v547
  %v2752 = vunpack.c.h.b16 %v547
  %v2753 = vunpack.c.l.b16 %v548
  %v2754 = vunpack.c.h.b16 %v548
  %v2755 = vunpack.c.l.b16 %v549
  %v2756 = vunpack.c.h.b16 %v549
  %v2757 = vunpack.c.l.b16 %v550
  %v2758 = vunpack.c.h.b16 %v550
  %v2759 = vunpack.c.l.b16 %v551
  %v2760 = vunpack.c.h.b16 %v551
  %v2761 = vunpack.c.l.b16 %v552
  %v2762 = vunpack.c.h.b16 %v552
  %v2763 = vunpack.c.l.b16 %v553
  %v2764 = vunpack.c.h.b16 %v553
  %v2765 = vunpack.c.l.b16 %v554
  %v2766 = vunpack.c.h.b16 %v554
  %v2767 = vunpack.c.l.b16 %v555
  %v2768 = vunpack.c.h.b16 %v555
  %v2769 = vunpack.c.l.b16 %v556
  %v2770 = vunpack.c.h.b16 %v556
  %v2771 = vunpack.c.l.b16 %v557
  %v2772 = vunpack.c.h.b16 %v557
  %v2773 = vunpack.c.l.b16 %v558
  %v2774 = vunpack.c.h.b16 %v558
  %v2775 = vunpack.c.l.b16 %v559
  %v2776 = vunpack.c.h.b16 %v559
  %v2777 = vunpack.c.l.b16 %v560
  %v2778 = vunpack.c.h.b16 %v560
  %v2779 = vunpack.c.l.b16 %v561
  %v2780 = vunpack.c.h.b16 %v561
  %v2781 = vunpack.c.l.b16 %v562
  %v2782 = vunpack.c.h.b16 %v562
  %v2783 = vunpack.c.l.b16 %v563
  %v2784 = vunpack.c.h.b16 %v563
  %v2785 = vunpack.c.l.b16 %v564
  %v2786 = vunpack.c.h.b16 %v564
  %v2787 = vunpack.c.l.b16 %v565
  %v2788 = vunpack.c.h.b16 %v565
  %v2789 = vunpack.c.l.b16 %v566
  %v2790 = vunpack.c.h.b16 %v566
  %v2791 = vunpack.c.l.b16 %v567
  %v2792 = vunpack.c.h.b16 %v567
  %v2793 = vunpack.c.l.b16 %v568
  %v2794 = vunpack.c.h.b16 %v568
  %v2795 = vunpack.c.l.b16 %v569
  %v2796 = vunpack.c.h.b16 %v569
  %v2797 = vunpack.c.l.b16 %v570
  %v2798 = vunpack.c.h.b16 %v570
  %v2799 = vunpack.c.l.b16 %v571
  %v2800 = vunpack.c.h.b16 %v571
  %v2801 = vunpack.c.l.b16 %v572
  %v2802 = vunpack.c.h.b16 %v572
  %v2803 = vunpack.c.l.b16 %v573
  %v2804 = vunpack.c.h.b16 %v573
  %v2805 = vunpack.c.l.b16 %v574
  %v2806 = vunpack.c.h.b16 %v574
  %v2807 = vunpack.c.l.b16 %v575
  %v2808 = vunpack.c.h.b16 %v575
  %v2809 = vunpack.c.l.b16 %v576
  %v2810 = vunpack.c.h.b16 %v576
  %v2811 = vunpack.c.l.b16 %v577
  %v2812 = vunpack.c.h.b16 %v577
  %v2813 = vunpack.c.l.b16 %v578
  %v2814 = vunpack.c.h.b16 %v578
  %v2815 = vunpack.c.l.b16 %v579
  %v2816 = vunpack.c.h.b16 %v579
  %v2817 = vunpack.c.l.b16 %v580
  %v2818 = vunpack.c.h.b16 %v580
  %v2819 = vunpack.c.l.b16 %v581
  %v2820 = vunpack.c.h.b16 %v581
  %v2821 = vunpack.c.l.b16 %v582
  %v2822 = vunpack.c.h.b16 %v582
  %v2823 = vunpack.c.l.b16 %v583
  %v2824 = vunpack.c.h.b16 %v583
  %v2825 = vunpack.c.l.b16 %v584
  %v2826 = vunpack.c.h.b16 %v584
  %v2827 = vunpack.c.l.b16 %v585
  %v2828 = vunpack.c.h.b16 %v585
  %v2829 = vunpack.c.l.b16 %v586
  %v2830 = vunpack.c.h.b16 %v586
  %v2831 = vunpack.c.l.b16 %v587
  %v2832 = vunpack.c.h.b16 %v587
  %v2833 = vunpack.c.l.b16 %v588
  %v2834 = vunpack.c.h.b16 %v588
  %v2835 = vunpack.c.l.b16 %v589
  %v2836 = vunpack.c.h.b16 %v589
  %v2837 = vunpack.c.l.b16 %v590
  %v2838 = vunpack.c.h.b16 %v590
  %v2839 = vunpack.c.l.b16 %v591
  %v2840 = vunpack.c.h.b16 %v591
  %v2841 = vunpack.c.l.b16 %v592
  %v2842 = vunpack.c.h.b16 %v592
  %v2843 = vunpack.c.l.b16 %v593
  %v2844 = vunpack.c.h.b16 %v593
  %v2845 = vunpack.c.l.b16 %v594
  %v2846 = vunpack.c.h.b16 %v594
  %v2847 = vunpack.c.l.b16 %v595
  %v2848 = vunpack.c.h.b16 %v595
  %v2849 = vunpack.c.l.b16 %v596
  %v2850 = vunpack.c.h.b16 %v596
  %v2851 = vunpack.c.l.b16 %v597
  %v2852 = vunpack.c.h.b16 %v597
  %v2853 = vunpack.c.l.b16 %v598
  %v2854 = vunpack.c.h.b16 %v598
  %v2855 = vunpack.c.l.b16 %v599
  %v2856 = vunpack.c.h.b16 %v599
  %v2857 = vunpack.c.l.b16 %v600
  %v2858 = vunpack.c.h.b16 %v600
  %v2859 = vunpack.c.l.b16 %v601
  %v2860 = vunpack.c.h.b16 %v601
  %v2861 = vunpack.c.l.b16 %v602
  %v2862 = vunpack.c.h.b16 %v602
  %v2863 = vunpack.c.l.b16 %v603
  %v2864 = vunpack.c.h.b16 %v603
  %v2865 = vunpack.c.l.b16 %v604
  %v2866 = vunpack.c.h.b16 %v604
  %v2867 = vunpack.c.l.b16 %v605
  %v2868 = vunpack.c.h.b16 %v605
  %v2869 = vunpack.c.l.b16 %v606
  %v2870 = vunpack.c.h.b16 %v606
  %v2871 = vunpack.c.l.b16 %v607
  %v2872 = vunpack.c.h.b16 %v607
  %v2873 = vunpack.c.l.b16 %v608
  %v2874 = vunpack.c.h.b16 %v608
  %v2875 = vunpack.c.l.b16 %v609
  %v2876 = vunpack.c.h.b16 %v609
  %v2877 = vunpack.c.l.b16 %v610
  %v2878 = vunpack.c.h.b16 %v610
  %v2879 = vunpack.c.l.b16 %v611
  %v2880 = vunpack.c.h.b16 %v611
  %v2881 = vunpack.c.l.b16 %v612
  %v2882 = vunpack.c.h.b16 %v612
  %v2883 = vunpack.c.l.b16 %v613
  %v2884 = vunpack.c.h.b16 %v613
  %v2885 = vunpack.c.l.b16 %v614
  %v2886 = vunpack.c.h.b16 %v614
  %v2887 = vunpack.c.l.b16 %v615
  %v2888 = vunpack.c.h.b16 %v615
  %v2889 = vunpack.c.l.b16 %v616
  %v2890 = vunpack.c.h.b16 %v616
  %v2891 = vunpack.c.l.b16 %v617
  %v2892 = vunpack.c.h.b16 %v617
  %v2893 = vunpack.c.l.b16 %v618
  %v2894 = vunpack.c.h.b16 %v618
  %v2895 = vunpack.c.l.b16 %v619
  %v2896 = vunpack.c.h.b16 %v619
  %v2897 = vunpack.c.l.b16 %v620
  %v2898 = vunpack.c.h.b16 %v620
  %v2899 = vunpack.c.l.b16 %v621
  %v2900 = vunpack.c.h.b16 %v621
  %v2901 = vunpack.c.l.b16 %v622
  %v2902 = vunpack.c.h.b16 %v622
  %v2903 = vunpack.c.l.b16 %v623
  %v2904 = vunpack.c.h.b16 %v623
  %v2905 = vunpack.c.l.b16 %v624
  %v2906 = vunpack.c.h.b16 %v624
  %v2907 = vunpack.c.l.b16 %v625
  %v2908 = vunpack.c.h.b16 %v625
  %v2909 = vunpack.c.l.b16 %v626
  %v2910 = vunpack.c.h.b16 %v626
  %v2911 = vunpack.c.l.b16 %v627
  %v2912 = vunpack.c.h.b16 %v627
  %v2913 = vunpack.c.l.b16 %v628
  %v2914 = vunpack.c.h.b16 %v628
  %v2915 = vunpack.c.l.b16 %v629
  %v2916 = vunpack.c.h.b16 %v629
  %v2917 = vunpack.c.l.b16 %v630
  %v2918 = vunpack.c.h.b16 %v630
  %v2919 = vunpack.c.l.b16 %v631
  %v2920 = vunpack.c.h.b16 %v631
  %v2921 = vunpack.c.l.b16 %v632
  %v2922 = vunpack.c.h.b16 %v632
  %v2923 = vunpack.c.l.b16 %v633
  %v2924 = vunpack.c.h.b16 %v633
  %v2925 = vunpack.c.l.b16 %v634
  %v2926 = vunpack.c.h.b16 %v634
  %v2927 = vunpack.c.l.b16 %v635
  %v2928 = vunpack.c.h.b16 %v635
  %v2929 = vunpack.c.l.b16 %v636
  %v2930 = vunpack.c.h.b16 %v636
  %v2931 = vunpack.c.l.b16 %v637
  %v2932 = vunpack.c.h.b16 %v637
  %v2933 = vunpack.c.l.b16 %v638
  %v2934 = vunpack.c.h.b16 %v638
  %v2935 = vunpack.c.l.b16 %v639
  %v2936 = vunpack.c.h.b16 %v639
  %v2937 = vunpack.c.l.b16 %v640
  %v2938 = vunpack.c.h.b16 %v640
  %v2939 = vunpack.c.l.b16 %v641
  %v2940 = vunpack.c.h.b16 %v641
  %v2941 = vunpack.c.l.b16 %v642
  %v2942 = vunpack.c.h.b16 %v642
  %v2943 = vunpack.c.l.b16 %v643
  %v2944 = vunpack.c.h.b16 %v643
  %v2945 = vunpack.c.l.b16 %v644
  %v2946 = vunpack.c.h.b16 %v644
  %v2947 = vunpack.c.l.b16 %v645
  %v2948 = vunpack.c.h.b16 %v645
  %v2949 = vunpack.c.l.b16 %v646
  %v2950 = vunpack.c.h.b16 %v646
  %v2951 = vunpack.c.l.b16 %v647
  %v2952 = vunpack.c.h.b16 %v647
  %v2953 = vunpack.c.l.b16 %v648
  %v2954 = vunpack.c.h.b16 %v648
  %v2955 = vunpack.c.l.b16 %v649
  %v2956 = vunpack.c.h.b16 %v649
  %v2957 = vunpack.c.l.b16 %v650
  %v2958 = vunpack.c.h.b16 %v650
  %v2959 = vunpack.c.l.b16 %v651
  %v2960 = vunpack.c.h.b16 %v651
  %v2961 = vunpack.c.l.b16 %v652
  %v2962 = vunpack.c.h.b16 %v652
  %v2963 = vunpack.c.l.b16 %v653
  %v2964 = vunpack.c.h.b16 %v653
  %v2965 = vunpack.c.l.b16 %v654
  %v2966 = vunpack.c.h.b16 %v654
  %v2967 = vunpack.c.l.b16 %v655
  %v2968 = vunpack.c.h.b16 %v655
  %v2969 = vunpack.c.l.b16 %v656
  %v2970 = vunpack.c.h.b16 %v656
  %v2971 = vunpack.c.l.b16 %v657
  %v2972 = vunpack.c.h.b16 %v657
  %v2973 = vunpack.c.l.b16 %v658
  %v2974 = vunpack.c.h.b16 %v658
  %v2975 = vunpack.c.l.b16 %v659
  %v2976 = vunpack.c.h.b16 %v659
  %v2977 = vunpack.c.l.b16 %v660
  %v2978 = vunpack.c.h.b16 %v660
  %v2979 = vunpack.c.l.b16 %v661
  %v2980 = vunpack.c.h.b16 %v661
  %v2981 = vunpack.c.l.b16 %v662
  %v2982 = vunpack.c.h.b16 %v662
  %v2983 = vunpack.c.l.b16 %v663
  %v2984 = vunpack.c.h.b16 %v663
  %v2985 = vunpack.c.l.b16 %v664
  %v2986 = vunpack.c.h.b16 %v664
  %v2987 = vunpack.c.l.b16 %v665
  %v2988 = vunpack.c.h.b16 %v665
  %v2989 = vunpack.c.l.b16 %v666
  %v2990 = vunpack.c.h.b16 %v666
  %v2991 = vunpack.c.l.b16 %v667
  %v2992 = vunpack.c.h.b16 %v667
  %v2993 = vunpack.c.l.b16 %v668
  %v2994 = vunpack.c.h.b16 %v668
  %v2995 = vunpack.c.l.b16 %v669
  %v2996 = vunpack.c.h.b16 %v669
  %v2997 = vunpack.c.l.b16 %v670
  %v2998 = vunpack.c.h.b16 %v670
  %v2999 = vunpack.c.l.b16 %v671
  %v3000 = vunpack.c.h.b16 %v671
  %v3001 = vunpack.c.l.b16 %v672
  %v3002 = vunpack.c.h.b16 %v672
  %v3003 = vunpack.c.l.b16 %v673
  %v3004 = vunpack.c.h.b16 %v673
  %v3005 = vunpack.c.l.b16 %v674
  %v3006 = vunpack.c.h.b16 %v674
  %v3007 = vunpack.c.l.b16 %v675
  %v3008 = vunpack.c.h.b16 %v675
  %v3009 = vunpack.c.l.b16 %v676
  %v3010 = vunpack.c.h.b16 %v676
  %v3011 = vunpack.c.l.b16 %v677
  %v3012 = vunpack.c.h.b16 %v677
  %v3013 = vunpack.c.l.b16 %v678
  %v3014 = vunpack.c.h.b16 %v678
  %v3015 = vunpack.c.l.b16 %v679
  %v3016 = vunpack.c.h.b16 %v679
  %v3017 = vunpack.c.l.b16 %v680
  %v3018 = vunpack.c.h.b16 %v680
  %v3019 = vunpack.c.l.b16 %v681
  %v3020 = vunpack.c.h.b16 %v681
  %v3021 = vunpack.c.l.b16 %v682
  %v3022 = vunpack.c.h.b16 %v682
  %v3023 = vunpack.c.l.b16 %v683
  %v3024 = vunpack.c.h.b16 %v683
  %v3025 = vunpack.c.l.b16 %v684
  %v3026 = vunpack.c.h.b16 %v684
  %v3027 = vunpack.c.l.b16 %v685
  %v3028 = vunpack.c.h.b16 %v685
  %v3029 = vunpack.c.l.b16 %v686
  %v3030 = vunpack.c.h.b16 %v686
  %v3031 = vunpack.c.l.b16 %v687
  %v3032 = vunpack.c.h.b16 %v687
  %v3033 = vunpack.c.l.b16 %v688
  %v3034 = vunpack.c.h.b16 %v688
  %v3035 = vunpack.c.l.b16 %v689
  %v3036 = vunpack.c.h.b16 %v689
  %v3037 = vunpack.c.l.b16 %v690
  %v3038 = vunpack.c.h.b16 %v690
  %v3039 = vunpack.c.l.b16 %v691
  %v3040 = vunpack.c.h.b16 %v691
  %v3041 = vunpack.c.l.b16 %v692
  %v3042 = vunpack.c.h.b16 %v692
  %v3043 = vunpack.c.l.b16 %v693
  %v3044 = vunpack.c.h.b16 %v693
  %v3045 = vunpack.c.l.b16 %v694
  %v3046 = vunpack.c.h.b16 %v694
  %v3047 = vunpack.c.l.b16 %v695
  %v3048 = vunpack.c.h.b16 %v695
  %v3049 = vunpack.c.l.b16 %v696
  %v3050 = vunpack.c.h.b16 %v696
  %v3051 = vunpack.c.l.b16 %v697
  %v3052 = vunpack.c.h.b16 %v697
  %v3053 = vunpack.c.l.b16 %v698
  %v3054 = vunpack.c.h.b16 %v698
  %v3055 = vunpack.c.l.b16 %v699
  %v3056 = vunpack.c.h.b16 %v699
  %v3057 = vunpack.c.l.b16 %v700
  %v3058 = vunpack.c.h.b16 %v700
  %v3059 = vunpack.c.l.b16 %v701
  %v3060 = vunpack.c.h.b16 %v701
  %v3061 = vunpack.c.l.b16 %v702
  %v3062 = vunpack.c.h.b16 %v702
  %v3063 = vunpack.c.l.b16 %v703
  %v3064 = vunpack.c.h.b16 %v703
  %v3065 = vunpack.c.l.b16 %v704
  %v3066 = vunpack.c.h.b16 %v704
  %v3067 = vunpack.c.l.b16 %v705
  %v3068 = vunpack.c.h.b16 %v705
  %v3069 = vunpack.c.l.b16 %v706
  %v3070 = vunpack.c.h.b16 %v706
  %v3071 = vunpack.c.l.b16 %v707
  %v3072 = vunpack.c.h.b16 %v707
  %v3073 = vunpack.c.l.b16 %v708
  %v3074 = vunpack.c.h.b16 %v708
  %v3075 = vunpack.c.l.b16 %v709
  %v3076 = vunpack.c.h.b16 %v709
  %v3077 = vunpack.c.l.b16 %v710
  %v3078 = vunpack.c.h.b16 %v710
  %v3079 = vunpack.c.l.b16 %v711
  %v3080 = vunpack.c.h.b16 %v711
  %v3081 = vunpack.c.l.b16 %v712
  %v3082 = vunpack.c.h.b16 %v712
  %v3083 = vunpack.c.l.b16 %v713
  %v3084 = vunpack.c.h.b16 %v713
  %v3085 = vunpack.c.l.b16 %v714
  %v3086 = vunpack.c.h.b16 %v714
  %v3087 = vunpack.c.l.b16 %v715
  %v3088 = vunpack.c.h.b16 %v715
  %v3089 = vunpack.c.l.b16 %v716
  %v3090 = vunpack.c.h.b16 %v716
  %v3091 = vunpack.c.l.b16 %v717
  %v3092 = vunpack.c.h.b16 %v717
  %v3093 = vunpack.c.l.b16 %v718
  %v3094 = vunpack.c.h.b16 %v718
  %v3095 = vunpack.c.l.b16 %v719
  %v3096 = vunpack.c.h.b16 %v719
  %v3097 = vunpack.c.l.b16 %v720
  %v3098 = vunpack.c.h.b16 %v720
  %v3099 = vunpack.c.l.b16 %v721
  %v3100 = vunpack.c.h.b16 %v721
  %v3101 = vunpack.c.l.b16 %v722
  %v3102 = vunpack.c.h.b16 %v722
  %v3103 = vunpack.c.l.b16 %v723
  %v3104 = vunpack.c.h.b16 %v723
  %v3105 = vunpack.c.l.b16 %v724
  %v3106 = vunpack.c.h.b16 %v724
  %v3107 = vunpack.c.l.b16 %v725
  %v3108 = vunpack.c.h.b16 %v725
  %v3109 = vunpack.c.l.b16 %v726
  %v3110 = vunpack.c.h.b16 %v726
  %v3111 = vunpack.c.l.b16 %v727
  %v3112 = vunpack.c.h.b16 %v727
  %v3113 = vunpack.c.l.b16 %v728
  %v3114 = vunpack.c.h.b16 %v728
  %v3115 = vunpack.c.l.b16 %v729
  %v3116 = vunpack.c.h.b16 %v729
  %v3117 = vunpack.c.l.b16 %v730
  %v3118 = vunpack.c.h.b16 %v730
  %v3119 = vunpack.c.l.b16 %v731
  %v3120 = vunpack.c.h.b16 %v731
  %v3121 = vunpack.c.l.b16 %v732
  %v3122 = vunpack.c.h.b16 %v732
  %v3123 = vunpack.c.l.b16 %v733
  %v3124 = vunpack.c.h.b16 %v733
  %v3125 = vunpack.c.l.b16 %v734
  %v3126 = vunpack.c.h.b16 %v734
  %v3127 = vunpack.c.l.b16 %v735
  %v3128 = vunpack.c.h.b16 %v735
  %v3129 = vunpack.c.l.b16 %v736
  %v3130 = vunpack.c.h.b16 %v736
  %v3131 = vunpack.c.l.b16 %v737
  %v3132 = vunpack.c.h.b16 %v737
  %v3133 = vunpack.c.l.b16 %v738
  %v3134 = vunpack.c.h.b16 %v738
  %v3135 = vunpack.c.l.b16 %v739
  %v3136 = vunpack.c.h.b16 %v739
  %v3137 = vunpack.c.l.b16 %v740
  %v3138 = vunpack.c.h.b16 %v740
  %v3139 = vunpack.c.l.b16 %v741
  %v3140 = vunpack.c.h.b16 %v741
  %v3141 = vunpack.c.l.b16 %v742
  %v3142 = vunpack.c.h.b16 %v742
  %v3143 = vunpack.c.l.b16 %v743
  %v3144 = vunpack.c.h.b16 %v743
  %v3145 = vunpack.c.l.b16 %v744
  %v3146 = vunpack.c.h.b16 %v744
  %v3147 = vunpack.c.l.b16 %v745
  %v3148 = vunpack.c.h.b16 %v745
  %v3149 = vunpack.c.l.b16 %v746
  %v3150 = vunpack.c.h.b16 %v746
  %v3151 = vunpack.c.l.b16 %v747
  %v3152 = vunpack.c.h.b16 %v747
  %v3153 = vunpack.c.l.b16 %v748
  %v3154 = vunpack.c.h.b16 %v748
  %v3155 = vunpack.c.l.b16 %v749
  %v3156 = vunpack.c.h.b16 %v749
  %v3157 = vunpack.c.l.b16 %v750
  %v3158 = vunpack.c.h.b16 %v750
  %v3159 = vunpack.c.l.b16 %v751
  %v3160 = vunpack.c.h.b16 %v751
  %v3161 = vunpack.c.l.b16 %v752
  %v3162 = vunpack.c.h.b16 %v752
  %v3163 = vunpack.c.l.b16 %v753
  %v3164 = vunpack.c.h.b16 %v753
  %v3165 = vunpack.c.l.b16 %v754
  %v3166 = vunpack.c.h.b16 %v754
  %v3167 = vunpack.c.l.b16 %v755
  %v3168 = vunpack.c.h.b16 %v755
  %v3169 = vunpack.c.l.b16 %v756
  %v3170 = vunpack.c.h.b16 %v756
  %v3171 = vunpack.c.l.b16 %v757
  %v3172 = vunpack.c.h.b16 %v757
  %v3173 = vunpack.c.l.b16 %v758
  %v3174 = vunpack.c.h.b16 %v758
  %v3175 = vunpack.c.l.b16 %v759
  %v3176 = vunpack.c.h.b16 %v759
  %v3177 = vunpack.c.l.b16 %v760
  %v3178 = vunpack.c.h.b16 %v760
  %v3179 = vunpack.c.l.b16 %v761
  %v3180 = vunpack.c.h.b16 %v761
  %v3181 = vunpack.c.l.b16 %v762
  %v3182 = vunpack.c.h.b16 %v762
  %v3183 = vunpack.c.l.b16 %v763
  %v3184 = vunpack.c.h.b16 %v763
  %v3185 = vunpack.c.l.b16 %v764
  %v3186 = vunpack.c.h.b16 %v764
  %v3187 = vunpack.c.l.b16 %v765
  %v3188 = vunpack.c.h.b16 %v765
  %v3189 = vunpack.c.l.b16 %v766
  %v3190 = vunpack.c.h.b16 %v766
  %v3191 = vunpack.c.l.b16 %v767
  %v3192 = vunpack.c.h.b16 %v767
  %v3193 = vunpack.c.l.b16 %v768
  %v3194 = vunpack.c.h.b16 %v768
  %v3195 = vunpack.c.l.b16 %v769
  %v3196 = vunpack.c.h.b16 %v769
  %v3197 = vunpack.c.l.b16 %v770
  %v3198 = vunpack.c.h.b16 %v770
  %v3199 = vunpack.c.l.b16 %v771
  %v3200 = vunpack.c.h.b16 %v771
  %v3201 = vunpack.c.l.b16 %v772
  %v3202 = vunpack.c.h.b16 %v772
  %v3203 = vunpack.c.l.b16 %v773
  %v3204 = vunpack.c.h.b16 %v773
  %v3205 = vunpack.c.l.b16 %v774
  %v3206 = vunpack.c.h.b16 %v774
  %v3207 = vunpack.c.l.b16 %v775
  %v3208 = vunpack.c.h.b16 %v775
  %v3209 = vunpack.c.l.b16 %v776
  %v3210 = vunpack.c.h.b16 %v776
  %v3211 = vunpack.c.l.b16 %v777
  %v3212 = vunpack.c.h.b16 %v777
  %v3213 = vunpack.c.l.b16 %v778
  %v3214 = vunpack.c.h.b16 %v778
  %v3215 = vunpack.c.l.b16 %v779
  %v3216 = vunpack.c.h.b16 %v779
  %v3217 = vunpack.c.l.b16 %v780
  %v3218 = vunpack.c.h.b16 %v780
  %v3219 = vunpack.c.l.b16 %v781
  %v3220 = vunpack.c.h.b16 %v781
  %v3221 = vunpack.c.l.b16 %v782
  %v3222 = vunpack.c.h.b16 %v782
  %v3223 = vunpack.c.l.b16 %v783
  %v3224 = vunpack.c.h.b16 %v783
  %v3225 = vunpack.c.l.b16 %v784
  %v3226 = vunpack.c.h.b16 %v784
  %v3227 = vunpack.c.l.b16 %v785
  %v3228 = vunpack.c.h.b16 %v785
  %v3229 = vunpack.c.l.b16 %v786
  %v3230 = vunpack.c.h.b16 %v786
  %v3231 = vunpack.c.l.b16 %v787
  %v3232 = vunpack.c.h.b16 %v787
  %v3233 = vunpack.c.l.b16 %v788
  %v3234 = vunpack.c.h.b16 %v788
  %v3235 = vunpack.c.l.b16 %v789
  %v3236 = vunpack.c.h.b16 %v789
  %v3237 = vunpack.c.l.b16 %v790
  %v3238 = vunpack.c.h.b16 %v790
  %v3239 = vunpack.c.l.b16 %v791
  %v3240 = vunpack.c.h.b16 %v791
  %v3241 = vunpack.c.l.b16 %v792
  %v3242 = vunpack.c.h.b16 %v792
  %v3243 = vunpack.c.l.b16 %v793
  %v3244 = vunpack.c.h.b16 %v793
  %v3245 = vunpack.c.l.b16 %v794
  %v3246 = vunpack.c.h.b16 %v794
  %v3247 = vunpack.c.l.b16 %v795
  %v3248 = vunpack.c.h.b16 %v795
  %v3249 = vunpack.c.l.b16 %v796
  %v3250 = vunpack.c.h.b16 %v796
  %v3251 = vunpack.c.l.b16 %v797
  %v3252 = vunpack.c.h.b16 %v797
  %v3253 = vunpack.c.l.b16 %v798
  %v3254 = vunpack.c.h.b16 %v798
  %v3255 = vunpack.c.l.b16 %v799
  %v3256 = vunpack.c.h.b16 %v799
  %v3257 = vunpack.c.l.b16 %v800
  %v3258 = vunpack.c.h.b16 %v800
  %v3259 = vunpack.c.l.b16 %v801
  %v3260 = vunpack.c.h.b16 %v801
  %v3261 = vunpack.c.l.b16 %v802
  %v3262 = vunpack.c.h.b16 %v802
  %v3263 = vunpack.c.l.b16 %v803
  %v3264 = vunpack.c.h.b16 %v803
  %v3265 = vunpack.c.l.b16 %v804
  %v3266 = vunpack.c.h.b16 %v804
  %v3267 = vunpack.c.l.b16 %v805
  %v3268 = vunpack.c.h.b16 %v805
  %v3269 = vunpack.c.l.b16 %v806
  %v3270 = vunpack.c.h.b16 %v806
  %v3271 = vunpack.c.l.b16 %v807
  %v3272 = vunpack.c.h.b16 %v807
  %v3273 = vunpack.c.l.b16 %v808
  %v3274 = vunpack.c.h.b16 %v808
  %v3275 = vunpack.c.l.b16 %v809
  %v3276 = vunpack.c.h.b16 %v809
  %v3277 = vunpack.c.l.b16 %v810
  %v3278 = vunpack.c.h.b16 %v810
  %v3279 = vunpack.c.l.b16 %v811
  %v3280 = vunpack.c.h.b16 %v811
  %v3281 = vunpack.c.l.b16 %v812
  %v3282 = vunpack.c.h.b16 %v812
  %v3283 = vunpack.c.l.b16 %v813
  %v3284 = vunpack.c.h.b16 %v813
  %v3285 = vunpack.c.l.b16 %v814
  %v3286 = vunpack.c.h.b16 %v814
  %v3287 = vunpack.c.l.b16 %v815
  %v3288 = vunpack.c.h.b16 %v815
  %v3289 = vunpack.c.l.b16 %v816
  %v3290 = vunpack.c.h.b16 %v816
  %v3291 = vunpack.c.l.b16 %v817
  %v3292 = vunpack.c.h.b16 %v817
  %v3293 = vunpack.c.l.b16 %v818
  %v3294 = vunpack.c.h.b16 %v818
  %v3295 = vunpack.c.l.b16 %v819
  %v3296 = vunpack.c.h.b16 %v819
  %v3297 = vunpack.c.l.b16 %v820
  %v3298 = vunpack.c.h.b16 %v820
  %v3299 = vunpack.c.l.b16 %v821
  %v3300 = vunpack.c.h.b16 %v821
  %v3301 = vunpack.c.l.b16 %v822
  %v3302 = vunpack.c.h.b16 %v822
  %v3303 = vunpack.c.l.b16 %v823
  %v3304 = vunpack.c.h.b16 %v823
  %v3305 = vunpack.c.l.b16 %v824
  %v3306 = vunpack.c.h.b16 %v824
  %v3307 = vunpack.c.l.b16 %v825
  %v3308 = vunpack.c.h.b16 %v825
  %v3309 = vunpack.c.l.b16 %v826
  %v3310 = vunpack.c.h.b16 %v826
  %v3311 = vunpack.c.l.b16 %v827
  %v3312 = vunpack.c.h.b16 %v827
  %v3313 = vunpack.c.l.b16 %v828
  %v3314 = vunpack.c.h.b16 %v828
  %v3315 = vunpack.c.l.b16 %v829
  %v3316 = vunpack.c.h.b16 %v829
  %v3317 = vunpack.c.l.b16 %v830
  %v3318 = vunpack.c.h.b16 %v830
  %v3319 = vunpack.c.l.b16 %v831
  %v3320 = vunpack.c.h.b16 %v831
  %v3321 = vunpack.c.l.b16 %v832
  %v3322 = vunpack.c.h.b16 %v832
  %v3323 = vunpack.c.l.b16 %v833
  %v3324 = vunpack.c.h.b16 %v833
  %v3325 = vunpack.c.l.b16 %v834
  %v3326 = vunpack.c.h.b16 %v834
  %v3327 = vunpack.c.l.b16 %v835
  %v3328 = vunpack.c.h.b16 %v835
  %v3329 = vunpack.c.l.b16 %v836
  %v3330 = vunpack.c.h.b16 %v836
  %v3331 = vunpack.c.l.b16 %v837
  %v3332 = vunpack.c.h.b16 %v837
  %v3333 = vunpack.c.l.b16 %v838
  %v3334 = vunpack.c.h.b16 %v838
  %v3335 = vunpack.c.l.b16 %v839
  %v3336 = vunpack.c.h.b16 %v839
  %v3337 = vunpack.c.l.b16 %v840
  %v3338 = vunpack.c.h.b16 %v840
  %v3339 = vpack.c.b16 %v1743, %v1739
  %v3340 = vpack.c.b16 %v1744, %v1740
  %v3341 = vpack.c.b16 %v1745, %v1741
  %v3342 = vpack.c.b16 %v1746, %v1742
  %v3343 = vpack.c.b16 %v1751, %v1747
  %v3344 = vpack.c.b16 %v1752, %v1748
  %v3345 = vpack.c.b16 %v1753, %v1749
  %v3346 = vpack.c.b16 %v1754, %v1750
  %v3347 = vpack.c.b16 %v1759, %v1755
  %v3348 = vpack.c.b16 %v1760, %v1756
  %v3349 = vpack.c.b16 %v1761, %v1757
  %v3350 = vpack.c.b16 %v1762, %v1758
  %v3351 = vpack.c.b16 %v1767, %v1763
  %v3352 = vpack.c.b16 %v1768, %v1764
  %v3353 = vpack.c.b16 %v1769, %v1765
  %v3354 = vpack.c.b16 %v1770, %v1766
  %v3355 = vpack.c.b16 %v1775, %v1771
  %v3356 = vpack.c.b16 %v1776, %v1772
  %v3357 = vpack.c.b16 %v1777, %v1773
  %v3358 = vpack.c.b16 %v1778, %v1774
  %v3359 = vpack.c.b16 %v1783, %v1779
  %v3360 = vpack.c.b16 %v1784, %v1780
  %v3361 = vpack.c.b16 %v1785, %v1781
  %v3362 = vpack.c.b16 %v1786, %v1782
  %v3363 = vpack.c.b16 %v1791, %v1787
  %v3364 = vpack.c.b16 %v1792, %v1788
  %v3365 = vpack.c.b16 %v1793, %v1789
  %v3366 = vpack.c.b16 %v1794, %v1790
  %v3367 = vpack.c.b16 %v1799, %v1795
  %v3368 = vpack.c.b16 %v1800, %v1796
  %v3369 = vpack.c.b16 %v1801, %v1797
  %v3370 = vpack.c.b16 %v1802, %v1798
  %v3371 = vpack.c.b16 %v1807, %v1803
  %v3372 = vpack.c.b16 %v1808, %v1804
  %v3373 = vpack.c.b16 %v1809, %v1805
  %v3374 = vpack.c.b16 %v1810, %v1806
  %v3375 = vpack.c.b16 %v1815, %v1811
  %v3376 = vpack.c.b16 %v1816, %v1812
  %v3377 = vpack.c.b16 %v1817, %v1813
  %v3378 = vpack.c.b16 %v1818, %v1814
  %v3379 = vpack.c.b16 %v1823, %v1819
  %v3380 = vpack.c.b16 %v1824, %v1820
  %v3381 = vpack.c.b16 %v1825, %v1821
  %v3382 = vpack.c.b16 %v1826, %v1822
  %v3383 = vpack.c.b16 %v1831, %v1827
  %v3384 = vpack.c.b16 %v1832, %v1828
  %v3385 = vpack.c.b16 %v1833, %v1829
  %v3386 = vpack.c.b16 %v1834, %v1830
  %v3387 = vpack.c.b16 %v1839, %v1835
  %v3388 = vpack.c.b16 %v1840, %v1836
  %v3389 = vpack.c.b16 %v1841, %v1837
  %v3390 = vpack.c.b16 %v1842, %v1838
  %v3391 = vpack.c.b16 %v1847, %v1843
  %v3392 = vpack.c.b16 %v1848, %v1844
  %v3393 = vpack.c.b16 %v1849, %v1845
  %v3394 = vpack.c.b16 %v1850, %v1846
  %v3395 = vpack.c.b16 %v1855, %v1851
  %v3396 = vpack.c.b16 %v1856, %v1852
  %v3397 = vpack.c.b16 %v1857, %v1853
  %v3398 = vpack.c.b16 %v1858, %v1854
  %v3399 = vpack.c.b16 %v1863, %v1859
  %v3400 = vpack.c.b16 %v1864, %v1860
  %v3401 = vpack.c.b16 %v1865, %v1861
  %v3402 = vpack.c.b16 %v1866, %v1862
  %v3403 = vpack.c.b16 %v1871, %v1867
  %v3404 = vpack.c.b16 %v1872, %v1868
  %v3405 = vpack.c.b16 %v1873, %v1869
  %v3406 = vpack.c.b16 %v1874, %v1870
  %v3407 = vpack.c.b16 %v1879, %v1875
  %v3408 = vpack.c.b16 %v1880, %v1876
  %v3409 = vpack.c.b16 %v1881, %v1877
  %v3410 = vpack.c.b16 %v1882, %v1878
  %v3411 = vpack.c.b16 %v1887, %v1883
  %v3412 = vpack.c.b16 %v1888, %v1884
  %v3413 = vpack.c.b16 %v1889, %v1885
  %v3414 = vpack.c.b16 %v1890, %v1886
  %v3415 = vpack.c.b16 %v1895, %v1891
  %v3416 = vpack.c.b16 %v1896, %v1892
  %v3417 = vpack.c.b16 %v1897, %v1893
  %v3418 = vpack.c.b16 %v1898, %v1894
  %v3419 = vpack.c.b16 %v1903, %v1899
  %v3420 = vpack.c.b16 %v1904, %v1900
  %v3421 = vpack.c.b16 %v1905, %v1901
  %v3422 = vpack.c.b16 %v1906, %v1902
  %v3423 = vpack.c.b16 %v1911, %v1907
  %v3424 = vpack.c.b16 %v1912, %v1908
  %v3425 = vpack.c.b16 %v1913, %v1909
  %v3426 = vpack.c.b16 %v1914, %v1910
  %v3427 = vpack.c.b16 %v1919, %v1915
  %v3428 = vpack.c.b16 %v1920, %v1916
  %v3429 = vpack.c.b16 %v1921, %v1917
  %v3430 = vpack.c.b16 %v1922, %v1918
  %v3431 = vpack.c.b16 %v1927, %v1923
  %v3432 = vpack.c.b16 %v1928, %v1924
  %v3433 = vpack.c.b16 %v1929, %v1925
  %v3434 = vpack.c.b16 %v1930, %v1926
  %v3435 = vpack.c.b16 %v1935, %v1931
  %v3436 = vpack.c.b16 %v1936, %v1932
  %v3437 = vpack.c.b16 %v1937, %v1933
  %v3438 = vpack.c.b16 %v1938, %v1934
  %v3439 = vpack.c.b16 %v1943, %v1939
  %v3440 = vpack.c.b16 %v1944, %v1940
  %v3441 = vpack.c.b16 %v1945, %v1941
  %v3442 = vpack.c.b16 %v1946, %v1942
  %v3443 = vpack.c.b16 %v1951, %v1947
  %v3444 = vpack.c.b16 %v1952, %v1948
  %v3445 = vpack.c.b16 %v1953, %v1949
  %v3446 = vpack.c.b16 %v1954, %v1950
  %v3447 = vpack.c.b16 %v1959, %v1955
  %v3448 = vpack.c.b16 %v1960, %v1956
  %v3449 = vpack.c.b16 %v1961, %v1957
  %v3450 = vpack.c.b16 %v1962, %v1958
  %v3451 = vpack.c.b16 %v1967, %v1963
  %v3452 = vpack.c.b16 %v1968, %v1964
  %v3453 = vpack.c.b16 %v1969, %v1965
  %v3454 = vpack.c.b16 %v1970, %v1966
  %v3455 = vpack.c.b16 %v1975, %v1971
  %v3456 = vpack.c.b16 %v1976, %v1972
  %v3457 = vpack.c.b16 %v1977, %v1973
  %v3458 = vpack.c.b16 %v1978, %v1974
  %v3459 = vpack.c.b16 %v1983, %v1979
  %v3460 = vpack.c.b16 %v1984, %v1980
  %v3461 = vpack.c.b16 %v1985, %v1981
  %v3462 = vpack.c.b16 %v1986, %v1982
  %v3463 = vpack.c.b16 %v1991, %v1987
  %v3464 = vpack.c.b16 %v1992, %v1988
  %v3465 = vpack.c.b16 %v1993, %v1989
  %v3466 = vpack.c.b16 %v1994, %v1990
  %v3467 = vpack.c.b16 %v1999, %v1995
  %v3468 = vpack.c.b16 %v2000, %v1996
  %v3469 = vpack.c.b16 %v2001, %v1997
  %v3470 = vpack.c.b16 %v2002, %v1998
  %v3471 = vpack.c.b16 %v2007, %v2003
  %v3472 = vpack.c.b16 %v2008, %v2004
  %v3473 = vpack.c.b16 %v2009, %v2005
  %v3474 = vpack.c.b16 %v2010, %v2006
  %v3475 = vpack.c.b16 %v2015, %v2011
  %v3476 = vpack.c.b16 %v2016, %v2012
  %v3477 = vpack.c.b16 %v2017, %v2013
  %v3478 = vpack.c.b16 %v2018, %v2014
  %v3479 = vpack.c.b16 %v2023, %v2019
  %v3480 = vpack.c.b16 %v2024, %v2020
  %v3481 = vpack.c.b16 %v2025, %v2021
  %v3482 = vpack.c.b16 %v2026, %v2022
  %v3483 = vpack.c.b16 %v2031, %v2027
  %v3484 = vpack.c.b16 %v2032, %v2028
  %v3485 = vpack.c.b16 %v2033, %v2029
  %v3486 = vpack.c.b16 %v2034, %v2030
  %v3487 = vpack.c.b16 %v2039, %v2035
  %v3488 = vpack.c.b16 %v2040, %v2036
  %v3489 = vpack.c.b16 %v2041, %v2037
  %v3490 = vpack.c.b16 %v2042, %v2038
  %v3491 = vpack.c.b16 %v2047, %v2043
  %v3492 = vpack.c.b16 %v2048, %v2044
  %v3493 = vpack.c.b16 %v2049, %v2045
  %v3494 = vpack.c.b16 %v2050, %v2046
  %v3495 = vpack.c.b16 %v2055, %v2051
  %v3496 = vpack.c.b16 %v2056, %v2052
  %v3497 = vpack.c.b16 %v2057, %v2053
  %v3498 = vpack.c.b16 %v2058, %v2054
  %v3499 = vpack.c.b16 %v2063, %v2059
  %v3500 = vpack.c.b16 %v2064, %v2060
  %v3501 = vpack.c.b16 %v2065, %v2061
  %v3502 = vpack.c.b16 %v2066, %v2062
  %v3503 = vpack.c.b16 %v2071, %v2067
  %v3504 = vpack.c.b16 %v2072, %v2068
  %v3505 = vpack.c.b16 %v2073, %v2069
  %v3506 = vpack.c.b16 %v2074, %v2070
  %v3507 = vpack.c.b16 %v2079, %v2075
  %v3508 = vpack.c.b16 %v2080, %v2076
  %v3509 = vpack.c.b16 %v2081, %v2077
  %v3510 = vpack.c.b16 %v2082, %v2078
  %v3511 = vpack.c.b16 %v2087, %v2083
  %v3512 = vpack.c.b16 %v2088, %v2084
  %v3513 = vpack.c.b16 %v2089, %v2085
  %v3514 = vpack.c.b16 %v2090, %v2086
  %v3515 = vpack.c.b16 %v2095, %v2091
  %v3516 = vpack.c.b16 %v2096, %v2092
  %v3517 = vpack.c.b16 %v2097, %v2093
  %v3518 = vpack.c.b16 %v2098, %v2094
  %v3519 = vpack.c.b16 %v2103, %v2099
  %v3520 = vpack.c.b16 %v2104, %v2100
  %v3521 = vpack.c.b16 %v2105, %v2101
  %v3522 = vpack.c.b16 %v2106, %v2102
  %v3523 = vpack.c.b16 %v2111, %v2107
  %v3524 = vpack.c.b16 %v2112, %v2108
  %v3525 = vpack.c.b16 %v2113, %v2109
  %v3526 = vpack.c.b16 %v2114, %v2110
  %v3527 = vpack.c.b16 %v2119, %v2115
  %v3528 = vpack.c.b16 %v2120, %v2116
  %v3529 = vpack.c.b16 %v2121, %v2117
  %v3530 = vpack.c.b16 %v2122, %v2118
  %v3531 = vpack.c.b16 %v2127, %v2123
  %v3532 = vpack.c.b16 %v2128, %v2124
  %v3533 = vpack.c.b16 %v2129, %v2125
  %v3534 = vpack.c.b16 %v2130, %v2126
  %v3535 = vpack.c.b16 %v2135, %v2131
  %v3536 = vpack.c.b16 %v2136, %v2132
  %v3537 = vpack.c.b16 %v2137, %v2133
  %v3538 = vpack.c.b16 %v2138, %v2134
  %v3539 = vpack.c.b16 %v2143, %v2139
  %v3540 = vpack.c.b16 %v2144, %v2140
  %v3541 = vpack.c.b16 %v2145, %v2141
  %v3542 = vpack.c.b16 %v2146, %v2142
  %v3543 = vpack.c.b16 %v2151, %v2147
  %v3544 = vpack.c.b16 %v2152, %v2148
  %v3545 = vpack.c.b16 %v2153, %v2149
  %v3546 = vpack.c.b16 %v2154, %v2150
  %v3547 = vpack.c.b16 %v2159, %v2155
  %v3548 = vpack.c.b16 %v2160, %v2156
  %v3549 = vpack.c.b16 %v2161, %v2157
  %v3550 = vpack.c.b16 %v2162, %v2158
  %v3551 = vpack.c.b16 %v2167, %v2163
  %v3552 = vpack.c.b16 %v2168, %v2164
  %v3553 = vpack.c.b16 %v2169, %v2165
  %v3554 = vpack.c.b16 %v2170, %v2166
  %v3555 = vpack.c.b16 %v2175, %v2171
  %v3556 = vpack.c.b16 %v2176, %v2172
  %v3557 = vpack.c.b16 %v2177, %v2173
  %v3558 = vpack.c.b16 %v2178, %v2174
  %v3559 = vpack.c.b16 %v2183, %v2179
  %v3560 = vpack.c.b16 %v2184, %v2180
  %v3561 = vpack.c.b16 %v2185, %v2181
  %v3562 = vpack.c.b16 %v2186, %v2182
  %v3563 = vpack.c.b16 %v2191, %v2187
  %v3564 = vpack.c.b16 %v2192, %v2188
  %v3565 = vpack.c.b16 %v2193, %v2189
  %v3566 = vpack.c.b16 %v2194, %v2190
  %v3567 = vpack.c.b16 %v2199, %v2195
  %v3568 = vpack.c.b16 %v2200, %v2196
  %v3569 = vpack.c.b16 %v2201, %v2197
  %v3570 = vpack.c.b16 %v2202, %v2198
  %v3571 = vpack.c.b16 %v2207, %v2203
  %v3572 = vpack.c.b16 %v2208, %v2204
  %v3573 = vpack.c.b16 %v2209, %v2205
  %v3574 = vpack.c.b16 %v2210, %v2206
  %v3575 = vpack.c.b16 %v2215, %v2211
  %v3576 = vpack.c.b16 %v2216, %v2212
  %v3577 = vpack.c.b16 %v2217, %v2213
  %v3578 = vpack.c.b16 %v2218, %v2214
  %v3579 = vpack.c.b16 %v2223, %v2219
  %v3580 = vpack.c.b16 %v2224, %v2220
  %v3581 = vpack.c.b16 %v2225, %v2221
  %v3582 = vpack.c.b16 %v2226, %v2222
  %v3583 = vpack.c.b16 %v2231, %v2227
  %v3584 = vpack.c.b16 %v2232, %v2228
  %v3585 = vpack.c.b16 %v2233, %v2229
  %v3586 = vpack.c.b16 %v2234, %v2230
  %v3587 = vpack.c.b16 %v2239, %v2235
  %v3588 = vpack.c.b16 %v2240, %v2236
  %v3589 = vpack.c.b16 %v2241, %v2237
  %v3590 = vpack.c.b16 %v2242, %v2238
  %v3591 = vpack.c.b16 %v2247, %v2243
  %v3592 = vpack.c.b16 %v2248, %v2244
  %v3593 = vpack.c.b16 %v2249, %v2245
  %v3594 = vpack.c.b16 %v2250, %v2246
  %v3595 = vpack.c.b16 %v2255, %v2251
  %v3596 = vpack.c.b16 %v2256, %v2252
  %v3597 = vpack.c.b16 %v2257, %v2253
  %v3598 = vpack.c.b16 %v2258, %v2254
  %v3599 = vpack.c.b16 %v2263, %v2259
  %v3600 = vpack.c.b16 %v2264, %v2260
  %v3601 = vpack.c.b16 %v2265, %v2261
  %v3602 = vpack.c.b16 %v2266, %v2262
  %v3603 = vpack.c.b16 %v2271, %v2267
  %v3604 = vpack.c.b16 %v2272, %v2268
  %v3605 = vpack.c.b16 %v2273, %v2269
  %v3606 = vpack.c.b16 %v2274, %v2270
  %v3607 = vpack.c.b16 %v2279, %v2275
  %v3608 = vpack.c.b16 %v2280, %v2276
  %v3609 = vpack.c.b16 %v2281, %v2277
  %v3610 = vpack.c.b16 %v2282, %v2278
  %v3611 = vpack.c.b16 %v2287, %v2283
  %v3612 = vpack.c.b16 %v2288, %v2284
  %v3613 = vpack.c.b16 %v2289, %v2285
  %v3614 = vpack.c.b16 %v2290, %v2286
  %v3615 = vpack.c.b16 %v2295, %v2291
  %v3616 = vpack.c.b16 %v2296, %v2292
  %v3617 = vpack.c.b16 %v2297, %v2293
  %v3618 = vpack.c.b16 %v2298, %v2294
  %v3619 = vpack.c.b16 %v2303, %v2299
  %v3620 = vpack.c.b16 %v2304, %v2300
  %v3621 = vpack.c.b16 %v2305, %v2301
  %v3622 = vpack.c.b16 %v2306, %v2302
  %v3623 = vpack.c.b16 %v2311, %v2307
  %v3624 = vpack.c.b16 %v2312, %v2308
  %v3625 = vpack.c.b16 %v2313, %v2309
  %v3626 = vpack.c.b16 %v2314, %v2310
  %v3627 = vpack.c.b16 %v2319, %v2315
  %v3628 = vpack.c.b16 %v2320, %v2316
  %v3629 = vpack.c.b16 %v2321, %v2317
  %v3630 = vpack.c.b16 %v2322, %v2318
  %v3631 = vpack.c.b16 %v2327, %v2323
  %v3632 = vpack.c.b16 %v2328, %v2324
  %v3633 = vpack.c.b16 %v2329, %v2325
  %v3634 = vpack.c.b16 %v2330, %v2326
  %v3635 = vpack.c.b16 %v2335, %v2331
  %v3636 = vpack.c.b16 %v2336, %v2332
  %v3637 = vpack.c.b16 %v2337, %v2333
  %v3638 = vpack.c.b16 %v2338, %v2334
  %v3639 = vpack.c.b16 %v2343, %v2339
  %v3640 = vpack.c.b16 %v2344, %v2340
  %v3641 = vpack.c.b16 %v2345, %v2341
  %v3642 = vpack.c.b16 %v2346, %v2342
  %v3643 = vpack.c.b16 %v2351, %v2347
  %v3644 = vpack.c.b16 %v2352, %v2348
  %v3645 = vpack.c.b16 %v2353, %v2349
  %v3646 = vpack.c.b16 %v2354, %v2350
  %v3647 = vpack.c.b16 %v2359, %v2355
  %v3648 = vpack.c.b16 %v2360, %v2356
  %v3649 = vpack.c.b16 %v2361, %v2357
  %v3650 = vpack.c.b16 %v2362, %v2358
  %v3651 = vpack.c.b16 %v2367, %v2363
  %v3652 = vpack.c.b16 %v2368, %v2364
  %v3653 = vpack.c.b16 %v2369, %v2365
  %v3654 = vpack.c.b16 %v2370, %v2366
  %v3655 = vpack.c.b16 %v2375, %v2371
  %v3656 = vpack.c.b16 %v2376, %v2372
  %v3657 = vpack.c.b16 %v2377, %v2373
  %v3658 = vpack.c.b16 %v2378, %v2374
  %v3659 = vpack.c.b16 %v2383, %v2379
  %v3660 = vpack.c.b16 %v2384, %v2380
  %v3661 = vpack.c.b16 %v2385, %v2381
  %v3662 = vpack.c.b16 %v2386, %v2382
  %v3663 = vpack.c.b16 %v2391, %v2387
  %v3664 = vpack.c.b16 %v2392, %v2388
  %v3665 = vpack.c.b16 %v2393, %v2389
  %v3666 = vpack.c.b16 %v2394, %v2390
  %v3667 = vpack.c.b16 %v2399, %v2395
  %v3668 = vpack.c.b16 %v2400, %v2396
  %v3669 = vpack.c.b16 %v2401, %v2397
  %v3670 = vpack.c.b16 %v2402, %v2398
  %v3671 = vpack.c.b16 %v2407, %v2403
  %v3672 = vpack.c.b16 %v2408, %v2404
  %v3673 = vpack.c.b16 %v2409, %v2405
  %v3674 = vpack.c.b16 %v2410, %v2406
  %v3675 = vpack.c.b16 %v2415, %v2411
  %v3676 = vpack.c.b16 %v2416, %v2412
  %v3677 = vpack.c.b16 %v2417, %v2413
  %v3678 = vpack.c.b16 %v2418, %v2414
  %v3679 = vpack.c.b16 %v2423, %v2419
  %v3680 = vpack.c.b16 %v2424, %v2420
  %v3681 = vpack.c.b16 %v2425, %v2421
  %v3682 = vpack.c.b16 %v2426, %v2422
  %v3683 = vpack.c.b16 %v2431, %v2427
  %v3684 = vpack.c.b16 %v2432, %v2428
  %v3685 = vpack.c.b16 %v2433, %v2429
  %v3686 = vpack.c.b16 %v2434, %v2430
  %v3687 = vpack.c.b16 %v2439, %v2435
  %v3688 = vpack.c.b16 %v2440, %v2436
  %v3689 = vpack.c.b16 %v2441, %v2437
  %v3690 = vpack.c.b16 %v2442, %v2438
  %v3691 = vpack.c.b16 %v2447, %v2443
  %v3692 = vpack.c.b16 %v2448, %v2444
  %v3693 = vpack.c.b16 %v2449, %v2445
  %v3694 = vpack.c.b16 %v2450, %v2446
  %v3695 = vpack.c.b16 %v2455, %v2451
  %v3696 = vpack.c.b16 %v2456, %v2452
  %v3697 = vpack.c.b16 %v2457, %v2453
  %v3698 = vpack.c.b16 %v2458, %v2454
  %v3699 = vpack.c.b16 %v2463, %v2459
  %v3700 = vpack.c.b16 %v2464, %v2460
  %v3701 = vpack.c.b16 %v2465, %v2461
  %v3702 = vpack.c.b16 %v2466, %v2462
  %v3703 = vpack.c.b16 %v2471, %v2467
  %v3704 = vpack.c.b16 %v2472, %v2468
  %v3705 = vpack.c.b16 %v2473, %v2469
  %v3706 = vpack.c.b16 %v2474, %v2470
  %v3707 = vpack.c.b16 %v2479, %v2475
  %v3708 = vpack.c.b16 %v2480, %v2476
  %v3709 = vpack.c.b16 %v2481, %v2477
  %v3710 = vpack.c.b16 %v2482, %v2478
  %v3711 = vpack.c.b16 %v2487, %v2483
  %v3712 = vpack.c.b16 %v2488, %v2484
  %v3713 = vpack.c.b16 %v2489, %v2485
  %v3714 = vpack.c.b16 %v2490, %v2486
  %v3715 = vpack.c.b16 %v2495, %v2491
  %v3716 = vpack.c.b16 %v2496, %v2492
  %v3717 = vpack.c.b16 %v2497, %v2493
  %v3718 = vpack.c.b16 %v2498, %v2494
  %v3719 = vpack.c.b16 %v2503, %v2499
  %v3720 = vpack.c.b16 %v2504, %v2500
  %v3721 = vpack.c.b16 %v2505, %v2501
  %v3722 = vpack.c.b16 %v2506, %v2502
  %v3723 = vpack.c.b16 %v2511, %v2507
  %v3724 = vpack.c.b16 %v2512, %v2508
  %v3725 = vpack.c.b16 %v2513, %v2509
  %v3726 = vpack.c.b16 %v2514, %v2510
  %v3727 = vpack.c.b16 %v2519, %v2515
  %v3728 = vpack.c.b16 %v2520, %v2516
  %v3729 = vpack.c.b16 %v2521, %v2517
  %v3730 = vpack.c.b16 %v2522, %v2518
  %v3731 = vpack.c.b16 %v2527, %v2523
  %v3732 = vpack.c.b16 %v2528, %v2524
  %v3733 = vpack.c.b16 %v2529, %v2525
  %v3734 = vpack.c.b16 %v2530, %v2526
  %v3735 = vpack.c.b16 %v2535, %v2531
  %v3736 = vpack.c.b16 %v2536, %v2532
  %v3737 = vpack.c.b16 %v2537, %v2533
  %v3738 = vpack.c.b16 %v2538, %v2534
  %v3739 = vpack.c.b16 %v2543, %v2539
  %v3740 = vpack.c.b16 %v2544, %v2540
  %v3741 = vpack.c.b16 %v2545, %v2541
  %v3742 = vpack.c.b16 %v2546, %v2542
  %v3743 = vpack.c.b16 %v2551, %v2547
  %v3744 = vpack.c.b16 %v2552, %v2548
  %v3745 = vpack.c.b16 %v2553, %v2549
  %v3746 = vpack.c.b16 %v2554, %v2550
  %v3747 = vpack.c.b16 %v2559, %v2555
  %v3748 = vpack.c.b16 %v2560, %v2556
  %v3749 = vpack.c.b16 %v2561, %v2557
  %v3750 = vpack.c.b16 %v2562, %v2558
  %v3751 = vpack.c.b16 %v2567, %v2563
  %v3752 = vpack.c.b16 %v2568, %v2564
  %v3753 = vpack.c.b16 %v2569, %v2565
  %v3754 = vpack.c.b16 %v2570, %v2566
  %v3755 = vpack.c.b16 %v2575, %v2571
  %v3756 = vpack.c.b16 %v2576, %v2572
  %v3757 = vpack.c.b16 %v2577, %v2573
  %v3758 = vpack.c.b16 %v2578, %v2574
  %v3759 = vpack.c.b16 %v2583, %v2579
  %v3760 = vpack.c.b16 %v2584, %v2580
  %v3761 = vpack.c.b16 %v2585, %v2581
  %v3762 = vpack.c.b16 %v2586, %v2582
  %v3763 = vpack.c.b16 %v2591, %v2587
  %v3764 = vpack.c.b16 %v2592, %v2588
  %v3765 = vpack.c.b16 %v2593, %v2589
  %v3766 = vpack.c.b16 %v2594, %v2590
  %v3767 = vpack.c.b16 %v2599, %v2595
  %v3768 = vpack.c.b16 %v2600, %v2596
  %v3769 = vpack.c.b16 %v2601, %v2597
  %v3770 = vpack.c.b16 %v2602, %v2598
  %v3771 = vpack.c.b16 %v2607, %v2603
  %v3772 = vpack.c.b16 %v2608, %v2604
  %v3773 = vpack.c.b16 %v2609, %v2605
  %v3774 = vpack.c.b16 %v2610, %v2606
  %v3775 = vpack.c.b16 %v2615, %v2611
  %v3776 = vpack.c.b16 %v2616, %v2612
  %v3777 = vpack.c.b16 %v2617, %v2613
  %v3778 = vpack.c.b16 %v2618, %v2614
  %v3779 = vpack.c.b16 %v2623, %v2619
  %v3780 = vpack.c.b16 %v2624, %v2620
  %v3781 = vpack.c.b16 %v2625, %v2621
  %v3782 = vpack.c.b16 %v2626, %v2622
  %v3783 = vpack.c.b16 %v2631, %v2627
  %v3784 = vpack.c.b16 %v2632, %v2628
  %v3785 = vpack.c.b16 %v2633, %v2629
  %v3786 = vpack.c.b16 %v2634, %v2630
  %v3787 = vpack.c.b16 %v2639, %v2635
  %v3788 = vpack.c.b16 %v2640, %v2636
  %v3789 = vpack.c.b16 %v2641, %v2637
  %v3790 = vpack.c.b16 %v2642, %v2638
  %v3791 = vpack.c.b16 %v2647, %v2643
  %v3792 = vpack.c.b16 %v2648, %v2644
  %v3793 = vpack.c.b16 %v2649, %v2645
  %v3794 = vpack.c.b16 %v2650, %v2646
  %v3795 = vpack.c.b16 %v2655, %v2651
  %v3796 = vpack.c.b16 %v2656, %v2652
  %v3797 = vpack.c.b16 %v2657, %v2653
  %v3798 = vpack.c.b16 %v2658, %v2654
  %v3799 = vpack.c.b16 %v2663, %v2659
  %v3800 = vpack.c.b16 %v2664, %v2660
  %v3801 = vpack.c.b16 %v2665, %v2661
  %v3802 = vpack.c.b16 %v2666, %v2662
  %v3803 = vpack.c.b16 %v2671, %v2667
  %v3804 = vpack.c.b16 %v2672, %v2668
  %v3805 = vpack.c.b16 %v2673, %v2669
  %v3806 = vpack.c.b16 %v2674, %v2670
  %v3807 = vpack.c.b16 %v2679, %v2675
  %v3808 = vpack.c.b16 %v2680, %v2676
  %v3809 = vpack.c.b16 %v2681, %v2677
  %v3810 = vpack.c.b16 %v2682, %v2678
  %v3811 = vpack.c.b16 %v2687, %v2683
  %v3812 = vpack.c.b16 %v2688, %v2684
  %v3813 = vpack.c.b16 %v2689, %v2685
  %v3814 = vpack.c.b16 %v2690, %v2686
  %v3815 = vpack.c.b16 %v2695, %v2691
  %v3816 = vpack.c.b16 %v2696, %v2692
  %v3817 = vpack.c.b16 %v2697, %v2693
  %v3818 = vpack.c.b16 %v2698, %v2694
  %v3819 = vpack.c.b16 %v2703, %v2699
  %v3820 = vpack.c.b16 %v2704, %v2700
  %v3821 = vpack.c.b16 %v2705, %v2701
  %v3822 = vpack.c.b16 %v2706, %v2702
  %v3823 = vpack.c.b16 %v2711, %v2707
  %v3824 = vpack.c.b16 %v2712, %v2708
  %v3825 = vpack.c.b16 %v2713, %v2709
  %v3826 = vpack.c.b16 %v2714, %v2710
  %v3827 = vpack.c.b16 %v2719, %v2715
  %v3828 = vpack.c.b16 %v2720, %v2716
  %v3829 = vpack.c.b16 %v2721, %v2717
  %v3830 = vpack.c.b16 %v2722, %v2718
  %v3831 = vpack.c.b16 %v2727, %v2723
  %v3832 = vpack.c.b16 %v2728, %v2724
  %v3833 = vpack.c.b16 %v2729, %v2725
  %v3834 = vpack.c.b16 %v2730, %v2726
  %v3835 = vpack.c.b16 %v2735, %v2731
  %v3836 = vpack.c.b16 %v2736, %v2732
  %v3837 = vpack.c.b16 %v2737, %v2733
  %v3838 = vpack.c.b16 %v2738, %v2734
  %v3839 = vpack.c.b16 %v2743, %v2739
  %v3840 = vpack.c.b16 %v2744, %v2740
  %v3841 = vpack.c.b16 %v2745, %v2741
  %v3842 = vpack.c.b16 %v2746, %v2742
  %v3843 = vpack.c.b16 %v2751, %v2747
  %v3844 = vpack.c.b16 %v2752, %v2748
  %v3845 = vpack.c.b16 %v2753, %v2749
  %v3846 = vpack.c.b16 %v2754, %v2750
  %v3847 = vpack.c.b16 %v2759, %v2755
  %v3848 = vpack.c.b16 %v2760, %v2756
  %v3849 = vpack.c.b16 %v2761, %v2757
  %v3850 = vpack.c.b16 %v2762, %v2758
  %v3851 = vpack.c.b16 %v2767, %v2763
  %v3852 = vpack.c.b16 %v2768, %v2764
  %v3853 = vpack.c.b16 %v2769, %v2765
  %v3854 = vpack.c.b16 %v2770, %v2766
  %v3855 = vpack.c.b16 %v2775, %v2771
  %v3856 = vpack.c.b16 %v2776, %v2772
  %v3857 = vpack.c.b16 %v2777, %v2773
  %v3858 = vpack.c.b16 %v2778, %v2774
  %v3859 = vpack.c.b16 %v2783, %v2779
  %v3860 = vpack.c.b16 %v2784, %v2780
  %v3861 = vpack.c.b16 %v2785, %v2781
  %v3862 = vpack.c.b16 %v2786, %v2782
  %v3863 = vpack.c.b16 %v2791, %v2787
  %v3864 = vpack.c.b16 %v2792, %v2788
  %v3865 = vpack.c.b16 %v2793, %v2789
  %v3866 = vpack.c.b16 %v2794, %v2790
  %v3867 = vpack.c.b16 %v2799, %v2795
  %v3868 = vpack.c.b16 %v2800, %v2796
  %v3869 = vpack.c.b16 %v2801, %v2797
  %v3870 = vpack.c.b16 %v2802, %v2798
  %v3871 = vpack.c.b16 %v2807, %v2803
  %v3872 = vpack.c.b16 %v2808, %v2804
  %v3873 = vpack.c.b16 %v2809, %v2805
  %v3874 = vpack.c.b16 %v2810, %v2806
  %v3875 = vpack.c.b16 %v2815, %v2811
  %v3876 = vpack.c.b16 %v2816, %v2812
  %v3877 = vpack.c.b16 %v2817, %v2813
  %v3878 = vpack.c.b16 %v2818, %v2814
  %v3879 = vpack.c.b16 %v2823, %v2819
  %v3880 = vpack.c.b16 %v2824, %v2820
  %v3881 = vpack.c.b16 %v2825, %v2821
  %v3882 = vpack.c.b16 %v2826, %v2822
  %v3883 = vpack.c.b16 %v2831, %v2827
  %v3884 = vpack.c.b16 %v2832, %v2828
  %v3885 = vpack.c.b16 %v2833, %v2829
  %v3886 = vpack.c.b16 %v2834, %v2830
  %v3887 = vpack.c.b16 %v2839, %v2835
  %v3888 = vpack.c.b16 %v2840, %v2836
  %v3889 = vpack.c.b16 %v2841, %v2837
  %v3890 = vpack.c.b16 %v2842, %v2838
  %v3891 = vpack.c.b16 %v2847, %v2843
  %v3892 = vpack.c.b16 %v2848, %v2844
  %v3893 = vpack.c.b16 %v2849, %v2845
  %v3894 = vpack.c.b16 %v2850, %v2846
  %v3895 = vpack.c.b16 %v2855, %v2851
  %v3896 = vpack.c.b16 %v2856, %v2852
  %v3897 = vpack.c.b16 %v2857, %v2853
  %v3898 = vpack.c.b16 %v2858, %v2854
  %v3899 = vpack.c.b16 %v2863, %v2859
  %v3900 = vpack.c.b16 %v2864, %v2860
  %v3901 = vpack.c.b16 %v2865, %v2861
  %v3902 = vpack.c.b16 %v2866, %v2862
  %v3903 = vpack.c.b16 %v2871, %v2867
  %v3904 = vpack.c.b16 %v2872, %v2868
  %v3905 = vpack.c.b16 %v2873, %v2869
  %v3906 = vpack.c.b16 %v2874, %v2870
  %v3907 = vpack.c.b16 %v2879, %v2875
  %v3908 = vpack.c.b16 %v2880, %v2876
  %v3909 = vpack.c.b16 %v2881, %v2877
  %v3910 = vpack.c.b16 %v2882, %v2878
  %v3911 = vpack.c.b16 %v2887, %v2883
  %v3912 = vpack.c.b16 %v2888, %v2884
  %v3913 = vpack.c.b16 %v2889, %v2885
  %v3914 = vpack.c.b16 %v2890, %v2886
  %v3915 = vpack.c.b16 %v2895, %v2891
  %v3916 = vpack.c.b16 %v2896, %v2892
  %v3917 = vpack.c.b16 %v2897, %v2893
  %v3918 = vpack.c.b16 %v2898, %v2894
  %v3919 = vpack.c.b16 %v2903, %v2899
  %v3920 = vpack.c.b16 %v2904, %v2900
  %v3921 = vpack.c.b16 %v2905, %v2901
  %v3922 = vpack.c.b16 %v2906, %v2902
  %v3923 = vpack.c.b16 %v2911, %v2907
  %v3924 = vpack.c.b16 %v2912, %v2908
  %v3925 = vpack.c.b16 %v2913, %v2909
  %v3926 = vpack.c.b16 %v2914, %v2910
  %v3927 = vpack.c.b16 %v2919, %v2915
  %v3928 = vpack.c.b16 %v2920, %v2916
  %v3929 = vpack.c.b16 %v2921, %v2917
  %v3930 = vpack.c.b16 %v2922, %v2918
  %v3931 = vpack.c.b16 %v2927, %v2923
  %v3932 = vpack.c.b16 %v2928, %v2924
  %v3933 = vpack.c.b16 %v2929, %v2925
  %v3934 = vpack.c.b16 %v2930, %v2926
  %v3935 = vpack.c.b16 %v2935, %v2931
  %v3936 = vpack.c.b16 %v2936, %v2932
  %v3937 = vpack.c.b16 %v2937, %v2933
  %v3938 = vpack.c.b16 %v2938, %v2934
  %v3939 = vpack.c.b16 %v2943, %v2939
  %v3940 = vpack.c.b16 %v2944, %v2940
  %v3941 = vpack.c.b16 %v2945, %v2941
  %v3942 = vpack.c.b16 %v2946, %v2942
  %v3943 = vpack.c.b16 %v2951, %v2947
  %v3944 = vpack.c.b16 %v2952, %v2948
  %v3945 = vpack.c.b16 %v2953, %v2949
  %v3946 = vpack.c.b16 %v2954, %v2950
  %v3947 = vpack.c.b16 %v2959, %v2955
  %v3948 = vpack.c.b16 %v2960, %v2956
  %v3949 = vpack.c.b16 %v2961, %v2957
  %v3950 = vpack.c.b16 %v2962, %v2958
  %v3951 = vpack.c.b16 %v2967, %v2963
  %v3952 = vpack.c.b16 %v2968, %v2964
  %v3953 = vpack.c.b16 %v2969, %v2965
  %v3954 = vpack.c.b16 %v2970, %v2966
  %v3955 = vpack.c.b16 %v2975, %v2971
  %v3956 = vpack.c.b16 %v2976, %v2972
  %v3957 = vpack.c.b16 %v2977, %v2973
  %v3958 = vpack.c.b16 %v2978, %v2974
  %v3959 = vpack.c.b16 %v2983, %v2979
  %v3960 = vpack.c.b16 %v2984, %v2980
  %v3961 = vpack.c.b16 %v2985, %v2981
  %v3962 = vpack.c.b16 %v2986, %v2982
  %v3963 = vpack.c.b16 %v2991, %v2987
  %v3964 = vpack.c.b16 %v2992, %v2988
  %v3965 = vpack.c.b16 %v2993, %v2989
  %v3966 = vpack.c.b16 %v2994, %v2990
  %v3967 = vpack.c.b16 %v2999, %v2995
  %v3968 = vpack.c.b16 %v3000, %v2996
  %v3969 = vpack.c.b16 %v3001, %v2997
  %v3970 = vpack.c.b16 %v3002, %v2998
  %v3971 = vpack.c.b16 %v3007, %v3003
  %v3972 = vpack.c.b16 %v3008, %v3004
  %v3973 = vpack.c.b16 %v3009, %v3005
  %v3974 = vpack.c.b16 %v3010, %v3006
  %v3975 = vpack.c.b16 %v3015, %v3011
  %v3976 = vpack.c.b16 %v3016, %v3012
  %v3977 = vpack.c.b16 %v3017, %v3013
  %v3978 = vpack.c.b16 %v3018, %v3014
  %v3979 = vpack.c.b16 %v3023, %v3019
  %v3980 = vpack.c.b16 %v3024, %v3020
  %v3981 = vpack.c.b16 %v3025, %v3021
  %v3982 = vpack.c.b16 %v3026, %v3022
  %v3983 = vpack.c.b16 %v3031, %v3027
  %v3984 = vpack.c.b16 %v3032, %v3028
  %v3985 = vpack.c.b16 %v3033, %v3029
  %v3986 = vpack.c.b16 %v3034, %v3030
  %v3987 = vpack.c.b16 %v3039, %v3035
  %v3988 = vpack.c.b16 %v3040, %v3036
  %v3989 = vpack.c.b16 %v3041, %v3037
  %v3990 = vpack.c.b16 %v3042, %v3038
  %v3991 = vpack.c.b16 %v3047, %v3043
  %v3992 = vpack.c.b16 %v3048, %v3044
  %v3993 = vpack.c.b16 %v3049, %v3045
  %v3994 = vpack.c.b16 %v3050, %v3046
  %v3995 = vpack.c.b16 %v3055, %v3051
  %v3996 = vpack.c.b16 %v3056, %v3052
  %v3997 = vpack.c.b16 %v3057, %v3053
  %v3998 = vpack.c.b16 %v3058, %v3054
  %v3999 = vpack.c.b16 %v3063, %v3059
  %v4000 = vpack.c.b16 %v3064, %v3060
  %v4001 = vpack.c.b16 %v3065, %v3061
  %v4002 = vpack.c.b16 %v3066, %v3062
  %v4003 = vpack.c.b16 %v3071, %v3067
  %v4004 = vpack.c.b16 %v3072, %v3068
  %v4005 = vpack.c.b16 %v3073, %v3069
  %v4006 = vpack.c.b16 %v3074, %v3070
  %v4007 = vpack.c.b16 %v3079, %v3075
  %v4008 = vpack.c.b16 %v3080, %v3076
  %v4009 = vpack.c.b16 %v3081, %v3077
  %v4010 = vpack.c.b16 %v3082, %v3078
  %v4011 = vpack.c.b16 %v3087, %v3083
  %v4012 = vpack.c.b16 %v3088, %v3084
  %v4013 = vpack.c.b16 %v3089, %v3085
  %v4014 = vpack.c.b16 %v3090, %v3086
  %v4015 = vpack.c.b16 %v3095, %v3091
  %v4016 = vpack.c.b16 %v3096, %v3092
  %v4017 = vpack.c.b16 %v3097, %v3093
  %v4018 = vpack.c.b16 %v3098, %v3094
  %v4019 = vpack.c.b16 %v3103, %v3099
  %v4020 = vpack.c.b16 %v3104, %v3100
  %v4021 = vpack.c.b16 %v3105, %v3101
  %v4022 = vpack.c.b16 %v3106, %v3102
  %v4023 = vpack.c.b16 %v3111, %v3107
  %v4024 = vpack.c.b16 %v3112, %v3108
  %v4025 = vpack.c.b16 %v3113, %v3109
  %v4026 = vpack.c.b16 %v3114, %v3110
  %v4027 = vpack.c.b16 %v3119, %v3115
  %v4028 = vpack.c.b16 %v3120, %v3116
  %v4029 = vpack.c.b16 %v3121, %v3117
  %v4030 = vpack.c.b16 %v3122, %v3118
  %v4031 = vpack.c.b16 %v3127, %v3123
  %v4032 = vpack.c.b16 %v3128, %v3124
  %v4033 = vpack.c.b16 %v3129, %v3125
  %v4034 = vpack.c.b16 %v3130, %v3126
  %v4035 = vpack.c.b16 %v3135, %v3131
  %v4036 = vpack.c.b16 %v3136, %v3132
  %v4037 = vpack.c.b16 %v3137, %v3133
  %v4038 = vpack.c.b16 %v3138, %v3134
  %v4039 = vpack.c.b16 %v3143, %v3139
  %v4040 = vpack.c.b16 %v3144, %v3140
  %v4041 = vpack.c.b16 %v3145, %v3141
  %v4042 = vpack.c.b16 %v3146, %v3142
  %v4043 = vpack.c.b16 %v3151, %v3147
  %v4044 = vpack.c.b16 %v3152, %v3148
  %v4045 = vpack.c.b16 %v3153, %v3149
  %v4046 = vpack.c.b16 %v3154, %v3150
  %v4047 = vpack.c.b16 %v3159, %v3155
  %v4048 = vpack.c.b16 %v3160, %v3156
  %v4049 = vpack.c.b16 %v3161, %v3157
  %v4050 = vpack.c.b16 %v3162, %v3158
  %v4051 = vpack.c.b16 %v3167, %v3163
  %v4052 = vpack.c.b16 %v3168, %v3164
  %v4053 = vpack.c.b16 %v3169, %v3165
  %v4054 = vpack.c.b16 %v3170, %v3166
  %v4055 = vpack.c.b16 %v3175, %v3171
  %v4056 = vpack.c.b16 %v3176, %v3172
  %v4057 = vpack.c.b16 %v3177, %v3173
  %v4058 = vpack.c.b16 %v3178, %v3174
  %v4059 = vpack.c.b16 %v3183, %v3179
  %v4060 = vpack.c.b16 %v3184, %v3180
  %v4061 = vpack.c.b16 %v3185, %v3181
  %v4062 = vpack.c.b16 %v3186, %v3182
  %v4063 = vpack.c.b16 %v3191, %v3187
  %v4064 = vpack.c.b16 %v3192, %v3188
  %v4065 = vpack.c.b16 %v3193, %v3189
  %v4066 = vpack.c.b16 %v3194, %v3190
  %v4067 = vpack.c.b16 %v3199, %v3195
  %v4068 = vpack.c.b16 %v3200, %v3196
  %v4069 = vpack.c.b16 %v3201, %v3197
  %v4070 = vpack.c.b16 %v3202, %v3198
  %v4071 = vpack.c.b16 %v3207, %v3203
  %v4072 = vpack.c.b16 %v3208, %v3204
  %v4073 = vpack.c.b16 %v3209, %v3205
  %v4074 = vpack.c.b16 %v3210, %v3206
  %v4075 = vpack.c.b16 %v3215, %v3211
  %v4076 = vpack.c.b16 %v3216, %v3212
  %v4077 = vpack.c.b16 %v3217, %v3213
  %v4078 = vpack.c.b16 %v3218, %v3214
  %v4079 = vpack.c.b16 %v3223, %v3219
  %v4080 = vpack.c.b16 %v3224, %v3220
  %v4081 = vpack.c.b16 %v3225, %v3221
  %v4082 = vpack.c.b16 %v3226, %v3222
  %v4083 = vpack.c.b16 %v3231, %v3227
  %v4084 = vpack.c.b16 %v3232, %v3228
  %v4085 = vpack.c.b16 %v3233, %v3229
  %v4086 = vpack.c.b16 %v3234, %v3230
  %v4087 = vpack.c.b16 %v3239, %v3235
  %v4088 = vpack.c.b16 %v3240, %v3236
  %v4089 = vpack.c.b16 %v3241, %v3237
  %v4090 = vpack.c.b16 %v3242, %v3238
  %v4091 = vpack.c.b16 %v3247, %v3243
  %v4092 = vpack.c.b16 %v3248, %v3244
  %v4093 = vpack.c.b16 %v3249, %v3245
  %v4094 = vpack.c.b16 %v3250, %v3246
  %v4095 = vpack.c.b16 %v3255, %v3251
  %v4096 = vpack.c.b16 %v3256, %v3252
  %v4097 = vpack.c.b16 %v3257, %v3253
  %v4098 = vpack.c.b16 %v3258, %v3254
  %v4099 = vpack.c.b16 %v3263, %v3259
  %v4100 = vpack.c.b16 %v3264, %v3260
  %v4101 = vpack.c.b16 %v3265, %v3261
  %v4102 = vpack.c.b16 %v3266, %v3262
  %v4103 = vpack.c.b16 %v3271, %v3267
  %v4104 = vpack.c.b16 %v3272, %v3268
  %v4105 = vpack.c.b16 %v3273, %v3269
  %v4106 = vpack.c.b16 %v3274, %v3270
  %v4107 = vpack.c.b16 %v3279, %v3275
  %v4108 = vpack.c.b16 %v3280, %v3276
  %v4109 = vpack.c.b16 %v3281, %v3277
  %v4110 = vpack.c.b16 %v3282, %v3278
  %v4111 = vpack.c.b16 %v3287, %v3283
  %v4112 = vpack.c.b16 %v3288, %v3284
  %v4113 = vpack.c.b16 %v3289, %v3285
  %v4114 = vpack.c.b16 %v3290, %v3286
  %v4115 = vpack.c.b16 %v3295, %v3291
  %v4116 = vpack.c.b16 %v3296, %v3292
  %v4117 = vpack.c.b16 %v3297, %v3293
  %v4118 = vpack.c.b16 %v3298, %v3294
  %v4119 = vpack.c.b16 %v3303, %v3299
  %v4120 = vpack.c.b16 %v3304, %v3300
  %v4121 = vpack.c.b16 %v3305, %v3301
  %v4122 = vpack.c.b16 %v3306, %v3302
  %v4123 = vpack.c.b16 %v3311, %v3307
  %v4124 = vpack.c.b16 %v3312, %v3308
  %v4125 = vpack.c.b16 %v3313, %v3309
  %v4126 = vpack.c.b16 %v3314, %v3310
  %v4127 = vpack.c.b16 %v3319, %v3315
  %v4128 = vpack.c.b16 %v3320, %v3316
  %v4129 = vpack.c.b16 %v3321, %v3317
  %v4130 = vpack.c.b16 %v3322, %v3318
  %v4131 = vpack.c.b16 %v3327, %v3323
  %v4132 = vpack.c.b16 %v3328, %v3324
  %v4133 = vpack.c.b16 %v3329, %v3325
  %v4134 = vpack.c.b16 %v3330, %v3326
  %v4135 = vpack.c.b16 %v3335, %v3331
  %v4136 = vpack.c.b16 %v3336, %v3332
  %v4137 = vpack.c.b16 %v3337, %v3333
  %v4138 = vpack.c.b16 %v3338, %v3334
  %4939 = vmatpush.bf16.msra.mxu0 %v3367
  %4940 = vmatpush.bf16.msra.mxu0 %v3363
  %4941 = vmatpush.bf16.msra.mxu0 %v3359
  %4942 = vmatpush.bf16.msra.mxu0 %v3355
  %4943 = vmatpush.bf16.msra.mxu0 %v3351
  %4944 = vmatpush.bf16.msra.mxu0 %v3347
  %4945 = vmatpush.bf16.msra.mxu0 %v3343
  %4946 = vmatpush.bf16.msra.mxu0 %v3339
  %4947 = vmatmul.bf16.gmra.mxu0 %v889
  %v4948 = vpop.f32.mrf.mxu0
  %v4949 = vadd.f32 %v843, %v4948
  %v4950 = vpop.f32.mrf.mxu0
  %4951 = vdwg.mxu0
  %4952 = vmatpush.bf16.msra.mxu0 %v3399
  %4953 = vmatpush.bf16.msra.mxu0 %v3395
  %4954 = vmatpush.bf16.msra.mxu0 %v3391
  %4955 = vmatpush.bf16.msra.mxu0 %v3387
  %4956 = vmatpush.bf16.msra.mxu0 %v3383
  %4957 = vmatpush.bf16.msra.mxu0 %v3379
  %4958 = vmatpush.bf16.msra.mxu0 %v3375
  %4959 = vmatpush.bf16.msra.mxu0 %v3371
  %4960 = vmatmul.bf16.gmra.mxu0 %v890
  %v4961 = vpop.f32.mrf.mxu0
  %v4962 = vadd.f32 %v4949, %v4961
  %v4963 = vpop.f32.mrf.mxu0
  %4964 = vdwg.mxu0
  %4965 = vmatpush.bf16.msra.mxu0 %v3431
  %4966 = vmatpush.bf16.msra.mxu0 %v3427
  %4967 = vmatpush.bf16.msra.mxu0 %v3423
  %4968 = vmatpush.bf16.msra.mxu0 %v3419
  %4969 = vmatpush.bf16.msra.mxu0 %v3415
  %4970 = vmatpush.bf16.msra.mxu0 %v3411
  %4971 = vmatpush.bf16.msra.mxu0 %v3407
  %4972 = vmatpush.bf16.msra.mxu0 %v3403
  %4973 = vmatmul.bf16.gmra.mxu0 %v891
  %v4974 = vpop.f32.mrf.mxu0
  %v4975 = vadd.f32 %v4962, %v4974
  %v4976 = vpop.f32.mrf.mxu0
  %4977 = vdwg.mxu0
  %4978 = vmatpush.bf16.msra.mxu0 %v3463
  %4979 = vmatpush.bf16.msra.mxu0 %v3459
  %4980 = vmatpush.bf16.msra.mxu0 %v3455
  %4981 = vmatpush.bf16.msra.mxu0 %v3451
  %4982 = vmatpush.bf16.msra.mxu0 %v3447
  %4983 = vmatpush.bf16.msra.mxu0 %v3443
  %4984 = vmatpush.bf16.msra.mxu0 %v3439
  %4985 = vmatpush.bf16.msra.mxu0 %v3435
  %4986 = vmatmul.bf16.gmra.mxu0 %v892
  %v4987 = vpop.f32.mrf.mxu0
  %v4988 = vadd.f32 %v4975, %v4987
  %v4989 = vpop.f32.mrf.mxu0
  %4990 = vdwg.mxu0
  %4991 = vmatpush.bf16.msra.mxu0 %v3495
  %4992 = vmatpush.bf16.msra.mxu0 %v3491
  %4993 = vmatpush.bf16.msra.mxu0 %v3487
  %4994 = vmatpush.bf16.msra.mxu0 %v3483
  %4995 = vmatpush.bf16.msra.mxu0 %v3479
  %4996 = vmatpush.bf16.msra.mxu0 %v3475
  %4997 = vmatpush.bf16.msra.mxu0 %v3471
  %4998 = vmatpush.bf16.msra.mxu0 %v3467
  %4999 = vmatmul.bf16.gmra.mxu0 %v893
  %v5000 = vpop.f32.mrf.mxu0
  %v5001 = vadd.f32 %v4988, %v5000
  %v5002 = vpop.f32.mrf.mxu0
  %5003 = vdwg.mxu0
  %5004 = vmatpush.bf16.msra.mxu0 %v3527
  %5005 = vmatpush.bf16.msra.mxu0 %v3523
  %5006 = vmatpush.bf16.msra.mxu0 %v3519
  %5007 = vmatpush.bf16.msra.mxu0 %v3515
  %5008 = vmatpush.bf16.msra.mxu0 %v3511
  %5009 = vmatpush.bf16.msra.mxu0 %v3507
  %5010 = vmatpush.bf16.msra.mxu0 %v3503
  %5011 = vmatpush.bf16.msra.mxu0 %v3499
  %5012 = vmatmul.bf16.gmra.mxu0 %v894
  %v5013 = vpop.f32.mrf.mxu0
  %v5014 = vadd.f32 %v5001, %v5013
  %v5015 = vpop.f32.mrf.mxu0
  %5016 = vdwg.mxu0
  %5017 = vmatpush.bf16.msra.mxu0 %v3559
  %5018 = vmatpush.bf16.msra.mxu0 %v3555
  %5019 = vmatpush.bf16.msra.mxu0 %v3551
  %5020 = vmatpush.bf16.msra.mxu0 %v3547
  %5021 = vmatpush.bf16.msra.mxu0 %v3543
  %5022 = vmatpush.bf16.msra.mxu0 %v3539
  %5023 = vmatpush.bf16.msra.mxu0 %v3535
  %5024 = vmatpush.bf16.msra.mxu0 %v3531
  %5025 = vmatmul.bf16.gmra.mxu0 %v895
  %v5026 = vpop.f32.mrf.mxu0
  %v5027 = vadd.f32 %v5014, %v5026
  %v5028 = vpop.f32.mrf.mxu0
  %5029 = vdwg.mxu0
  %5030 = vmatpush.bf16.msra.mxu0 %v3591
  %5031 = vmatpush.bf16.msra.mxu0 %v3587
  %5032 = vmatpush.bf16.msra.mxu0 %v3583
  %5033 = vmatpush.bf16.msra.mxu0 %v3579
  %5034 = vmatpush.bf16.msra.mxu0 %v3575
  %5035 = vmatpush.bf16.msra.mxu0 %v3571
  %5036 = vmatpush.bf16.msra.mxu0 %v3567
  %5037 = vmatpush.bf16.msra.mxu0 %v3563
  %5038 = vmatmul.bf16.gmra.mxu0 %v896
  %v5039 = vpop.f32.mrf.mxu0
  %v5040 = vadd.f32 %v5027, %v5039
  %v5041 = vpop.f32.mrf.mxu0
  %5042 = vdwg.mxu0
  %5043 = vmatpush.bf16.msra.mxu0 %v3623
  %5044 = vmatpush.bf16.msra.mxu0 %v3619
  %5045 = vmatpush.bf16.msra.mxu0 %v3615
  %5046 = vmatpush.bf16.msra.mxu0 %v3611
  %5047 = vmatpush.bf16.msra.mxu0 %v3607
  %5048 = vmatpush.bf16.msra.mxu0 %v3603
  %5049 = vmatpush.bf16.msra.mxu0 %v3599
  %5050 = vmatpush.bf16.msra.mxu0 %v3595
  %5051 = vmatmul.bf16.gmra.mxu0 %v897
  %v5052 = vpop.f32.mrf.mxu0
  %v5053 = vadd.f32 %v5040, %v5052
  %v5054 = vpop.f32.mrf.mxu0
  %5055 = vdwg.mxu0
  %5056 = vmatpush.bf16.msra.mxu0 %v3655
  %5057 = vmatpush.bf16.msra.mxu0 %v3651
  %5058 = vmatpush.bf16.msra.mxu0 %v3647
  %5059 = vmatpush.bf16.msra.mxu0 %v3643
  %5060 = vmatpush.bf16.msra.mxu0 %v3639
  %5061 = vmatpush.bf16.msra.mxu0 %v3635
  %5062 = vmatpush.bf16.msra.mxu0 %v3631
  %5063 = vmatpush.bf16.msra.mxu0 %v3627
  %5064 = vmatmul.bf16.gmra.mxu0 %v898
  %v5065 = vpop.f32.mrf.mxu0
  %v5066 = vadd.f32 %v5053, %v5065
  %v5067 = vpop.f32.mrf.mxu0
  %5068 = vdwg.mxu0
  %5069 = vmatpush.bf16.msra.mxu0 %v3687
  %5070 = vmatpush.bf16.msra.mxu0 %v3683
  %5071 = vmatpush.bf16.msra.mxu0 %v3679
  %5072 = vmatpush.bf16.msra.mxu0 %v3675
  %5073 = vmatpush.bf16.msra.mxu0 %v3671
  %5074 = vmatpush.bf16.msra.mxu0 %v3667
  %5075 = vmatpush.bf16.msra.mxu0 %v3663
  %5076 = vmatpush.bf16.msra.mxu0 %v3659
  %5077 = vmatmul.bf16.gmra.mxu0 %v899
  %v5078 = vpop.f32.mrf.mxu0
  %v5079 = vadd.f32 %v5066, %v5078
  %v5080 = vpop.f32.mrf.mxu0
  %5081 = vdwg.mxu0
  %5082 = vmatpush.bf16.msra.mxu0 %v3719
  %5083 = vmatpush.bf16.msra.mxu0 %v3715
  %5084 = vmatpush.bf16.msra.mxu0 %v3711
  %5085 = vmatpush.bf16.msra.mxu0 %v3707
  %5086 = vmatpush.bf16.msra.mxu0 %v3703
  %5087 = vmatpush.bf16.msra.mxu0 %v3699
  %5088 = vmatpush.bf16.msra.mxu0 %v3695
  %5089 = vmatpush.bf16.msra.mxu0 %v3691
  %5090 = vmatmul.bf16.gmra.mxu0 %v900
  %v5091 = vpop.f32.mrf.mxu0
  %v5092 = vadd.f32 %v5079, %v5091
  %v5093 = vpop.f32.mrf.mxu0
  %5094 = vdwg.mxu0
  %5095 = vmatpush.bf16.msra.mxu0 %v3751
  %5096 = vmatpush.bf16.msra.mxu0 %v3747
  %5097 = vmatpush.bf16.msra.mxu0 %v3743
  %5098 = vmatpush.bf16.msra.mxu0 %v3739
  %5099 = vmatpush.bf16.msra.mxu0 %v3735
  %5100 = vmatpush.bf16.msra.mxu0 %v3731
  %5101 = vmatpush.bf16.msra.mxu0 %v3727
  %5102 = vmatpush.bf16.msra.mxu0 %v3723
  %5103 = vmatmul.bf16.gmra.mxu0 %v901
  %v5104 = vpop.f32.mrf.mxu0
  %v5105 = vadd.f32 %v5092, %v5104
  %v5106 = vpop.f32.mrf.mxu0
  %5107 = vdwg.mxu0
  %5108 = vmatpush.bf16.msra.mxu0 %v3783
  %5109 = vmatpush.bf16.msra.mxu0 %v3779
  %5110 = vmatpush.bf16.msra.mxu0 %v3775
  %5111 = vmatpush.bf16.msra.mxu0 %v3771
  %5112 = vmatpush.bf16.msra.mxu0 %v3767
  %5113 = vmatpush.bf16.msra.mxu0 %v3763
  %5114 = vmatpush.bf16.msra.mxu0 %v3759
  %5115 = vmatpush.bf16.msra.mxu0 %v3755
  %5116 = vmatmul.bf16.gmra.mxu0 %v902
  %v5117 = vpop.f32.mrf.mxu0
  %v5118 = vadd.f32 %v5105, %v5117
  %v5119 = vpop.f32.mrf.mxu0
  %5120 = vdwg.mxu0
  %5121 = vmatpush.bf16.msra.mxu0 %v3815
  %5122 = vmatpush.bf16.msra.mxu0 %v3811
  %5123 = vmatpush.bf16.msra.mxu0 %v3807
  %5124 = vmatpush.bf16.msra.mxu0 %v3803
  %5125 = vmatpush.bf16.msra.mxu0 %v3799
  %5126 = vmatpush.bf16.msra.mxu0 %v3795
  %5127 = vmatpush.bf16.msra.mxu0 %v3791
  %5128 = vmatpush.bf16.msra.mxu0 %v3787
  %5129 = vmatmul.bf16.gmra.mxu0 %v903
  %v5130 = vpop.f32.mrf.mxu0
  %v5131 = vadd.f32 %v5118, %v5130
  %v5132 = vpop.f32.mrf.mxu0
  %5133 = vdwg.mxu0
  %5134 = vmatpush.bf16.msra.mxu0 %v3847
  %5135 = vmatpush.bf16.msra.mxu0 %v3843
  %5136 = vmatpush.bf16.msra.mxu0 %v3839
  %5137 = vmatpush.bf16.msra.mxu0 %v3835
  %5138 = vmatpush.bf16.msra.mxu0 %v3831
  %5139 = vmatpush.bf16.msra.mxu0 %v3827
  %5140 = vmatpush.bf16.msra.mxu0 %v3823
  %5141 = vmatpush.bf16.msra.mxu0 %v3819
  %5142 = vmatmul.bf16.gmra.mxu0 %v904
  %v5143 = vpop.f32.mrf.mxu0
  %v5144 = vadd.f32 %v5131, %v5143
  %v5145 = vpop.f32.mrf.mxu0
  %5146 = vdwg.mxu0
  %5147 = vmatpush.bf16.msra.mxu0 %v3879
  %5148 = vmatpush.bf16.msra.mxu0 %v3875
  %5149 = vmatpush.bf16.msra.mxu0 %v3871
  %5150 = vmatpush.bf16.msra.mxu0 %v3867
  %5151 = vmatpush.bf16.msra.mxu0 %v3863
  %5152 = vmatpush.bf16.msra.mxu0 %v3859
  %5153 = vmatpush.bf16.msra.mxu0 %v3855
  %5154 = vmatpush.bf16.msra.mxu0 %v3851
  %5155 = vmatmul.bf16.gmra.mxu0 %v905
  %v5156 = vpop.f32.mrf.mxu0
  %v5157 = vadd.f32 %v5144, %v5156
  %v5158 = vpop.f32.mrf.mxu0
  %5159 = vdwg.mxu0
  %5160 = vmatpush.bf16.msra.mxu0 %v3911
  %5161 = vmatpush.bf16.msra.mxu0 %v3907
  %5162 = vmatpush.bf16.msra.mxu0 %v3903
  %5163 = vmatpush.bf16.msra.mxu0 %v3899
  %5164 = vmatpush.bf16.msra.mxu0 %v3895
  %5165 = vmatpush.bf16.msra.mxu0 %v3891
  %5166 = vmatpush.bf16.msra.mxu0 %v3887
  %5167 = vmatpush.bf16.msra.mxu0 %v3883
  %5168 = vmatmul.bf16.gmra.mxu0 %v906
  %v5169 = vpop.f32.mrf.mxu0
  %v5170 = vadd.f32 %v5157, %v5169
  %v5171 = vpop.f32.mrf.mxu0
  %5172 = vdwg.mxu0
  %5173 = vmatpush.bf16.msra.mxu0 %v3943
  %5174 = vmatpush.bf16.msra.mxu0 %v3939
  %5175 = vmatpush.bf16.msra.mxu0 %v3935
  %5176 = vmatpush.bf16.msra.mxu0 %v3931
  %5177 = vmatpush.bf16.msra.mxu0 %v3927
  %5178 = vmatpush.bf16.msra.mxu0 %v3923
  %5179 = vmatpush.bf16.msra.mxu0 %v3919
  %5180 = vmatpush.bf16.msra.mxu0 %v3915
  %5181 = vmatmul.bf16.gmra.mxu0 %v907
  %v5182 = vpop.f32.mrf.mxu0
  %v5183 = vadd.f32 %v5170, %v5182
  %v5184 = vpop.f32.mrf.mxu0
  %5185 = vdwg.mxu0
  %5186 = vmatpush.bf16.msra.mxu0 %v3975
  %5187 = vmatpush.bf16.msra.mxu0 %v3971
  %5188 = vmatpush.bf16.msra.mxu0 %v3967
  %5189 = vmatpush.bf16.msra.mxu0 %v3963
  %5190 = vmatpush.bf16.msra.mxu0 %v3959
  %5191 = vmatpush.bf16.msra.mxu0 %v3955
  %5192 = vmatpush.bf16.msra.mxu0 %v3951
  %5193 = vmatpush.bf16.msra.mxu0 %v3947
  %5194 = vmatmul.bf16.gmra.mxu0 %v908
  %v5195 = vpop.f32.mrf.mxu0
  %v5196 = vadd.f32 %v5183, %v5195
  %v5197 = vpop.f32.mrf.mxu0
  %5198 = vdwg.mxu0
  %5199 = vmatpush.bf16.msra.mxu0 %v4007
  %5200 = vmatpush.bf16.msra.mxu0 %v4003
  %5201 = vmatpush.bf16.msra.mxu0 %v3999
  %5202 = vmatpush.bf16.msra.mxu0 %v3995
  %5203 = vmatpush.bf16.msra.mxu0 %v3991
  %5204 = vmatpush.bf16.msra.mxu0 %v3987
  %5205 = vmatpush.bf16.msra.mxu0 %v3983
  %5206 = vmatpush.bf16.msra.mxu0 %v3979
  %5207 = vmatmul.bf16.gmra.mxu0 %v909
  %v5208 = vpop.f32.mrf.mxu0
  %v5209 = vadd.f32 %v5196, %v5208
  %v5210 = vpop.f32.mrf.mxu0
  %5211 = vdwg.mxu0
  %5212 = vmatpush.bf16.msra.mxu0 %v4039
  %5213 = vmatpush.bf16.msra.mxu0 %v4035
  %5214 = vmatpush.bf16.msra.mxu0 %v4031
  %5215 = vmatpush.bf16.msra.mxu0 %v4027
  %5216 = vmatpush.bf16.msra.mxu0 %v4023
  %5217 = vmatpush.bf16.msra.mxu0 %v4019
  %5218 = vmatpush.bf16.msra.mxu0 %v4015
  %5219 = vmatpush.bf16.msra.mxu0 %v4011
  %5220 = vmatmul.bf16.gmra.mxu0 %v910
  %v5221 = vpop.f32.mrf.mxu0
  %v5222 = vadd.f32 %v5209, %v5221
  %v5223 = vpop.f32.mrf.mxu0
  %5224 = vdwg.mxu0
  %5225 = vmatpush.bf16.msra.mxu0 %v4071
  %5226 = vmatpush.bf16.msra.mxu0 %v4067
  %5227 = vmatpush.bf16.msra.mxu0 %v4063
  %5228 = vmatpush.bf16.msra.mxu0 %v4059
  %5229 = vmatpush.bf16.msra.mxu0 %v4055
  %5230 = vmatpush.bf16.msra.mxu0 %v4051
  %5231 = vmatpush.bf16.msra.mxu0 %v4047
  %5232 = vmatpush.bf16.msra.mxu0 %v4043
  %5233 = vmatmul.bf16.gmra.mxu0 %v911
  %v5234 = vpop.f32.mrf.mxu0
  %v5235 = vadd.f32 %v5222, %v5234
  %v5236 = vpop.f32.mrf.mxu0
  %5237 = vdwg.mxu0
  %5238 = vmatpush.bf16.msra.mxu0 %v4103
  %5239 = vmatpush.bf16.msra.mxu0 %v4099
  %5240 = vmatpush.bf16.msra.mxu0 %v4095
  %5241 = vmatpush.bf16.msra.mxu0 %v4091
  %5242 = vmatpush.bf16.msra.mxu0 %v4087
  %5243 = vmatpush.bf16.msra.mxu0 %v4083
  %5244 = vmatpush.bf16.msra.mxu0 %v4079
  %5245 = vmatpush.bf16.msra.mxu0 %v4075
  %5246 = vmatmul.bf16.gmra.mxu0 %v912
  %v5247 = vpop.f32.mrf.mxu0
  %v5248 = vadd.f32 %v5235, %v5247
  %v5249 = vpop.f32.mrf.mxu0
  %5250 = vdwg.mxu0
  %5251 = vmatpush.bf16.msra.mxu0 %v4135
  %5252 = vmatpush.bf16.msra.mxu0 %v4131
  %5253 = vmatpush.bf16.msra.mxu0 %v4127
  %5254 = vmatpush.bf16.msra.mxu0 %v4123
  %5255 = vmatpush.bf16.msra.mxu0 %v4119
  %5256 = vmatpush.bf16.msra.mxu0 %v4115
  %5257 = vmatpush.bf16.msra.mxu0 %v4111
  %5258 = vmatpush.bf16.msra.mxu0 %v4107
  %5259 = vmatmul.bf16.gmra.mxu0 %v913
  %v5260 = vpop.f32.mrf.mxu0
  %v5261 = vadd.f32 %v5248, %v5260
  %v5262 = vpop.f32.mrf.mxu0
  %5263 = vdwg.mxu0
  %5264 = vmatpush.bf16.msra.mxu0 %v3368
  %5265 = vmatpush.bf16.msra.mxu0 %v3364
  %5266 = vmatpush.bf16.msra.mxu0 %v3360
  %5267 = vmatpush.bf16.msra.mxu0 %v3356
  %5268 = vmatpush.bf16.msra.mxu0 %v3352
  %5269 = vmatpush.bf16.msra.mxu0 %v3348
  %5270 = vmatpush.bf16.msra.mxu0 %v3344
  %5271 = vmatpush.bf16.msra.mxu0 %v3340
  %5272 = vmatmul.bf16.gmra.mxu0 %v889
  %v5273 = vpop.f32.mrf.mxu0
  %v5274 = vadd.f32 %v844, %v5273
  %v5275 = vpop.f32.mrf.mxu0
  %5276 = vdwg.mxu0
  %5277 = vmatpush.bf16.msra.mxu0 %v3400
  %5278 = vmatpush.bf16.msra.mxu0 %v3396
  %5279 = vmatpush.bf16.msra.mxu0 %v3392
  %5280 = vmatpush.bf16.msra.mxu0 %v3388
  %5281 = vmatpush.bf16.msra.mxu0 %v3384
  %5282 = vmatpush.bf16.msra.mxu0 %v3380
  %5283 = vmatpush.bf16.msra.mxu0 %v3376
  %5284 = vmatpush.bf16.msra.mxu0 %v3372
  %5285 = vmatmul.bf16.gmra.mxu0 %v890
  %v5286 = vpop.f32.mrf.mxu0
  %v5287 = vadd.f32 %v5274, %v5286
  %v5288 = vpop.f32.mrf.mxu0
  %5289 = vdwg.mxu0
  %5290 = vmatpush.bf16.msra.mxu0 %v3432
  %5291 = vmatpush.bf16.msra.mxu0 %v3428
  %5292 = vmatpush.bf16.msra.mxu0 %v3424
  %5293 = vmatpush.bf16.msra.mxu0 %v3420
  %5294 = vmatpush.bf16.msra.mxu0 %v3416
  %5295 = vmatpush.bf16.msra.mxu0 %v3412
  %5296 = vmatpush.bf16.msra.mxu0 %v3408
  %5297 = vmatpush.bf16.msra.mxu0 %v3404
  %5298 = vmatmul.bf16.gmra.mxu0 %v891
  %v5299 = vpop.f32.mrf.mxu0
  %v5300 = vadd.f32 %v5287, %v5299
  %v5301 = vpop.f32.mrf.mxu0
  %5302 = vdwg.mxu0
  %5303 = vmatpush.bf16.msra.mxu0 %v3464
  %5304 = vmatpush.bf16.msra.mxu0 %v3460
  %5305 = vmatpush.bf16.msra.mxu0 %v3456
  %5306 = vmatpush.bf16.msra.mxu0 %v3452
  %5307 = vmatpush.bf16.msra.mxu0 %v3448
  %5308 = vmatpush.bf16.msra.mxu0 %v3444
  %5309 = vmatpush.bf16.msra.mxu0 %v3440
  %5310 = vmatpush.bf16.msra.mxu0 %v3436
  %5311 = vmatmul.bf16.gmra.mxu0 %v892
  %v5312 = vpop.f32.mrf.mxu0
  %v5313 = vadd.f32 %v5300, %v5312
  %v5314 = vpop.f32.mrf.mxu0
  %5315 = vdwg.mxu0
  %5316 = vmatpush.bf16.msra.mxu0 %v3496
  %5317 = vmatpush.bf16.msra.mxu0 %v3492
  %5318 = vmatpush.bf16.msra.mxu0 %v3488
  %5319 = vmatpush.bf16.msra.mxu0 %v3484
  %5320 = vmatpush.bf16.msra.mxu0 %v3480
  %5321 = vmatpush.bf16.msra.mxu0 %v3476
  %5322 = vmatpush.bf16.msra.mxu0 %v3472
  %5323 = vmatpush.bf16.msra.mxu0 %v3468
  %5324 = vmatmul.bf16.gmra.mxu0 %v893
  %v5325 = vpop.f32.mrf.mxu0
  %v5326 = vadd.f32 %v5313, %v5325
  %v5327 = vpop.f32.mrf.mxu0
  %5328 = vdwg.mxu0
  %5329 = vmatpush.bf16.msra.mxu0 %v3528
  %5330 = vmatpush.bf16.msra.mxu0 %v3524
  %5331 = vmatpush.bf16.msra.mxu0 %v3520
  %5332 = vmatpush.bf16.msra.mxu0 %v3516
  %5333 = vmatpush.bf16.msra.mxu0 %v3512
  %5334 = vmatpush.bf16.msra.mxu0 %v3508
  %5335 = vmatpush.bf16.msra.mxu0 %v3504
  %5336 = vmatpush.bf16.msra.mxu0 %v3500
  %5337 = vmatmul.bf16.gmra.mxu0 %v894
  %v5338 = vpop.f32.mrf.mxu0
  %v5339 = vadd.f32 %v5326, %v5338
  %v5340 = vpop.f32.mrf.mxu0
  %5341 = vdwg.mxu0
  %5342 = vmatpush.bf16.msra.mxu0 %v3560
  %5343 = vmatpush.bf16.msra.mxu0 %v3556
  %5344 = vmatpush.bf16.msra.mxu0 %v3552
  %5345 = vmatpush.bf16.msra.mxu0 %v3548
  %5346 = vmatpush.bf16.msra.mxu0 %v3544
  %5347 = vmatpush.bf16.msra.mxu0 %v3540
  %5348 = vmatpush.bf16.msra.mxu0 %v3536
  %5349 = vmatpush.bf16.msra.mxu0 %v3532
  %5350 = vmatmul.bf16.gmra.mxu0 %v895
  %v5351 = vpop.f32.mrf.mxu0
  %v5352 = vadd.f32 %v5339, %v5351
  %v5353 = vpop.f32.mrf.mxu0
  %5354 = vdwg.mxu0
  %5355 = vmatpush.bf16.msra.mxu0 %v3592
  %5356 = vmatpush.bf16.msra.mxu0 %v3588
  %5357 = vmatpush.bf16.msra.mxu0 %v3584
  %5358 = vmatpush.bf16.msra.mxu0 %v3580
  %5359 = vmatpush.bf16.msra.mxu0 %v3576
  %5360 = vmatpush.bf16.msra.mxu0 %v3572
  %5361 = vmatpush.bf16.msra.mxu0 %v3568
  %5362 = vmatpush.bf16.msra.mxu0 %v3564
  %5363 = vmatmul.bf16.gmra.mxu0 %v896
  %v5364 = vpop.f32.mrf.mxu0
  %v5365 = vadd.f32 %v5352, %v5364
  %v5366 = vpop.f32.mrf.mxu0
  %5367 = vdwg.mxu0
  %5368 = vmatpush.bf16.msra.mxu0 %v3624
  %5369 = vmatpush.bf16.msra.mxu0 %v3620
  %5370 = vmatpush.bf16.msra.mxu0 %v3616
  %5371 = vmatpush.bf16.msra.mxu0 %v3612
  %5372 = vmatpush.bf16.msra.mxu0 %v3608
  %5373 = vmatpush.bf16.msra.mxu0 %v3604
  %5374 = vmatpush.bf16.msra.mxu0 %v3600
  %5375 = vmatpush.bf16.msra.mxu0 %v3596
  %5376 = vmatmul.bf16.gmra.mxu0 %v897
  %v5377 = vpop.f32.mrf.mxu0
  %v5378 = vadd.f32 %v5365, %v5377
  %v5379 = vpop.f32.mrf.mxu0
  %5380 = vdwg.mxu0
  %5381 = vmatpush.bf16.msra.mxu0 %v3656
  %5382 = vmatpush.bf16.msra.mxu0 %v3652
  %5383 = vmatpush.bf16.msra.mxu0 %v3648
  %5384 = vmatpush.bf16.msra.mxu0 %v3644
  %5385 = vmatpush.bf16.msra.mxu0 %v3640
  %5386 = vmatpush.bf16.msra.mxu0 %v3636
  %5387 = vmatpush.bf16.msra.mxu0 %v3632
  %5388 = vmatpush.bf16.msra.mxu0 %v3628
  %5389 = vmatmul.bf16.gmra.mxu0 %v898
  %v5390 = vpop.f32.mrf.mxu0
  %v5391 = vadd.f32 %v5378, %v5390
  %v5392 = vpop.f32.mrf.mxu0
  %5393 = vdwg.mxu0
  %5394 = vmatpush.bf16.msra.mxu0 %v3688
  %5395 = vmatpush.bf16.msra.mxu0 %v3684
  %5396 = vmatpush.bf16.msra.mxu0 %v3680
  %5397 = vmatpush.bf16.msra.mxu0 %v3676
  %5398 = vmatpush.bf16.msra.mxu0 %v3672
  %5399 = vmatpush.bf16.msra.mxu0 %v3668
  %5400 = vmatpush.bf16.msra.mxu0 %v3664
  %5401 = vmatpush.bf16.msra.mxu0 %v3660
  %5402 = vmatmul.bf16.gmra.mxu0 %v899
  %v5403 = vpop.f32.mrf.mxu0
  %v5404 = vadd.f32 %v5391, %v5403
  %v5405 = vpop.f32.mrf.mxu0
  %5406 = vdwg.mxu0
  %5407 = vmatpush.bf16.msra.mxu0 %v3720
  %5408 = vmatpush.bf16.msra.mxu0 %v3716
  %5409 = vmatpush.bf16.msra.mxu0 %v3712
  %5410 = vmatpush.bf16.msra.mxu0 %v3708
  %5411 = vmatpush.bf16.msra.mxu0 %v3704
  %5412 = vmatpush.bf16.msra.mxu0 %v3700
  %5413 = vmatpush.bf16.msra.mxu0 %v3696
  %5414 = vmatpush.bf16.msra.mxu0 %v3692
  %5415 = vmatmul.bf16.gmra.mxu0 %v900
  %v5416 = vpop.f32.mrf.mxu0
  %v5417 = vadd.f32 %v5404, %v5416
  %v5418 = vpop.f32.mrf.mxu0
  %5419 = vdwg.mxu0
  %5420 = vmatpush.bf16.msra.mxu0 %v3752
  %5421 = vmatpush.bf16.msra.mxu0 %v3748
  %5422 = vmatpush.bf16.msra.mxu0 %v3744
  %5423 = vmatpush.bf16.msra.mxu0 %v3740
  %5424 = vmatpush.bf16.msra.mxu0 %v3736
  %5425 = vmatpush.bf16.msra.mxu0 %v3732
  %5426 = vmatpush.bf16.msra.mxu0 %v3728
  %5427 = vmatpush.bf16.msra.mxu0 %v3724
  %5428 = vmatmul.bf16.gmra.mxu0 %v901
  %v5429 = vpop.f32.mrf.mxu0
  %v5430 = vadd.f32 %v5417, %v5429
  %v5431 = vpop.f32.mrf.mxu0
  %5432 = vdwg.mxu0
  %5433 = vmatpush.bf16.msra.mxu0 %v3784
  %5434 = vmatpush.bf16.msra.mxu0 %v3780
  %5435 = vmatpush.bf16.msra.mxu0 %v3776
  %5436 = vmatpush.bf16.msra.mxu0 %v3772
  %5437 = vmatpush.bf16.msra.mxu0 %v3768
  %5438 = vmatpush.bf16.msra.mxu0 %v3764
  %5439 = vmatpush.bf16.msra.mxu0 %v3760
  %5440 = vmatpush.bf16.msra.mxu0 %v3756
  %5441 = vmatmul.bf16.gmra.mxu0 %v902
  %v5442 = vpop.f32.mrf.mxu0
  %v5443 = vadd.f32 %v5430, %v5442
  %v5444 = vpop.f32.mrf.mxu0
  %5445 = vdwg.mxu0
  %5446 = vmatpush.bf16.msra.mxu0 %v3816
  %5447 = vmatpush.bf16.msra.mxu0 %v3812
  %5448 = vmatpush.bf16.msra.mxu0 %v3808
  %5449 = vmatpush.bf16.msra.mxu0 %v3804
  %5450 = vmatpush.bf16.msra.mxu0 %v3800
  %5451 = vmatpush.bf16.msra.mxu0 %v3796
  %5452 = vmatpush.bf16.msra.mxu0 %v3792
  %5453 = vmatpush.bf16.msra.mxu0 %v3788
  %5454 = vmatmul.bf16.gmra.mxu0 %v903
  %v5455 = vpop.f32.mrf.mxu0
  %v5456 = vadd.f32 %v5443, %v5455
  %v5457 = vpop.f32.mrf.mxu0
  %5458 = vdwg.mxu0
  %5459 = vmatpush.bf16.msra.mxu0 %v3848
  %5460 = vmatpush.bf16.msra.mxu0 %v3844
  %5461 = vmatpush.bf16.msra.mxu0 %v3840
  %5462 = vmatpush.bf16.msra.mxu0 %v3836
  %5463 = vmatpush.bf16.msra.mxu0 %v3832
  %5464 = vmatpush.bf16.msra.mxu0 %v3828
  %5465 = vmatpush.bf16.msra.mxu0 %v3824
  %5466 = vmatpush.bf16.msra.mxu0 %v3820
  %5467 = vmatmul.bf16.gmra.mxu0 %v904
  %v5468 = vpop.f32.mrf.mxu0
  %v5469 = vadd.f32 %v5456, %v5468
  %v5470 = vpop.f32.mrf.mxu0
  %5471 = vdwg.mxu0
  %5472 = vmatpush.bf16.msra.mxu0 %v3880
  %5473 = vmatpush.bf16.msra.mxu0 %v3876
  %5474 = vmatpush.bf16.msra.mxu0 %v3872
  %5475 = vmatpush.bf16.msra.mxu0 %v3868
  %5476 = vmatpush.bf16.msra.mxu0 %v3864
  %5477 = vmatpush.bf16.msra.mxu0 %v3860
  %5478 = vmatpush.bf16.msra.mxu0 %v3856
  %5479 = vmatpush.bf16.msra.mxu0 %v3852
  %5480 = vmatmul.bf16.gmra.mxu0 %v905
  %v5481 = vpop.f32.mrf.mxu0
  %v5482 = vadd.f32 %v5469, %v5481
  %v5483 = vpop.f32.mrf.mxu0
  %5484 = vdwg.mxu0
  %5485 = vmatpush.bf16.msra.mxu0 %v3912
  %5486 = vmatpush.bf16.msra.mxu0 %v3908
  %5487 = vmatpush.bf16.msra.mxu0 %v3904
  %5488 = vmatpush.bf16.msra.mxu0 %v3900
  %5489 = vmatpush.bf16.msra.mxu0 %v3896
  %5490 = vmatpush.bf16.msra.mxu0 %v3892
  %5491 = vmatpush.bf16.msra.mxu0 %v3888
  %5492 = vmatpush.bf16.msra.mxu0 %v3884
  %5493 = vmatmul.bf16.gmra.mxu0 %v906
  %v5494 = vpop.f32.mrf.mxu0
  %v5495 = vadd.f32 %v5482, %v5494
  %v5496 = vpop.f32.mrf.mxu0
  %5497 = vdwg.mxu0
  %5498 = vmatpush.bf16.msra.mxu0 %v3944
  %5499 = vmatpush.bf16.msra.mxu0 %v3940
  %5500 = vmatpush.bf16.msra.mxu0 %v3936
  %5501 = vmatpush.bf16.msra.mxu0 %v3932
  %5502 = vmatpush.bf16.msra.mxu0 %v3928
  %5503 = vmatpush.bf16.msra.mxu0 %v3924
  %5504 = vmatpush.bf16.msra.mxu0 %v3920
  %5505 = vmatpush.bf16.msra.mxu0 %v3916
  %5506 = vmatmul.bf16.gmra.mxu0 %v907
  %v5507 = vpop.f32.mrf.mxu0
  %v5508 = vadd.f32 %v5495, %v5507
  %v5509 = vpop.f32.mrf.mxu0
  %5510 = vdwg.mxu0
  %5511 = vmatpush.bf16.msra.mxu0 %v3976
  %5512 = vmatpush.bf16.msra.mxu0 %v3972
  %5513 = vmatpush.bf16.msra.mxu0 %v3968
  %5514 = vmatpush.bf16.msra.mxu0 %v3964
  %5515 = vmatpush.bf16.msra.mxu0 %v3960
  %5516 = vmatpush.bf16.msra.mxu0 %v3956
  %5517 = vmatpush.bf16.msra.mxu0 %v3952
  %5518 = vmatpush.bf16.msra.mxu0 %v3948
  %5519 = vmatmul.bf16.gmra.mxu0 %v908
  %v5520 = vpop.f32.mrf.mxu0
  %v5521 = vadd.f32 %v5508, %v5520
  %v5522 = vpop.f32.mrf.mxu0
  %5523 = vdwg.mxu0
  %5524 = vmatpush.bf16.msra.mxu0 %v4008
  %5525 = vmatpush.bf16.msra.mxu0 %v4004
  %5526 = vmatpush.bf16.msra.mxu0 %v4000
  %5527 = vmatpush.bf16.msra.mxu0 %v3996
  %5528 = vmatpush.bf16.msra.mxu0 %v3992
  %5529 = vmatpush.bf16.msra.mxu0 %v3988
  %5530 = vmatpush.bf16.msra.mxu0 %v3984
  %5531 = vmatpush.bf16.msra.mxu0 %v3980
  %5532 = vmatmul.bf16.gmra.mxu0 %v909
  %v5533 = vpop.f32.mrf.mxu0
  %v5534 = vadd.f32 %v5521, %v5533
  %v5535 = vpop.f32.mrf.mxu0
  %5536 = vdwg.mxu0
  %5537 = vmatpush.bf16.msra.mxu0 %v4040
  %5538 = vmatpush.bf16.msra.mxu0 %v4036
  %5539 = vmatpush.bf16.msra.mxu0 %v4032
  %5540 = vmatpush.bf16.msra.mxu0 %v4028
  %5541 = vmatpush.bf16.msra.mxu0 %v4024
  %5542 = vmatpush.bf16.msra.mxu0 %v4020
  %5543 = vmatpush.bf16.msra.mxu0 %v4016
  %5544 = vmatpush.bf16.msra.mxu0 %v4012
  %5545 = vmatmul.bf16.gmra.mxu0 %v910
  %v5546 = vpop.f32.mrf.mxu0
  %v5547 = vadd.f32 %v5534, %v5546
  %v5548 = vpop.f32.mrf.mxu0
  %5549 = vdwg.mxu0
  %5550 = vmatpush.bf16.msra.mxu0 %v4072
  %5551 = vmatpush.bf16.msra.mxu0 %v4068
  %5552 = vmatpush.bf16.msra.mxu0 %v4064
  %5553 = vmatpush.bf16.msra.mxu0 %v4060
  %5554 = vmatpush.bf16.msra.mxu0 %v4056
  %5555 = vmatpush.bf16.msra.mxu0 %v4052
  %5556 = vmatpush.bf16.msra.mxu0 %v4048
  %5557 = vmatpush.bf16.msra.mxu0 %v4044
  %5558 = vmatmul.bf16.gmra.mxu0 %v911
  %v5559 = vpop.f32.mrf.mxu0
  %v5560 = vadd.f32 %v5547, %v5559
  %v5561 = vpop.f32.mrf.mxu0
  %5562 = vdwg.mxu0
  %5563 = vmatpush.bf16.msra.mxu0 %v4104
  %5564 = vmatpush.bf16.msra.mxu0 %v4100
  %5565 = vmatpush.bf16.msra.mxu0 %v4096
  %5566 = vmatpush.bf16.msra.mxu0 %v4092
  %5567 = vmatpush.bf16.msra.mxu0 %v4088
  %5568 = vmatpush.bf16.msra.mxu0 %v4084
  %5569 = vmatpush.bf16.msra.mxu0 %v4080
  %5570 = vmatpush.bf16.msra.mxu0 %v4076
  %5571 = vmatmul.bf16.gmra.mxu0 %v912
  %v5572 = vpop.f32.mrf.mxu0
  %v5573 = vadd.f32 %v5560, %v5572
  %v5574 = vpop.f32.mrf.mxu0
  %5575 = vdwg.mxu0
  %5576 = vmatpush.bf16.msra.mxu0 %v4136
  %5577 = vmatpush.bf16.msra.mxu0 %v4132
  %5578 = vmatpush.bf16.msra.mxu0 %v4128
  %5579 = vmatpush.bf16.msra.mxu0 %v4124
  %5580 = vmatpush.bf16.msra.mxu0 %v4120
  %5581 = vmatpush.bf16.msra.mxu0 %v4116
  %5582 = vmatpush.bf16.msra.mxu0 %v4112
  %5583 = vmatpush.bf16.msra.mxu0 %v4108
  %5584 = vmatmul.bf16.gmra.mxu0 %v913
  %v5585 = vpop.f32.mrf.mxu0
  %v5586 = vadd.f32 %v5573, %v5585
  %v5587 = vpop.f32.mrf.mxu0
  %5588 = vdwg.mxu0
  %5589 = vmatpush.bf16.msra.mxu0 %v3369
  %5590 = vmatpush.bf16.msra.mxu0 %v3365
  %5591 = vmatpush.bf16.msra.mxu0 %v3361
  %5592 = vmatpush.bf16.msra.mxu0 %v3357
  %5593 = vmatpush.bf16.msra.mxu0 %v3353
  %5594 = vmatpush.bf16.msra.mxu0 %v3349
  %5595 = vmatpush.bf16.msra.mxu0 %v3345
  %5596 = vmatpush.bf16.msra.mxu0 %v3341
  %5597 = vmatmul.bf16.gmra.mxu0 %v889
  %v5598 = vpop.f32.mrf.mxu0
  %v5599 = vadd.f32 %v845, %v5598
  %v5600 = vpop.f32.mrf.mxu0
  %5601 = vdwg.mxu0
  %5602 = vmatpush.bf16.msra.mxu0 %v3401
  %5603 = vmatpush.bf16.msra.mxu0 %v3397
  %5604 = vmatpush.bf16.msra.mxu0 %v3393
  %5605 = vmatpush.bf16.msra.mxu0 %v3389
  %5606 = vmatpush.bf16.msra.mxu0 %v3385
  %5607 = vmatpush.bf16.msra.mxu0 %v3381
  %5608 = vmatpush.bf16.msra.mxu0 %v3377
  %5609 = vmatpush.bf16.msra.mxu0 %v3373
  %5610 = vmatmul.bf16.gmra.mxu0 %v890
  %v5611 = vpop.f32.mrf.mxu0
  %v5612 = vadd.f32 %v5599, %v5611
  %v5613 = vpop.f32.mrf.mxu0
  %5614 = vdwg.mxu0
  %5615 = vmatpush.bf16.msra.mxu0 %v3433
  %5616 = vmatpush.bf16.msra.mxu0 %v3429
  %5617 = vmatpush.bf16.msra.mxu0 %v3425
  %5618 = vmatpush.bf16.msra.mxu0 %v3421
  %5619 = vmatpush.bf16.msra.mxu0 %v3417
  %5620 = vmatpush.bf16.msra.mxu0 %v3413
  %5621 = vmatpush.bf16.msra.mxu0 %v3409
  %5622 = vmatpush.bf16.msra.mxu0 %v3405
  %5623 = vmatmul.bf16.gmra.mxu0 %v891
  %v5624 = vpop.f32.mrf.mxu0
  %v5625 = vadd.f32 %v5612, %v5624
  %v5626 = vpop.f32.mrf.mxu0
  %5627 = vdwg.mxu0
  %5628 = vmatpush.bf16.msra.mxu0 %v3465
  %5629 = vmatpush.bf16.msra.mxu0 %v3461
  %5630 = vmatpush.bf16.msra.mxu0 %v3457
  %5631 = vmatpush.bf16.msra.mxu0 %v3453
  %5632 = vmatpush.bf16.msra.mxu0 %v3449
  %5633 = vmatpush.bf16.msra.mxu0 %v3445
  %5634 = vmatpush.bf16.msra.mxu0 %v3441
  %5635 = vmatpush.bf16.msra.mxu0 %v3437
  %5636 = vmatmul.bf16.gmra.mxu0 %v892
  %v5637 = vpop.f32.mrf.mxu0
  %v5638 = vadd.f32 %v5625, %v5637
  %v5639 = vpop.f32.mrf.mxu0
  %5640 = vdwg.mxu0
  %5641 = vmatpush.bf16.msra.mxu0 %v3497
  %5642 = vmatpush.bf16.msra.mxu0 %v3493
  %5643 = vmatpush.bf16.msra.mxu0 %v3489
  %5644 = vmatpush.bf16.msra.mxu0 %v3485
  %5645 = vmatpush.bf16.msra.mxu0 %v3481
  %5646 = vmatpush.bf16.msra.mxu0 %v3477
  %5647 = vmatpush.bf16.msra.mxu0 %v3473
  %5648 = vmatpush.bf16.msra.mxu0 %v3469
  %5649 = vmatmul.bf16.gmra.mxu0 %v893
  %v5650 = vpop.f32.mrf.mxu0
  %v5651 = vadd.f32 %v5638, %v5650
  %v5652 = vpop.f32.mrf.mxu0
  %5653 = vdwg.mxu0
  %5654 = vmatpush.bf16.msra.mxu0 %v3529
  %5655 = vmatpush.bf16.msra.mxu0 %v3525
  %5656 = vmatpush.bf16.msra.mxu0 %v3521
  %5657 = vmatpush.bf16.msra.mxu0 %v3517
  %5658 = vmatpush.bf16.msra.mxu0 %v3513
  %5659 = vmatpush.bf16.msra.mxu0 %v3509
  %5660 = vmatpush.bf16.msra.mxu0 %v3505
  %5661 = vmatpush.bf16.msra.mxu0 %v3501
  %5662 = vmatmul.bf16.gmra.mxu0 %v894
  %v5663 = vpop.f32.mrf.mxu0
  %v5664 = vadd.f32 %v5651, %v5663
  %v5665 = vpop.f32.mrf.mxu0
  %5666 = vdwg.mxu0
  %5667 = vmatpush.bf16.msra.mxu0 %v3561
  %5668 = vmatpush.bf16.msra.mxu0 %v3557
  %5669 = vmatpush.bf16.msra.mxu0 %v3553
  %5670 = vmatpush.bf16.msra.mxu0 %v3549
  %5671 = vmatpush.bf16.msra.mxu0 %v3545
  %5672 = vmatpush.bf16.msra.mxu0 %v3541
  %5673 = vmatpush.bf16.msra.mxu0 %v3537
  %5674 = vmatpush.bf16.msra.mxu0 %v3533
  %5675 = vmatmul.bf16.gmra.mxu0 %v895
  %v5676 = vpop.f32.mrf.mxu0
  %v5677 = vadd.f32 %v5664, %v5676
  %v5678 = vpop.f32.mrf.mxu0
  %5679 = vdwg.mxu0
  %5680 = vmatpush.bf16.msra.mxu0 %v3593
  %5681 = vmatpush.bf16.msra.mxu0 %v3589
  %5682 = vmatpush.bf16.msra.mxu0 %v3585
  %5683 = vmatpush.bf16.msra.mxu0 %v3581
  %5684 = vmatpush.bf16.msra.mxu0 %v3577
  %5685 = vmatpush.bf16.msra.mxu0 %v3573
  %5686 = vmatpush.bf16.msra.mxu0 %v3569
  %5687 = vmatpush.bf16.msra.mxu0 %v3565
  %5688 = vmatmul.bf16.gmra.mxu0 %v896
  %v5689 = vpop.f32.mrf.mxu0
  %v5690 = vadd.f32 %v5677, %v5689
  %v5691 = vpop.f32.mrf.mxu0
  %5692 = vdwg.mxu0
  %5693 = vmatpush.bf16.msra.mxu0 %v3625
  %5694 = vmatpush.bf16.msra.mxu0 %v3621
  %5695 = vmatpush.bf16.msra.mxu0 %v3617
  %5696 = vmatpush.bf16.msra.mxu0 %v3613
  %5697 = vmatpush.bf16.msra.mxu0 %v3609
  %5698 = vmatpush.bf16.msra.mxu0 %v3605
  %5699 = vmatpush.bf16.msra.mxu0 %v3601
  %5700 = vmatpush.bf16.msra.mxu0 %v3597
  %5701 = vmatmul.bf16.gmra.mxu0 %v897
  %v5702 = vpop.f32.mrf.mxu0
  %v5703 = vadd.f32 %v5690, %v5702
  %v5704 = vpop.f32.mrf.mxu0
  %5705 = vdwg.mxu0
  %5706 = vmatpush.bf16.msra.mxu0 %v3657
  %5707 = vmatpush.bf16.msra.mxu0 %v3653
  %5708 = vmatpush.bf16.msra.mxu0 %v3649
  %5709 = vmatpush.bf16.msra.mxu0 %v3645
  %5710 = vmatpush.bf16.msra.mxu0 %v3641
  %5711 = vmatpush.bf16.msra.mxu0 %v3637
  %5712 = vmatpush.bf16.msra.mxu0 %v3633
  %5713 = vmatpush.bf16.msra.mxu0 %v3629
  %5714 = vmatmul.bf16.gmra.mxu0 %v898
  %v5715 = vpop.f32.mrf.mxu0
  %v5716 = vadd.f32 %v5703, %v5715
  %v5717 = vpop.f32.mrf.mxu0
  %5718 = vdwg.mxu0
  %5719 = vmatpush.bf16.msra.mxu0 %v3689
  %5720 = vmatpush.bf16.msra.mxu0 %v3685
  %5721 = vmatpush.bf16.msra.mxu0 %v3681
  %5722 = vmatpush.bf16.msra.mxu0 %v3677
  %5723 = vmatpush.bf16.msra.mxu0 %v3673
  %5724 = vmatpush.bf16.msra.mxu0 %v3669
  %5725 = vmatpush.bf16.msra.mxu0 %v3665
  %5726 = vmatpush.bf16.msra.mxu0 %v3661
  %5727 = vmatmul.bf16.gmra.mxu0 %v899
  %v5728 = vpop.f32.mrf.mxu0
  %v5729 = vadd.f32 %v5716, %v5728
  %v5730 = vpop.f32.mrf.mxu0
  %5731 = vdwg.mxu0
  %5732 = vmatpush.bf16.msra.mxu0 %v3721
  %5733 = vmatpush.bf16.msra.mxu0 %v3717
  %5734 = vmatpush.bf16.msra.mxu0 %v3713
  %5735 = vmatpush.bf16.msra.mxu0 %v3709
  %5736 = vmatpush.bf16.msra.mxu0 %v3705
  %5737 = vmatpush.bf16.msra.mxu0 %v3701
  %5738 = vmatpush.bf16.msra.mxu0 %v3697
  %5739 = vmatpush.bf16.msra.mxu0 %v3693
  %5740 = vmatmul.bf16.gmra.mxu0 %v900
  %v5741 = vpop.f32.mrf.mxu0
  %v5742 = vadd.f32 %v5729, %v5741
  %v5743 = vpop.f32.mrf.mxu0
  %5744 = vdwg.mxu0
  %5745 = vmatpush.bf16.msra.mxu0 %v3753
  %5746 = vmatpush.bf16.msra.mxu0 %v3749
  %5747 = vmatpush.bf16.msra.mxu0 %v3745
  %5748 = vmatpush.bf16.msra.mxu0 %v3741
  %5749 = vmatpush.bf16.msra.mxu0 %v3737
  %5750 = vmatpush.bf16.msra.mxu0 %v3733
  %5751 = vmatpush.bf16.msra.mxu0 %v3729
  %5752 = vmatpush.bf16.msra.mxu0 %v3725
  %5753 = vmatmul.bf16.gmra.mxu0 %v901
  %v5754 = vpop.f32.mrf.mxu0
  %v5755 = vadd.f32 %v5742, %v5754
  %v5756 = vpop.f32.mrf.mxu0
  %5757 = vdwg.mxu0
  %5758 = vmatpush.bf16.msra.mxu0 %v3785
  %5759 = vmatpush.bf16.msra.mxu0 %v3781
  %5760 = vmatpush.bf16.msra.mxu0 %v3777
  %5761 = vmatpush.bf16.msra.mxu0 %v3773
  %5762 = vmatpush.bf16.msra.mxu0 %v3769
  %5763 = vmatpush.bf16.msra.mxu0 %v3765
  %5764 = vmatpush.bf16.msra.mxu0 %v3761
  %5765 = vmatpush.bf16.msra.mxu0 %v3757
  %5766 = vmatmul.bf16.gmra.mxu0 %v902
  %v5767 = vpop.f32.mrf.mxu0
  %v5768 = vadd.f32 %v5755, %v5767
  %v5769 = vpop.f32.mrf.mxu0
  %5770 = vdwg.mxu0
  %5771 = vmatpush.bf16.msra.mxu0 %v3817
  %5772 = vmatpush.bf16.msra.mxu0 %v3813
  %5773 = vmatpush.bf16.msra.mxu0 %v3809
  %5774 = vmatpush.bf16.msra.mxu0 %v3805
  %5775 = vmatpush.bf16.msra.mxu0 %v3801
  %5776 = vmatpush.bf16.msra.mxu0 %v3797
  %5777 = vmatpush.bf16.msra.mxu0 %v3793
  %5778 = vmatpush.bf16.msra.mxu0 %v3789
  %5779 = vmatmul.bf16.gmra.mxu0 %v903
  %v5780 = vpop.f32.mrf.mxu0
  %v5781 = vadd.f32 %v5768, %v5780
  %v5782 = vpop.f32.mrf.mxu0
  %5783 = vdwg.mxu0
  %5784 = vmatpush.bf16.msra.mxu0 %v3849
  %5785 = vmatpush.bf16.msra.mxu0 %v3845
  %5786 = vmatpush.bf16.msra.mxu0 %v3841
  %5787 = vmatpush.bf16.msra.mxu0 %v3837
  %5788 = vmatpush.bf16.msra.mxu0 %v3833
  %5789 = vmatpush.bf16.msra.mxu0 %v3829
  %5790 = vmatpush.bf16.msra.mxu0 %v3825
  %5791 = vmatpush.bf16.msra.mxu0 %v3821
  %5792 = vmatmul.bf16.gmra.mxu0 %v904
  %v5793 = vpop.f32.mrf.mxu0
  %v5794 = vadd.f32 %v5781, %v5793
  %v5795 = vpop.f32.mrf.mxu0
  %5796 = vdwg.mxu0
  %5797 = vmatpush.bf16.msra.mxu0 %v3881
  %5798 = vmatpush.bf16.msra.mxu0 %v3877
  %5799 = vmatpush.bf16.msra.mxu0 %v3873
  %5800 = vmatpush.bf16.msra.mxu0 %v3869
  %5801 = vmatpush.bf16.msra.mxu0 %v3865
  %5802 = vmatpush.bf16.msra.mxu0 %v3861
  %5803 = vmatpush.bf16.msra.mxu0 %v3857
  %5804 = vmatpush.bf16.msra.mxu0 %v3853
  %5805 = vmatmul.bf16.gmra.mxu0 %v905
  %v5806 = vpop.f32.mrf.mxu0
  %v5807 = vadd.f32 %v5794, %v5806
  %v5808 = vpop.f32.mrf.mxu0
  %5809 = vdwg.mxu0
  %5810 = vmatpush.bf16.msra.mxu0 %v3913
  %5811 = vmatpush.bf16.msra.mxu0 %v3909
  %5812 = vmatpush.bf16.msra.mxu0 %v3905
  %5813 = vmatpush.bf16.msra.mxu0 %v3901
  %5814 = vmatpush.bf16.msra.mxu0 %v3897
  %5815 = vmatpush.bf16.msra.mxu0 %v3893
  %5816 = vmatpush.bf16.msra.mxu0 %v3889
  %5817 = vmatpush.bf16.msra.mxu0 %v3885
  %5818 = vmatmul.bf16.gmra.mxu0 %v906
  %v5819 = vpop.f32.mrf.mxu0
  %v5820 = vadd.f32 %v5807, %v5819
  %v5821 = vpop.f32.mrf.mxu0
  %5822 = vdwg.mxu0
  %5823 = vmatpush.bf16.msra.mxu0 %v3945
  %5824 = vmatpush.bf16.msra.mxu0 %v3941
  %5825 = vmatpush.bf16.msra.mxu0 %v3937
  %5826 = vmatpush.bf16.msra.mxu0 %v3933
  %5827 = vmatpush.bf16.msra.mxu0 %v3929
  %5828 = vmatpush.bf16.msra.mxu0 %v3925
  %5829 = vmatpush.bf16.msra.mxu0 %v3921
  %5830 = vmatpush.bf16.msra.mxu0 %v3917
  %5831 = vmatmul.bf16.gmra.mxu0 %v907
  %v5832 = vpop.f32.mrf.mxu0
  %v5833 = vadd.f32 %v5820, %v5832
  %v5834 = vpop.f32.mrf.mxu0
  %5835 = vdwg.mxu0
  %5836 = vmatpush.bf16.msra.mxu0 %v3977
  %5837 = vmatpush.bf16.msra.mxu0 %v3973
  %5838 = vmatpush.bf16.msra.mxu0 %v3969
  %5839 = vmatpush.bf16.msra.mxu0 %v3965
  %5840 = vmatpush.bf16.msra.mxu0 %v3961
  %5841 = vmatpush.bf16.msra.mxu0 %v3957
  %5842 = vmatpush.bf16.msra.mxu0 %v3953
  %5843 = vmatpush.bf16.msra.mxu0 %v3949
  %5844 = vmatmul.bf16.gmra.mxu0 %v908
  %v5845 = vpop.f32.mrf.mxu0
  %v5846 = vadd.f32 %v5833, %v5845
  %v5847 = vpop.f32.mrf.mxu0
  %5848 = vdwg.mxu0
  %5849 = vmatpush.bf16.msra.mxu0 %v4009
  %5850 = vmatpush.bf16.msra.mxu0 %v4005
  %5851 = vmatpush.bf16.msra.mxu0 %v4001
  %5852 = vmatpush.bf16.msra.mxu0 %v3997
  %5853 = vmatpush.bf16.msra.mxu0 %v3993
  %5854 = vmatpush.bf16.msra.mxu0 %v3989
  %5855 = vmatpush.bf16.msra.mxu0 %v3985
  %5856 = vmatpush.bf16.msra.mxu0 %v3981
  %5857 = vmatmul.bf16.gmra.mxu0 %v909
  %v5858 = vpop.f32.mrf.mxu0
  %v5859 = vadd.f32 %v5846, %v5858
  %v5860 = vpop.f32.mrf.mxu0
  %5861 = vdwg.mxu0
  %5862 = vmatpush.bf16.msra.mxu0 %v4041
  %5863 = vmatpush.bf16.msra.mxu0 %v4037
  %5864 = vmatpush.bf16.msra.mxu0 %v4033
  %5865 = vmatpush.bf16.msra.mxu0 %v4029
  %5866 = vmatpush.bf16.msra.mxu0 %v4025
  %5867 = vmatpush.bf16.msra.mxu0 %v4021
  %5868 = vmatpush.bf16.msra.mxu0 %v4017
  %5869 = vmatpush.bf16.msra.mxu0 %v4013
  %5870 = vmatmul.bf16.gmra.mxu0 %v910
  %v5871 = vpop.f32.mrf.mxu0
  %v5872 = vadd.f32 %v5859, %v5871
  %v5873 = vpop.f32.mrf.mxu0
  %5874 = vdwg.mxu0
  %5875 = vmatpush.bf16.msra.mxu0 %v4073
  %5876 = vmatpush.bf16.msra.mxu0 %v4069
  %5877 = vmatpush.bf16.msra.mxu0 %v4065
  %5878 = vmatpush.bf16.msra.mxu0 %v4061
  %5879 = vmatpush.bf16.msra.mxu0 %v4057
  %5880 = vmatpush.bf16.msra.mxu0 %v4053
  %5881 = vmatpush.bf16.msra.mxu0 %v4049
  %5882 = vmatpush.bf16.msra.mxu0 %v4045
  %5883 = vmatmul.bf16.gmra.mxu0 %v911
  %v5884 = vpop.f32.mrf.mxu0
  %v5885 = vadd.f32 %v5872, %v5884
  %v5886 = vpop.f32.mrf.mxu0
  %5887 = vdwg.mxu0
  %5888 = vmatpush.bf16.msra.mxu0 %v4105
  %5889 = vmatpush.bf16.msra.mxu0 %v4101
  %5890 = vmatpush.bf16.msra.mxu0 %v4097
  %5891 = vmatpush.bf16.msra.mxu0 %v4093
  %5892 = vmatpush.bf16.msra.mxu0 %v4089
  %5893 = vmatpush.bf16.msra.mxu0 %v4085
  %5894 = vmatpush.bf16.msra.mxu0 %v4081
  %5895 = vmatpush.bf16.msra.mxu0 %v4077
  %5896 = vmatmul.bf16.gmra.mxu0 %v912
  %v5897 = vpop.f32.mrf.mxu0
  %v5898 = vadd.f32 %v5885, %v5897
  %v5899 = vpop.f32.mrf.mxu0
  %5900 = vdwg.mxu0
  %5901 = vmatpush.bf16.msra.mxu0 %v4137
  %5902 = vmatpush.bf16.msra.mxu0 %v4133
  %5903 = vmatpush.bf16.msra.mxu0 %v4129
  %5904 = vmatpush.bf16.msra.mxu0 %v4125
  %5905 = vmatpush.bf16.msra.mxu0 %v4121
  %5906 = vmatpush.bf16.msra.mxu0 %v4117
  %5907 = vmatpush.bf16.msra.mxu0 %v4113
  %5908 = vmatpush.bf16.msra.mxu0 %v4109
  %5909 = vmatmul.bf16.gmra.mxu0 %v913
  %v5910 = vpop.f32.mrf.mxu0
  %v5911 = vadd.f32 %v5898, %v5910
  %v5912 = vpop.f32.mrf.mxu0
  %5913 = vdwg.mxu0
  %5914 = vmatpush.bf16.msra.mxu0 %v3370
  %5915 = vmatpush.bf16.msra.mxu0 %v3366
  %5916 = vmatpush.bf16.msra.mxu0 %v3362
  %5917 = vmatpush.bf16.msra.mxu0 %v3358
  %5918 = vmatpush.bf16.msra.mxu0 %v3354
  %5919 = vmatpush.bf16.msra.mxu0 %v3350
  %5920 = vmatpush.bf16.msra.mxu0 %v3346
  %5921 = vmatpush.bf16.msra.mxu0 %v3342
  %5922 = vmatmul.bf16.gmra.mxu0 %v889
  %v5923 = vpop.f32.mrf.mxu0
  %v5924 = vadd.f32 %v846, %v5923
  %v5925 = vpop.f32.mrf.mxu0
  %5926 = vdwg.mxu0
  %5927 = vmatpush.bf16.msra.mxu0 %v3402
  %5928 = vmatpush.bf16.msra.mxu0 %v3398
  %5929 = vmatpush.bf16.msra.mxu0 %v3394
  %5930 = vmatpush.bf16.msra.mxu0 %v3390
  %5931 = vmatpush.bf16.msra.mxu0 %v3386
  %5932 = vmatpush.bf16.msra.mxu0 %v3382
  %5933 = vmatpush.bf16.msra.mxu0 %v3378
  %5934 = vmatpush.bf16.msra.mxu0 %v3374
  %5935 = vmatmul.bf16.gmra.mxu0 %v890
  %v5936 = vpop.f32.mrf.mxu0
  %v5937 = vadd.f32 %v5924, %v5936
  %v5938 = vpop.f32.mrf.mxu0
  %5939 = vdwg.mxu0
  %5940 = vmatpush.bf16.msra.mxu0 %v3434
  %5941 = vmatpush.bf16.msra.mxu0 %v3430
  %5942 = vmatpush.bf16.msra.mxu0 %v3426
  %5943 = vmatpush.bf16.msra.mxu0 %v3422
  %5944 = vmatpush.bf16.msra.mxu0 %v3418
  %5945 = vmatpush.bf16.msra.mxu0 %v3414
  %5946 = vmatpush.bf16.msra.mxu0 %v3410
  %5947 = vmatpush.bf16.msra.mxu0 %v3406
  %5948 = vmatmul.bf16.gmra.mxu0 %v891
  %v5949 = vpop.f32.mrf.mxu0
  %v5950 = vadd.f32 %v5937, %v5949
  %v5951 = vpop.f32.mrf.mxu0
  %5952 = vdwg.mxu0
  %5953 = vmatpush.bf16.msra.mxu0 %v3466
  %5954 = vmatpush.bf16.msra.mxu0 %v3462
  %5955 = vmatpush.bf16.msra.mxu0 %v3458
  %5956 = vmatpush.bf16.msra.mxu0 %v3454
  %5957 = vmatpush.bf16.msra.mxu0 %v3450
  %5958 = vmatpush.bf16.msra.mxu0 %v3446
  %5959 = vmatpush.bf16.msra.mxu0 %v3442
  %5960 = vmatpush.bf16.msra.mxu0 %v3438
  %5961 = vmatmul.bf16.gmra.mxu0 %v892
  %v5962 = vpop.f32.mrf.mxu0
  %v5963 = vadd.f32 %v5950, %v5962
  %v5964 = vpop.f32.mrf.mxu0
  %5965 = vdwg.mxu0
  %5966 = vmatpush.bf16.msra.mxu0 %v3498
  %5967 = vmatpush.bf16.msra.mxu0 %v3494
  %5968 = vmatpush.bf16.msra.mxu0 %v3490
  %5969 = vmatpush.bf16.msra.mxu0 %v3486
  %5970 = vmatpush.bf16.msra.mxu0 %v3482
  %5971 = vmatpush.bf16.msra.mxu0 %v3478
  %5972 = vmatpush.bf16.msra.mxu0 %v3474
  %5973 = vmatpush.bf16.msra.mxu0 %v3470
  %5974 = vmatmul.bf16.gmra.mxu0 %v893
  %v5975 = vpop.f32.mrf.mxu0
  %v5976 = vadd.f32 %v5963, %v5975
  %v5977 = vpop.f32.mrf.mxu0
  %5978 = vdwg.mxu0
  %5979 = vmatpush.bf16.msra.mxu0 %v3530
  %5980 = vmatpush.bf16.msra.mxu0 %v3526
  %5981 = vmatpush.bf16.msra.mxu0 %v3522
  %5982 = vmatpush.bf16.msra.mxu0 %v3518
  %5983 = vmatpush.bf16.msra.mxu0 %v3514
  %5984 = vmatpush.bf16.msra.mxu0 %v3510
  %5985 = vmatpush.bf16.msra.mxu0 %v3506
  %5986 = vmatpush.bf16.msra.mxu0 %v3502
  %5987 = vmatmul.bf16.gmra.mxu0 %v894
  %v5988 = vpop.f32.mrf.mxu0
  %v5989 = vadd.f32 %v5976, %v5988
  %v5990 = vpop.f32.mrf.mxu0
  %5991 = vdwg.mxu0
  %5992 = vmatpush.bf16.msra.mxu0 %v3562
  %5993 = vmatpush.bf16.msra.mxu0 %v3558
  %5994 = vmatpush.bf16.msra.mxu0 %v3554
  %5995 = vmatpush.bf16.msra.mxu0 %v3550
  %5996 = vmatpush.bf16.msra.mxu0 %v3546
  %5997 = vmatpush.bf16.msra.mxu0 %v3542
  %5998 = vmatpush.bf16.msra.mxu0 %v3538
  %5999 = vmatpush.bf16.msra.mxu0 %v3534
  %6000 = vmatmul.bf16.gmra.mxu0 %v895
  %v6001 = vpop.f32.mrf.mxu0
  %v6002 = vadd.f32 %v5989, %v6001
  %v6003 = vpop.f32.mrf.mxu0
  %6004 = vdwg.mxu0
  %6005 = vmatpush.bf16.msra.mxu0 %v3594
  %6006 = vmatpush.bf16.msra.mxu0 %v3590
  %6007 = vmatpush.bf16.msra.mxu0 %v3586
  %6008 = vmatpush.bf16.msra.mxu0 %v3582
  %6009 = vmatpush.bf16.msra.mxu0 %v3578
  %6010 = vmatpush.bf16.msra.mxu0 %v3574
  %6011 = vmatpush.bf16.msra.mxu0 %v3570
  %6012 = vmatpush.bf16.msra.mxu0 %v3566
  %6013 = vmatmul.bf16.gmra.mxu0 %v896
  %v6014 = vpop.f32.mrf.mxu0
  %v6015 = vadd.f32 %v6002, %v6014
  %v6016 = vpop.f32.mrf.mxu0
  %6017 = vdwg.mxu0
  %6018 = vmatpush.bf16.msra.mxu0 %v3626
  %6019 = vmatpush.bf16.msra.mxu0 %v3622
  %6020 = vmatpush.bf16.msra.mxu0 %v3618
  %6021 = vmatpush.bf16.msra.mxu0 %v3614
  %6022 = vmatpush.bf16.msra.mxu0 %v3610
  %6023 = vmatpush.bf16.msra.mxu0 %v3606
  %6024 = vmatpush.bf16.msra.mxu0 %v3602
  %6025 = vmatpush.bf16.msra.mxu0 %v3598
  %6026 = vmatmul.bf16.gmra.mxu0 %v897
  %v6027 = vpop.f32.mrf.mxu0
  %v6028 = vadd.f32 %v6015, %v6027
  %v6029 = vpop.f32.mrf.mxu0
  %6030 = vdwg.mxu0
  %6031 = vmatpush.bf16.msra.mxu0 %v3658
  %6032 = vmatpush.bf16.msra.mxu0 %v3654
  %6033 = vmatpush.bf16.msra.mxu0 %v3650
  %6034 = vmatpush.bf16.msra.mxu0 %v3646
  %6035 = vmatpush.bf16.msra.mxu0 %v3642
  %6036 = vmatpush.bf16.msra.mxu0 %v3638
  %6037 = vmatpush.bf16.msra.mxu0 %v3634
  %6038 = vmatpush.bf16.msra.mxu0 %v3630
  %6039 = vmatmul.bf16.gmra.mxu0 %v898
  %v6040 = vpop.f32.mrf.mxu0
  %v6041 = vadd.f32 %v6028, %v6040
  %v6042 = vpop.f32.mrf.mxu0
  %6043 = vdwg.mxu0
  %6044 = vmatpush.bf16.msra.mxu0 %v3690
  %6045 = vmatpush.bf16.msra.mxu0 %v3686
  %6046 = vmatpush.bf16.msra.mxu0 %v3682
  %6047 = vmatpush.bf16.msra.mxu0 %v3678
  %6048 = vmatpush.bf16.msra.mxu0 %v3674
  %6049 = vmatpush.bf16.msra.mxu0 %v3670
  %6050 = vmatpush.bf16.msra.mxu0 %v3666
  %6051 = vmatpush.bf16.msra.mxu0 %v3662
  %6052 = vmatmul.bf16.gmra.mxu0 %v899
  %v6053 = vpop.f32.mrf.mxu0
  %v6054 = vadd.f32 %v6041, %v6053
  %v6055 = vpop.f32.mrf.mxu0
  %6056 = vdwg.mxu0
  %6057 = vmatpush.bf16.msra.mxu0 %v3722
  %6058 = vmatpush.bf16.msra.mxu0 %v3718
  %6059 = vmatpush.bf16.msra.mxu0 %v3714
  %6060 = vmatpush.bf16.msra.mxu0 %v3710
  %6061 = vmatpush.bf16.msra.mxu0 %v3706
  %6062 = vmatpush.bf16.msra.mxu0 %v3702
  %6063 = vmatpush.bf16.msra.mxu0 %v3698
  %6064 = vmatpush.bf16.msra.mxu0 %v3694
  %6065 = vmatmul.bf16.gmra.mxu0 %v900
  %v6066 = vpop.f32.mrf.mxu0
  %v6067 = vadd.f32 %v6054, %v6066
  %v6068 = vpop.f32.mrf.mxu0
  %6069 = vdwg.mxu0
  %6070 = vmatpush.bf16.msra.mxu0 %v3754
  %6071 = vmatpush.bf16.msra.mxu0 %v3750
  %6072 = vmatpush.bf16.msra.mxu0 %v3746
  %6073 = vmatpush.bf16.msra.mxu0 %v3742
  %6074 = vmatpush.bf16.msra.mxu0 %v3738
  %6075 = vmatpush.bf16.msra.mxu0 %v3734
  %6076 = vmatpush.bf16.msra.mxu0 %v3730
  %6077 = vmatpush.bf16.msra.mxu0 %v3726
  %6078 = vmatmul.bf16.gmra.mxu0 %v901
  %v6079 = vpop.f32.mrf.mxu0
  %v6080 = vadd.f32 %v6067, %v6079
  %v6081 = vpop.f32.mrf.mxu0
  %6082 = vdwg.mxu0
  %6083 = vmatpush.bf16.msra.mxu0 %v3786
  %6084 = vmatpush.bf16.msra.mxu0 %v3782
  %6085 = vmatpush.bf16.msra.mxu0 %v3778
  %6086 = vmatpush.bf16.msra.mxu0 %v3774
  %6087 = vmatpush.bf16.msra.mxu0 %v3770
  %6088 = vmatpush.bf16.msra.mxu0 %v3766
  %6089 = vmatpush.bf16.msra.mxu0 %v3762
  %6090 = vmatpush.bf16.msra.mxu0 %v3758
  %6091 = vmatmul.bf16.gmra.mxu0 %v902
  %v6092 = vpop.f32.mrf.mxu0
  %v6093 = vadd.f32 %v6080, %v6092
  %v6094 = vpop.f32.mrf.mxu0
  %6095 = vdwg.mxu0
  %6096 = vmatpush.bf16.msra.mxu0 %v3818
  %6097 = vmatpush.bf16.msra.mxu0 %v3814
  %6098 = vmatpush.bf16.msra.mxu0 %v3810
  %6099 = vmatpush.bf16.msra.mxu0 %v3806
  %6100 = vmatpush.bf16.msra.mxu0 %v3802
  %6101 = vmatpush.bf16.msra.mxu0 %v3798
  %6102 = vmatpush.bf16.msra.mxu0 %v3794
  %6103 = vmatpush.bf16.msra.mxu0 %v3790
  %6104 = vmatmul.bf16.gmra.mxu0 %v903
  %v6105 = vpop.f32.mrf.mxu0
  %v6106 = vadd.f32 %v6093, %v6105
  %v6107 = vpop.f32.mrf.mxu0
  %6108 = vdwg.mxu0
  %6109 = vmatpush.bf16.msra.mxu0 %v3850
  %6110 = vmatpush.bf16.msra.mxu0 %v3846
  %6111 = vmatpush.bf16.msra.mxu0 %v3842
  %6112 = vmatpush.bf16.msra.mxu0 %v3838
  %6113 = vmatpush.bf16.msra.mxu0 %v3834
  %6114 = vmatpush.bf16.msra.mxu0 %v3830
  %6115 = vmatpush.bf16.msra.mxu0 %v3826
  %6116 = vmatpush.bf16.msra.mxu0 %v3822
  %6117 = vmatmul.bf16.gmra.mxu0 %v904
  %v6118 = vpop.f32.mrf.mxu0
  %v6119 = vadd.f32 %v6106, %v6118
  %v6120 = vpop.f32.mrf.mxu0
  %6121 = vdwg.mxu0
  %6122 = vmatpush.bf16.msra.mxu0 %v3882
  %6123 = vmatpush.bf16.msra.mxu0 %v3878
  %6124 = vmatpush.bf16.msra.mxu0 %v3874
  %6125 = vmatpush.bf16.msra.mxu0 %v3870
  %6126 = vmatpush.bf16.msra.mxu0 %v3866
  %6127 = vmatpush.bf16.msra.mxu0 %v3862
  %6128 = vmatpush.bf16.msra.mxu0 %v3858
  %6129 = vmatpush.bf16.msra.mxu0 %v3854
  %6130 = vmatmul.bf16.gmra.mxu0 %v905
  %v6131 = vpop.f32.mrf.mxu0
  %v6132 = vadd.f32 %v6119, %v6131
  %v6133 = vpop.f32.mrf.mxu0
  %6134 = vdwg.mxu0
  %6135 = vmatpush.bf16.msra.mxu0 %v3914
  %6136 = vmatpush.bf16.msra.mxu0 %v3910
  %6137 = vmatpush.bf16.msra.mxu0 %v3906
  %6138 = vmatpush.bf16.msra.mxu0 %v3902
  %6139 = vmatpush.bf16.msra.mxu0 %v3898
  %6140 = vmatpush.bf16.msra.mxu0 %v3894
  %6141 = vmatpush.bf16.msra.mxu0 %v3890
  %6142 = vmatpush.bf16.msra.mxu0 %v3886
  %6143 = vmatmul.bf16.gmra.mxu0 %v906
  %v6144 = vpop.f32.mrf.mxu0
  %v6145 = vadd.f32 %v6132, %v6144
  %v6146 = vpop.f32.mrf.mxu0
  %6147 = vdwg.mxu0
  %6148 = vmatpush.bf16.msra.mxu0 %v3946
  %6149 = vmatpush.bf16.msra.mxu0 %v3942
  %6150 = vmatpush.bf16.msra.mxu0 %v3938
  %6151 = vmatpush.bf16.msra.mxu0 %v3934
  %6152 = vmatpush.bf16.msra.mxu0 %v3930
  %6153 = vmatpush.bf16.msra.mxu0 %v3926
  %6154 = vmatpush.bf16.msra.mxu0 %v3922
  %6155 = vmatpush.bf16.msra.mxu0 %v3918
  %6156 = vmatmul.bf16.gmra.mxu0 %v907
  %v6157 = vpop.f32.mrf.mxu0
  %v6158 = vadd.f32 %v6145, %v6157
  %v6159 = vpop.f32.mrf.mxu0
  %6160 = vdwg.mxu0
  %6161 = vmatpush.bf16.msra.mxu0 %v3978
  %6162 = vmatpush.bf16.msra.mxu0 %v3974
  %6163 = vmatpush.bf16.msra.mxu0 %v3970
  %6164 = vmatpush.bf16.msra.mxu0 %v3966
  %6165 = vmatpush.bf16.msra.mxu0 %v3962
  %6166 = vmatpush.bf16.msra.mxu0 %v3958
  %6167 = vmatpush.bf16.msra.mxu0 %v3954
  %6168 = vmatpush.bf16.msra.mxu0 %v3950
  %6169 = vmatmul.bf16.gmra.mxu0 %v908
  %v6170 = vpop.f32.mrf.mxu0
  %v6171 = vadd.f32 %v6158, %v6170
  %v6172 = vpop.f32.mrf.mxu0
  %6173 = vdwg.mxu0
  %6174 = vmatpush.bf16.msra.mxu0 %v4010
  %6175 = vmatpush.bf16.msra.mxu0 %v4006
  %6176 = vmatpush.bf16.msra.mxu0 %v4002
  %6177 = vmatpush.bf16.msra.mxu0 %v3998
  %6178 = vmatpush.bf16.msra.mxu0 %v3994
  %6179 = vmatpush.bf16.msra.mxu0 %v3990
  %6180 = vmatpush.bf16.msra.mxu0 %v3986
  %6181 = vmatpush.bf16.msra.mxu0 %v3982
  %6182 = vmatmul.bf16.gmra.mxu0 %v909
  %v6183 = vpop.f32.mrf.mxu0
  %v6184 = vadd.f32 %v6171, %v6183
  %v6185 = vpop.f32.mrf.mxu0
  %6186 = vdwg.mxu0
  %6187 = vmatpush.bf16.msra.mxu0 %v4042
  %6188 = vmatpush.bf16.msra.mxu0 %v4038
  %6189 = vmatpush.bf16.msra.mxu0 %v4034
  %6190 = vmatpush.bf16.msra.mxu0 %v4030
  %6191 = vmatpush.bf16.msra.mxu0 %v4026
  %6192 = vmatpush.bf16.msra.mxu0 %v4022
  %6193 = vmatpush.bf16.msra.mxu0 %v4018
  %6194 = vmatpush.bf16.msra.mxu0 %v4014
  %6195 = vmatmul.bf16.gmra.mxu0 %v910
  %v6196 = vpop.f32.mrf.mxu0
  %v6197 = vadd.f32 %v6184, %v6196
  %v6198 = vpop.f32.mrf.mxu0
  %6199 = vdwg.mxu0
  %6200 = vmatpush.bf16.msra.mxu0 %v4074
  %6201 = vmatpush.bf16.msra.mxu0 %v4070
  %6202 = vmatpush.bf16.msra.mxu0 %v4066
  %6203 = vmatpush.bf16.msra.mxu0 %v4062
  %6204 = vmatpush.bf16.msra.mxu0 %v4058
  %6205 = vmatpush.bf16.msra.mxu0 %v4054
  %6206 = vmatpush.bf16.msra.mxu0 %v4050
  %6207 = vmatpush.bf16.msra.mxu0 %v4046
  %6208 = vmatmul.bf16.gmra.mxu0 %v911
  %v6209 = vpop.f32.mrf.mxu0
  %v6210 = vadd.f32 %v6197, %v6209
  %v6211 = vpop.f32.mrf.mxu0
  %6212 = vdwg.mxu0
  %6213 = vmatpush.bf16.msra.mxu0 %v4106
  %6214 = vmatpush.bf16.msra.mxu0 %v4102
  %6215 = vmatpush.bf16.msra.mxu0 %v4098
  %6216 = vmatpush.bf16.msra.mxu0 %v4094
  %6217 = vmatpush.bf16.msra.mxu0 %v4090
  %6218 = vmatpush.bf16.msra.mxu0 %v4086
  %6219 = vmatpush.bf16.msra.mxu0 %v4082
  %6220 = vmatpush.bf16.msra.mxu0 %v4078
  %6221 = vmatmul.bf16.gmra.mxu0 %v912
  %v6222 = vpop.f32.mrf.mxu0
  %v6223 = vadd.f32 %v6210, %v6222
  %v6224 = vpop.f32.mrf.mxu0
  %6225 = vdwg.mxu0
  %6226 = vmatpush.bf16.msra.mxu0 %v4138
  %6227 = vmatpush.bf16.msra.mxu0 %v4134
  %6228 = vmatpush.bf16.msra.mxu0 %v4130
  %6229 = vmatpush.bf16.msra.mxu0 %v4126
  %6230 = vmatpush.bf16.msra.mxu0 %v4122
  %6231 = vmatpush.bf16.msra.mxu0 %v4118
  %6232 = vmatpush.bf16.msra.mxu0 %v4114
  %6233 = vmatpush.bf16.msra.mxu0 %v4110
  %6234 = vmatmul.bf16.gmra.mxu0 %v913
  %v6235 = vpop.f32.mrf.mxu0
  %v6236 = vadd.f32 %v6223, %v6235
  %v6237 = vpop.f32.mrf.mxu0
  %6238 = vdwg.mxu0
  %v6239 = vmax.f32 %v5261, 0.0
  %v6240 = vmax.f32 %v5586, 0.0
  %v6241 = vmax.f32 %v5911, 0.0
  %v6242 = vmax.f32 %v6236, 0.0
  %v6243 = vpack.c.bf16 %v6239, %v6239
  %v6244 = vpack.c.bf16 %v6240, %v6240
  %v6245 = vpack.c.bf16 %v6241, %v6241
  %v6246 = vpack.c.bf16 %v6242, %v6242
  %v6247 = vld [vmem:[%s3] sm:$0xf]
  %v6248 = vld [vmem:[%s3 + $0x4] sm:$0xf]
  %v6249 = vld [vmem:[%s3 + $0x8] sm:$0xf]
  %v6250 = vld [vmem:[%s3 + $0xc] sm:$0xf]
  %v6251 = vld [vmem:[%s3 + $0x10] sm:$0xf]
  %v6252 = vld [vmem:[%s3 + $0x14] sm:$0xf]
  %v6253 = vld [vmem:[%s3 + $0x18] sm:$0xf]
  %v6254 = vld [vmem:[%s3 + $0x1c] sm:$0xf]
  %v6255 = vld [vmem:[%s3 + $0x20] sm:$0xf]
  %v6256 = vld [vmem:[%s3 + $0x24] sm:$0xf]
  %v6257 = vld [vmem:[%s3 + $0x28] sm:$0xf]
  %v6258 = vld [vmem:[%s3 + $0x2c] sm:$0xf]
  %v6259 = vld [vmem:[%s3 + $0x30] sm:$0xf]
  %v6260 = vld [vmem:[%s3 + $0x34] sm:$0xf]
  %v6261 = vld [vmem:[%s3 + $0x38] sm:$0xf]
  %v6262 = vld [vmem:[%s3 + $0x3c] sm:$0xf]
  %v6263 = vld [vmem:[%s3 + $0x40] sm:$0xf]
  %v6264 = vld [vmem:[%s3 + $0x44] sm:$0xf]
  %v6265 = vld [vmem:[%s3 + $0x48] sm:$0xf]
  %v6266 = vld [vmem:[%s3 + $0x4c] sm:$0xf]
  %v6267 = vld [vmem:[%s3 + $0x50] sm:$0xf]
  %v6268 = vld [vmem:[%s3 + $0x54] sm:$0xf]
  %v6269 = vld [vmem:[%s3 + $0x58] sm:$0xf]
  %v6270 = vld [vmem:[%s3 + $0x5c] sm:$0xf]
  %v6271 = vld [vmem:[%s3 + $0x60] sm:$0xf]
  %v6272 = vld [vmem:[%s3 + $0x64] sm:$0xf]
  %v6273 = vld [vmem:[%s3 + $0x68] sm:$0xf]
  %v6274 = vld [vmem:[%s3 + $0x6c] sm:$0xf]
  %v6275 = vld [vmem:[%s3 + $0x70] sm:$0xf]
  %v6276 = vld [vmem:[%s3 + $0x74] sm:$0xf]
  %v6277 = vld [vmem:[%s3 + $0x78] sm:$0xf]
  %v6278 = vld [vmem:[%s3 + $0x7c] sm:$0xf]
  %v6279 = vld [vmem:[%s3 + $0x80] sm:$0xf]
  %v6280 = vld [vmem:[%s3 + $0x84] sm:$0xf]
  %v6281 = vld [vmem:[%s3 + $0x88] sm:$0xf]
  %v6282 = vld [vmem:[%s3 + $0x8c] sm:$0xf]
  %v6283 = vld [vmem:[%s3 + $0x90] sm:$0xf]
  %v6284 = vld [vmem:[%s3 + $0x94] sm:$0xf]
  %v6285 = vld [vmem:[%s3 + $0x98] sm:$0xf]
  %v6286 = vld [vmem:[%s3 + $0x9c] sm:$0xf]
  %v6287 = vld [vmem:[%s3 + $0xa0] sm:$0xf]
  %v6288 = vld [vmem:[%s3 + $0xa4] sm:$0xf]
  %v6289 = vld [vmem:[%s3 + $0xa8] sm:$0xf]
  %v6290 = vld [vmem:[%s3 + $0xac] sm:$0xf]
  %v6291 = vld [vmem:[%s3 + $0xb0] sm:$0xf]
  %v6292 = vld [vmem:[%s3 + $0xb4] sm:$0xf]
  %v6293 = vld [vmem:[%s3 + $0xb8] sm:$0xf]
  %v6294 = vld [vmem:[%s3 + $0xbc] sm:$0xf]
  %v6295 = vld [vmem:[%s3 + $0xc0] sm:$0xf]
  %v6296 = vld [vmem:[%s3 + $0xc4] sm:$0xf]
  %v6297 = vld [vmem:[%s3 + $0xc8] sm:$0xf]
  %v6298 = vld [vmem:[%s3 + $0xcc] sm:$0xf]
  %v6299 = vld [vmem:[%s3 + $0xd0] sm:$0xf]
  %v6300 = vld [vmem:[%s3 + $0xd4] sm:$0xf]
  %v6301 = vld [vmem:[%s3 + $0xd8] sm:$0xf]
  %v6302 = vld [vmem:[%s3 + $0xdc] sm:$0xf]
  %v6303 = vld [vmem:[%s3 + $0xe0] sm:$0xf]
  %v6304 = vld [vmem:[%s3 + $0xe4] sm:$0xf]
  %v6305 = vld [vmem:[%s3 + $0xe8] sm:$0xf]
  %v6306 = vld [vmem:[%s3 + $0xec] sm:$0xf]
  %v6307 = vld [vmem:[%s3 + $0xf0] sm:$0xf]
  %v6308 = vld [vmem:[%s3 + $0xf4] sm:$0xf]
  %v6309 = vld [vmem:[%s3 + $0xf8] sm:$0xf]
  %v6310 = vld [vmem:[%s3 + $0xfc] sm:$0xf]
  %v6311 = vld [vmem:[%s4] sm:$0x1]
  %v6313 = vperm.slane %v6311, 0
  %v6379 = vunpack.c.l.b16 %v6247
  %v6380 = vunpack.c.l.b16 %v6248
  %v6381 = vunpack.c.l.b16 %v6249
  %v6382 = vunpack.c.l.b16 %v6250
  %v6383 = vunpack.c.l.b16 %v6251
  %v6384 = vunpack.c.l.b16 %v6252
  %v6385 = vunpack.c.l.b16 %v6253
  %v6386 = vunpack.c.l.b16 %v6254
  %v6387 = vunpack.c.l.b16 %v6255
  %v6388 = vunpack.c.l.b16 %v6256
  %v6389 = vunpack.c.l.b16 %v6257
  %v6390 = vunpack.c.l.b16 %v6258
  %v6391 = vunpack.c.l.b16 %v6259
  %v6392 = vunpack.c.l.b16 %v6260
  %v6393 = vunpack.c.l.b16 %v6261
  %v6394 = vunpack.c.l.b16 %v6262
  %v6395 = vunpack.c.l.b16 %v6263
  %v6396 = vunpack.c.l.b16 %v6264
  %v6397 = vunpack.c.l.b16 %v6265
  %v6398 = vunpack.c.l.b16 %v6266
  %v6399 = vunpack.c.l.b16 %v6267
  %v6400 = vunpack.c.l.b16 %v6268
  %v6401 = vunpack.c.l.b16 %v6269
  %v6402 = vunpack.c.l.b16 %v6270
  %v6403 = vunpack.c.l.b16 %v6271
  %v6404 = vunpack.c.l.b16 %v6272
  %v6405 = vunpack.c.l.b16 %v6273
  %v6406 = vunpack.c.l.b16 %v6274
  %v6407 = vunpack.c.l.b16 %v6275
  %v6408 = vunpack.c.l.b16 %v6276
  %v6409 = vunpack.c.l.b16 %v6277
  %v6410 = vunpack.c.l.b16 %v6278
  %v6411 = vunpack.c.l.b16 %v6279
  %v6412 = vunpack.c.l.b16 %v6280
  %v6413 = vunpack.c.l.b16 %v6281
  %v6414 = vunpack.c.l.b16 %v6282
  %v6415 = vunpack.c.l.b16 %v6283
  %v6416 = vunpack.c.l.b16 %v6284
  %v6417 = vunpack.c.l.b16 %v6285
  %v6418 = vunpack.c.l.b16 %v6286
  %v6419 = vunpack.c.l.b16 %v6287
  %v6420 = vunpack.c.l.b16 %v6288
  %v6421 = vunpack.c.l.b16 %v6289
  %v6422 = vunpack.c.l.b16 %v6290
  %v6423 = vunpack.c.l.b16 %v6291
  %v6424 = vunpack.c.l.b16 %v6292
  %v6425 = vunpack.c.l.b16 %v6293
  %v6426 = vunpack.c.l.b16 %v6294
  %v6427 = vunpack.c.l.b16 %v6295
  %v6428 = vunpack.c.l.b16 %v6296
  %v6429 = vunpack.c.l.b16 %v6297
  %v6430 = vunpack.c.l.b16 %v6298
  %v6431 = vunpack.c.l.b16 %v6299
  %v6432 = vunpack.c.l.b16 %v6300
  %v6433 = vunpack.c.l.b16 %v6301
  %v6434 = vunpack.c.l.b16 %v6302
  %v6435 = vunpack.c.l.b16 %v6303
  %v6436 = vunpack.c.l.b16 %v6304
  %v6437 = vunpack.c.l.b16 %v6305
  %v6438 = vunpack.c.l.b16 %v6306
  %v6439 = vunpack.c.l.b16 %v6307
  %v6440 = vunpack.c.l.b16 %v6308
  %v6441 = vunpack.c.l.b16 %v6309
  %v6442 = vunpack.c.l.b16 %v6310
  %v6443 = vpack.c.b16 %v6380, %v6379
  %v6444 = vpack.c.b16 %v6382, %v6381
  %v6445 = vpack.c.b16 %v6384, %v6383
  %v6446 = vpack.c.b16 %v6386, %v6385
  %v6447 = vpack.c.b16 %v6388, %v6387
  %v6448 = vpack.c.b16 %v6390, %v6389
  %v6449 = vpack.c.b16 %v6392, %v6391
  %v6450 = vpack.c.b16 %v6394, %v6393
  %v6451 = vpack.c.b16 %v6396, %v6395
  %v6452 = vpack.c.b16 %v6398, %v6397
  %v6453 = vpack.c.b16 %v6400, %v6399
  %v6454 = vpack.c.b16 %v6402, %v6401
  %v6455 = vpack.c.b16 %v6404, %v6403
  %v6456 = vpack.c.b16 %v6406, %v6405
  %v6457 = vpack.c.b16 %v6408, %v6407
  %v6458 = vpack.c.b16 %v6410, %v6409
  %v6459 = vpack.c.b16 %v6412, %v6411
  %v6460 = vpack.c.b16 %v6414, %v6413
  %v6461 = vpack.c.b16 %v6416, %v6415
  %v6462 = vpack.c.b16 %v6418, %v6417
  %v6463 = vpack.c.b16 %v6420, %v6419
  %v6464 = vpack.c.b16 %v6422, %v6421
  %v6465 = vpack.c.b16 %v6424, %v6423
  %v6466 = vpack.c.b16 %v6426, %v6425
  %v6467 = vpack.c.b16 %v6428, %v6427
  %v6468 = vpack.c.b16 %v6430, %v6429
  %v6469 = vpack.c.b16 %v6432, %v6431
  %v6470 = vpack.c.b16 %v6434, %v6433
  %v6471 = vpack.c.b16 %v6436, %v6435
  %v6472 = vpack.c.b16 %v6438, %v6437
  %v6473 = vpack.c.b16 %v6440, %v6439
  %v6474 = vpack.c.b16 %v6442, %v6441
  %6507 = vmatpush.bf16.msra.mxu0 %v6450
  %6508 = vmatpush.bf16.msra.mxu0 %v6449
  %6509 = vmatpush.bf16.msra.mxu0 %v6448
  %6510 = vmatpush.bf16.msra.mxu0 %v6447
  %6511 = vmatpush.bf16.msra.mxu0 %v6446
  %6512 = vmatpush.bf16.msra.mxu0 %v6445
  %6513 = vmatpush.bf16.msra.mxu0 %v6444
  %6514 = vmatpush.bf16.msra.mxu0 %v6443
  %6515 = vmatmul.bf16.gmra.mxu0 %v6243
  %v6516 = vpop.f32.mrf.mxu0
  %v6517 = vadd.f32 %v6313, %v6516
  %v6518 = vpop.f32.mrf.mxu0
  %6519 = vdwg.mxu0
  %6520 = vmatpush.bf16.msra.mxu0 %v6458
  %6521 = vmatpush.bf16.msra.mxu0 %v6457
  %6522 = vmatpush.bf16.msra.mxu0 %v6456
  %6523 = vmatpush.bf16.msra.mxu0 %v6455
  %6524 = vmatpush.bf16.msra.mxu0 %v6454
  %6525 = vmatpush.bf16.msra.mxu0 %v6453
  %6526 = vmatpush.bf16.msra.mxu0 %v6452
  %6527 = vmatpush.bf16.msra.mxu0 %v6451
  %6528 = vmatmul.bf16.gmra.mxu0 %v6244
  %v6529 = vpop.f32.mrf.mxu0
  %v6530 = vadd.f32 %v6517, %v6529
  %v6531 = vpop.f32.mrf.mxu0
  %6532 = vdwg.mxu0
  %6533 = vmatpush.bf16.msra.mxu0 %v6466
  %6534 = vmatpush.bf16.msra.mxu0 %v6465
  %6535 = vmatpush.bf16.msra.mxu0 %v6464
  %6536 = vmatpush.bf16.msra.mxu0 %v6463
  %6537 = vmatpush.bf16.msra.mxu0 %v6462
  %6538 = vmatpush.bf16.msra.mxu0 %v6461
  %6539 = vmatpush.bf16.msra.mxu0 %v6460
  %6540 = vmatpush.bf16.msra.mxu0 %v6459
  %6541 = vmatmul.bf16.gmra.mxu0 %v6245
  %v6542 = vpop.f32.mrf.mxu0
  %v6543 = vadd.f32 %v6530, %v6542
  %v6544 = vpop.f32.mrf.mxu0
  %6545 = vdwg.mxu0
  %6546 = vmatpush.bf16.msra.mxu0 %v6474
  %6547 = vmatpush.bf16.msra.mxu0 %v6473
  %6548 = vmatpush.bf16.msra.mxu0 %v6472
  %6549 = vmatpush.bf16.msra.mxu0 %v6471
  %6550 = vmatpush.bf16.msra.mxu0 %v6470
  %6551 = vmatpush.bf16.msra.mxu0 %v6469
  %6552 = vmatpush.bf16.msra.mxu0 %v6468
  %6553 = vmatpush.bf16.msra.mxu0 %v6467
  %6554 = vmatmul.bf16.gmra.mxu0 %v6246
  %v6555 = vpop.f32.mrf.mxu0
  %v6556 = vadd.f32 %v6543, %v6555
  %v6557 = vpop.f32.mrf.mxu0
  %6558 = vdwg.mxu0
  %v6559 = vmax.f32 %v6556, 0.0
  %v6560 = vld [vmem:[%s5] sm:$0x1]
  %v6562 = vperm.slane %v6560, 0
  %v6564 = vmul.f32 %v6559, %v6562
  %6565 = vadd.xlane.f32.xlu0 %v6564
  %v6566 = vpop.xlane.xlu0 %6565
  %v6567 = vld [vmem:[#allocation2] sm:$0x1]
  %v6569 = vperm.slane %v6567, 0
  %v6571 = vadd.f32 %v6566, %v6569
  %v6572 = vmax.f32 %v6571, -10.0
  %v6573 = vmin.f32 %v6572, 10.0
  %vm6574 = vcmask 7168
  %6575 = vst.msk [vmem:[%s7] sm:$0xff] %vm6574, %v6573
  // Predicated region
  $region30: #{classifier_atari_forward.7} parent=0 // pred_check
    _
  $region31: #{classifier_atari_forward.7} parent=0 // pred_check_branch
    %6577 = sbr.rel (0) target = $region33
  $region32: #{classifier_atari_forward.7} parent=0 // pred_region
    _
  $region33: #{classifier_atari_forward.7} parent=0 // pred_fallthru
    _
  // Predicated region
  $region34: #{classifier_atari_forward.7} parent=0 // pred_check
    _
  $region35: #{classifier_atari_forward.7} parent=0 // pred_check_branch
    %6579 = sbr.rel (0) target = $region37
  $region36: #{classifier_atari_forward.7} parent=0 // pred_region
    _
  $region37: #{classifier_atari_forward.7} parent=0 // pred_fallthru
    _

</llo_original>
